<compile_context>
chip_gen: v7x
topology: tpu7x:2x2x1
jax: 0.10.0
libtpu: 0.0.40
codegen_flags: <defaults>
</compile_context>

<pallas_src>
import functools

import jax
import jax.numpy as jnp
from jax.experimental import pallas as pl
from jax.experimental.pallas import tpu as pltpu

LANE = 128
LPAD = 8              # left column pad of the intermediate -> aligned stores
BN_EPS = 1e-5


def _ceil_to(x, m):
    return (x + m - 1) // m * m


def _vmem_limit_bytes():
    """Scoped-VMEM budget sized from the chip (v5e/v6e: 128 MiB, v7x: 64 MiB)."""
    try:
        cap = pltpu.get_tpu_info().vmem_capacity_bytes
    except Exception:                      # older jax / CPU trace fallback
        cap = 64 * 1024 * 1024
    return int(min(100 * 1024 * 1024, cap * 3 // 4))


VMEM_LIMIT_BYTES = _vmem_limit_bytes()


def fold_bn(gamma, beta, mean, var, eps=BN_EPS):
    scale = gamma / jnp.sqrt(var + eps)
    return scale, beta - mean * scale


def _pad_vec(v, cop):
    """(C,) fp32 vector -> (1, cop) lane-padded fp32."""
    return jnp.zeros((1, cop), jnp.float32).at[0, :v.shape[0]].set(v.astype(jnp.float32))


def _pick_row_tile(ho, wo):
    """Largest divisor of `ho` giving MXU M = th*wo of at least ~256 rows."""
    th = min(max(-(-256 // wo), 8), ho)
    while ho % th:
        th -= 1
    return th


# ----------------------------------------------------------------------------
# In-kernel helpers
# ----------------------------------------------------------------------------
def _conv3x3_acc(x_ref, w_ref, row0, *, stride, th, wo, col0=0):
    """fp32 (th*wo, Co) 3x3-conv partial sum for one output row tile.

    x_ref : (rows, col_groups, stride*Cin) padded input image resident in VMEM
            (`stride` adjacent columns pre-folded into the lane axis).
    w_ref : (3, 3*Cin, Co) per-dy taps with the 3 dx taps packed into K.

    One fat MXU matmul per kernel row dy (3 total), K = 3*Cin, accumulated into
    a local fp32 value (no VMEM scratch round trips).
    """
    cin = w_ref.shape[1] // 3
    acc = None
    for dy in range(3):
        slab = x_ref[pl.ds(stride * row0 + dy, stride * th), :, :]
        if stride > 1:
            # In-kernel row subsampling (keep every `stride`-th row).
            # TODO(synk): use a strided pl.ds(..., stride=stride) load once
            # strided major-dim loads are confirmed to lower; halves this vld.
            slab = slab.reshape(th, stride, slab.shape[1], slab.shape[2])[:, 0]
        # TODO(synk): the lane-axis concat of 3 shifted slices costs relayout
        # copies; a per-dx K=Cin matmul loop (or an im2col VMEM scratch) may be
        # cheaper on v5e/v6e -- measure before switching.
        xs = jnp.concatenate(
            [slab[:, col0 + dx // stride:col0 + dx // stride + wo,
                  (dx % stride) * cin:(dx % stride + 1) * cin]
             for dx in range(3)],
            axis=-1)
        part = jnp.dot(xs.reshape(th * wo, 3 * cin), w_ref[dy],
                       preferred_element_type=jnp.float32)
        acc = part if acc is None else acc + part
    return acc


def _conv1_bn_relu_kernel(x_ref, w_ref, scale_ref, shift_ref, o_ref,
                          *, stride, th, wo):
    """Fused conv3x3 (stride baked in) + folded BN + ReLU.

    The output block is the full, spatially pre-padded intermediate for one
    image (resident, revisited across row tiles): zero it once, then store the
    interior at a sublane-aligned column offset.  The untouched border rows /
    columns are the zero padding that conv2 reads, so no jnp.pad HBM pass.
    """
    i = pl.program_id(1)
    row0 = pl.multiple_of(i * th, th)

    @pl.when(i == 0)
    def _():
        o_ref[...] = jnp.zeros_like(o_ref)

    acc = _conv3x3_acc(x_ref, w_ref, row0, stride=stride, th=th, wo=wo)
    y = jnp.maximum(acc * scale_ref[...] + shift_ref[...], 0.0)
    o_ref[pl.ds(1 + row0, th), LPAD:LPAD + wo, :] = (
        y.reshape(th, wo, -1).astype(o_ref.dtype))


def _conv2_bn_add_relu_kernel(h_ref, w_ref, scale_ref, shift_ref, *rest,
                              th, wo, proj, stride_sc):
    """Fused conv3x3 (stride 1) + BN + shortcut add + ReLU for one row tile.

    proj=False: rest = (res_ref, o_ref)                 identity shortcut tile
    proj=True : rest = (xsc_ref, wsc_ref, ssc_ref, bsc_ref, o_ref); the
                1x1-conv+BN projection shortcut is computed in-kernel from the
                same padded input tensor that conv1 used.
    """
    if proj:
        xsc_ref, wsc_ref, ssc_ref, bsc_ref, o_ref = rest
    else:
        res_ref, o_ref = rest

    row0 = pl.multiple_of(pl.program_id(1) * th, th)
    y = _conv3x3_acc(h_ref, w_ref, row0, stride=1, th=th, wo=wo, col0=LPAD - 1)
    y = y * scale_ref[...] + shift_ref[...]

    if proj:
        cin = wsc_ref.shape[0]
        slab = xsc_ref[pl.ds(stride_sc * row0 + 1, stride_sc * th), :, :]
        if stride_sc > 1:
            slab = slab.reshape(th, stride_sc, slab.shape[1], slab.shape[2])[:, 0]
        c0, sub = 1 // stride_sc, 1 % stride_sc
        xs = slab[:, c0:c0 + wo, sub * cin:(sub + 1) * cin]
        res = jnp.dot(xs.reshape(th * wo, cin), wsc_ref[...],
                      preferred_element_type=jnp.float32)
        res = res * ssc_ref[...] + bsc_ref[...]
    else:
        res = res_ref[...].reshape(th * wo, -1).astype(jnp.float32)

    y = jnp.maximum(y + res, 0.0)
    o_ref[...] = y.reshape(th, wo, -1).astype(o_ref.dtype)


# ----------------------------------------------------------------------------
# Host-side data prep
# ----------------------------------------------------------------------------
def _prep_conv_input(x_nhwc, stride, ci_pad):
    """Zero-pad spatially by 1, pad channels to ci_pad (lane-dense), cast bf16,
    and fold `stride` adjacent columns into the lane axis (metadata-only
    reshape) so in-kernel column subsampling is a contiguous lane slice."""
    N, H, W, C = x_nhwc.shape
    assert (W + 2) % stride == 0
    xp = jnp.pad(x_nhwc.astype(jnp.bfloat16),
                 ((0, 0), (1, 1), (1, 1), (0, ci_pad - C)))
    return xp.reshape(N, H + 2, (W + 2) // stride, stride * ci_pad)


def _pack_w3x3(w_hwio, ci_pad, co_pad):
    """(3,3,Ci,Co) HWIO taps -> (3, 3*ci_pad, co_pad) bf16 with the 3 column
    taps packed into the contraction dim (no zero-weight quarter at stride 2)."""
    _, kw, Ci, Co = w_hwio.shape
    wp = jnp.zeros((3, 3 * ci_pad, co_pad), jnp.float32)
    for dx in range(kw):
        wp = wp.at[:, dx * ci_pad:dx * ci_pad + Ci, :Co].set(
            w_hwio[:, dx].astype(jnp.float32))
    return wp.astype(jnp.bfloat16)


# ----------------------------------------------------------------------------
# Residual block forward (Pallas)
# ----------------------------------------------------------------------------
@functools.partial(jax.jit, static_argnames=("stride",))
def residual_block_pallas(params, x_nchw, stride):
    N, Ci, H, W = x_nchw.shape
    Co = params["conv1_w"].shape[0]
    S = stride
    assert H % S == 0 and W % S == 0
    Ho, Wo = H // S, W // S
    assert Wo % 8 == 0          # keeps every reshape / store sublane-aligned
    Cip, Cop = _ceil_to(Ci, LANE), _ceil_to(Co, LANE)
    th = _pick_row_tile(Ho, Wo)
    grid = (N, Ho // th)

    x = jnp.transpose(x_nchw, (0, 2, 3, 1))                       # NCHW -> NHWC

    # ------------------------------------------------------------------ conv1
    x_k = _prep_conv_input(x, S, Cip)                             # (N,H+2,cgrps,S*Cip)
    cgrps, cs1 = x_k.shape[2], x_k.shape[3]

    w1 = jnp.transpose(params["conv1_w"], (2, 3, 1, 0))           # OIHW -> HWIO
    s1, b1 = fold_bn(params["bn1_g"], params["bn1_b"],
                     params["bn1_m"], params["bn1_v"])
    w1p = _pack_w3x3(w1, Cip, Cop)

    Wp = Wo + LPAD + 1                                            # padded width of h

    # TODO(synk): mark constant-index-map blocks (images / weights / vectors)
    # with pipeline_mode=pl.Buffered(1) to drop their unused second pipeline
    # buffer (matters on v7x's 64 MiB VMEM at real ResNet sizes).
    # TODO(synk): for very large images switch the resident image inputs to
    # memory_space=pl.ANY + manual halo DMA so per-step VMEM is bounded by the
    # row tile; for Co >= 256 add an output-channel grid axis (N-tile 256/128).
    cparams_a = pltpu.CompilerParams(
        dimension_semantics=("parallel", "arbitrary"),  # output revisited over rows
        vmem_limit_bytes=VMEM_LIMIT_BYTES)
    cost_a = pl.CostEstimate(
        flops=2 * N * Ho * Wo * 9 * Cip * Cop,
        transcendentals=0,
        bytes_accessed=int(2 * (x_k.size + w1p.size + N * (Ho + 2) * Wp * Cop)
                           + 8 * Cop))

    h = pl.pallas_call(
        functools.partial(_conv1_bn_relu_kernel, stride=S, th=th, wo=Wo),
        out_shape=jax.ShapeDtypeStruct((N, Ho + 2, Wp, Cop), jnp.bfloat16),
        grid=grid,
        in_specs=[
            # whole padded image resident per batch element (one DMA per n)
            pl.BlockSpec((None, H + 2, cgrps, cs1), lambda n, i: (n, 0, 0, 0)),
            pl.BlockSpec((3, 3 * Cip, Cop), lambda n, i: (0, 0, 0)),
            pl.BlockSpec((1, Cop), lambda n, i: (0, 0)),
            pl.BlockSpec((1, Cop), lambda n, i: (0, 0)),
        ],
        # resident, spatially pre-padded intermediate (revisited along rows)
        out_specs=pl.BlockSpec((None, Ho + 2, Wp, Cop), lambda n, i: (n, 0, 0, 0)),
        compiler_params=cparams_a,
        cost_estimate=cost_a,
    )(x_k, w1p, _pad_vec(s1, Cop), _pad_vec(b1, Cop))

    # -------------------------------------------- conv2 (+ fused shortcut) ---
    w2 = jnp.transpose(params["conv2_w"], (2, 3, 1, 0))
    s2, b2 = fold_bn(params["bn2_g"], params["bn2_b"],
                     params["bn2_m"], params["bn2_v"])
    w2p = _pack_w3x3(w2, Cop, Cop)

    proj = "convs_w" in params
    in_specs = [
        pl.BlockSpec((None, Ho + 2, Wp, Cop), lambda n, i: (n, 0, 0, 0)),
        pl.BlockSpec((3, 3 * Cop, Cop), lambda n, i: (0, 0, 0)),
        pl.BlockSpec((1, Cop), lambda n, i: (0, 0)),
        pl.BlockSpec((1, Cop), lambda n, i: (0, 0)),
    ]
    args = [h, w2p, _pad_vec(s2, Cop), _pad_vec(b2, Cop)]
    flops_b = 2 * N * Ho * Wo * 9 * Cop * Cop
    bytes_b = 2 * (h.size + w2p.size + N * Ho * Wo * Cop) + 8 * Cop

    if proj:
        ws = params["convs_w"][:, :, 0, 0].T                      # (Ci, Co)
        wsp = (jnp.zeros((Cip, Cop), jnp.float32)
               .at[:Ci, :Co].set(ws.astype(jnp.float32)).astype(jnp.bfloat16))
        ss, bs = fold_bn(params["bns_g"], params["bns_b"],
                         params["bns_m"], params["bns_v"])
        in_specs += [
            pl.BlockSpec((None, H + 2, cgrps, cs1), lambda n, i: (n, 0, 0, 0)),
            pl.BlockSpec((Cip, Cop), lambda n, i: (0, 0)),
            pl.BlockSpec((1, Cop), lambda n, i: (0, 0)),
            pl.BlockSpec((1, Cop), lambda n, i: (0, 0)),
        ]
        args += [x_k, wsp, _pad_vec(ss, Cop), _pad_vec(bs, Cop)]
        flops_b += 2 * N * Ho * Wo * Cip * Cop
        bytes_b += 2 * (x_k.size + wsp.size) + 8 * Cop
    else:
        res = jnp.pad(x.astype(jnp.bfloat16),
                      ((0, 0), (0, 0), (0, 0), (0, Cop - Ci)))
        in_specs.append(pl.BlockSpec((None, th, Wo, Cop), lambda n, i: (n, i, 0, 0)))
        args.append(res)
        bytes_b += 2 * res.size

    cparams_b = pltpu.CompilerParams(
        dimension_semantics=("parallel", "parallel"),
        vmem_limit_bytes=VMEM_LIMIT_BYTES)

    out2 = pl.pallas_call(
        functools.partial(_conv2_bn_add_relu_kernel, th=th, wo=Wo,
                          proj=proj, stride_sc=S),
        out_shape=jax.ShapeDtypeStruct((N, Ho, Wo, Cop), jnp.bfloat16),
        grid=grid,
        in_specs=in_specs,
        out_specs=pl.BlockSpec((None, th, Wo, Cop), lambda n, i: (n, i, 0, 0)),
        compiler_params=cparams_b,
        cost_estimate=pl.CostEstimate(flops=int(flops_b), transcendentals=0,
                                      bytes_accessed=int(bytes_b)),
    )(*args)

    # Interface plumbing back to the PyTorch-style NCHW fp32 layout.
    # TODO(synk): when chaining residual blocks, keep activations in padded
    # NHWC bf16 and skip this de-pad / cast / transpose (a full strided HBM pass).
    out = out2[:, :, :, :Co].astype(jnp.float32)
    return jnp.transpose(out, (0, 3, 1, 2))                       # NHWC -> NCHW


# ----------------------------------------------------------------------------
# Parameter init (deterministic, synthetic) and pure-JAX reference
# ----------------------------------------------------------------------------
def init_params(key, in_channels, out_channels, stride):
    ks = jax.random.split(key, 12)
    p = {
        "conv1_w": 0.1 * jax.random.normal(ks[0], (out_channels, in_channels, 3, 3), jnp.float32),
        "bn1_g": 1.0 + 0.1 * jax.random.normal(ks[1], (out_channels,), jnp.float32),
        "bn1_b": 0.1 * jax.random.normal(ks[2], (out_channels,), jnp.float32),
        "bn1_m": 0.1 * jax.random.normal(ks[3], (out_channels,), jnp.float32),
        "bn1_v": jnp.abs(jax.random.normal(ks[4], (out_channels,), jnp.float32)) + 0.5,
        "conv2_w": 0.1 * jax.random.normal(ks[5], (out_channels, out_channels, 3, 3), jnp.float32),
        "bn2_g": 1.0 + 0.1 * jax.random.normal(ks[6], (out_channels,), jnp.float32),
        "bn2_b": 0.1 * jax.random.normal(ks[7], (out_channels,), jnp.float32),
        "bn2_m": 0.1 * jax.random.normal(ks[8], (out_channels,), jnp.float32),
        "bn2_v": jnp.abs(jax.random.normal(ks[9], (out_channels,), jnp.float32)) + 0.5,
    }
    if stride != 1 or in_channels != out_channels:
        p["convs_w"] = 0.1 * jax.random.normal(ks[10], (out_channels, in_channels, 1, 1), jnp.float32)
        ks2 = jax.random.split(ks[11], 4)
        p["bns_g"] = 1.0 + 0.1 * jax.random.normal(ks2[0], (out_channels,), jnp.float32)
        p["bns_b"] = 0.1 * jax.random.normal(ks2[1], (out_channels,), jnp.float32)
        p["bns_m"] = 0.1 * jax.random.normal(ks2[2], (out_channels,), jnp.float32)
        p["bns_v"] = jnp.abs(jax.random.normal(ks2[3], (out_channels,), jnp.float32)) + 0.5
    return p


def residual_block_reference(params, x_nchw, stride):
    """Pure-JAX reference (eval-mode BN) for correctness checking."""
    def conv(x, w, s, pad):
        return jax.lax.conv_general_dilated(
            x, w, (s, s), [(pad, pad), (pad, pad)],
            dimension_numbers=("NCHW", "OIHW", "NCHW"))

    def bn(x, g, b, m, v):
        g, b, m, v = [a[None, :, None, None] for a in (g, b, m, v)]
        return (x - m) / jnp.sqrt(v + BN_EPS) * g + b

    out = jax.nn.relu(bn(conv(x_nchw, params["conv1_w"], stride, 1),
                         params["bn1_g"], params["bn1_b"], params["bn1_m"], params["bn1_v"]))
    out = bn(conv(out, params["conv2_w"], 1, 1),
             params["bn2_g"], params["bn2_b"], params["bn2_m"], params["bn2_v"])
    if "convs_w" in params:
        sc = bn(conv(x_nchw, params["convs_w"], stride, 0),
                params["bns_g"], params["bns_b"], params["bns_m"], params["bns_v"])
    else:
        sc = x_nchw
    return jax.nn.relu(out + sc)


if __name__ == "__main__":
    key = jax.random.PRNGKey(0)

    configs = [
        # (N, Ci, Co, H,  W,  stride)
        (2, 4, 8, 16, 16, 1),   # projection shortcut (channel change)
        (2, 4, 8, 32, 32, 2),   # projection shortcut + in-kernel stride-2
        (2, 8, 8, 16, 16, 1),   # identity shortcut
    ]
    for idx, (N, Ci, Co, H, W, stride) in enumerate(configs):
        kx, kp = jax.random.split(jax.random.fold_in(key, idx))
        x = jax.random.normal(kx, (N, Ci, H, W), jnp.float32)      # NCHW, like PyTorch
        params = init_params(kp, Ci, Co, stride)

        out = jax.block_until_ready(residual_block_pallas(params, x, stride=stride))
        ref = residual_block_reference(params, x, stride)
        assert out.shape == ref.shape == (N, Co, H // stride, W // stride)
        err = jnp.max(jnp.abs(out - ref))
        # bf16 activations / intermediate -> ~1e-2-level deviation vs fp32 ref.
        assert jnp.allclose(out, ref, rtol=5e-2, atol=5e-2), \
            f"config {idx}: max abs err = {err}"

    print("KERNEL_OK")
</pallas_src>

<mosaic_0001>
module attributes {stable_mosaic.version = 11 : i64} {
  func.func @_conv1_bn_relu_kernel(%arg0: i32, %arg1: i32, %arg2: memref<1x18x18x128xbf16, #tpu.memory_space<vmem>>, %arg3: memref<3x384x128xbf16, #tpu.memory_space<vmem>>, %arg4: memref<1x128xf32, #tpu.memory_space<vmem>>, %arg5: memref<1x128xf32, #tpu.memory_space<vmem>>, %arg6: memref<1x18x25x128xbf16, #tpu.memory_space<vmem>>) attributes {dimension_semantics = [#tpu.dimension_semantics<parallel>, #tpu.dimension_semantics<arbitrary>], iteration_bounds = array<i64: 2, 1>, scalar_prefetch = 0 : i64, scratch_operands = 0 : i64, tpu.core_type = #tpu.core_type<tc>, window_params = [{transform_indices = @transform_0, window_bounds = array<i64: 1, 18, 18, 128>}, {pipeline_mode = #tpu.pipeline_mode<synchronous>, transform_indices = @transform_1, window_bounds = array<i64: 3, 384, 128>}, {pipeline_mode = #tpu.pipeline_mode<synchronous>, transform_indices = @transform_2, window_bounds = array<i64: 1, 128>}, {pipeline_mode = #tpu.pipeline_mode<synchronous>, transform_indices = @transform_3, window_bounds = array<i64: 1, 128>}, {transform_indices = @transform_4, window_bounds = array<i64: 1, 18, 25, 128>}]} {
    %c16_i32 = arith.constant 16 : i32
    %0 = arith.muli %arg1, %c16_i32 : i32
    %1 = tpu.assume_multiple %0, 16 : i32
    %c0_i32 = arith.constant 0 : i32
    %2 = arith.cmpi eq, %arg1, %c0_i32 : i32
    %3 = arith.extui %2 : i1 to i32
    %c0_i32_0 = arith.constant 0 : i32
    %4 = arith.cmpi ne, %3, %c0_i32_0 : i32
    scf.if %4 {
      %cst_30 = arith.constant 0.000000e+00 : bf16
      %61 = vector.broadcast %cst_30 : bf16 to vector<18x25x128xbf16>
      %c0_31 = arith.constant 0 : index
      %c0_32 = arith.constant 0 : index
      %c0_33 = arith.constant 0 : index
      %c0_34 = arith.constant 0 : index
      %62 = vector.load %arg6[%c0_31, %c0_32, %c0_33, %c0_34] : memref<1x18x25x128xbf16, #tpu.memory_space<vmem>>, vector<1x18x25x128xbf16>
      %63 = vector.shape_cast %62 : vector<1x18x25x128xbf16> to vector<18x25x128xbf16>
      %64 = vector.shape_cast %61 : vector<18x25x128xbf16> to vector<1x18x25x128xbf16>
      tpu.vector_store %arg6[%c0_31, %c0_32, %c0_33, %c0_34], %64 {strides = array<i32>} : memref<1x18x25x128xbf16, #tpu.memory_space<vmem>>, vector<1x18x25x128xbf16>,
    } else {
    }
    %c1_i32 = arith.constant 1 : i32
    %5 = arith.muli %c1_i32, %1 : i32
    %c0_i32_1 = arith.constant 0 : i32
    %6 = arith.addi %5, %c0_i32_1 : i32
    %c0 = arith.constant 0 : index
    %7 = arith.index_cast %6 : i32 to index
    %c0_2 = arith.constant 0 : index
    %c0_3 = arith.constant 0 : index
    %8 = vector.load %arg2[%c0, %7, %c0_2, %c0_3] : memref<1x18x18x128xbf16, #tpu.memory_space<vmem>>, vector<1x16x18x128xbf16>
    %9 = vector.shape_cast %8 : vector<1x16x18x128xbf16> to vector<16x18x128xbf16>
    %10 = vector.extract_strided_slice %9 {offsets = [0, 0, 0], sizes = [16, 16, 128], strides = [1, 1, 1]} : vector<16x18x128xbf16> to vector<16x16x128xbf16>
    %11 = vector.extract_strided_slice %9 {offsets = [0, 1, 0], sizes = [16, 16, 128], strides = [1, 1, 1]} : vector<16x18x128xbf16> to vector<16x16x128xbf16>
    %12 = vector.extract_strided_slice %9 {offsets = [0, 2, 0], sizes = [16, 16, 128], strides = [1, 1, 1]} : vector<16x18x128xbf16> to vector<16x16x128xbf16>
    %13 = tpu.concatenate %10, %11, %12 in 2 : vector<16x16x128xbf16>, vector<16x16x128xbf16>, vector<16x16x128xbf16> -> vector<16x16x384xbf16>
    %14 = vector.shape_cast %13 : vector<16x16x384xbf16> to vector<256x384xbf16>
    %c0_4 = arith.constant 0 : index
    %c0_5 = arith.constant 0 : index
    %c0_6 = arith.constant 0 : index
    %15 = vector.load %arg3[%c0_4, %c0_5, %c0_6] : memref<3x384x128xbf16, #tpu.memory_space<vmem>>, vector<1x384x128xbf16>
    %16 = vector.shape_cast %15 : vector<1x384x128xbf16> to vector<384x128xbf16>
    %cst = arith.constant dense<0.000000e+00> : vector<256x128xf32>
    %17 = tpu.matmul %14, %16, %cst {dimension_numbers = #tpu.dot_dimension_numbers<[1], [0], [0], [1], [0, 0, 1, 1], [], []>} : vector<256x384xbf16>, vector<384x128xbf16>, vector<256x128xf32> -> vector<256x128xf32>
    %c1_i32_7 = arith.constant 1 : i32
    %18 = arith.muli %c1_i32_7, %1 : i32
    %c1_i32_8 = arith.constant 1 : i32
    %19 = arith.addi %18, %c1_i32_8 : i32
    %c0_9 = arith.constant 0 : index
    %20 = arith.index_cast %19 : i32 to index
    %c0_10 = arith.constant 0 : index
    %c0_11 = arith.constant 0 : index
    %21 = vector.load %arg2[%c0_9, %20, %c0_10, %c0_11] : memref<1x18x18x128xbf16, #tpu.memory_space<vmem>>, vector<1x16x18x128xbf16>
    %22 = vector.shape_cast %21 : vector<1x16x18x128xbf16> to vector<16x18x128xbf16>
    %23 = vector.extract_strided_slice %22 {offsets = [0, 0, 0], sizes = [16, 16, 128], strides = [1, 1, 1]} : vector<16x18x128xbf16> to vector<16x16x128xbf16>
    %24 = vector.extract_strided_slice %22 {offsets = [0, 1, 0], sizes = [16, 16, 128], strides = [1, 1, 1]} : vector<16x18x128xbf16> to vector<16x16x128xbf16>
    %25 = vector.extract_strided_slice %22 {offsets = [0, 2, 0], sizes = [16, 16, 128], strides = [1, 1, 1]} : vector<16x18x128xbf16> to vector<16x16x128xbf16>
    %26 = tpu.concatenate %23, %24, %25 in 2 : vector<16x16x128xbf16>, vector<16x16x128xbf16>, vector<16x16x128xbf16> -> vector<16x16x384xbf16>
    %27 = vector.shape_cast %26 : vector<16x16x384xbf16> to vector<256x384xbf16>
    %c1 = arith.constant 1 : index
    %c0_12 = arith.constant 0 : index
    %c0_13 = arith.constant 0 : index
    %28 = vector.load %arg3[%c1, %c0_12, %c0_13] : memref<3x384x128xbf16, #tpu.memory_space<vmem>>, vector<1x384x128xbf16>
    %29 = vector.shape_cast %28 : vector<1x384x128xbf16> to vector<384x128xbf16>
    %cst_14 = arith.constant dense<0.000000e+00> : vector<256x128xf32>
    %30 = tpu.matmul %27, %29, %cst_14 {dimension_numbers = #tpu.dot_dimension_numbers<[1], [0], [0], [1], [0, 0, 1, 1], [], []>} : vector<256x384xbf16>, vector<384x128xbf16>, vector<256x128xf32> -> vector<256x128xf32>
    %31 = arith.addf %17, %30 : vector<256x128xf32>
    %c1_i32_15 = arith.constant 1 : i32
    %32 = arith.muli %c1_i32_15, %1 : i32
    %c2_i32 = arith.constant 2 : i32
    %33 = arith.addi %32, %c2_i32 : i32
    %c0_16 = arith.constant 0 : index
    %34 = arith.index_cast %33 : i32 to index
    %c0_17 = arith.constant 0 : index
    %c0_18 = arith.constant 0 : index
    %35 = vector.load %arg2[%c0_16, %34, %c0_17, %c0_18] : memref<1x18x18x128xbf16, #tpu.memory_space<vmem>>, vector<1x16x18x128xbf16>
    %36 = vector.shape_cast %35 : vector<1x16x18x128xbf16> to vector<16x18x128xbf16>
    %37 = vector.extract_strided_slice %36 {offsets = [0, 0, 0], sizes = [16, 16, 128], strides = [1, 1, 1]} : vector<16x18x128xbf16> to vector<16x16x128xbf16>
    %38 = vector.extract_strided_slice %36 {offsets = [0, 1, 0], sizes = [16, 16, 128], strides = [1, 1, 1]} : vector<16x18x128xbf16> to vector<16x16x128xbf16>
    %39 = vector.extract_strided_slice %36 {offsets = [0, 2, 0], sizes = [16, 16, 128], strides = [1, 1, 1]} : vector<16x18x128xbf16> to vector<16x16x128xbf16>
    %40 = tpu.concatenate %37, %38, %39 in 2 : vector<16x16x128xbf16>, vector<16x16x128xbf16>, vector<16x16x128xbf16> -> vector<16x16x384xbf16>
    %41 = vector.shape_cast %40 : vector<16x16x384xbf16> to vector<256x384xbf16>
    %c2 = arith.constant 2 : index
    %c0_19 = arith.constant 0 : index
    %c0_20 = arith.constant 0 : index
    %42 = vector.load %arg3[%c2, %c0_19, %c0_20] : memref<3x384x128xbf16, #tpu.memory_space<vmem>>, vector<1x384x128xbf16>
    %43 = vector.shape_cast %42 : vector<1x384x128xbf16> to vector<384x128xbf16>
    %cst_21 = arith.constant dense<0.000000e+00> : vector<256x128xf32>
    %44 = tpu.matmul %41, %43, %cst_21 {dimension_numbers = #tpu.dot_dimension_numbers<[1], [0], [0], [1], [0, 0, 1, 1], [], []>} : vector<256x384xbf16>, vector<384x128xbf16>, vector<256x128xf32> -> vector<256x128xf32>
    %45 = arith.addf %31, %44 : vector<256x128xf32>
    %c0_22 = arith.constant 0 : index
    %c0_23 = arith.constant 0 : index
    %46 = vector.load %arg4[%c0_22, %c0_23] : memref<1x128xf32, #tpu.memory_space<vmem>>, vector<1x128xf32>
    %47 = vector.broadcast %46 : vector<1x128xf32> to vector<256x128xf32>
    %48 = arith.mulf %45, %47 : vector<256x128xf32>
    %c0_24 = arith.constant 0 : index
    %c0_25 = arith.constant 0 : index
    %49 = vector.load %arg5[%c0_24, %c0_25] : memref<1x128xf32, #tpu.memory_space<vmem>>, vector<1x128xf32>
    %50 = vector.broadcast %49 : vector<1x128xf32> to vector<256x128xf32>
    %51 = arith.addf %48, %50 : vector<256x128xf32>
    %cst_26 = arith.constant 0.000000e+00 : f32
    %52 = vector.broadcast %cst_26 : f32 to vector<256x128xf32>
    %53 = arith.maximumf %51, %52 : vector<256x128xf32>
    %54 = vector.shape_cast %53 : vector<256x128xf32> to vector<16x16x128xf32>
    %55 = arith.truncf %54 : vector<16x16x128xf32> to vector<16x16x128xbf16>
    %c1_i32_27 = arith.constant 1 : i32
    %56 = arith.addi %c1_i32_27, %1 : i32
    %c0_28 = arith.constant 0 : index
    %57 = arith.index_cast %56 : i32 to index
    %c8 = arith.constant 8 : index
    %c0_29 = arith.constant 0 : index
    %58 = vector.load %arg6[%c0_28, %57, %c8, %c0_29] : memref<1x18x25x128xbf16, #tpu.memory_space<vmem>>, vector<1x16x16x128xbf16>
    %59 = vector.shape_cast %58 : vector<1x16x16x128xbf16> to vector<16x16x128xbf16>
    %60 = vector.shape_cast %55 : vector<16x16x128xbf16> to vector<1x16x16x128xbf16>
    tpu.vector_store %arg6[%c0_28, %57, %c8, %c0_29], %60 {strides = array<i32>} : memref<1x18x25x128xbf16, #tpu.memory_space<vmem>>, vector<1x16x16x128xbf16>,
    return
  }
  func.func @transform_0(%arg0: i32, %arg1: i32) -> (i32, i32, i32, i32) {
    %c0_i32 = arith.constant 0 : i32
    %c0_i32_0 = arith.constant 0 : i32
    %c0_i32_1 = arith.constant 0 : i32
    %c0_i32_2 = arith.constant 0 : i32
    return %arg0, %c0_i32, %c0_i32_0, %c0_i32_1 : i32, i32, i32, i32
  }
  func.func @transform_1(%arg0: i32, %arg1: i32) -> (i32, i32, i32) {
    %c0_i32 = arith.constant 0 : i32
    %c0_i32_0 = arith.constant 0 : i32
    %c0_i32_1 = arith.constant 0 : i32
    %c0_i32_2 = arith.constant 0 : i32
    return %c0_i32, %c0_i32_0, %c0_i32_1 : i32, i32, i32
  }
  func.func @transform_2(%arg0: i32, %arg1: i32) -> (i32, i32) {
    %c0_i32 = arith.constant 0 : i32
    %c0_i32_0 = arith.constant 0 : i32
    %c0_i32_1 = arith.constant 0 : i32
    return %c0_i32, %c0_i32_0 : i32, i32
  }
  func.func @transform_3(%arg0: i32, %arg1: i32) -> (i32, i32) {
    %c0_i32 = arith.constant 0 : i32
    %c0_i32_0 = arith.constant 0 : i32
    %c0_i32_1 = arith.constant 0 : i32
    return %c0_i32, %c0_i32_0 : i32, i32
  }
  func.func @transform_4(%arg0: i32, %arg1: i32) -> (i32, i32, i32, i32) {
    %c0_i32 = arith.constant 0 : i32
    %c0_i32_0 = arith.constant 0 : i32
    %c0_i32_1 = arith.constant 0 : i32
    %c0_i32_2 = arith.constant 0 : i32
    return %arg0, %c0_i32, %c0_i32_0, %c0_i32_1 : i32, i32, i32, i32
  }
}

module attributes {stable_mosaic.version = 11 : i64} {
  func.func @_conv2_bn_add_relu_kernel(%arg0: i32, %arg1: i32, %arg2: memref<1x18x25x128xbf16, #tpu.memory_space<vmem>>, %arg3: memref<3x384x128xbf16, #tpu.memory_space<vmem>>, %arg4: memref<1x128xf32, #tpu.memory_space<vmem>>, %arg5: memref<1x128xf32, #tpu.memory_space<vmem>>, %arg6: memref<1x18x18x128xbf16, #tpu.memory_space<vmem>>, %arg7: memref<128x128xbf16, #tpu.memory_space<vmem>>, %arg8: memref<1x128xf32, #tpu.memory_space<vmem>>, %arg9: memref<1x128xf32, #tpu.memory_space<vmem>>, %arg10: memref<1x16x16x128xbf16, #tpu.memory_space<vmem>>) attributes {dimension_semantics = [#tpu.dimension_semantics<parallel>, #tpu.dimension_semantics<parallel>], iteration_bounds = array<i64: 2, 1>, scalar_prefetch = 0 : i64, scratch_operands = 0 : i64, tpu.core_type = #tpu.core_type<tc>, window_params = [{transform_indices = @transform_0, window_bounds = array<i64: 1, 18, 25, 128>}, {pipeline_mode = #tpu.pipeline_mode<synchronous>, transform_indices = @transform_1, window_bounds = array<i64: 3, 384, 128>}, {pipeline_mode = #tpu.pipeline_mode<synchronous>, transform_indices = @transform_2, window_bounds = array<i64: 1, 128>}, {pipeline_mode = #tpu.pipeline_mode<synchronous>, transform_indices = @transform_3, window_bounds = array<i64: 1, 128>}, {transform_indices = @transform_4, window_bounds = array<i64: 1, 18, 18, 128>}, {pipeline_mode = #tpu.pipeline_mode<synchronous>, transform_indices = @transform_5, window_bounds = array<i64: 128, 128>}, {pipeline_mode = #tpu.pipeline_mode<synchronous>, transform_indices = @transform_6, window_bounds = array<i64: 1, 128>}, {pipeline_mode = #tpu.pipeline_mode<synchronous>, transform_indices = @transform_7, window_bounds = array<i64: 1, 128>}, {transform_indices = @transform_8, window_bounds = array<i64: 1, 16, 16, 128>}]} {
    %c16_i32 = arith.constant 16 : i32
    %0 = arith.muli %arg1, %c16_i32 : i32
    %1 = tpu.assume_multiple %0, 16 : i32
    %c1_i32 = arith.constant 1 : i32
    %2 = arith.muli %c1_i32, %1 : i32
    %c0_i32 = arith.constant 0 : i32
    %3 = arith.addi %2, %c0_i32 : i32
    %c0 = arith.constant 0 : index
    %4 = arith.index_cast %3 : i32 to index
    %c0_0 = arith.constant 0 : index
    %c0_1 = arith.constant 0 : index
    %5 = vector.load %arg2[%c0, %4, %c0_0, %c0_1] : memref<1x18x25x128xbf16, #tpu.memory_space<vmem>>, vector<1x16x25x128xbf16>
    %6 = vector.shape_cast %5 : vector<1x16x25x128xbf16> to vector<16x25x128xbf16>
    %7 = vector.extract_strided_slice %6 {offsets = [0, 7, 0], sizes = [16, 16, 128], strides = [1, 1, 1]} : vector<16x25x128xbf16> to vector<16x16x128xbf16>
    %8 = vector.extract_strided_slice %6 {offsets = [0, 8, 0], sizes = [16, 16, 128], strides = [1, 1, 1]} : vector<16x25x128xbf16> to vector<16x16x128xbf16>
    %9 = vector.extract_strided_slice %6 {offsets = [0, 9, 0], sizes = [16, 16, 128], strides = [1, 1, 1]} : vector<16x25x128xbf16> to vector<16x16x128xbf16>
    %10 = tpu.concatenate %7, %8, %9 in 2 : vector<16x16x128xbf16>, vector<16x16x128xbf16>, vector<16x16x128xbf16> -> vector<16x16x384xbf16>
    %11 = vector.shape_cast %10 : vector<16x16x384xbf16> to vector<256x384xbf16>
    %c0_2 = arith.constant 0 : index
    %c0_3 = arith.constant 0 : index
    %c0_4 = arith.constant 0 : index
    %12 = vector.load %arg3[%c0_2, %c0_3, %c0_4] : memref<3x384x128xbf16, #tpu.memory_space<vmem>>, vector<1x384x128xbf16>
    %13 = vector.shape_cast %12 : vector<1x384x128xbf16> to vector<384x128xbf16>
    %cst = arith.constant dense<0.000000e+00> : vector<256x128xf32>
    %14 = tpu.matmul %11, %13, %cst {dimension_numbers = #tpu.dot_dimension_numbers<[1], [0], [0], [1], [0, 0, 1, 1], [], []>} : vector<256x384xbf16>, vector<384x128xbf16>, vector<256x128xf32> -> vector<256x128xf32>
    %c1_i32_5 = arith.constant 1 : i32
    %15 = arith.muli %c1_i32_5, %1 : i32
    %c1_i32_6 = arith.constant 1 : i32
    %16 = arith.addi %15, %c1_i32_6 : i32
    %c0_7 = arith.constant 0 : index
    %17 = arith.index_cast %16 : i32 to index
    %c0_8 = arith.constant 0 : index
    %c0_9 = arith.constant 0 : index
    %18 = vector.load %arg2[%c0_7, %17, %c0_8, %c0_9] : memref<1x18x25x128xbf16, #tpu.memory_space<vmem>>, vector<1x16x25x128xbf16>
    %19 = vector.shape_cast %18 : vector<1x16x25x128xbf16> to vector<16x25x128xbf16>
    %20 = vector.extract_strided_slice %19 {offsets = [0, 7, 0], sizes = [16, 16, 128], strides = [1, 1, 1]} : vector<16x25x128xbf16> to vector<16x16x128xbf16>
    %21 = vector.extract_strided_slice %19 {offsets = [0, 8, 0], sizes = [16, 16, 128], strides = [1, 1, 1]} : vector<16x25x128xbf16> to vector<16x16x128xbf16>
    %22 = vector.extract_strided_slice %19 {offsets = [0, 9, 0], sizes = [16, 16, 128], strides = [1, 1, 1]} : vector<16x25x128xbf16> to vector<16x16x128xbf16>
    %23 = tpu.concatenate %20, %21, %22 in 2 : vector<16x16x128xbf16>, vector<16x16x128xbf16>, vector<16x16x128xbf16> -> vector<16x16x384xbf16>
    %24 = vector.shape_cast %23 : vector<16x16x384xbf16> to vector<256x384xbf16>
    %c1 = arith.constant 1 : index
    %c0_10 = arith.constant 0 : index
    %c0_11 = arith.constant 0 : index
    %25 = vector.load %arg3[%c1, %c0_10, %c0_11] : memref<3x384x128xbf16, #tpu.memory_space<vmem>>, vector<1x384x128xbf16>
    %26 = vector.shape_cast %25 : vector<1x384x128xbf16> to vector<384x128xbf16>
    %cst_12 = arith.constant dense<0.000000e+00> : vector<256x128xf32>
    %27 = tpu.matmul %24, %26, %cst_12 {dimension_numbers = #tpu.dot_dimension_numbers<[1], [0], [0], [1], [0, 0, 1, 1], [], []>} : vector<256x384xbf16>, vector<384x128xbf16>, vector<256x128xf32> -> vector<256x128xf32>
    %28 = arith.addf %14, %27 : vector<256x128xf32>
    %c1_i32_13 = arith.constant 1 : i32
    %29 = arith.muli %c1_i32_13, %1 : i32
    %c2_i32 = arith.constant 2 : i32
    %30 = arith.addi %29, %c2_i32 : i32
    %c0_14 = arith.constant 0 : index
    %31 = arith.index_cast %30 : i32 to index
    %c0_15 = arith.constant 0 : index
    %c0_16 = arith.constant 0 : index
    %32 = vector.load %arg2[%c0_14, %31, %c0_15, %c0_16] : memref<1x18x25x128xbf16, #tpu.memory_space<vmem>>, vector<1x16x25x128xbf16>
    %33 = vector.shape_cast %32 : vector<1x16x25x128xbf16> to vector<16x25x128xbf16>
    %34 = vector.extract_strided_slice %33 {offsets = [0, 7, 0], sizes = [16, 16, 128], strides = [1, 1, 1]} : vector<16x25x128xbf16> to vector<16x16x128xbf16>
    %35 = vector.extract_strided_slice %33 {offsets = [0, 8, 0], sizes = [16, 16, 128], strides = [1, 1, 1]} : vector<16x25x128xbf16> to vector<16x16x128xbf16>
    %36 = vector.extract_strided_slice %33 {offsets = [0, 9, 0], sizes = [16, 16, 128], strides = [1, 1, 1]} : vector<16x25x128xbf16> to vector<16x16x128xbf16>
    %37 = tpu.concatenate %34, %35, %36 in 2 : vector<16x16x128xbf16>, vector<16x16x128xbf16>, vector<16x16x128xbf16> -> vector<16x16x384xbf16>
    %38 = vector.shape_cast %37 : vector<16x16x384xbf16> to vector<256x384xbf16>
    %c2 = arith.constant 2 : index
    %c0_17 = arith.constant 0 : index
    %c0_18 = arith.constant 0 : index
    %39 = vector.load %arg3[%c2, %c0_17, %c0_18] : memref<3x384x128xbf16, #tpu.memory_space<vmem>>, vector<1x384x128xbf16>
    %40 = vector.shape_cast %39 : vector<1x384x128xbf16> to vector<384x128xbf16>
    %cst_19 = arith.constant dense<0.000000e+00> : vector<256x128xf32>
    %41 = tpu.matmul %38, %40, %cst_19 {dimension_numbers = #tpu.dot_dimension_numbers<[1], [0], [0], [1], [0, 0, 1, 1], [], []>} : vector<256x384xbf16>, vector<384x128xbf16>, vector<256x128xf32> -> vector<256x128xf32>
    %42 = arith.addf %28, %41 : vector<256x128xf32>
    %c0_20 = arith.constant 0 : index
    %c0_21 = arith.constant 0 : index
    %43 = vector.load %arg4[%c0_20, %c0_21] : memref<1x128xf32, #tpu.memory_space<vmem>>, vector<1x128xf32>
    %44 = vector.broadcast %43 : vector<1x128xf32> to vector<256x128xf32>
    %45 = arith.mulf %42, %44 : vector<256x128xf32>
    %c0_22 = arith.constant 0 : index
    %c0_23 = arith.constant 0 : index
    %46 = vector.load %arg5[%c0_22, %c0_23] : memref<1x128xf32, #tpu.memory_space<vmem>>, vector<1x128xf32>
    %47 = vector.broadcast %46 : vector<1x128xf32> to vector<256x128xf32>
    %48 = arith.addf %45, %47 : vector<256x128xf32>
    %c1_i32_24 = arith.constant 1 : i32
    %49 = arith.muli %c1_i32_24, %1 : i32
    %c1_i32_25 = arith.constant 1 : i32
    %50 = arith.addi %49, %c1_i32_25 : i32
    %c0_26 = arith.constant 0 : index
    %51 = arith.index_cast %50 : i32 to index
    %c0_27 = arith.constant 0 : index
    %c0_28 = arith.constant 0 : index
    %52 = vector.load %arg6[%c0_26, %51, %c0_27, %c0_28] : memref<1x18x18x128xbf16, #tpu.memory_space<vmem>>, vector<1x16x18x128xbf16>
    %53 = vector.shape_cast %52 : vector<1x16x18x128xbf16> to vector<16x18x128xbf16>
    %54 = vector.extract_strided_slice %53 {offsets = [0, 1, 0], sizes = [16, 16, 128], strides = [1, 1, 1]} : vector<16x18x128xbf16> to vector<16x16x128xbf16>
    %55 = vector.shape_cast %54 : vector<16x16x128xbf16> to vector<256x128xbf16>
    %c0_29 = arith.constant 0 : index
    %c0_30 = arith.constant 0 : index
    %56 = vector.load %arg7[%c0_29, %c0_30] : memref<128x128xbf16, #tpu.memory_space<vmem>>, vector<128x128xbf16>
    %cst_31 = arith.constant dense<0.000000e+00> : vector<256x128xf32>
    %57 = tpu.matmul %55, %56, %cst_31 {dimension_numbers = #tpu.dot_dimension_numbers<[1], [0], [0], [1], [0, 0, 1, 1], [], []>} : vector<256x128xbf16>, vector<128x128xbf16>, vector<256x128xf32> -> vector<256x128xf32>
    %c0_32 = arith.constant 0 : index
    %c0_33 = arith.constant 0 : index
    %58 = vector.load %arg8[%c0_32, %c0_33] : memref<1x128xf32, #tpu.memory_space<vmem>>, vector<1x128xf32>
    %59 = vector.broadcast %58 : vector<1x128xf32> to vector<256x128xf32>
    %60 = arith.mulf %57, %59 : vector<256x128xf32>
    %c0_34 = arith.constant 0 : index
    %c0_35 = arith.constant 0 : index
    %61 = vector.load %arg9[%c0_34, %c0_35] : memref<1x128xf32, #tpu.memory_space<vmem>>, vector<1x128xf32>
    %62 = vector.broadcast %61 : vector<1x128xf32> to vector<256x128xf32>
    %63 = arith.addf %60, %62 : vector<256x128xf32>
    %64 = arith.addf %48, %63 : vector<256x128xf32>
    %cst_36 = arith.constant 0.000000e+00 : f32
    %65 = vector.broadcast %cst_36 : f32 to vector<256x128xf32>
    %66 = arith.maximumf %64, %65 : vector<256x128xf32>
    %67 = vector.shape_cast %66 : vector<256x128xf32> to vector<16x16x128xf32>
    %68 = arith.truncf %67 : vector<16x16x128xf32> to vector<16x16x128xbf16>
    %c0_37 = arith.constant 0 : index
    %c0_38 = arith.constant 0 : index
    %c0_39 = arith.constant 0 : index
    %c0_40 = arith.constant 0 : index
    %69 = vector.load %arg10[%c0_37, %c0_38, %c0_39, %c0_40] : memref<1x16x16x128xbf16, #tpu.memory_space<vmem>>, vector<1x16x16x128xbf16>
    %70 = vector.shape_cast %69 : vector<1x16x16x128xbf16> to vector<16x16x128xbf16>
    %71 = vector.shape_cast %68 : vector<16x16x128xbf16> to vector<1x16x16x128xbf16>
    tpu.vector_store %arg10[%c0_37, %c0_38, %c0_39, %c0_40], %71 {strides = array<i32>} : memref<1x16x16x128xbf16, #tpu.memory_space<vmem>>, vector<1x16x16x128xbf16>,
    return
  }
  func.func @transform_0(%arg0: i32, %arg1: i32) -> (i32, i32, i32, i32) {
    %c0_i32 = arith.constant 0 : i32
    %c0_i32_0 = arith.constant 0 : i32
    %c0_i32_1 = arith.constant 0 : i32
    %c0_i32_2 = arith.constant 0 : i32
    return %arg0, %c0_i32, %c0_i32_0, %c0_i32_1 : i32, i32, i32, i32
  }
  func.func @transform_1(%arg0: i32, %arg1: i32) -> (i32, i32, i32) {
    %c0_i32 = arith.constant 0 : i32
    %c0_i32_0 = arith.constant 0 : i32
    %c0_i32_1 = arith.constant 0 : i32
    %c0_i32_2 = arith.constant 0 : i32
    return %c0_i32, %c0_i32_0, %c0_i32_1 : i32, i32, i32
  }
  func.func @transform_2(%arg0: i32, %arg1: i32) -> (i32, i32) {
    %c0_i32 = arith.constant 0 : i32
    %c0_i32_0 = arith.constant 0 : i32
    %c0_i32_1 = arith.constant 0 : i32
    return %c0_i32, %c0_i32_0 : i32, i32
  }
  func.func @transform_3(%arg0: i32, %arg1: i32) -> (i32, i32) {
    %c0_i32 = arith.constant 0 : i32
    %c0_i32_0 = arith.constant 0 : i32
    %c0_i32_1 = arith.constant 0 : i32
    return %c0_i32, %c0_i32_0 : i32, i32
  }
  func.func @transform_4(%arg0: i32, %arg1: i32) -> (i32, i32, i32, i32) {
    %c0_i32 = arith.constant 0 : i32
    %c0_i32_0 = arith.constant 0 : i32
    %c0_i32_1 = arith.constant 0 : i32
    %c0_i32_2 = arith.constant 0 : i32
    return %arg0, %c0_i32, %c0_i32_0, %c0_i32_1 : i32, i32, i32, i32
  }
  func.func @transform_5(%arg0: i32, %arg1: i32) -> (i32, i32) {
    %c0_i32 = arith.constant 0 : i32
    %c0_i32_0 = arith.constant 0 : i32
    %c0_i32_1 = arith.constant 0 : i32
    return %c0_i32, %c0_i32_0 : i32, i32
  }
  func.func @transform_6(%arg0: i32, %arg1: i32) -> (i32, i32) {
    %c0_i32 = arith.constant 0 : i32
    %c0_i32_0 = arith.constant 0 : i32
    %c0_i32_1 = arith.constant 0 : i32
    return %c0_i32, %c0_i32_0 : i32, i32
  }
  func.func @transform_7(%arg0: i32, %arg1: i32) -> (i32, i32) {
    %c0_i32 = arith.constant 0 : i32
    %c0_i32_0 = arith.constant 0 : i32
    %c0_i32_1 = arith.constant 0 : i32
    return %c0_i32, %c0_i32_0 : i32, i32
  }
  func.func @transform_8(%arg0: i32, %arg1: i32) -> (i32, i32, i32, i32) {
    %c0_i32 = arith.constant 0 : i32
    %c0_i32_0 = arith.constant 0 : i32
    %c0_i32_1 = arith.constant 0 : i32
    return %arg0, %arg1, %c0_i32, %c0_i32_0 : i32, i32, i32, i32
  }
}

</mosaic_0001>

<llo_original>
// kernel: residual_block_pallas.2
$region0: #{residual_block_pallas.2}
  #allocation0 [shape = 'u32[]', space=smem, size = 0x4, offset = 0x4, fixed_abs, tag = 'smem constant byte address 0x4 - core index']
  #allocation1 [shape = 'u32[144,128]{1,0:T(1,128)}', space=vmem, size = 0x12000, scoped, tag = 'internal scratch']
  %s0 = inlined_call_operand.vmem [shape: bf16[2,18,18,128], index: 0, kind: input, shape index: {}]
  %s1 = inlined_call_operand.vmem [shape: bf16[3,384,128], index: 1, kind: input, shape index: {}]
  %s2 = inlined_call_operand.vmem [shape: f32[1,128], index: 2, kind: input, shape index: {}]
  %s3 = inlined_call_operand.vmem [shape: f32[1,128], index: 3, kind: input, shape index: {}]
  %s4 = inlined_call_operand.vmem [shape: bf16[2,18,25,128], index: 4, kind: output, shape index: {}]
  %s5 = sld [smem:[#allocation0]]
  $region53: #{residual_block_pallas.2} parent=0
    _
  %s7 = ssub.s32 1, %s5
  %s8 = scalar_select 0, %s7, %s5
  loop: start=0, step=1, limit=4
  $region2: #{residual_block_pallas.2} parent=0 // loop_pre_header
    _
  $region3: #{residual_block_pallas.2} parent=0 // loop_header
    %s10 = sphi 0, %s14
    %p11 = scmp.ge.s32.totalorder %s10, 4
    %s17 = sphi 0, %s29
    %s18 = sphi 0, %s25
    %s19 = sphi 0, %s17
    %s20 = sphi 0, %s18
    %s21 = sphi 0, %s19
    %s22 = sphi 0, %s20
    %s32 = sphi 0, %s34
    %s35 = sphi 0, %s32
    %s36 = sphi 0, %s35
    %s52 = sphi 0, %s36
    %s56 = sphi 0, %s56
    %s58 = sphi 0, %s56
    %s59 = sphi 0, %s58
    %s73 = sphi 0, %s59
    %s77 = sphi 0, %s77
    %s79 = sphi 0, %s77
    %s80 = sphi 0, %s79
    %s94 = sphi 0, %s80
    %s98 = sphi 0, %s98
    %s100 = sphi 0, %s98
    %s101 = sphi 0, %s100
    %s115 = sphi 0, %s101
    %s121 = sphi 0, %s123
    %s124 = sphi 0, %s121
    %s125 = sphi 0, %s124
    %s141 = sphi 0, %s125
  $region4: #{residual_block_pallas.2} parent=0 // loop_header_branch
    %13 = sbr.rel (%p11) target = $region8
  $region5: #{residual_block_pallas.2} parent=0 // loop_body
    %s15 = ssub.s32 %s10, 1
    %s16 = ssub.s32 %s10, 2
    %s23 = sadd.s32 1, %s18
    %p24 = scmp.ge.s32.totalorder %s23, 1
    %s25 = scalar_select %p24, 0, %s23
    %s26 = sadd.s32 1, %s17
    %s27 = scalar_select %p24, %s26, %s17
    %p28 = scmp.ge.s32.totalorder %s27, 2
    %s29 = scalar_select %p28, 0, %s27
    %s30 = ssub.s32 %s17, %s29
    %p31 = scmp.eq.s32.totalorder %s30, 0
    %s33 = sadd.s32 %s32, 1
    %s34 = scalar_select %p31, %s32, %s33
    %p37 = pneg %p31
    %p38 = scmp.eq.s32.totalorder %s10, 1
    %p39 = por %p37, %p38
    %p40 = scmp.ne.s32.totalorder %s32, %s35
    %p41 = scmp.eq.s32.totalorder %s10, 0
    %p42 = por %p40, %p41
    %p43 = scmp.ne.s32.totalorder %s32, %s35
    %p44 = scmp.eq.s32.totalorder %s15, 1
    %p45 = por %p43, %p44
    %p46 = scmp.ne.s32.totalorder %s35, %s36
    %p47 = scmp.eq.s32.totalorder %s15, 0
    %p48 = por %p46, %p47
    %p49 = scmp.ne.s32.totalorder %s35, %s36
    %p50 = scmp.eq.s32.totalorder %s16, 1
    %p51 = por %p49, %p50
    %p53 = scmp.ne.s32.totalorder %s36, %s52
    %p54 = scmp.eq.s32.totalorder %s16, 0
    %p55 = por %p53, %p54
    %s57 = sadd.s32 %s56, 1
    %p60 = scmp.eq.s32.totalorder %s10, 1
    %p61 = scmp.ne.s32.totalorder %s56, %s58
    %p62 = scmp.eq.s32.totalorder %s10, 0
    %p63 = por %p61, %p62
    %p64 = scmp.ne.s32.totalorder %s56, %s58
    %p65 = scmp.eq.s32.totalorder %s15, 1
    %p66 = por %p64, %p65
    %p67 = scmp.ne.s32.totalorder %s58, %s59
    %p68 = scmp.eq.s32.totalorder %s15, 0
    %p69 = por %p67, %p68
    %p70 = scmp.ne.s32.totalorder %s58, %s59
    %p71 = scmp.eq.s32.totalorder %s16, 1
    %p72 = por %p70, %p71
    %p74 = scmp.ne.s32.totalorder %s59, %s73
    %p75 = scmp.eq.s32.totalorder %s16, 0
    %p76 = por %p74, %p75
    %s78 = sadd.s32 %s77, 1
    %p81 = scmp.eq.s32.totalorder %s10, 1
    %p82 = scmp.ne.s32.totalorder %s77, %s79
    %p83 = scmp.eq.s32.totalorder %s10, 0
    %p84 = por %p82, %p83
    %p85 = scmp.ne.s32.totalorder %s77, %s79
    %p86 = scmp.eq.s32.totalorder %s15, 1
    %p87 = por %p85, %p86
    %p88 = scmp.ne.s32.totalorder %s79, %s80
    %p89 = scmp.eq.s32.totalorder %s15, 0
    %p90 = por %p88, %p89
    %p91 = scmp.ne.s32.totalorder %s79, %s80
    %p92 = scmp.eq.s32.totalorder %s16, 1
    %p93 = por %p91, %p92
    %p95 = scmp.ne.s32.totalorder %s80, %s94
    %p96 = scmp.eq.s32.totalorder %s16, 0
    %p97 = por %p95, %p96
    %s99 = sadd.s32 %s98, 1
    %p102 = scmp.eq.s32.totalorder %s10, 1
    %p103 = scmp.ne.s32.totalorder %s98, %s100
    %p104 = scmp.eq.s32.totalorder %s10, 0
    %p105 = por %p103, %p104
    %p106 = scmp.ne.s32.totalorder %s98, %s100
    %p107 = scmp.eq.s32.totalorder %s15, 1
    %p108 = por %p106, %p107
    %p109 = scmp.ne.s32.totalorder %s100, %s101
    %p110 = scmp.eq.s32.totalorder %s15, 0
    %p111 = por %p109, %p110
    %p112 = scmp.ne.s32.totalorder %s100, %s101
    %p113 = scmp.eq.s32.totalorder %s16, 1
    %p114 = por %p112, %p113
    %p116 = scmp.ne.s32.totalorder %s101, %s115
    %p117 = scmp.eq.s32.totalorder %s16, 0
    %p118 = por %p116, %p117
    %s119 = ssub.s32 %s17, %s29
    %p120 = scmp.eq.s32.totalorder %s119, 0
    %s122 = sadd.s32 %s121, 1
    %s123 = scalar_select %p120, %s121, %s122
    %p126 = pneg %p120
    %p127 = scmp.eq.s32.totalorder %s10, 1
    %p128 = por %p126, %p127
    %p129 = scmp.ne.s32.totalorder %s121, %s124
    %p130 = scmp.eq.s32.totalorder %s10, 0
    %p131 = por %p129, %p130
    %p132 = scmp.ne.s32.totalorder %s121, %s124
    %p133 = scmp.eq.s32.totalorder %s15, 1
    %p134 = por %p132, %p133
    %p135 = scmp.ne.s32.totalorder %s124, %s125
    %p136 = scmp.eq.s32.totalorder %s15, 0
    %p137 = por %p135, %p136
    %p138 = scmp.ne.s32.totalorder %s124, %s125
    %p139 = scmp.eq.s32.totalorder %s16, 1
    %p140 = por %p138, %p139
    %p142 = scmp.ne.s32.totalorder %s125, %s141
    %p143 = scmp.eq.s32.totalorder %s16, 0
    %p144 = por %p142, %p143
    %p145 = scmp.le.s32.totalorder 1, %s10
    %p146 = scmp.lt.s32.totalorder %s10, 3
    %p147 = pnand %p145, %p146
    %p148 = pneg %p147
    // Predicated region
    $region9: #{residual_block_pallas.2} parent=5 // pred_check
      _
    $region10: #{residual_block_pallas.2} parent=5 // pred_check_branch
      %150 = sbr.rel (%p147) target = $region12
    $region11: #{residual_block_pallas.2} parent=5 // pred_region
      %s151 = ssub.s32 %s10, 1
      // Predicated region
      $region13: #{residual_block_pallas.2} parent=11 // pred_check
        %p152 = pneg %p69
      $region14: #{residual_block_pallas.2} parent=11 // pred_check_branch
        %154 = sbr.rel (%p152) target = $region16
      $region15: #{residual_block_pallas.2} parent=11 // pred_region
        _
      $region16: #{residual_block_pallas.2} parent=11 // pred_fallthru
        _
      // Predicated region
      $region17: #{residual_block_pallas.2} parent=11 // pred_check
        %p155 = pneg %p90
      $region18: #{residual_block_pallas.2} parent=11 // pred_check_branch
        %157 = sbr.rel (%p155) target = $region20
      $region19: #{residual_block_pallas.2} parent=11 // pred_region
        _
      $region20: #{residual_block_pallas.2} parent=11 // pred_fallthru
        _
      // Predicated region
      $region21: #{residual_block_pallas.2} parent=11 // pred_check
        %p158 = pneg %p111
      $region22: #{residual_block_pallas.2} parent=11 // pred_check_branch
        %160 = sbr.rel (%p158) target = $region24
      $region23: #{residual_block_pallas.2} parent=11 // pred_region
        _
      $region24: #{residual_block_pallas.2} parent=11 // pred_fallthru
        _
    $region12: #{residual_block_pallas.2} parent=5 // pred_fallthru
      _
    %p161 = scmp.lt.s32.totalorder %s10, 2
    // Predicated region
    $region25: #{residual_block_pallas.2} parent=5 // pred_check
      %p162 = pneg %p161
    $region26: #{residual_block_pallas.2} parent=5 // pred_check_branch
      %164 = sbr.rel (%p162) target = $region28
    $region27: #{residual_block_pallas.2} parent=5 // pred_region
      // Predicated region
      $region29: #{residual_block_pallas.2} parent=27 // pred_check
        %p165 = pneg %p42
      $region30: #{residual_block_pallas.2} parent=27 // pred_check_branch
        %167 = sbr.rel (%p165) target = $region32
      $region31: #{residual_block_pallas.2} parent=27 // pred_region
        %p168 = scmp.lt.s32.totalorder %s17, 1
        %s169 = scalar_select %p168, %s17, 1
        %s170 = smul.addr %s169, 54
        %s171 = smul.addr %s170, 4
        %s172 = scalar_lea.vmem %s0, %s171
      $region32: #{residual_block_pallas.2} parent=27 // pred_fallthru
        _
    $region28: #{residual_block_pallas.2} parent=5 // pred_fallthru
      _
    %p173 = scmp.le.s32.totalorder 1, %s10
    %p174 = scmp.lt.s32.totalorder %s10, 3
    %p175 = pnand %p173, %p174
    %p176 = pneg %p175
    // Predicated region
    $region33: #{residual_block_pallas.2} parent=5 // pred_check
      _
    $region34: #{residual_block_pallas.2} parent=5 // pred_check_branch
      %178 = sbr.rel (%p175) target = $region36
    $region35: #{residual_block_pallas.2} parent=5 // pred_region
      %s179 = ssub.s32 %s10, 1
      %p180 = scmp.lt.s32.totalorder %s19, 1
      %s181 = scalar_select %p180, %s19, 1
      %s182 = smul.addr %s181, 54
      %s183 = smul.addr %s182, 4
      %s184 = scalar_lea.vmem %s0, %s183
      %p185 = pneg %p48
      %p186 = pneg %p45
      %p187 = pneg %p69
      %p188 = pneg %p66
      %p189 = pneg %p90
      %p190 = pneg %p87
      %p191 = pneg %p111
      %p192 = pneg %p108
      %p193 = pneg %p137
      %p194 = pneg %p134
      %p195 = scmp.lt.s32.totalorder %s19, 1
      %s196 = scalar_select %p195, %s19, 1
      %s197 = smul.addr %s196, 72
      %s198 = smul.addr %s197, 4
      %s199 = scalar_lea.vmem %s4, %s198
      %p200 = scmp.lt.s32.totalorder %s19, 1
      %s201 = scalar_select %p200, %s19, 1
      %s202 = smul.addr %s201, 54
      %s203 = smul.addr %s202, 4
      %s204 = scalar_lea.vmem %s0, %s203
      %p205 = scmp.lt.s32.totalorder %s19, 1
      %s206 = scalar_select %p205, %s19, 1
      %s207 = smul.addr %s206, 72
      %s208 = smul.addr %s207, 4
      %s209 = scalar_lea.vmem %s4, %s208
      %s211 = smul.u32 %s20, 16
      %p212 = scmp.eq.s32.totalorder %s20, 0
      // Predicated region
      $region37: #{residual_block_pallas.2} parent=35 // pred_check
        %p213 = pneg %p212
      $region38: #{residual_block_pallas.2} parent=35 // pred_check_branch
        %215 = sbr.rel (%p213) target = $region40
      $region39: #{residual_block_pallas.2} parent=35 // pred_region
        %216 = vst [vmem:[%s209] sm:$0xf] 0
        %217 = vst [vmem:[%s209 + $0x4] sm:$0xf] 0
        %218 = vst [vmem:[%s209 + $0x8] sm:$0xf] 0
        %vm219 = vcmask 1040384
        %vm220 = vsmask.f32 256
        %vm221 = vmand %vm219, %vm220
        %v222 = vld [vmem:[%s209 + $0xc] sm:$0x1]
        %v223 = vsel %vm221, 0, %v222
        %224 = vst [vmem:[%s209 + $0xc] sm:$0x1] %v223
        %225 = vst [vmem:[%s209 + $0x10] sm:$0xf] 0
        %226 = vst [vmem:[%s209 + $0x14] sm:$0xf] 0
        %227 = vst [vmem:[%s209 + $0x18] sm:$0xf] 0
        %v228 = vld [vmem:[%s209 + $0x1c] sm:$0x1]
        %v229 = vsel %vm221, 0, %v228
        %230 = vst [vmem:[%s209 + $0x1c] sm:$0x1] %v229
        %231 = vst [vmem:[%s209 + $0x20] sm:$0xf] 0
        %232 = vst [vmem:[%s209 + $0x24] sm:$0xf] 0
        %233 = vst [vmem:[%s209 + $0x28] sm:$0xf] 0
        %v234 = vld [vmem:[%s209 + $0x2c] sm:$0x1]
        %v235 = vsel %vm221, 0, %v234
        %236 = vst [vmem:[%s209 + $0x2c] sm:$0x1] %v235
        %237 = vst [vmem:[%s209 + $0x30] sm:$0xf] 0
        %238 = vst [vmem:[%s209 + $0x34] sm:$0xf] 0
        %239 = vst [vmem:[%s209 + $0x38] sm:$0xf] 0
        %v240 = vld [vmem:[%s209 + $0x3c] sm:$0x1]
        %v241 = vsel %vm221, 0, %v240
        %242 = vst [vmem:[%s209 + $0x3c] sm:$0x1] %v241
        %243 = vst [vmem:[%s209 + $0x40] sm:$0xf] 0
        %244 = vst [vmem:[%s209 + $0x44] sm:$0xf] 0
        %245 = vst [vmem:[%s209 + $0x48] sm:$0xf] 0
        %v246 = vld [vmem:[%s209 + $0x4c] sm:$0x1]
        %v247 = vsel %vm221, 0, %v246
        %248 = vst [vmem:[%s209 + $0x4c] sm:$0x1] %v247
        %249 = vst [vmem:[%s209 + $0x50] sm:$0xf] 0
        %250 = vst [vmem:[%s209 + $0x54] sm:$0xf] 0
        %251 = vst [vmem:[%s209 + $0x58] sm:$0xf] 0
        %v252 = vld [vmem:[%s209 + $0x5c] sm:$0x1]
        %v253 = vsel %vm221, 0, %v252
        %254 = vst [vmem:[%s209 + $0x5c] sm:$0x1] %v253
        %255 = vst [vmem:[%s209 + $0x60] sm:$0xf] 0
        %256 = vst [vmem:[%s209 + $0x64] sm:$0xf] 0
        %257 = vst [vmem:[%s209 + $0x68] sm:$0xf] 0
        %v258 = vld [vmem:[%s209 + $0x6c] sm:$0x1]
        %v259 = vsel %vm221, 0, %v258
        %260 = vst [vmem:[%s209 + $0x6c] sm:$0x1] %v259
        %261 = vst [vmem:[%s209 + $0x70] sm:$0xf] 0
        %262 = vst [vmem:[%s209 + $0x74] sm:$0xf] 0
        %263 = vst [vmem:[%s209 + $0x78] sm:$0xf] 0
        %v264 = vld [vmem:[%s209 + $0x7c] sm:$0x1]
        %v265 = vsel %vm221, 0, %v264
        %266 = vst [vmem:[%s209 + $0x7c] sm:$0x1] %v265
        %267 = vst [vmem:[%s209 + $0x80] sm:$0xf] 0
        %268 = vst [vmem:[%s209 + $0x84] sm:$0xf] 0
        %269 = vst [vmem:[%s209 + $0x88] sm:$0xf] 0
        %v270 = vld [vmem:[%s209 + $0x8c] sm:$0x1]
        %v271 = vsel %vm221, 0, %v270
        %272 = vst [vmem:[%s209 + $0x8c] sm:$0x1] %v271
        %273 = vst [vmem:[%s209 + $0x90] sm:$0xf] 0
        %274 = vst [vmem:[%s209 + $0x94] sm:$0xf] 0
        %275 = vst [vmem:[%s209 + $0x98] sm:$0xf] 0
        %v276 = vld [vmem:[%s209 + $0x9c] sm:$0x1]
        %v277 = vsel %vm221, 0, %v276
        %278 = vst [vmem:[%s209 + $0x9c] sm:$0x1] %v277
        %279 = vst [vmem:[%s209 + $0xa0] sm:$0xf] 0
        %280 = vst [vmem:[%s209 + $0xa4] sm:$0xf] 0
        %281 = vst [vmem:[%s209 + $0xa8] sm:$0xf] 0
        %v282 = vld [vmem:[%s209 + $0xac] sm:$0x1]
        %v283 = vsel %vm221, 0, %v282
        %284 = vst [vmem:[%s209 + $0xac] sm:$0x1] %v283
        %285 = vst [vmem:[%s209 + $0xb0] sm:$0xf] 0
        %286 = vst [vmem:[%s209 + $0xb4] sm:$0xf] 0
        %287 = vst [vmem:[%s209 + $0xb8] sm:$0xf] 0
        %v288 = vld [vmem:[%s209 + $0xbc] sm:$0x1]
        %v289 = vsel %vm221, 0, %v288
        %290 = vst [vmem:[%s209 + $0xbc] sm:$0x1] %v289
        %291 = vst [vmem:[%s209 + $0xc0] sm:$0xf] 0
        %292 = vst [vmem:[%s209 + $0xc4] sm:$0xf] 0
        %293 = vst [vmem:[%s209 + $0xc8] sm:$0xf] 0
        %v294 = vld [vmem:[%s209 + $0xcc] sm:$0x1]
        %v295 = vsel %vm221, 0, %v294
        %296 = vst [vmem:[%s209 + $0xcc] sm:$0x1] %v295
        %297 = vst [vmem:[%s209 + $0xd0] sm:$0xf] 0
        %298 = vst [vmem:[%s209 + $0xd4] sm:$0xf] 0
        %299 = vst [vmem:[%s209 + $0xd8] sm:$0xf] 0
        %v300 = vld [vmem:[%s209 + $0xdc] sm:$0x1]
        %v301 = vsel %vm221, 0, %v300
        %302 = vst [vmem:[%s209 + $0xdc] sm:$0x1] %v301
        %303 = vst [vmem:[%s209 + $0xe0] sm:$0xf] 0
        %304 = vst [vmem:[%s209 + $0xe4] sm:$0xf] 0
        %305 = vst [vmem:[%s209 + $0xe8] sm:$0xf] 0
        %v306 = vld [vmem:[%s209 + $0xec] sm:$0x1]
        %v307 = vsel %vm221, 0, %v306
        %308 = vst [vmem:[%s209 + $0xec] sm:$0x1] %v307
        %309 = vst [vmem:[%s209 + $0xf0] sm:$0xf] 0
        %310 = vst [vmem:[%s209 + $0xf4] sm:$0xf] 0
        %311 = vst [vmem:[%s209 + $0xf8] sm:$0xf] 0
        %v312 = vld [vmem:[%s209 + $0xfc] sm:$0x1]
        %v313 = vsel %vm221, 0, %v312
        %314 = vst [vmem:[%s209 + $0xfc] sm:$0x1] %v313
        %315 = vst [vmem:[%s209 + $0x100] sm:$0xf] 0
        %316 = vst [vmem:[%s209 + $0x104] sm:$0xf] 0
        %317 = vst [vmem:[%s209 + $0x108] sm:$0xf] 0
        %v318 = vld [vmem:[%s209 + $0x10c] sm:$0x1]
        %v319 = vsel %vm221, 0, %v318
        %320 = vst [vmem:[%s209 + $0x10c] sm:$0x1] %v319
        %321 = vst [vmem:[%s209 + $0x110] sm:$0xf] 0
        %322 = vst [vmem:[%s209 + $0x114] sm:$0xf] 0
        %323 = vst [vmem:[%s209 + $0x118] sm:$0xf] 0
        %v324 = vld [vmem:[%s209 + $0x11c] sm:$0x1]
        %v325 = vsel %vm221, 0, %v324
        %326 = vst [vmem:[%s209 + $0x11c] sm:$0x1] %v325
      $region40: #{residual_block_pallas.2} parent=35 // pred_fallthru
        _
      %s327 = smul.u32 %s211, 3
      %s328 = smul.addr %s327, 4
      %s329 = scalar_lea.vmem %s204, %s328
      %v330 = vld [vmem:[%s329] sm:$0xf]
      %v331 = vld [vmem:[%s329 + $0x4] sm:$0xf]
      %v332 = vld [vmem:[%s329 + $0x8] sm:$0x1]
      %v333 = vld [vmem:[%s329 + $0xc] sm:$0xf]
      %v334 = vld [vmem:[%s329 + $0x10] sm:$0xf]
      %v335 = vld [vmem:[%s329 + $0x14] sm:$0x1]
      %v336 = vld [vmem:[%s329 + $0x18] sm:$0xf]
      %v337 = vld [vmem:[%s329 + $0x1c] sm:$0xf]
      %v338 = vld [vmem:[%s329 + $0x20] sm:$0x1]
      %v339 = vld [vmem:[%s329 + $0x24] sm:$0xf]
      %v340 = vld [vmem:[%s329 + $0x28] sm:$0xf]
      %v341 = vld [vmem:[%s329 + $0x2c] sm:$0x1]
      %v342 = vld [vmem:[%s329 + $0x30] sm:$0xf]
      %v343 = vld [vmem:[%s329 + $0x34] sm:$0xf]
      %v344 = vld [vmem:[%s329 + $0x38] sm:$0x1]
      %v345 = vld [vmem:[%s329 + $0x3c] sm:$0xf]
      %v346 = vld [vmem:[%s329 + $0x40] sm:$0xf]
      %v347 = vld [vmem:[%s329 + $0x44] sm:$0x1]
      %v348 = vld [vmem:[%s329 + $0x48] sm:$0xf]
      %v349 = vld [vmem:[%s329 + $0x4c] sm:$0xf]
      %v350 = vld [vmem:[%s329 + $0x50] sm:$0x1]
      %v351 = vld [vmem:[%s329 + $0x54] sm:$0xf]
      %v352 = vld [vmem:[%s329 + $0x58] sm:$0xf]
      %v353 = vld [vmem:[%s329 + $0x5c] sm:$0x1]
      %v354 = vld [vmem:[%s329 + $0x60] sm:$0xf]
      %v355 = vld [vmem:[%s329 + $0x64] sm:$0xf]
      %v356 = vld [vmem:[%s329 + $0x68] sm:$0x1]
      %v357 = vld [vmem:[%s329 + $0x6c] sm:$0xf]
      %v358 = vld [vmem:[%s329 + $0x70] sm:$0xf]
      %v359 = vld [vmem:[%s329 + $0x74] sm:$0x1]
      %v360 = vld [vmem:[%s329 + $0x78] sm:$0xf]
      %v361 = vld [vmem:[%s329 + $0x7c] sm:$0xf]
      %v362 = vld [vmem:[%s329 + $0x80] sm:$0x1]
      %v363 = vld [vmem:[%s329 + $0x84] sm:$0xf]
      %v364 = vld [vmem:[%s329 + $0x88] sm:$0xf]
      %v365 = vld [vmem:[%s329 + $0x8c] sm:$0x1]
      %v366 = vld [vmem:[%s329 + $0x90] sm:$0xf]
      %v367 = vld [vmem:[%s329 + $0x94] sm:$0xf]
      %v368 = vld [vmem:[%s329 + $0x98] sm:$0x1]
      %v369 = vld [vmem:[%s329 + $0x9c] sm:$0xf]
      %v370 = vld [vmem:[%s329 + $0xa0] sm:$0xf]
      %v371 = vld [vmem:[%s329 + $0xa4] sm:$0x1]
      %v372 = vld [vmem:[%s329 + $0xa8] sm:$0xf]
      %v373 = vld [vmem:[%s329 + $0xac] sm:$0xf]
      %v374 = vld [vmem:[%s329 + $0xb0] sm:$0x1]
      %v375 = vld [vmem:[%s329 + $0xb4] sm:$0xf]
      %v376 = vld [vmem:[%s329 + $0xb8] sm:$0xf]
      %v377 = vld [vmem:[%s329 + $0xbc] sm:$0x1]
      %v410 = vunpack.c.l.b16 %v330
      %v411 = vunpack.c.l.b16 %v331
      %v412 = vunpack.c.l.b16 %v333
      %v413 = vunpack.c.l.b16 %v334
      %v414 = vunpack.c.l.b16 %v336
      %v415 = vunpack.c.l.b16 %v337
      %v416 = vunpack.c.l.b16 %v339
      %v417 = vunpack.c.l.b16 %v340
      %v418 = vunpack.c.l.b16 %v342
      %v419 = vunpack.c.l.b16 %v343
      %v420 = vunpack.c.l.b16 %v345
      %v421 = vunpack.c.l.b16 %v346
      %v422 = vunpack.c.l.b16 %v348
      %v423 = vunpack.c.l.b16 %v349
      %v424 = vunpack.c.l.b16 %v351
      %v425 = vunpack.c.l.b16 %v352
      %v426 = vunpack.c.l.b16 %v354
      %v427 = vunpack.c.l.b16 %v355
      %v428 = vunpack.c.l.b16 %v357
      %v429 = vunpack.c.l.b16 %v358
      %v430 = vunpack.c.l.b16 %v360
      %v431 = vunpack.c.l.b16 %v361
      %v432 = vunpack.c.l.b16 %v363
      %v433 = vunpack.c.l.b16 %v364
      %v434 = vunpack.c.l.b16 %v366
      %v435 = vunpack.c.l.b16 %v367
      %v436 = vunpack.c.l.b16 %v369
      %v437 = vunpack.c.l.b16 %v370
      %v438 = vunpack.c.l.b16 %v372
      %v439 = vunpack.c.l.b16 %v373
      %v440 = vunpack.c.l.b16 %v375
      %v441 = vunpack.c.l.b16 %v376
      %v442 = vpack.c.b16 %v411, %v410
      %v443 = vpack.c.b16 %v413, %v412
      %v444 = vpack.c.b16 %v415, %v414
      %v445 = vpack.c.b16 %v417, %v416
      %v446 = vpack.c.b16 %v419, %v418
      %v447 = vpack.c.b16 %v421, %v420
      %v448 = vpack.c.b16 %v423, %v422
      %v449 = vpack.c.b16 %v425, %v424
      %v450 = vpack.c.b16 %v427, %v426
      %v451 = vpack.c.b16 %v429, %v428
      %v452 = vpack.c.b16 %v431, %v430
      %v453 = vpack.c.b16 %v433, %v432
      %v454 = vpack.c.b16 %v435, %v434
      %v455 = vpack.c.b16 %v437, %v436
      %v456 = vpack.c.b16 %v439, %v438
      %v457 = vpack.c.b16 %v441, %v440
      %v490 = vunpack.c.l.b16 %v332
      %v491 = vunpack.c.l.b16 %v335
      %v492 = vunpack.c.l.b16 %v338
      %v493 = vunpack.c.l.b16 %v341
      %v494 = vunpack.c.l.b16 %v344
      %v495 = vunpack.c.l.b16 %v347
      %v496 = vunpack.c.l.b16 %v350
      %v497 = vunpack.c.l.b16 %v353
      %v498 = vunpack.c.l.b16 %v356
      %v499 = vunpack.c.l.b16 %v359
      %v500 = vunpack.c.l.b16 %v362
      %v501 = vunpack.c.l.b16 %v365
      %v502 = vunpack.c.l.b16 %v368
      %v503 = vunpack.c.l.b16 %v371
      %v504 = vunpack.c.l.b16 %v374
      %v505 = vunpack.c.l.b16 %v377
      %v506 = vpack.c.b16 %v490, %v490
      %v507 = vpack.c.b16 %v491, %v491
      %v508 = vpack.c.b16 %v492, %v492
      %v509 = vpack.c.b16 %v493, %v493
      %v510 = vpack.c.b16 %v494, %v494
      %v511 = vpack.c.b16 %v495, %v495
      %v512 = vpack.c.b16 %v496, %v496
      %v513 = vpack.c.b16 %v497, %v497
      %v514 = vpack.c.b16 %v498, %v498
      %v515 = vpack.c.b16 %v499, %v499
      %v516 = vpack.c.b16 %v500, %v500
      %v517 = vpack.c.b16 %v501, %v501
      %v518 = vpack.c.b16 %v502, %v502
      %v519 = vpack.c.b16 %v503, %v503
      %v520 = vpack.c.b16 %v504, %v504
      %v521 = vpack.c.b16 %v505, %v505
      %vm522 = vsmask.f32 7424
      %v524 = vshrl.u32 %v442, 16
      %v526 = vshll.u32 %v442, 16
      %v528 = vrot.slane %v526, 1
      %v529 = vor.u32 %v524, %v528
      %v531 = vshll.u32 %v506, 16
      %v533 = vrot.slane %v531, 1
      %v534 = vsel %vm522, %v529, %v533
      %v536 = vshrl.u32 %v443, 16
      %v538 = vshll.u32 %v443, 16
      %v540 = vrot.slane %v538, 1
      %v541 = vor.u32 %v536, %v540
      %v543 = vshll.u32 %v507, 16
      %v545 = vrot.slane %v543, 1
      %v546 = vsel %vm522, %v541, %v545
      %v548 = vshrl.u32 %v444, 16
      %v550 = vshll.u32 %v444, 16
      %v552 = vrot.slane %v550, 1
      %v553 = vor.u32 %v548, %v552
      %v555 = vshll.u32 %v508, 16
      %v557 = vrot.slane %v555, 1
      %v558 = vsel %vm522, %v553, %v557
      %v560 = vshrl.u32 %v445, 16
      %v562 = vshll.u32 %v445, 16
      %v564 = vrot.slane %v562, 1
      %v565 = vor.u32 %v560, %v564
      %v567 = vshll.u32 %v509, 16
      %v569 = vrot.slane %v567, 1
      %v570 = vsel %vm522, %v565, %v569
      %v572 = vshrl.u32 %v446, 16
      %v574 = vshll.u32 %v446, 16
      %v576 = vrot.slane %v574, 1
      %v577 = vor.u32 %v572, %v576
      %v579 = vshll.u32 %v510, 16
      %v581 = vrot.slane %v579, 1
      %v582 = vsel %vm522, %v577, %v581
      %v584 = vshrl.u32 %v447, 16
      %v586 = vshll.u32 %v447, 16
      %v588 = vrot.slane %v586, 1
      %v589 = vor.u32 %v584, %v588
      %v591 = vshll.u32 %v511, 16
      %v593 = vrot.slane %v591, 1
      %v594 = vsel %vm522, %v589, %v593
      %v596 = vshrl.u32 %v448, 16
      %v598 = vshll.u32 %v448, 16
      %v600 = vrot.slane %v598, 1
      %v601 = vor.u32 %v596, %v600
      %v603 = vshll.u32 %v512, 16
      %v605 = vrot.slane %v603, 1
      %v606 = vsel %vm522, %v601, %v605
      %v608 = vshrl.u32 %v449, 16
      %v610 = vshll.u32 %v449, 16
      %v612 = vrot.slane %v610, 1
      %v613 = vor.u32 %v608, %v612
      %v615 = vshll.u32 %v513, 16
      %v617 = vrot.slane %v615, 1
      %v618 = vsel %vm522, %v613, %v617
      %v620 = vshrl.u32 %v450, 16
      %v622 = vshll.u32 %v450, 16
      %v624 = vrot.slane %v622, 1
      %v625 = vor.u32 %v620, %v624
      %v627 = vshll.u32 %v514, 16
      %v629 = vrot.slane %v627, 1
      %v630 = vsel %vm522, %v625, %v629
      %v632 = vshrl.u32 %v451, 16
      %v634 = vshll.u32 %v451, 16
      %v636 = vrot.slane %v634, 1
      %v637 = vor.u32 %v632, %v636
      %v639 = vshll.u32 %v515, 16
      %v641 = vrot.slane %v639, 1
      %v642 = vsel %vm522, %v637, %v641
      %v644 = vshrl.u32 %v452, 16
      %v646 = vshll.u32 %v452, 16
      %v648 = vrot.slane %v646, 1
      %v649 = vor.u32 %v644, %v648
      %v651 = vshll.u32 %v516, 16
      %v653 = vrot.slane %v651, 1
      %v654 = vsel %vm522, %v649, %v653
      %v656 = vshrl.u32 %v453, 16
      %v658 = vshll.u32 %v453, 16
      %v660 = vrot.slane %v658, 1
      %v661 = vor.u32 %v656, %v660
      %v663 = vshll.u32 %v517, 16
      %v665 = vrot.slane %v663, 1
      %v666 = vsel %vm522, %v661, %v665
      %v668 = vshrl.u32 %v454, 16
      %v670 = vshll.u32 %v454, 16
      %v672 = vrot.slane %v670, 1
      %v673 = vor.u32 %v668, %v672
      %v675 = vshll.u32 %v518, 16
      %v677 = vrot.slane %v675, 1
      %v678 = vsel %vm522, %v673, %v677
      %v680 = vshrl.u32 %v455, 16
      %v682 = vshll.u32 %v455, 16
      %v684 = vrot.slane %v682, 1
      %v685 = vor.u32 %v680, %v684
      %v687 = vshll.u32 %v519, 16
      %v689 = vrot.slane %v687, 1
      %v690 = vsel %vm522, %v685, %v689
      %v692 = vshrl.u32 %v456, 16
      %v694 = vshll.u32 %v456, 16
      %v696 = vrot.slane %v694, 1
      %v697 = vor.u32 %v692, %v696
      %v699 = vshll.u32 %v520, 16
      %v701 = vrot.slane %v699, 1
      %v702 = vsel %vm522, %v697, %v701
      %v704 = vshrl.u32 %v457, 16
      %v706 = vshll.u32 %v457, 16
      %v708 = vrot.slane %v706, 1
      %v709 = vor.u32 %v704, %v708
      %v711 = vshll.u32 %v521, 16
      %v713 = vrot.slane %v711, 1
      %v714 = vsel %vm522, %v709, %v713
      %vm731 = vcmask 1046528
      %v732 = vrot.slane %v442, 1
      %v733 = vrot.slane %v506, 1
      %v734 = vsel %vm731, %v732, %v733
      %v735 = vrot.slane %v443, 1
      %v736 = vrot.slane %v507, 1
      %v737 = vsel %vm731, %v735, %v736
      %v738 = vrot.slane %v444, 1
      %v739 = vrot.slane %v508, 1
      %v740 = vsel %vm731, %v738, %v739
      %v741 = vrot.slane %v445, 1
      %v742 = vrot.slane %v509, 1
      %v743 = vsel %vm731, %v741, %v742
      %v744 = vrot.slane %v446, 1
      %v745 = vrot.slane %v510, 1
      %v746 = vsel %vm731, %v744, %v745
      %v747 = vrot.slane %v447, 1
      %v748 = vrot.slane %v511, 1
      %v749 = vsel %vm731, %v747, %v748
      %v750 = vrot.slane %v448, 1
      %v751 = vrot.slane %v512, 1
      %v752 = vsel %vm731, %v750, %v751
      %v753 = vrot.slane %v449, 1
      %v754 = vrot.slane %v513, 1
      %v755 = vsel %vm731, %v753, %v754
      %v756 = vrot.slane %v450, 1
      %v757 = vrot.slane %v514, 1
      %v758 = vsel %vm731, %v756, %v757
      %v759 = vrot.slane %v451, 1
      %v760 = vrot.slane %v515, 1
      %v761 = vsel %vm731, %v759, %v760
      %v762 = vrot.slane %v452, 1
      %v763 = vrot.slane %v516, 1
      %v764 = vsel %vm731, %v762, %v763
      %v765 = vrot.slane %v453, 1
      %v766 = vrot.slane %v517, 1
      %v767 = vsel %vm731, %v765, %v766
      %v768 = vrot.slane %v454, 1
      %v769 = vrot.slane %v518, 1
      %v770 = vsel %vm731, %v768, %v769
      %v771 = vrot.slane %v455, 1
      %v772 = vrot.slane %v519, 1
      %v773 = vsel %vm731, %v771, %v772
      %v774 = vrot.slane %v456, 1
      %v775 = vrot.slane %v520, 1
      %v776 = vsel %vm731, %v774, %v775
      %v777 = vrot.slane %v457, 1
      %v778 = vrot.slane %v521, 1
      %v779 = vsel %vm731, %v777, %v778
      %v796 = vld [vmem:[%s1] sm:$0xf]
      %v797 = vld [vmem:[%s1 + $0x4] sm:$0xf]
      %v798 = vld [vmem:[%s1 + $0x8] sm:$0xf]
      %v799 = vld [vmem:[%s1 + $0xc] sm:$0xf]
      %v800 = vld [vmem:[%s1 + $0x10] sm:$0xf]
      %v801 = vld [vmem:[%s1 + $0x14] sm:$0xf]
      %v802 = vld [vmem:[%s1 + $0x18] sm:$0xf]
      %v803 = vld [vmem:[%s1 + $0x1c] sm:$0xf]
      %v804 = vld [vmem:[%s1 + $0x20] sm:$0xf]
      %v805 = vld [vmem:[%s1 + $0x24] sm:$0xf]
      %v806 = vld [vmem:[%s1 + $0x28] sm:$0xf]
      %v807 = vld [vmem:[%s1 + $0x2c] sm:$0xf]
      %v808 = vld [vmem:[%s1 + $0x30] sm:$0xf]
      %v809 = vld [vmem:[%s1 + $0x34] sm:$0xf]
      %v810 = vld [vmem:[%s1 + $0x38] sm:$0xf]
      %v811 = vld [vmem:[%s1 + $0x3c] sm:$0xf]
      %v812 = vld [vmem:[%s1 + $0x40] sm:$0xf]
      %v813 = vld [vmem:[%s1 + $0x44] sm:$0xf]
      %v814 = vld [vmem:[%s1 + $0x48] sm:$0xf]
      %v815 = vld [vmem:[%s1 + $0x4c] sm:$0xf]
      %v816 = vld [vmem:[%s1 + $0x50] sm:$0xf]
      %v817 = vld [vmem:[%s1 + $0x54] sm:$0xf]
      %v818 = vld [vmem:[%s1 + $0x58] sm:$0xf]
      %v819 = vld [vmem:[%s1 + $0x5c] sm:$0xf]
      %v820 = vld [vmem:[%s1 + $0x60] sm:$0xf]
      %v821 = vld [vmem:[%s1 + $0x64] sm:$0xf]
      %v822 = vld [vmem:[%s1 + $0x68] sm:$0xf]
      %v823 = vld [vmem:[%s1 + $0x6c] sm:$0xf]
      %v824 = vld [vmem:[%s1 + $0x70] sm:$0xf]
      %v825 = vld [vmem:[%s1 + $0x74] sm:$0xf]
      %v826 = vld [vmem:[%s1 + $0x78] sm:$0xf]
      %v827 = vld [vmem:[%s1 + $0x7c] sm:$0xf]
      %v828 = vld [vmem:[%s1 + $0x80] sm:$0xf]
      %v829 = vld [vmem:[%s1 + $0x84] sm:$0xf]
      %v830 = vld [vmem:[%s1 + $0x88] sm:$0xf]
      %v831 = vld [vmem:[%s1 + $0x8c] sm:$0xf]
      %v832 = vld [vmem:[%s1 + $0x90] sm:$0xf]
      %v833 = vld [vmem:[%s1 + $0x94] sm:$0xf]
      %v834 = vld [vmem:[%s1 + $0x98] sm:$0xf]
      %v835 = vld [vmem:[%s1 + $0x9c] sm:$0xf]
      %v836 = vld [vmem:[%s1 + $0xa0] sm:$0xf]
      %v837 = vld [vmem:[%s1 + $0xa4] sm:$0xf]
      %v838 = vld [vmem:[%s1 + $0xa8] sm:$0xf]
      %v839 = vld [vmem:[%s1 + $0xac] sm:$0xf]
      %v840 = vld [vmem:[%s1 + $0xb0] sm:$0xf]
      %v841 = vld [vmem:[%s1 + $0xb4] sm:$0xf]
      %v842 = vld [vmem:[%s1 + $0xb8] sm:$0xf]
      %v843 = vld [vmem:[%s1 + $0xbc] sm:$0xf]
      %s844 = sadd.s32 %s211, 1
      %s845 = smul.u32 %s844, 3
      %s846 = smul.addr %s845, 4
      %s847 = scalar_lea.vmem %s204, %s846
      %v848 = vld [vmem:[%s847] sm:$0xf]
      %v849 = vld [vmem:[%s847 + $0x4] sm:$0xf]
      %v850 = vld [vmem:[%s847 + $0x8] sm:$0x1]
      %v851 = vld [vmem:[%s847 + $0xc] sm:$0xf]
      %v852 = vld [vmem:[%s847 + $0x10] sm:$0xf]
      %v853 = vld [vmem:[%s847 + $0x14] sm:$0x1]
      %v854 = vld [vmem:[%s847 + $0x18] sm:$0xf]
      %v855 = vld [vmem:[%s847 + $0x1c] sm:$0xf]
      %v856 = vld [vmem:[%s847 + $0x20] sm:$0x1]
      %v857 = vld [vmem:[%s847 + $0x24] sm:$0xf]
      %v858 = vld [vmem:[%s847 + $0x28] sm:$0xf]
      %v859 = vld [vmem:[%s847 + $0x2c] sm:$0x1]
      %v860 = vld [vmem:[%s847 + $0x30] sm:$0xf]
      %v861 = vld [vmem:[%s847 + $0x34] sm:$0xf]
      %v862 = vld [vmem:[%s847 + $0x38] sm:$0x1]
      %v863 = vld [vmem:[%s847 + $0x3c] sm:$0xf]
      %v864 = vld [vmem:[%s847 + $0x40] sm:$0xf]
      %v865 = vld [vmem:[%s847 + $0x44] sm:$0x1]
      %v866 = vld [vmem:[%s847 + $0x48] sm:$0xf]
      %v867 = vld [vmem:[%s847 + $0x4c] sm:$0xf]
      %v868 = vld [vmem:[%s847 + $0x50] sm:$0x1]
      %v869 = vld [vmem:[%s847 + $0x54] sm:$0xf]
      %v870 = vld [vmem:[%s847 + $0x58] sm:$0xf]
      %v871 = vld [vmem:[%s847 + $0x5c] sm:$0x1]
      %v872 = vld [vmem:[%s847 + $0x60] sm:$0xf]
      %v873 = vld [vmem:[%s847 + $0x64] sm:$0xf]
      %v874 = vld [vmem:[%s847 + $0x68] sm:$0x1]
      %v875 = vld [vmem:[%s847 + $0x6c] sm:$0xf]
      %v876 = vld [vmem:[%s847 + $0x70] sm:$0xf]
      %v877 = vld [vmem:[%s847 + $0x74] sm:$0x1]
      %v878 = vld [vmem:[%s847 + $0x78] sm:$0xf]
      %v879 = vld [vmem:[%s847 + $0x7c] sm:$0xf]
      %v880 = vld [vmem:[%s847 + $0x80] sm:$0x1]
      %v881 = vld [vmem:[%s847 + $0x84] sm:$0xf]
      %v882 = vld [vmem:[%s847 + $0x88] sm:$0xf]
      %v883 = vld [vmem:[%s847 + $0x8c] sm:$0x1]
      %v884 = vld [vmem:[%s847 + $0x90] sm:$0xf]
      %v885 = vld [vmem:[%s847 + $0x94] sm:$0xf]
      %v886 = vld [vmem:[%s847 + $0x98] sm:$0x1]
      %v887 = vld [vmem:[%s847 + $0x9c] sm:$0xf]
      %v888 = vld [vmem:[%s847 + $0xa0] sm:$0xf]
      %v889 = vld [vmem:[%s847 + $0xa4] sm:$0x1]
      %v890 = vld [vmem:[%s847 + $0xa8] sm:$0xf]
      %v891 = vld [vmem:[%s847 + $0xac] sm:$0xf]
      %v892 = vld [vmem:[%s847 + $0xb0] sm:$0x1]
      %v893 = vld [vmem:[%s847 + $0xb4] sm:$0xf]
      %v894 = vld [vmem:[%s847 + $0xb8] sm:$0xf]
      %v895 = vld [vmem:[%s847 + $0xbc] sm:$0x1]
      %v928 = vunpack.c.l.b16 %v848
      %v929 = vunpack.c.l.b16 %v849
      %v930 = vunpack.c.l.b16 %v851
      %v931 = vunpack.c.l.b16 %v852
      %v932 = vunpack.c.l.b16 %v854
      %v933 = vunpack.c.l.b16 %v855
      %v934 = vunpack.c.l.b16 %v857
      %v935 = vunpack.c.l.b16 %v858
      %v936 = vunpack.c.l.b16 %v860
      %v937 = vunpack.c.l.b16 %v861
      %v938 = vunpack.c.l.b16 %v863
      %v939 = vunpack.c.l.b16 %v864
      %v940 = vunpack.c.l.b16 %v866
      %v941 = vunpack.c.l.b16 %v867
      %v942 = vunpack.c.l.b16 %v869
      %v943 = vunpack.c.l.b16 %v870
      %v944 = vunpack.c.l.b16 %v872
      %v945 = vunpack.c.l.b16 %v873
      %v946 = vunpack.c.l.b16 %v875
      %v947 = vunpack.c.l.b16 %v876
      %v948 = vunpack.c.l.b16 %v878
      %v949 = vunpack.c.l.b16 %v879
      %v950 = vunpack.c.l.b16 %v881
      %v951 = vunpack.c.l.b16 %v882
      %v952 = vunpack.c.l.b16 %v884
      %v953 = vunpack.c.l.b16 %v885
      %v954 = vunpack.c.l.b16 %v887
      %v955 = vunpack.c.l.b16 %v888
      %v956 = vunpack.c.l.b16 %v890
      %v957 = vunpack.c.l.b16 %v891
      %v958 = vunpack.c.l.b16 %v893
      %v959 = vunpack.c.l.b16 %v894
      %v960 = vpack.c.b16 %v929, %v928
      %v961 = vpack.c.b16 %v931, %v930
      %v962 = vpack.c.b16 %v933, %v932
      %v963 = vpack.c.b16 %v935, %v934
      %v964 = vpack.c.b16 %v937, %v936
      %v965 = vpack.c.b16 %v939, %v938
      %v966 = vpack.c.b16 %v941, %v940
      %v967 = vpack.c.b16 %v943, %v942
      %v968 = vpack.c.b16 %v945, %v944
      %v969 = vpack.c.b16 %v947, %v946
      %v970 = vpack.c.b16 %v949, %v948
      %v971 = vpack.c.b16 %v951, %v950
      %v972 = vpack.c.b16 %v953, %v952
      %v973 = vpack.c.b16 %v955, %v954
      %v974 = vpack.c.b16 %v957, %v956
      %v975 = vpack.c.b16 %v959, %v958
      %v1008 = vunpack.c.l.b16 %v850
      %v1009 = vunpack.c.l.b16 %v853
      %v1010 = vunpack.c.l.b16 %v856
      %v1011 = vunpack.c.l.b16 %v859
      %v1012 = vunpack.c.l.b16 %v862
      %v1013 = vunpack.c.l.b16 %v865
      %v1014 = vunpack.c.l.b16 %v868
      %v1015 = vunpack.c.l.b16 %v871
      %v1016 = vunpack.c.l.b16 %v874
      %v1017 = vunpack.c.l.b16 %v877
      %v1018 = vunpack.c.l.b16 %v880
      %v1019 = vunpack.c.l.b16 %v883
      %v1020 = vunpack.c.l.b16 %v886
      %v1021 = vunpack.c.l.b16 %v889
      %v1022 = vunpack.c.l.b16 %v892
      %v1023 = vunpack.c.l.b16 %v895
      %v1024 = vpack.c.b16 %v1008, %v1008
      %v1025 = vpack.c.b16 %v1009, %v1009
      %v1026 = vpack.c.b16 %v1010, %v1010
      %v1027 = vpack.c.b16 %v1011, %v1011
      %v1028 = vpack.c.b16 %v1012, %v1012
      %v1029 = vpack.c.b16 %v1013, %v1013
      %v1030 = vpack.c.b16 %v1014, %v1014
      %v1031 = vpack.c.b16 %v1015, %v1015
      %v1032 = vpack.c.b16 %v1016, %v1016
      %v1033 = vpack.c.b16 %v1017, %v1017
      %v1034 = vpack.c.b16 %v1018, %v1018
      %v1035 = vpack.c.b16 %v1019, %v1019
      %v1036 = vpack.c.b16 %v1020, %v1020
      %v1037 = vpack.c.b16 %v1021, %v1021
      %v1038 = vpack.c.b16 %v1022, %v1022
      %v1039 = vpack.c.b16 %v1023, %v1023
      %v1041 = vshrl.u32 %v960, 16
      %v1043 = vshll.u32 %v960, 16
      %v1045 = vrot.slane %v1043, 1
      %v1046 = vor.u32 %v1041, %v1045
      %v1048 = vshll.u32 %v1024, 16
      %v1050 = vrot.slane %v1048, 1
      %v1051 = vsel %vm522, %v1046, %v1050
      %v1053 = vshrl.u32 %v961, 16
      %v1055 = vshll.u32 %v961, 16
      %v1057 = vrot.slane %v1055, 1
      %v1058 = vor.u32 %v1053, %v1057
      %v1060 = vshll.u32 %v1025, 16
      %v1062 = vrot.slane %v1060, 1
      %v1063 = vsel %vm522, %v1058, %v1062
      %v1065 = vshrl.u32 %v962, 16
      %v1067 = vshll.u32 %v962, 16
      %v1069 = vrot.slane %v1067, 1
      %v1070 = vor.u32 %v1065, %v1069
      %v1072 = vshll.u32 %v1026, 16
      %v1074 = vrot.slane %v1072, 1
      %v1075 = vsel %vm522, %v1070, %v1074
      %v1077 = vshrl.u32 %v963, 16
      %v1079 = vshll.u32 %v963, 16
      %v1081 = vrot.slane %v1079, 1
      %v1082 = vor.u32 %v1077, %v1081
      %v1084 = vshll.u32 %v1027, 16
      %v1086 = vrot.slane %v1084, 1
      %v1087 = vsel %vm522, %v1082, %v1086
      %v1089 = vshrl.u32 %v964, 16
      %v1091 = vshll.u32 %v964, 16
      %v1093 = vrot.slane %v1091, 1
      %v1094 = vor.u32 %v1089, %v1093
      %v1096 = vshll.u32 %v1028, 16
      %v1098 = vrot.slane %v1096, 1
      %v1099 = vsel %vm522, %v1094, %v1098
      %v1101 = vshrl.u32 %v965, 16
      %v1103 = vshll.u32 %v965, 16
      %v1105 = vrot.slane %v1103, 1
      %v1106 = vor.u32 %v1101, %v1105
      %v1108 = vshll.u32 %v1029, 16
      %v1110 = vrot.slane %v1108, 1
      %v1111 = vsel %vm522, %v1106, %v1110
      %v1113 = vshrl.u32 %v966, 16
      %v1115 = vshll.u32 %v966, 16
      %v1117 = vrot.slane %v1115, 1
      %v1118 = vor.u32 %v1113, %v1117
      %v1120 = vshll.u32 %v1030, 16
      %v1122 = vrot.slane %v1120, 1
      %v1123 = vsel %vm522, %v1118, %v1122
      %v1125 = vshrl.u32 %v967, 16
      %v1127 = vshll.u32 %v967, 16
      %v1129 = vrot.slane %v1127, 1
      %v1130 = vor.u32 %v1125, %v1129
      %v1132 = vshll.u32 %v1031, 16
      %v1134 = vrot.slane %v1132, 1
      %v1135 = vsel %vm522, %v1130, %v1134
      %v1137 = vshrl.u32 %v968, 16
      %v1139 = vshll.u32 %v968, 16
      %v1141 = vrot.slane %v1139, 1
      %v1142 = vor.u32 %v1137, %v1141
      %v1144 = vshll.u32 %v1032, 16
      %v1146 = vrot.slane %v1144, 1
      %v1147 = vsel %vm522, %v1142, %v1146
      %v1149 = vshrl.u32 %v969, 16
      %v1151 = vshll.u32 %v969, 16
      %v1153 = vrot.slane %v1151, 1
      %v1154 = vor.u32 %v1149, %v1153
      %v1156 = vshll.u32 %v1033, 16
      %v1158 = vrot.slane %v1156, 1
      %v1159 = vsel %vm522, %v1154, %v1158
      %v1161 = vshrl.u32 %v970, 16
      %v1163 = vshll.u32 %v970, 16
      %v1165 = vrot.slane %v1163, 1
      %v1166 = vor.u32 %v1161, %v1165
      %v1168 = vshll.u32 %v1034, 16
      %v1170 = vrot.slane %v1168, 1
      %v1171 = vsel %vm522, %v1166, %v1170
      %v1173 = vshrl.u32 %v971, 16
      %v1175 = vshll.u32 %v971, 16
      %v1177 = vrot.slane %v1175, 1
      %v1178 = vor.u32 %v1173, %v1177
      %v1180 = vshll.u32 %v1035, 16
      %v1182 = vrot.slane %v1180, 1
      %v1183 = vsel %vm522, %v1178, %v1182
      %v1185 = vshrl.u32 %v972, 16
      %v1187 = vshll.u32 %v972, 16
      %v1189 = vrot.slane %v1187, 1
      %v1190 = vor.u32 %v1185, %v1189
      %v1192 = vshll.u32 %v1036, 16
      %v1194 = vrot.slane %v1192, 1
      %v1195 = vsel %vm522, %v1190, %v1194
      %v1197 = vshrl.u32 %v973, 16
      %v1199 = vshll.u32 %v973, 16
      %v1201 = vrot.slane %v1199, 1
      %v1202 = vor.u32 %v1197, %v1201
      %v1204 = vshll.u32 %v1037, 16
      %v1206 = vrot.slane %v1204, 1
      %v1207 = vsel %vm522, %v1202, %v1206
      %v1209 = vshrl.u32 %v974, 16
      %v1211 = vshll.u32 %v974, 16
      %v1213 = vrot.slane %v1211, 1
      %v1214 = vor.u32 %v1209, %v1213
      %v1216 = vshll.u32 %v1038, 16
      %v1218 = vrot.slane %v1216, 1
      %v1219 = vsel %vm522, %v1214, %v1218
      %v1221 = vshrl.u32 %v975, 16
      %v1223 = vshll.u32 %v975, 16
      %v1225 = vrot.slane %v1223, 1
      %v1226 = vor.u32 %v1221, %v1225
      %v1228 = vshll.u32 %v1039, 16
      %v1230 = vrot.slane %v1228, 1
      %v1231 = vsel %vm522, %v1226, %v1230
      %v1248 = vrot.slane %v960, 1
      %v1249 = vrot.slane %v1024, 1
      %v1250 = vsel %vm731, %v1248, %v1249
      %v1251 = vrot.slane %v961, 1
      %v1252 = vrot.slane %v1025, 1
      %v1253 = vsel %vm731, %v1251, %v1252
      %v1254 = vrot.slane %v962, 1
      %v1255 = vrot.slane %v1026, 1
      %v1256 = vsel %vm731, %v1254, %v1255
      %v1257 = vrot.slane %v963, 1
      %v1258 = vrot.slane %v1027, 1
      %v1259 = vsel %vm731, %v1257, %v1258
      %v1260 = vrot.slane %v964, 1
      %v1261 = vrot.slane %v1028, 1
      %v1262 = vsel %vm731, %v1260, %v1261
      %v1263 = vrot.slane %v965, 1
      %v1264 = vrot.slane %v1029, 1
      %v1265 = vsel %vm731, %v1263, %v1264
      %v1266 = vrot.slane %v966, 1
      %v1267 = vrot.slane %v1030, 1
      %v1268 = vsel %vm731, %v1266, %v1267
      %v1269 = vrot.slane %v967, 1
      %v1270 = vrot.slane %v1031, 1
      %v1271 = vsel %vm731, %v1269, %v1270
      %v1272 = vrot.slane %v968, 1
      %v1273 = vrot.slane %v1032, 1
      %v1274 = vsel %vm731, %v1272, %v1273
      %v1275 = vrot.slane %v969, 1
      %v1276 = vrot.slane %v1033, 1
      %v1277 = vsel %vm731, %v1275, %v1276
      %v1278 = vrot.slane %v970, 1
      %v1279 = vrot.slane %v1034, 1
      %v1280 = vsel %vm731, %v1278, %v1279
      %v1281 = vrot.slane %v971, 1
      %v1282 = vrot.slane %v1035, 1
      %v1283 = vsel %vm731, %v1281, %v1282
      %v1284 = vrot.slane %v972, 1
      %v1285 = vrot.slane %v1036, 1
      %v1286 = vsel %vm731, %v1284, %v1285
      %v1287 = vrot.slane %v973, 1
      %v1288 = vrot.slane %v1037, 1
      %v1289 = vsel %vm731, %v1287, %v1288
      %v1290 = vrot.slane %v974, 1
      %v1291 = vrot.slane %v1038, 1
      %v1292 = vsel %vm731, %v1290, %v1291
      %v1293 = vrot.slane %v975, 1
      %v1294 = vrot.slane %v1039, 1
      %v1295 = vsel %vm731, %v1293, %v1294
      %s1312 = scalar_lea.vmem %s1, 192
      %v1313 = vld [vmem:[%s1312] sm:$0xf]
      %v1314 = vld [vmem:[%s1312 + $0x4] sm:$0xf]
      %v1315 = vld [vmem:[%s1312 + $0x8] sm:$0xf]
      %v1316 = vld [vmem:[%s1312 + $0xc] sm:$0xf]
      %v1317 = vld [vmem:[%s1312 + $0x10] sm:$0xf]
      %v1318 = vld [vmem:[%s1312 + $0x14] sm:$0xf]
      %v1319 = vld [vmem:[%s1312 + $0x18] sm:$0xf]
      %v1320 = vld [vmem:[%s1312 + $0x1c] sm:$0xf]
      %v1321 = vld [vmem:[%s1312 + $0x20] sm:$0xf]
      %v1322 = vld [vmem:[%s1312 + $0x24] sm:$0xf]
      %v1323 = vld [vmem:[%s1312 + $0x28] sm:$0xf]
      %v1324 = vld [vmem:[%s1312 + $0x2c] sm:$0xf]
      %v1325 = vld [vmem:[%s1312 + $0x30] sm:$0xf]
      %v1326 = vld [vmem:[%s1312 + $0x34] sm:$0xf]
      %v1327 = vld [vmem:[%s1312 + $0x38] sm:$0xf]
      %v1328 = vld [vmem:[%s1312 + $0x3c] sm:$0xf]
      %v1329 = vld [vmem:[%s1312 + $0x40] sm:$0xf]
      %v1330 = vld [vmem:[%s1312 + $0x44] sm:$0xf]
      %v1331 = vld [vmem:[%s1312 + $0x48] sm:$0xf]
      %v1332 = vld [vmem:[%s1312 + $0x4c] sm:$0xf]
      %v1333 = vld [vmem:[%s1312 + $0x50] sm:$0xf]
      %v1334 = vld [vmem:[%s1312 + $0x54] sm:$0xf]
      %v1335 = vld [vmem:[%s1312 + $0x58] sm:$0xf]
      %v1336 = vld [vmem:[%s1312 + $0x5c] sm:$0xf]
      %v1337 = vld [vmem:[%s1312 + $0x60] sm:$0xf]
      %v1338 = vld [vmem:[%s1312 + $0x64] sm:$0xf]
      %v1339 = vld [vmem:[%s1312 + $0x68] sm:$0xf]
      %v1340 = vld [vmem:[%s1312 + $0x6c] sm:$0xf]
      %v1341 = vld [vmem:[%s1312 + $0x70] sm:$0xf]
      %v1342 = vld [vmem:[%s1312 + $0x74] sm:$0xf]
      %v1343 = vld [vmem:[%s1312 + $0x78] sm:$0xf]
      %v1344 = vld [vmem:[%s1312 + $0x7c] sm:$0xf]
      %v1345 = vld [vmem:[%s1312 + $0x80] sm:$0xf]
      %v1346 = vld [vmem:[%s1312 + $0x84] sm:$0xf]
      %v1347 = vld [vmem:[%s1312 + $0x88] sm:$0xf]
      %v1348 = vld [vmem:[%s1312 + $0x8c] sm:$0xf]
      %v1349 = vld [vmem:[%s1312 + $0x90] sm:$0xf]
      %v1350 = vld [vmem:[%s1312 + $0x94] sm:$0xf]
      %v1351 = vld [vmem:[%s1312 + $0x98] sm:$0xf]
      %v1352 = vld [vmem:[%s1312 + $0x9c] sm:$0xf]
      %v1353 = vld [vmem:[%s1312 + $0xa0] sm:$0xf]
      %v1354 = vld [vmem:[%s1312 + $0xa4] sm:$0xf]
      %v1355 = vld [vmem:[%s1312 + $0xa8] sm:$0xf]
      %v1356 = vld [vmem:[%s1312 + $0xac] sm:$0xf]
      %v1357 = vld [vmem:[%s1312 + $0xb0] sm:$0xf]
      %v1358 = vld [vmem:[%s1312 + $0xb4] sm:$0xf]
      %v1359 = vld [vmem:[%s1312 + $0xb8] sm:$0xf]
      %v1360 = vld [vmem:[%s1312 + $0xbc] sm:$0xf]
      %v1409 = vunpack.c.l.b16 %v1313
      %v1410 = vunpack.c.l.b16 %v1314
      %v1411 = vunpack.c.l.b16 %v1315
      %v1412 = vunpack.c.l.b16 %v1316
      %v1413 = vunpack.c.l.b16 %v1317
      %v1414 = vunpack.c.l.b16 %v1318
      %v1415 = vunpack.c.l.b16 %v1319
      %v1416 = vunpack.c.l.b16 %v1320
      %v1417 = vunpack.c.l.b16 %v1321
      %v1418 = vunpack.c.l.b16 %v1322
      %v1419 = vunpack.c.l.b16 %v1323
      %v1420 = vunpack.c.l.b16 %v1324
      %v1421 = vunpack.c.l.b16 %v1325
      %v1422 = vunpack.c.l.b16 %v1326
      %v1423 = vunpack.c.l.b16 %v1327
      %v1424 = vunpack.c.l.b16 %v1328
      %v1425 = vunpack.c.l.b16 %v1329
      %v1426 = vunpack.c.l.b16 %v1330
      %v1427 = vunpack.c.l.b16 %v1331
      %v1428 = vunpack.c.l.b16 %v1332
      %v1429 = vunpack.c.l.b16 %v1333
      %v1430 = vunpack.c.l.b16 %v1334
      %v1431 = vunpack.c.l.b16 %v1335
      %v1432 = vunpack.c.l.b16 %v1336
      %v1433 = vunpack.c.l.b16 %v1337
      %v1434 = vunpack.c.l.b16 %v1338
      %v1435 = vunpack.c.l.b16 %v1339
      %v1436 = vunpack.c.l.b16 %v1340
      %v1437 = vunpack.c.l.b16 %v1341
      %v1438 = vunpack.c.l.b16 %v1342
      %v1439 = vunpack.c.l.b16 %v1343
      %v1440 = vunpack.c.l.b16 %v1344
      %v1441 = vunpack.c.l.b16 %v1345
      %v1442 = vunpack.c.l.b16 %v1346
      %v1443 = vunpack.c.l.b16 %v1347
      %v1444 = vunpack.c.l.b16 %v1348
      %v1445 = vunpack.c.l.b16 %v1349
      %v1446 = vunpack.c.l.b16 %v1350
      %v1447 = vunpack.c.l.b16 %v1351
      %v1448 = vunpack.c.l.b16 %v1352
      %v1449 = vunpack.c.l.b16 %v1353
      %v1450 = vunpack.c.l.b16 %v1354
      %v1451 = vunpack.c.l.b16 %v1355
      %v1452 = vunpack.c.l.b16 %v1356
      %v1453 = vunpack.c.l.b16 %v1357
      %v1454 = vunpack.c.l.b16 %v1358
      %v1455 = vunpack.c.l.b16 %v1359
      %v1456 = vunpack.c.l.b16 %v1360
      %v1457 = vpack.c.b16 %v1410, %v1409
      %v1458 = vpack.c.b16 %v1412, %v1411
      %v1459 = vpack.c.b16 %v1414, %v1413
      %v1460 = vpack.c.b16 %v1416, %v1415
      %v1461 = vpack.c.b16 %v1418, %v1417
      %v1462 = vpack.c.b16 %v1420, %v1419
      %v1463 = vpack.c.b16 %v1422, %v1421
      %v1464 = vpack.c.b16 %v1424, %v1423
      %v1465 = vpack.c.b16 %v1426, %v1425
      %v1466 = vpack.c.b16 %v1428, %v1427
      %v1467 = vpack.c.b16 %v1430, %v1429
      %v1468 = vpack.c.b16 %v1432, %v1431
      %v1469 = vpack.c.b16 %v1434, %v1433
      %v1470 = vpack.c.b16 %v1436, %v1435
      %v1471 = vpack.c.b16 %v1438, %v1437
      %v1472 = vpack.c.b16 %v1440, %v1439
      %v1473 = vpack.c.b16 %v1442, %v1441
      %v1474 = vpack.c.b16 %v1444, %v1443
      %v1475 = vpack.c.b16 %v1446, %v1445
      %v1476 = vpack.c.b16 %v1448, %v1447
      %v1477 = vpack.c.b16 %v1450, %v1449
      %v1478 = vpack.c.b16 %v1452, %v1451
      %v1479 = vpack.c.b16 %v1454, %v1453
      %v1480 = vpack.c.b16 %v1456, %v1455
      %1505 = vmatprep.subr.bf16.mxu0 0
      %1506 = vmatpush1.bf16.msra.mxu0 %v1457
      %1507 = vmatprep.subr.bf16.mxu0 0
      %1508 = vmatpush1.bf16.msra.mxu0 %v1458
      %1509 = vmatprep.subr.bf16.mxu0 0
      %1510 = vmatpush1.bf16.msra.mxu0 %v1459
      %1511 = vmatprep.subr.bf16.mxu0 0
      %1512 = vmatpush1.bf16.msra.mxu0 %v1460
      %1513 = vmatprep.subr.bf16.mxu0 0
      %1514 = vmatpush1.bf16.msra.mxu0 %v1461
      %1515 = vmatprep.subr.bf16.mxu0 0
      %1516 = vmatpush1.bf16.msra.mxu0 %v1462
      %1517 = vmatprep.subr.bf16.mxu0 0
      %1518 = vmatpush1.bf16.msra.mxu0 %v1463
      %1519 = vmatprep.subr.bf16.mxu0 0
      %1520 = vmatpush1.bf16.msra.mxu0 %v1464
      %1521 = vmatprep.subr.bf16.mxu0 0
      %1522 = vmatpush1.bf16.msra.mxu0 %v1465
      %1523 = vmatprep.subr.bf16.mxu0 0
      %1524 = vmatpush1.bf16.msra.mxu0 %v1466
      %1525 = vmatprep.subr.bf16.mxu0 0
      %1526 = vmatpush1.bf16.msra.mxu0 %v1467
      %1527 = vmatprep.subr.bf16.mxu0 0
      %1528 = vmatpush1.bf16.msra.mxu0 %v1468
      %1529 = vmatprep.subr.bf16.mxu0 0
      %1530 = vmatpush1.bf16.msra.mxu0 %v1469
      %1531 = vmatprep.subr.bf16.mxu0 0
      %1532 = vmatpush1.bf16.msra.mxu0 %v1470
      %1533 = vmatprep.subr.bf16.mxu0 0
      %1534 = vmatpush1.bf16.msra.mxu0 %v1471
      %1535 = vmatprep.subr.bf16.mxu0 0
      %1536 = vmatpush1.bf16.msra.mxu0 %v1472
      %1537 = vmatprep.mubr.bf16.mxu0 %v1051
      %1538 = vmatmul.mubr.bf16.gmra.mrb[0].mxu0 %v960
      %v1539 = vpop.f32.mrb[0].mxu0
      %v1540 = vadd.f32 0.0, %v1539
      %v1541 = vpop.f32.mrb[0].mxu0
      %v1542 = vpop.f32.mrb[0].mxu0
      %v1543 = vadd.f32 0.0, %v1542
      %v1544 = vpop.f32.mrb[0].mxu0
      %1545 = vmatprep.mubr.bf16.mxu0 %v1063
      %1546 = vmatmul.mubr.bf16.gmra.mrb[0].mxu0 %v961
      %v1547 = vpop.f32.mrb[0].mxu0
      %v1548 = vadd.f32 0.0, %v1547
      %v1549 = vpop.f32.mrb[0].mxu0
      %v1550 = vpop.f32.mrb[0].mxu0
      %v1551 = vadd.f32 0.0, %v1550
      %v1552 = vpop.f32.mrb[0].mxu0
      %1553 = vmatprep.mubr.bf16.mxu0 %v1075
      %1554 = vmatmul.mubr.bf16.gmra.mrb[0].mxu0 %v962
      %v1555 = vpop.f32.mrb[0].mxu0
      %v1556 = vadd.f32 0.0, %v1555
      %v1557 = vpop.f32.mrb[0].mxu0
      %v1558 = vpop.f32.mrb[0].mxu0
      %v1559 = vadd.f32 0.0, %v1558
      %v1560 = vpop.f32.mrb[0].mxu0
      %1561 = vmatprep.mubr.bf16.mxu0 %v1087
      %1562 = vmatmul.mubr.bf16.gmra.mrb[0].mxu0 %v963
      %v1563 = vpop.f32.mrb[0].mxu0
      %v1564 = vadd.f32 0.0, %v1563
      %v1565 = vpop.f32.mrb[0].mxu0
      %v1566 = vpop.f32.mrb[0].mxu0
      %v1567 = vadd.f32 0.0, %v1566
      %v1568 = vpop.f32.mrb[0].mxu0
      %1569 = vmatprep.mubr.bf16.mxu0 %v1099
      %1570 = vmatmul.mubr.bf16.gmra.mrb[0].mxu0 %v964
      %v1571 = vpop.f32.mrb[0].mxu0
      %v1572 = vadd.f32 0.0, %v1571
      %v1573 = vpop.f32.mrb[0].mxu0
      %v1574 = vpop.f32.mrb[0].mxu0
      %v1575 = vadd.f32 0.0, %v1574
      %v1576 = vpop.f32.mrb[0].mxu0
      %1577 = vmatprep.mubr.bf16.mxu0 %v1111
      %1578 = vmatmul.mubr.bf16.gmra.mrb[0].mxu0 %v965
      %v1579 = vpop.f32.mrb[0].mxu0
      %v1580 = vadd.f32 0.0, %v1579
      %v1581 = vpop.f32.mrb[0].mxu0
      %v1582 = vpop.f32.mrb[0].mxu0
      %v1583 = vadd.f32 0.0, %v1582
      %v1584 = vpop.f32.mrb[0].mxu0
      %1585 = vmatprep.mubr.bf16.mxu0 %v1123
      %1586 = vmatmul.mubr.bf16.gmra.mrb[0].mxu0 %v966
      %v1587 = vpop.f32.mrb[0].mxu0
      %v1588 = vadd.f32 0.0, %v1587
      %v1589 = vpop.f32.mrb[0].mxu0
      %v1590 = vpop.f32.mrb[0].mxu0
      %v1591 = vadd.f32 0.0, %v1590
      %v1592 = vpop.f32.mrb[0].mxu0
      %1593 = vmatprep.mubr.bf16.mxu0 %v1135
      %1594 = vmatmul.mubr.bf16.gmra.mrb[0].mxu0 %v967
      %v1595 = vpop.f32.mrb[0].mxu0
      %v1596 = vadd.f32 0.0, %v1595
      %v1597 = vpop.f32.mrb[0].mxu0
      %v1598 = vpop.f32.mrb[0].mxu0
      %v1599 = vadd.f32 0.0, %v1598
      %v1600 = vpop.f32.mrb[0].mxu0
      %1601 = vmatprep.mubr.bf16.mxu0 %v1147
      %1602 = vmatmul.mubr.bf16.gmra.mrb[0].mxu0 %v968
      %v1603 = vpop.f32.mrb[0].mxu0
      %v1604 = vadd.f32 0.0, %v1603
      %v1605 = vpop.f32.mrb[0].mxu0
      %v1606 = vpop.f32.mrb[0].mxu0
      %v1607 = vadd.f32 0.0, %v1606
      %v1608 = vpop.f32.mrb[0].mxu0
      %1609 = vmatprep.mubr.bf16.mxu0 %v1159
      %1610 = vmatmul.mubr.bf16.gmra.mrb[0].mxu0 %v969
      %v1611 = vpop.f32.mrb[0].mxu0
      %v1612 = vadd.f32 0.0, %v1611
      %v1613 = vpop.f32.mrb[0].mxu0
      %v1614 = vpop.f32.mrb[0].mxu0
      %v1615 = vadd.f32 0.0, %v1614
      %v1616 = vpop.f32.mrb[0].mxu0
      %1617 = vmatprep.mubr.bf16.mxu0 %v1171
      %1618 = vmatmul.mubr.bf16.gmra.mrb[0].mxu0 %v970
      %v1619 = vpop.f32.mrb[0].mxu0
      %v1620 = vadd.f32 0.0, %v1619
      %v1621 = vpop.f32.mrb[0].mxu0
      %v1622 = vpop.f32.mrb[0].mxu0
      %v1623 = vadd.f32 0.0, %v1622
      %v1624 = vpop.f32.mrb[0].mxu0
      %1625 = vmatprep.mubr.bf16.mxu0 %v1183
      %1626 = vmatmul.mubr.bf16.gmra.mrb[0].mxu0 %v971
      %v1627 = vpop.f32.mrb[0].mxu0
      %v1628 = vadd.f32 0.0, %v1627
      %v1629 = vpop.f32.mrb[0].mxu0
      %v1630 = vpop.f32.mrb[0].mxu0
      %v1631 = vadd.f32 0.0, %v1630
      %v1632 = vpop.f32.mrb[0].mxu0
      %1633 = vmatprep.mubr.bf16.mxu0 %v1195
      %1634 = vmatmul.mubr.bf16.gmra.mrb[0].mxu0 %v972
      %v1635 = vpop.f32.mrb[0].mxu0
      %v1636 = vadd.f32 0.0, %v1635
      %v1637 = vpop.f32.mrb[0].mxu0
      %v1638 = vpop.f32.mrb[0].mxu0
      %v1639 = vadd.f32 0.0, %v1638
      %v1640 = vpop.f32.mrb[0].mxu0
      %1641 = vmatprep.mubr.bf16.mxu0 %v1207
      %1642 = vmatmul.mubr.bf16.gmra.mrb[0].mxu0 %v973
      %v1643 = vpop.f32.mrb[0].mxu0
      %v1644 = vadd.f32 0.0, %v1643
      %v1645 = vpop.f32.mrb[0].mxu0
      %v1646 = vpop.f32.mrb[0].mxu0
      %v1647 = vadd.f32 0.0, %v1646
      %v1648 = vpop.f32.mrb[0].mxu0
      %1649 = vmatprep.mubr.bf16.mxu0 %v1219
      %1650 = vmatmul.mubr.bf16.gmra.mrb[0].mxu0 %v974
      %v1651 = vpop.f32.mrb[0].mxu0
      %v1652 = vadd.f32 0.0, %v1651
      %v1653 = vpop.f32.mrb[0].mxu0
      %v1654 = vpop.f32.mrb[0].mxu0
      %v1655 = vadd.f32 0.0, %v1654
      %v1656 = vpop.f32.mrb[0].mxu0
      %1657 = vmatprep.mubr.bf16.mxu0 %v1231
      %1658 = vmatmul.mubr.bf16.gmra.mrb[0].mxu0 %v975
      %v1659 = vpop.f32.mrb[0].mxu0
      %v1660 = vadd.f32 0.0, %v1659
      %v1661 = vpop.f32.mrb[0].mxu0
      %v1662 = vpop.f32.mrb[0].mxu0
      %v1663 = vadd.f32 0.0, %v1662
      %v1664 = vpop.f32.mrb[0].mxu0
      %1665 = vdwg.mxu0
      %1666 = vmatprep.subr.bf16.mxu0 0
      %1667 = vmatpush1.bf16.msra.mxu0 %v1473
      %1668 = vmatprep.subr.bf16.mxu0 0
      %1669 = vmatpush1.bf16.msra.mxu0 %v1474
      %1670 = vmatprep.subr.bf16.mxu0 0
      %1671 = vmatpush1.bf16.msra.mxu0 %v1475
      %1672 = vmatprep.subr.bf16.mxu0 0
      %1673 = vmatpush1.bf16.msra.mxu0 %v1476
      %1674 = vmatprep.subr.bf16.mxu0 0
      %1675 = vmatpush1.bf16.msra.mxu0 %v1477
      %1676 = vmatprep.subr.bf16.mxu0 0
      %1677 = vmatpush1.bf16.msra.mxu0 %v1478
      %1678 = vmatprep.subr.bf16.mxu0 0
      %1679 = vmatpush1.bf16.msra.mxu0 %v1479
      %1680 = vmatprep.subr.bf16.mxu0 0
      %1681 = vmatpush1.bf16.msra.mxu0 %v1480
      %1682 = vmatprep.subr.bf16.mxu0 0
      %1683 = vmatpush1.bf16.msra.mxu0 0
      %1684 = vmatprep.subr.bf16.mxu0 0
      %1685 = vmatpush1.bf16.msra.mxu0 0
      %1686 = vmatprep.subr.bf16.mxu0 0
      %1687 = vmatpush1.bf16.msra.mxu0 0
      %1688 = vmatprep.subr.bf16.mxu0 0
      %1689 = vmatpush1.bf16.msra.mxu0 0
      %1690 = vmatprep.subr.bf16.mxu0 0
      %1691 = vmatpush1.bf16.msra.mxu0 0
      %1692 = vmatprep.subr.bf16.mxu0 0
      %1693 = vmatpush1.bf16.msra.mxu0 0
      %1694 = vmatprep.subr.bf16.mxu0 0
      %1695 = vmatpush1.bf16.msra.mxu0 0
      %1696 = vmatprep.subr.bf16.mxu0 0
      %1697 = vmatpush1.bf16.msra.mxu0 0
      %1698 = vmatprep.mubr.bf16.mxu0 0
      %1699 = vmatmul.mubr.bf16.gmra.mrb[0].mxu0 %v1250
      %v1700 = vpop.f32.mrb[0].mxu0
      %v1701 = vadd.f32 %v1540, %v1700
      %v1702 = vpop.f32.mrb[0].mxu0
      %v1703 = vpop.f32.mrb[0].mxu0
      %v1704 = vadd.f32 %v1543, %v1703
      %v1705 = vpop.f32.mrb[0].mxu0
      %1706 = vmatprep.mubr.bf16.mxu0 0
      %1707 = vmatmul.mubr.bf16.gmra.mrb[0].mxu0 %v1253
      %v1708 = vpop.f32.mrb[0].mxu0
      %v1709 = vadd.f32 %v1548, %v1708
      %v1710 = vpop.f32.mrb[0].mxu0
      %v1711 = vpop.f32.mrb[0].mxu0
      %v1712 = vadd.f32 %v1551, %v1711
      %v1713 = vpop.f32.mrb[0].mxu0
      %1714 = vmatprep.mubr.bf16.mxu0 0
      %1715 = vmatmul.mubr.bf16.gmra.mrb[0].mxu0 %v1256
      %v1716 = vpop.f32.mrb[0].mxu0
      %v1717 = vadd.f32 %v1556, %v1716
      %v1718 = vpop.f32.mrb[0].mxu0
      %v1719 = vpop.f32.mrb[0].mxu0
      %v1720 = vadd.f32 %v1559, %v1719
      %v1721 = vpop.f32.mrb[0].mxu0
      %1722 = vmatprep.mubr.bf16.mxu0 0
      %1723 = vmatmul.mubr.bf16.gmra.mrb[0].mxu0 %v1259
      %v1724 = vpop.f32.mrb[0].mxu0
      %v1725 = vadd.f32 %v1564, %v1724
      %v1726 = vpop.f32.mrb[0].mxu0
      %v1727 = vpop.f32.mrb[0].mxu0
      %v1728 = vadd.f32 %v1567, %v1727
      %v1729 = vpop.f32.mrb[0].mxu0
      %1730 = vmatprep.mubr.bf16.mxu0 0
      %1731 = vmatmul.mubr.bf16.gmra.mrb[0].mxu0 %v1262
      %v1732 = vpop.f32.mrb[0].mxu0
      %v1733 = vadd.f32 %v1572, %v1732
      %v1734 = vpop.f32.mrb[0].mxu0
      %v1735 = vpop.f32.mrb[0].mxu0
      %v1736 = vadd.f32 %v1575, %v1735
      %v1737 = vpop.f32.mrb[0].mxu0
      %1738 = vmatprep.mubr.bf16.mxu0 0
      %1739 = vmatmul.mubr.bf16.gmra.mrb[0].mxu0 %v1265
      %v1740 = vpop.f32.mrb[0].mxu0
      %v1741 = vadd.f32 %v1580, %v1740
      %v1742 = vpop.f32.mrb[0].mxu0
      %v1743 = vpop.f32.mrb[0].mxu0
      %v1744 = vadd.f32 %v1583, %v1743
      %v1745 = vpop.f32.mrb[0].mxu0
      %1746 = vmatprep.mubr.bf16.mxu0 0
      %1747 = vmatmul.mubr.bf16.gmra.mrb[0].mxu0 %v1268
      %v1748 = vpop.f32.mrb[0].mxu0
      %v1749 = vadd.f32 %v1588, %v1748
      %v1750 = vpop.f32.mrb[0].mxu0
      %v1751 = vpop.f32.mrb[0].mxu0
      %v1752 = vadd.f32 %v1591, %v1751
      %v1753 = vpop.f32.mrb[0].mxu0
      %1754 = vmatprep.mubr.bf16.mxu0 0
      %1755 = vmatmul.mubr.bf16.gmra.mrb[0].mxu0 %v1271
      %v1756 = vpop.f32.mrb[0].mxu0
      %v1757 = vadd.f32 %v1596, %v1756
      %v1758 = vpop.f32.mrb[0].mxu0
      %v1759 = vpop.f32.mrb[0].mxu0
      %v1760 = vadd.f32 %v1599, %v1759
      %v1761 = vpop.f32.mrb[0].mxu0
      %1762 = vmatprep.mubr.bf16.mxu0 0
      %1763 = vmatmul.mubr.bf16.gmra.mrb[0].mxu0 %v1274
      %v1764 = vpop.f32.mrb[0].mxu0
      %v1765 = vadd.f32 %v1604, %v1764
      %v1766 = vpop.f32.mrb[0].mxu0
      %v1767 = vpop.f32.mrb[0].mxu0
      %v1768 = vadd.f32 %v1607, %v1767
      %v1769 = vpop.f32.mrb[0].mxu0
      %1770 = vmatprep.mubr.bf16.mxu0 0
      %1771 = vmatmul.mubr.bf16.gmra.mrb[0].mxu0 %v1277
      %v1772 = vpop.f32.mrb[0].mxu0
      %v1773 = vadd.f32 %v1612, %v1772
      %v1774 = vpop.f32.mrb[0].mxu0
      %v1775 = vpop.f32.mrb[0].mxu0
      %v1776 = vadd.f32 %v1615, %v1775
      %v1777 = vpop.f32.mrb[0].mxu0
      %1778 = vmatprep.mubr.bf16.mxu0 0
      %1779 = vmatmul.mubr.bf16.gmra.mrb[0].mxu0 %v1280
      %v1780 = vpop.f32.mrb[0].mxu0
      %v1781 = vadd.f32 %v1620, %v1780
      %v1782 = vpop.f32.mrb[0].mxu0
      %v1783 = vpop.f32.mrb[0].mxu0
      %v1784 = vadd.f32 %v1623, %v1783
      %v1785 = vpop.f32.mrb[0].mxu0
      %1786 = vmatprep.mubr.bf16.mxu0 0
      %1787 = vmatmul.mubr.bf16.gmra.mrb[0].mxu0 %v1283
      %v1788 = vpop.f32.mrb[0].mxu0
      %v1789 = vadd.f32 %v1628, %v1788
      %v1790 = vpop.f32.mrb[0].mxu0
      %v1791 = vpop.f32.mrb[0].mxu0
      %v1792 = vadd.f32 %v1631, %v1791
      %v1793 = vpop.f32.mrb[0].mxu0
      %1794 = vmatprep.mubr.bf16.mxu0 0
      %1795 = vmatmul.mubr.bf16.gmra.mrb[0].mxu0 %v1286
      %v1796 = vpop.f32.mrb[0].mxu0
      %v1797 = vadd.f32 %v1636, %v1796
      %v1798 = vpop.f32.mrb[0].mxu0
      %v1799 = vpop.f32.mrb[0].mxu0
      %v1800 = vadd.f32 %v1639, %v1799
      %v1801 = vpop.f32.mrb[0].mxu0
      %1802 = vmatprep.mubr.bf16.mxu0 0
      %1803 = vmatmul.mubr.bf16.gmra.mrb[0].mxu0 %v1289
      %v1804 = vpop.f32.mrb[0].mxu0
      %v1805 = vadd.f32 %v1644, %v1804
      %v1806 = vpop.f32.mrb[0].mxu0
      %v1807 = vpop.f32.mrb[0].mxu0
      %v1808 = vadd.f32 %v1647, %v1807
      %v1809 = vpop.f32.mrb[0].mxu0
      %1810 = vmatprep.mubr.bf16.mxu0 0
      %1811 = vmatmul.mubr.bf16.gmra.mrb[0].mxu0 %v1292
      %v1812 = vpop.f32.mrb[0].mxu0
      %v1813 = vadd.f32 %v1652, %v1812
      %v1814 = vpop.f32.mrb[0].mxu0
      %v1815 = vpop.f32.mrb[0].mxu0
      %v1816 = vadd.f32 %v1655, %v1815
      %v1817 = vpop.f32.mrb[0].mxu0
      %1818 = vmatprep.mubr.bf16.mxu0 0
      %1819 = vmatmul.mubr.bf16.gmra.mrb[0].mxu0 %v1295
      %v1820 = vpop.f32.mrb[0].mxu0
      %v1821 = vadd.f32 %v1660, %v1820
      %v1822 = vpop.f32.mrb[0].mxu0
      %v1823 = vpop.f32.mrb[0].mxu0
      %v1824 = vadd.f32 %v1663, %v1823
      %v1825 = vpop.f32.mrb[0].mxu0
      %1826 = vdwg.mxu0
      %v1875 = vunpack.c.l.b16 %v796
      %v1876 = vunpack.c.l.b16 %v797
      %v1877 = vunpack.c.l.b16 %v798
      %v1878 = vunpack.c.l.b16 %v799
      %v1879 = vunpack.c.l.b16 %v800
      %v1880 = vunpack.c.l.b16 %v801
      %v1881 = vunpack.c.l.b16 %v802
      %v1882 = vunpack.c.l.b16 %v803
      %v1883 = vunpack.c.l.b16 %v804
      %v1884 = vunpack.c.l.b16 %v805
      %v1885 = vunpack.c.l.b16 %v806
      %v1886 = vunpack.c.l.b16 %v807
      %v1887 = vunpack.c.l.b16 %v808
      %v1888 = vunpack.c.l.b16 %v809
      %v1889 = vunpack.c.l.b16 %v810
      %v1890 = vunpack.c.l.b16 %v811
      %v1891 = vunpack.c.l.b16 %v812
      %v1892 = vunpack.c.l.b16 %v813
      %v1893 = vunpack.c.l.b16 %v814
      %v1894 = vunpack.c.l.b16 %v815
      %v1895 = vunpack.c.l.b16 %v816
      %v1896 = vunpack.c.l.b16 %v817
      %v1897 = vunpack.c.l.b16 %v818
      %v1898 = vunpack.c.l.b16 %v819
      %v1899 = vunpack.c.l.b16 %v820
      %v1900 = vunpack.c.l.b16 %v821
      %v1901 = vunpack.c.l.b16 %v822
      %v1902 = vunpack.c.l.b16 %v823
      %v1903 = vunpack.c.l.b16 %v824
      %v1904 = vunpack.c.l.b16 %v825
      %v1905 = vunpack.c.l.b16 %v826
      %v1906 = vunpack.c.l.b16 %v827
      %v1907 = vunpack.c.l.b16 %v828
      %v1908 = vunpack.c.l.b16 %v829
      %v1909 = vunpack.c.l.b16 %v830
      %v1910 = vunpack.c.l.b16 %v831
      %v1911 = vunpack.c.l.b16 %v832
      %v1912 = vunpack.c.l.b16 %v833
      %v1913 = vunpack.c.l.b16 %v834
      %v1914 = vunpack.c.l.b16 %v835
      %v1915 = vunpack.c.l.b16 %v836
      %v1916 = vunpack.c.l.b16 %v837
      %v1917 = vunpack.c.l.b16 %v838
      %v1918 = vunpack.c.l.b16 %v839
      %v1919 = vunpack.c.l.b16 %v840
      %v1920 = vunpack.c.l.b16 %v841
      %v1921 = vunpack.c.l.b16 %v842
      %v1922 = vunpack.c.l.b16 %v843
      %v1923 = vpack.c.b16 %v1876, %v1875
      %v1924 = vpack.c.b16 %v1878, %v1877
      %v1925 = vpack.c.b16 %v1880, %v1879
      %v1926 = vpack.c.b16 %v1882, %v1881
      %v1927 = vpack.c.b16 %v1884, %v1883
      %v1928 = vpack.c.b16 %v1886, %v1885
      %v1929 = vpack.c.b16 %v1888, %v1887
      %v1930 = vpack.c.b16 %v1890, %v1889
      %v1931 = vpack.c.b16 %v1892, %v1891
      %v1932 = vpack.c.b16 %v1894, %v1893
      %v1933 = vpack.c.b16 %v1896, %v1895
      %v1934 = vpack.c.b16 %v1898, %v1897
      %v1935 = vpack.c.b16 %v1900, %v1899
      %v1936 = vpack.c.b16 %v1902, %v1901
      %v1937 = vpack.c.b16 %v1904, %v1903
      %v1938 = vpack.c.b16 %v1906, %v1905
      %v1939 = vpack.c.b16 %v1908, %v1907
      %v1940 = vpack.c.b16 %v1910, %v1909
      %v1941 = vpack.c.b16 %v1912, %v1911
      %v1942 = vpack.c.b16 %v1914, %v1913
      %v1943 = vpack.c.b16 %v1916, %v1915
      %v1944 = vpack.c.b16 %v1918, %v1917
      %v1945 = vpack.c.b16 %v1920, %v1919
      %v1946 = vpack.c.b16 %v1922, %v1921
      %1971 = vmatprep.subr.bf16.mxu0 0
      %1972 = vmatpush1.bf16.msra.mxu0 %v1923
      %1973 = vmatprep.subr.bf16.mxu0 0
      %1974 = vmatpush1.bf16.msra.mxu0 %v1924
      %1975 = vmatprep.subr.bf16.mxu0 0
      %1976 = vmatpush1.bf16.msra.mxu0 %v1925
      %1977 = vmatprep.subr.bf16.mxu0 0
      %1978 = vmatpush1.bf16.msra.mxu0 %v1926
      %1979 = vmatprep.subr.bf16.mxu0 0
      %1980 = vmatpush1.bf16.msra.mxu0 %v1927
      %1981 = vmatprep.subr.bf16.mxu0 0
      %1982 = vmatpush1.bf16.msra.mxu0 %v1928
      %1983 = vmatprep.subr.bf16.mxu0 0
      %1984 = vmatpush1.bf16.msra.mxu0 %v1929
      %1985 = vmatprep.subr.bf16.mxu0 0
      %1986 = vmatpush1.bf16.msra.mxu0 %v1930
      %1987 = vmatprep.subr.bf16.mxu0 0
      %1988 = vmatpush1.bf16.msra.mxu0 %v1931
      %1989 = vmatprep.subr.bf16.mxu0 0
      %1990 = vmatpush1.bf16.msra.mxu0 %v1932
      %1991 = vmatprep.subr.bf16.mxu0 0
      %1992 = vmatpush1.bf16.msra.mxu0 %v1933
      %1993 = vmatprep.subr.bf16.mxu0 0
      %1994 = vmatpush1.bf16.msra.mxu0 %v1934
      %1995 = vmatprep.subr.bf16.mxu0 0
      %1996 = vmatpush1.bf16.msra.mxu0 %v1935
      %1997 = vmatprep.subr.bf16.mxu0 0
      %1998 = vmatpush1.bf16.msra.mxu0 %v1936
      %1999 = vmatprep.subr.bf16.mxu0 0
      %2000 = vmatpush1.bf16.msra.mxu0 %v1937
      %2001 = vmatprep.subr.bf16.mxu0 0
      %2002 = vmatpush1.bf16.msra.mxu0 %v1938
      %2003 = vmatprep.mubr.bf16.mxu0 %v534
      %2004 = vmatmul.mubr.bf16.gmra.mrb[0].mxu0 %v442
      %v2005 = vpop.f32.mrb[0].mxu0
      %v2006 = vadd.f32 %v1701, %v2005
      %v2007 = vpop.f32.mrb[0].mxu0
      %v2008 = vpop.f32.mrb[0].mxu0
      %v2009 = vadd.f32 %v1704, %v2008
      %v2010 = vpop.f32.mrb[0].mxu0
      %2011 = vmatprep.mubr.bf16.mxu0 %v546
      %2012 = vmatmul.mubr.bf16.gmra.mrb[0].mxu0 %v443
      %v2013 = vpop.f32.mrb[0].mxu0
      %v2014 = vadd.f32 %v1709, %v2013
      %v2015 = vpop.f32.mrb[0].mxu0
      %v2016 = vpop.f32.mrb[0].mxu0
      %v2017 = vadd.f32 %v1712, %v2016
      %v2018 = vpop.f32.mrb[0].mxu0
      %2019 = vmatprep.mubr.bf16.mxu0 %v558
      %2020 = vmatmul.mubr.bf16.gmra.mrb[0].mxu0 %v444
      %v2021 = vpop.f32.mrb[0].mxu0
      %v2022 = vadd.f32 %v1717, %v2021
      %v2023 = vpop.f32.mrb[0].mxu0
      %v2024 = vpop.f32.mrb[0].mxu0
      %v2025 = vadd.f32 %v1720, %v2024
      %v2026 = vpop.f32.mrb[0].mxu0
      %2027 = vmatprep.mubr.bf16.mxu0 %v570
      %2028 = vmatmul.mubr.bf16.gmra.mrb[0].mxu0 %v445
      %v2029 = vpop.f32.mrb[0].mxu0
      %v2030 = vadd.f32 %v1725, %v2029
      %v2031 = vpop.f32.mrb[0].mxu0
      %v2032 = vpop.f32.mrb[0].mxu0
      %v2033 = vadd.f32 %v1728, %v2032
      %v2034 = vpop.f32.mrb[0].mxu0
      %2035 = vmatprep.mubr.bf16.mxu0 %v582
      %2036 = vmatmul.mubr.bf16.gmra.mrb[0].mxu0 %v446
      %v2037 = vpop.f32.mrb[0].mxu0
      %v2038 = vadd.f32 %v1733, %v2037
      %v2039 = vpop.f32.mrb[0].mxu0
      %v2040 = vpop.f32.mrb[0].mxu0
      %v2041 = vadd.f32 %v1736, %v2040
      %v2042 = vpop.f32.mrb[0].mxu0
      %2043 = vmatprep.mubr.bf16.mxu0 %v594
      %2044 = vmatmul.mubr.bf16.gmra.mrb[0].mxu0 %v447
      %v2045 = vpop.f32.mrb[0].mxu0
      %v2046 = vadd.f32 %v1741, %v2045
      %v2047 = vpop.f32.mrb[0].mxu0
      %v2048 = vpop.f32.mrb[0].mxu0
      %v2049 = vadd.f32 %v1744, %v2048
      %v2050 = vpop.f32.mrb[0].mxu0
      %2051 = vmatprep.mubr.bf16.mxu0 %v606
      %2052 = vmatmul.mubr.bf16.gmra.mrb[0].mxu0 %v448
      %v2053 = vpop.f32.mrb[0].mxu0
      %v2054 = vadd.f32 %v1749, %v2053
      %v2055 = vpop.f32.mrb[0].mxu0
      %v2056 = vpop.f32.mrb[0].mxu0
      %v2057 = vadd.f32 %v1752, %v2056
      %v2058 = vpop.f32.mrb[0].mxu0
      %2059 = vmatprep.mubr.bf16.mxu0 %v618
      %2060 = vmatmul.mubr.bf16.gmra.mrb[0].mxu0 %v449
      %v2061 = vpop.f32.mrb[0].mxu0
      %v2062 = vadd.f32 %v1757, %v2061
      %v2063 = vpop.f32.mrb[0].mxu0
      %v2064 = vpop.f32.mrb[0].mxu0
      %v2065 = vadd.f32 %v1760, %v2064
      %v2066 = vpop.f32.mrb[0].mxu0
      %2067 = vmatprep.mubr.bf16.mxu0 %v630
      %2068 = vmatmul.mubr.bf16.gmra.mrb[0].mxu0 %v450
      %v2069 = vpop.f32.mrb[0].mxu0
      %v2070 = vadd.f32 %v1765, %v2069
      %v2071 = vpop.f32.mrb[0].mxu0
      %v2072 = vpop.f32.mrb[0].mxu0
      %v2073 = vadd.f32 %v1768, %v2072
      %v2074 = vpop.f32.mrb[0].mxu0
      %2075 = vmatprep.mubr.bf16.mxu0 %v642
      %2076 = vmatmul.mubr.bf16.gmra.mrb[0].mxu0 %v451
      %v2077 = vpop.f32.mrb[0].mxu0
      %v2078 = vadd.f32 %v1773, %v2077
      %v2079 = vpop.f32.mrb[0].mxu0
      %v2080 = vpop.f32.mrb[0].mxu0
      %v2081 = vadd.f32 %v1776, %v2080
      %v2082 = vpop.f32.mrb[0].mxu0
      %2083 = vmatprep.mubr.bf16.mxu0 %v654
      %2084 = vmatmul.mubr.bf16.gmra.mrb[0].mxu0 %v452
      %v2085 = vpop.f32.mrb[0].mxu0
      %v2086 = vadd.f32 %v1781, %v2085
      %v2087 = vpop.f32.mrb[0].mxu0
      %v2088 = vpop.f32.mrb[0].mxu0
      %v2089 = vadd.f32 %v1784, %v2088
      %v2090 = vpop.f32.mrb[0].mxu0
      %2091 = vmatprep.mubr.bf16.mxu0 %v666
      %2092 = vmatmul.mubr.bf16.gmra.mrb[0].mxu0 %v453
      %v2093 = vpop.f32.mrb[0].mxu0
      %v2094 = vadd.f32 %v1789, %v2093
      %v2095 = vpop.f32.mrb[0].mxu0
      %v2096 = vpop.f32.mrb[0].mxu0
      %v2097 = vadd.f32 %v1792, %v2096
      %v2098 = vpop.f32.mrb[0].mxu0
      %2099 = vmatprep.mubr.bf16.mxu0 %v678
      %2100 = vmatmul.mubr.bf16.gmra.mrb[0].mxu0 %v454
      %v2101 = vpop.f32.mrb[0].mxu0
      %v2102 = vadd.f32 %v1797, %v2101
      %v2103 = vpop.f32.mrb[0].mxu0
      %v2104 = vpop.f32.mrb[0].mxu0
      %v2105 = vadd.f32 %v1800, %v2104
      %v2106 = vpop.f32.mrb[0].mxu0
      %2107 = vmatprep.mubr.bf16.mxu0 %v690
      %2108 = vmatmul.mubr.bf16.gmra.mrb[0].mxu0 %v455
      %v2109 = vpop.f32.mrb[0].mxu0
      %v2110 = vadd.f32 %v1805, %v2109
      %v2111 = vpop.f32.mrb[0].mxu0
      %v2112 = vpop.f32.mrb[0].mxu0
      %v2113 = vadd.f32 %v1808, %v2112
      %v2114 = vpop.f32.mrb[0].mxu0
      %2115 = vmatprep.mubr.bf16.mxu0 %v702
      %2116 = vmatmul.mubr.bf16.gmra.mrb[0].mxu0 %v456
      %v2117 = vpop.f32.mrb[0].mxu0
      %v2118 = vadd.f32 %v1813, %v2117
      %v2119 = vpop.f32.mrb[0].mxu0
      %v2120 = vpop.f32.mrb[0].mxu0
      %v2121 = vadd.f32 %v1816, %v2120
      %v2122 = vpop.f32.mrb[0].mxu0
      %2123 = vmatprep.mubr.bf16.mxu0 %v714
      %2124 = vmatmul.mubr.bf16.gmra.mrb[0].mxu0 %v457
      %v2125 = vpop.f32.mrb[0].mxu0
      %v2126 = vadd.f32 %v1821, %v2125
      %v2127 = vpop.f32.mrb[0].mxu0
      %v2128 = vpop.f32.mrb[0].mxu0
      %v2129 = vadd.f32 %v1824, %v2128
      %v2130 = vpop.f32.mrb[0].mxu0
      %2131 = vdwg.mxu0
      %2132 = vmatprep.subr.bf16.mxu0 0
      %2133 = vmatpush1.bf16.msra.mxu0 %v1939
      %2134 = vmatprep.subr.bf16.mxu0 0
      %2135 = vmatpush1.bf16.msra.mxu0 %v1940
      %2136 = vmatprep.subr.bf16.mxu0 0
      %2137 = vmatpush1.bf16.msra.mxu0 %v1941
      %2138 = vmatprep.subr.bf16.mxu0 0
      %2139 = vmatpush1.bf16.msra.mxu0 %v1942
      %2140 = vmatprep.subr.bf16.mxu0 0
      %2141 = vmatpush1.bf16.msra.mxu0 %v1943
      %2142 = vmatprep.subr.bf16.mxu0 0
      %2143 = vmatpush1.bf16.msra.mxu0 %v1944
      %2144 = vmatprep.subr.bf16.mxu0 0
      %2145 = vmatpush1.bf16.msra.mxu0 %v1945
      %2146 = vmatprep.subr.bf16.mxu0 0
      %2147 = vmatpush1.bf16.msra.mxu0 %v1946
      %2148 = vmatprep.subr.bf16.mxu0 0
      %2149 = vmatpush1.bf16.msra.mxu0 0
      %2150 = vmatprep.subr.bf16.mxu0 0
      %2151 = vmatpush1.bf16.msra.mxu0 0
      %2152 = vmatprep.subr.bf16.mxu0 0
      %2153 = vmatpush1.bf16.msra.mxu0 0
      %2154 = vmatprep.subr.bf16.mxu0 0
      %2155 = vmatpush1.bf16.msra.mxu0 0
      %2156 = vmatprep.subr.bf16.mxu0 0
      %2157 = vmatpush1.bf16.msra.mxu0 0
      %2158 = vmatprep.subr.bf16.mxu0 0
      %2159 = vmatpush1.bf16.msra.mxu0 0
      %2160 = vmatprep.subr.bf16.mxu0 0
      %2161 = vmatpush1.bf16.msra.mxu0 0
      %2162 = vmatprep.subr.bf16.mxu0 0
      %2163 = vmatpush1.bf16.msra.mxu0 0
      %2164 = vmatprep.mubr.bf16.mxu0 0
      %2165 = vmatmul.mubr.bf16.gmra.mrb[0].mxu0 %v734
      %v2166 = vpop.f32.mrb[0].mxu0
      %v2167 = vadd.f32 %v2006, %v2166
      %v2168 = vpop.f32.mrb[0].mxu0
      %v2169 = vpop.f32.mrb[0].mxu0
      %v2170 = vadd.f32 %v2009, %v2169
      %v2171 = vpop.f32.mrb[0].mxu0
      %2172 = vmatprep.mubr.bf16.mxu0 0
      %2173 = vmatmul.mubr.bf16.gmra.mrb[0].mxu0 %v737
      %v2174 = vpop.f32.mrb[0].mxu0
      %v2175 = vadd.f32 %v2014, %v2174
      %v2176 = vpop.f32.mrb[0].mxu0
      %v2177 = vpop.f32.mrb[0].mxu0
      %v2178 = vadd.f32 %v2017, %v2177
      %v2179 = vpop.f32.mrb[0].mxu0
      %2180 = vmatprep.mubr.bf16.mxu0 0
      %2181 = vmatmul.mubr.bf16.gmra.mrb[0].mxu0 %v740
      %v2182 = vpop.f32.mrb[0].mxu0
      %v2183 = vadd.f32 %v2022, %v2182
      %v2184 = vpop.f32.mrb[0].mxu0
      %v2185 = vpop.f32.mrb[0].mxu0
      %v2186 = vadd.f32 %v2025, %v2185
      %v2187 = vpop.f32.mrb[0].mxu0
      %2188 = vmatprep.mubr.bf16.mxu0 0
      %2189 = vmatmul.mubr.bf16.gmra.mrb[0].mxu0 %v743
      %v2190 = vpop.f32.mrb[0].mxu0
      %v2191 = vadd.f32 %v2030, %v2190
      %v2192 = vpop.f32.mrb[0].mxu0
      %v2193 = vpop.f32.mrb[0].mxu0
      %v2194 = vadd.f32 %v2033, %v2193
      %v2195 = vpop.f32.mrb[0].mxu0
      %2196 = vmatprep.mubr.bf16.mxu0 0
      %2197 = vmatmul.mubr.bf16.gmra.mrb[0].mxu0 %v746
      %v2198 = vpop.f32.mrb[0].mxu0
      %v2199 = vadd.f32 %v2038, %v2198
      %v2200 = vpop.f32.mrb[0].mxu0
      %v2201 = vpop.f32.mrb[0].mxu0
      %v2202 = vadd.f32 %v2041, %v2201
      %v2203 = vpop.f32.mrb[0].mxu0
      %2204 = vmatprep.mubr.bf16.mxu0 0
      %2205 = vmatmul.mubr.bf16.gmra.mrb[0].mxu0 %v749
      %v2206 = vpop.f32.mrb[0].mxu0
      %v2207 = vadd.f32 %v2046, %v2206
      %v2208 = vpop.f32.mrb[0].mxu0
      %v2209 = vpop.f32.mrb[0].mxu0
      %v2210 = vadd.f32 %v2049, %v2209
      %v2211 = vpop.f32.mrb[0].mxu0
      %2212 = vmatprep.mubr.bf16.mxu0 0
      %2213 = vmatmul.mubr.bf16.gmra.mrb[0].mxu0 %v752
      %v2214 = vpop.f32.mrb[0].mxu0
      %v2215 = vadd.f32 %v2054, %v2214
      %v2216 = vpop.f32.mrb[0].mxu0
      %v2217 = vpop.f32.mrb[0].mxu0
      %v2218 = vadd.f32 %v2057, %v2217
      %v2219 = vpop.f32.mrb[0].mxu0
      %2220 = vmatprep.mubr.bf16.mxu0 0
      %2221 = vmatmul.mubr.bf16.gmra.mrb[0].mxu0 %v755
      %v2222 = vpop.f32.mrb[0].mxu0
      %v2223 = vadd.f32 %v2062, %v2222
      %v2224 = vpop.f32.mrb[0].mxu0
      %v2225 = vpop.f32.mrb[0].mxu0
      %v2226 = vadd.f32 %v2065, %v2225
      %v2227 = vpop.f32.mrb[0].mxu0
      %2228 = vmatprep.mubr.bf16.mxu0 0
      %2229 = vmatmul.mubr.bf16.gmra.mrb[0].mxu0 %v758
      %v2230 = vpop.f32.mrb[0].mxu0
      %v2231 = vadd.f32 %v2070, %v2230
      %v2232 = vpop.f32.mrb[0].mxu0
      %v2233 = vpop.f32.mrb[0].mxu0
      %v2234 = vadd.f32 %v2073, %v2233
      %v2235 = vpop.f32.mrb[0].mxu0
      %2236 = vmatprep.mubr.bf16.mxu0 0
      %2237 = vmatmul.mubr.bf16.gmra.mrb[0].mxu0 %v761
      %v2238 = vpop.f32.mrb[0].mxu0
      %v2239 = vadd.f32 %v2078, %v2238
      %v2240 = vpop.f32.mrb[0].mxu0
      %v2241 = vpop.f32.mrb[0].mxu0
      %v2242 = vadd.f32 %v2081, %v2241
      %v2243 = vpop.f32.mrb[0].mxu0
      %2244 = vmatprep.mubr.bf16.mxu0 0
      %2245 = vmatmul.mubr.bf16.gmra.mrb[0].mxu0 %v764
      %v2246 = vpop.f32.mrb[0].mxu0
      %v2247 = vadd.f32 %v2086, %v2246
      %v2248 = vpop.f32.mrb[0].mxu0
      %v2249 = vpop.f32.mrb[0].mxu0
      %v2250 = vadd.f32 %v2089, %v2249
      %v2251 = vpop.f32.mrb[0].mxu0
      %2252 = vmatprep.mubr.bf16.mxu0 0
      %2253 = vmatmul.mubr.bf16.gmra.mrb[0].mxu0 %v767
      %v2254 = vpop.f32.mrb[0].mxu0
      %v2255 = vadd.f32 %v2094, %v2254
      %v2256 = vpop.f32.mrb[0].mxu0
      %v2257 = vpop.f32.mrb[0].mxu0
      %v2258 = vadd.f32 %v2097, %v2257
      %v2259 = vpop.f32.mrb[0].mxu0
      %2260 = vmatprep.mubr.bf16.mxu0 0
      %2261 = vmatmul.mubr.bf16.gmra.mrb[0].mxu0 %v770
      %v2262 = vpop.f32.mrb[0].mxu0
      %v2263 = vadd.f32 %v2102, %v2262
      %v2264 = vpop.f32.mrb[0].mxu0
      %v2265 = vpop.f32.mrb[0].mxu0
      %v2266 = vadd.f32 %v2105, %v2265
      %v2267 = vpop.f32.mrb[0].mxu0
      %2268 = vmatprep.mubr.bf16.mxu0 0
      %2269 = vmatmul.mubr.bf16.gmra.mrb[0].mxu0 %v773
      %v2270 = vpop.f32.mrb[0].mxu0
      %v2271 = vadd.f32 %v2110, %v2270
      %v2272 = vpop.f32.mrb[0].mxu0
      %v2273 = vpop.f32.mrb[0].mxu0
      %v2274 = vadd.f32 %v2113, %v2273
      %v2275 = vpop.f32.mrb[0].mxu0
      %2276 = vmatprep.mubr.bf16.mxu0 0
      %2277 = vmatmul.mubr.bf16.gmra.mrb[0].mxu0 %v776
      %v2278 = vpop.f32.mrb[0].mxu0
      %v2279 = vadd.f32 %v2118, %v2278
      %v2280 = vpop.f32.mrb[0].mxu0
      %v2281 = vpop.f32.mrb[0].mxu0
      %v2282 = vadd.f32 %v2121, %v2281
      %v2283 = vpop.f32.mrb[0].mxu0
      %2284 = vmatprep.mubr.bf16.mxu0 0
      %2285 = vmatmul.mubr.bf16.gmra.mrb[0].mxu0 %v779
      %v2286 = vpop.f32.mrb[0].mxu0
      %v2287 = vadd.f32 %v2126, %v2286
      %v2288 = vpop.f32.mrb[0].mxu0
      %v2289 = vpop.f32.mrb[0].mxu0
      %v2290 = vadd.f32 %v2129, %v2289
      %v2291 = vpop.f32.mrb[0].mxu0
      %2292 = vdwg.mxu0
      %s2293 = sadd.s32 %s211, 2
      %s2294 = smul.u32 %s2293, 3
      %s2295 = smul.addr %s2294, 4
      %s2296 = scalar_lea.vmem %s204, %s2295
      %v2297 = vld [vmem:[%s2296] sm:$0xf]
      %v2298 = vld [vmem:[%s2296 + $0x4] sm:$0xf]
      %v2299 = vld [vmem:[%s2296 + $0x8] sm:$0x1]
      %v2300 = vld [vmem:[%s2296 + $0xc] sm:$0xf]
      %v2301 = vld [vmem:[%s2296 + $0x10] sm:$0xf]
      %v2302 = vld [vmem:[%s2296 + $0x14] sm:$0x1]
      %v2303 = vld [vmem:[%s2296 + $0x18] sm:$0xf]
      %v2304 = vld [vmem:[%s2296 + $0x1c] sm:$0xf]
      %v2305 = vld [vmem:[%s2296 + $0x20] sm:$0x1]
      %v2306 = vld [vmem:[%s2296 + $0x24] sm:$0xf]
      %v2307 = vld [vmem:[%s2296 + $0x28] sm:$0xf]
      %v2308 = vld [vmem:[%s2296 + $0x2c] sm:$0x1]
      %v2309 = vld [vmem:[%s2296 + $0x30] sm:$0xf]
      %v2310 = vld [vmem:[%s2296 + $0x34] sm:$0xf]
      %v2311 = vld [vmem:[%s2296 + $0x38] sm:$0x1]
      %v2312 = vld [vmem:[%s2296 + $0x3c] sm:$0xf]
      %v2313 = vld [vmem:[%s2296 + $0x40] sm:$0xf]
      %v2314 = vld [vmem:[%s2296 + $0x44] sm:$0x1]
      %v2315 = vld [vmem:[%s2296 + $0x48] sm:$0xf]
      %v2316 = vld [vmem:[%s2296 + $0x4c] sm:$0xf]
      %v2317 = vld [vmem:[%s2296 + $0x50] sm:$0x1]
      %v2318 = vld [vmem:[%s2296 + $0x54] sm:$0xf]
      %v2319 = vld [vmem:[%s2296 + $0x58] sm:$0xf]
      %v2320 = vld [vmem:[%s2296 + $0x5c] sm:$0x1]
      %v2321 = vld [vmem:[%s2296 + $0x60] sm:$0xf]
      %v2322 = vld [vmem:[%s2296 + $0x64] sm:$0xf]
      %v2323 = vld [vmem:[%s2296 + $0x68] sm:$0x1]
      %v2324 = vld [vmem:[%s2296 + $0x6c] sm:$0xf]
      %v2325 = vld [vmem:[%s2296 + $0x70] sm:$0xf]
      %v2326 = vld [vmem:[%s2296 + $0x74] sm:$0x1]
      %v2327 = vld [vmem:[%s2296 + $0x78] sm:$0xf]
      %v2328 = vld [vmem:[%s2296 + $0x7c] sm:$0xf]
      %v2329 = vld [vmem:[%s2296 + $0x80] sm:$0x1]
      %v2330 = vld [vmem:[%s2296 + $0x84] sm:$0xf]
      %v2331 = vld [vmem:[%s2296 + $0x88] sm:$0xf]
      %v2332 = vld [vmem:[%s2296 + $0x8c] sm:$0x1]
      %v2333 = vld [vmem:[%s2296 + $0x90] sm:$0xf]
      %v2334 = vld [vmem:[%s2296 + $0x94] sm:$0xf]
      %v2335 = vld [vmem:[%s2296 + $0x98] sm:$0x1]
      %v2336 = vld [vmem:[%s2296 + $0x9c] sm:$0xf]
      %v2337 = vld [vmem:[%s2296 + $0xa0] sm:$0xf]
      %v2338 = vld [vmem:[%s2296 + $0xa4] sm:$0x1]
      %v2339 = vld [vmem:[%s2296 + $0xa8] sm:$0xf]
      %v2340 = vld [vmem:[%s2296 + $0xac] sm:$0xf]
      %v2341 = vld [vmem:[%s2296 + $0xb0] sm:$0x1]
      %v2342 = vld [vmem:[%s2296 + $0xb4] sm:$0xf]
      %v2343 = vld [vmem:[%s2296 + $0xb8] sm:$0xf]
      %v2344 = vld [vmem:[%s2296 + $0xbc] sm:$0x1]
      %v2377 = vunpack.c.l.b16 %v2297
      %v2378 = vunpack.c.l.b16 %v2298
      %v2379 = vunpack.c.l.b16 %v2300
      %v2380 = vunpack.c.l.b16 %v2301
      %v2381 = vunpack.c.l.b16 %v2303
      %v2382 = vunpack.c.l.b16 %v2304
      %v2383 = vunpack.c.l.b16 %v2306
      %v2384 = vunpack.c.l.b16 %v2307
      %v2385 = vunpack.c.l.b16 %v2309
      %v2386 = vunpack.c.l.b16 %v2310
      %v2387 = vunpack.c.l.b16 %v2312
      %v2388 = vunpack.c.l.b16 %v2313
      %v2389 = vunpack.c.l.b16 %v2315
      %v2390 = vunpack.c.l.b16 %v2316
      %v2391 = vunpack.c.l.b16 %v2318
      %v2392 = vunpack.c.l.b16 %v2319
      %v2393 = vunpack.c.l.b16 %v2321
      %v2394 = vunpack.c.l.b16 %v2322
      %v2395 = vunpack.c.l.b16 %v2324
      %v2396 = vunpack.c.l.b16 %v2325
      %v2397 = vunpack.c.l.b16 %v2327
      %v2398 = vunpack.c.l.b16 %v2328
      %v2399 = vunpack.c.l.b16 %v2330
      %v2400 = vunpack.c.l.b16 %v2331
      %v2401 = vunpack.c.l.b16 %v2333
      %v2402 = vunpack.c.l.b16 %v2334
      %v2403 = vunpack.c.l.b16 %v2336
      %v2404 = vunpack.c.l.b16 %v2337
      %v2405 = vunpack.c.l.b16 %v2339
      %v2406 = vunpack.c.l.b16 %v2340
      %v2407 = vunpack.c.l.b16 %v2342
      %v2408 = vunpack.c.l.b16 %v2343
      %v2409 = vpack.c.b16 %v2378, %v2377
      %v2410 = vpack.c.b16 %v2380, %v2379
      %v2411 = vpack.c.b16 %v2382, %v2381
      %v2412 = vpack.c.b16 %v2384, %v2383
      %v2413 = vpack.c.b16 %v2386, %v2385
      %v2414 = vpack.c.b16 %v2388, %v2387
      %v2415 = vpack.c.b16 %v2390, %v2389
      %v2416 = vpack.c.b16 %v2392, %v2391
      %v2417 = vpack.c.b16 %v2394, %v2393
      %v2418 = vpack.c.b16 %v2396, %v2395
      %v2419 = vpack.c.b16 %v2398, %v2397
      %v2420 = vpack.c.b16 %v2400, %v2399
      %v2421 = vpack.c.b16 %v2402, %v2401
      %v2422 = vpack.c.b16 %v2404, %v2403
      %v2423 = vpack.c.b16 %v2406, %v2405
      %v2424 = vpack.c.b16 %v2408, %v2407
      %v2457 = vunpack.c.l.b16 %v2299
      %v2458 = vunpack.c.l.b16 %v2302
      %v2459 = vunpack.c.l.b16 %v2305
      %v2460 = vunpack.c.l.b16 %v2308
      %v2461 = vunpack.c.l.b16 %v2311
      %v2462 = vunpack.c.l.b16 %v2314
      %v2463 = vunpack.c.l.b16 %v2317
      %v2464 = vunpack.c.l.b16 %v2320
      %v2465 = vunpack.c.l.b16 %v2323
      %v2466 = vunpack.c.l.b16 %v2326
      %v2467 = vunpack.c.l.b16 %v2329
      %v2468 = vunpack.c.l.b16 %v2332
      %v2469 = vunpack.c.l.b16 %v2335
      %v2470 = vunpack.c.l.b16 %v2338
      %v2471 = vunpack.c.l.b16 %v2341
      %v2472 = vunpack.c.l.b16 %v2344
      %v2473 = vpack.c.b16 %v2457, %v2457
      %v2474 = vpack.c.b16 %v2458, %v2458
      %v2475 = vpack.c.b16 %v2459, %v2459
      %v2476 = vpack.c.b16 %v2460, %v2460
      %v2477 = vpack.c.b16 %v2461, %v2461
      %v2478 = vpack.c.b16 %v2462, %v2462
      %v2479 = vpack.c.b16 %v2463, %v2463
      %v2480 = vpack.c.b16 %v2464, %v2464
      %v2481 = vpack.c.b16 %v2465, %v2465
      %v2482 = vpack.c.b16 %v2466, %v2466
      %v2483 = vpack.c.b16 %v2467, %v2467
      %v2484 = vpack.c.b16 %v2468, %v2468
      %v2485 = vpack.c.b16 %v2469, %v2469
      %v2486 = vpack.c.b16 %v2470, %v2470
      %v2487 = vpack.c.b16 %v2471, %v2471
      %v2488 = vpack.c.b16 %v2472, %v2472
      %v2490 = vshrl.u32 %v2409, 16
      %v2492 = vshll.u32 %v2409, 16
      %v2494 = vrot.slane %v2492, 1
      %v2495 = vor.u32 %v2490, %v2494
      %v2497 = vshll.u32 %v2473, 16
      %v2499 = vrot.slane %v2497, 1
      %v2500 = vsel %vm522, %v2495, %v2499
      %v2502 = vshrl.u32 %v2410, 16
      %v2504 = vshll.u32 %v2410, 16
      %v2506 = vrot.slane %v2504, 1
      %v2507 = vor.u32 %v2502, %v2506
      %v2509 = vshll.u32 %v2474, 16
      %v2511 = vrot.slane %v2509, 1
      %v2512 = vsel %vm522, %v2507, %v2511
      %v2514 = vshrl.u32 %v2411, 16
      %v2516 = vshll.u32 %v2411, 16
      %v2518 = vrot.slane %v2516, 1
      %v2519 = vor.u32 %v2514, %v2518
      %v2521 = vshll.u32 %v2475, 16
      %v2523 = vrot.slane %v2521, 1
      %v2524 = vsel %vm522, %v2519, %v2523
      %v2526 = vshrl.u32 %v2412, 16
      %v2528 = vshll.u32 %v2412, 16
      %v2530 = vrot.slane %v2528, 1
      %v2531 = vor.u32 %v2526, %v2530
      %v2533 = vshll.u32 %v2476, 16
      %v2535 = vrot.slane %v2533, 1
      %v2536 = vsel %vm522, %v2531, %v2535
      %v2538 = vshrl.u32 %v2413, 16
      %v2540 = vshll.u32 %v2413, 16
      %v2542 = vrot.slane %v2540, 1
      %v2543 = vor.u32 %v2538, %v2542
      %v2545 = vshll.u32 %v2477, 16
      %v2547 = vrot.slane %v2545, 1
      %v2548 = vsel %vm522, %v2543, %v2547
      %v2550 = vshrl.u32 %v2414, 16
      %v2552 = vshll.u32 %v2414, 16
      %v2554 = vrot.slane %v2552, 1
      %v2555 = vor.u32 %v2550, %v2554
      %v2557 = vshll.u32 %v2478, 16
      %v2559 = vrot.slane %v2557, 1
      %v2560 = vsel %vm522, %v2555, %v2559
      %v2562 = vshrl.u32 %v2415, 16
      %v2564 = vshll.u32 %v2415, 16
      %v2566 = vrot.slane %v2564, 1
      %v2567 = vor.u32 %v2562, %v2566
      %v2569 = vshll.u32 %v2479, 16
      %v2571 = vrot.slane %v2569, 1
      %v2572 = vsel %vm522, %v2567, %v2571
      %v2574 = vshrl.u32 %v2416, 16
      %v2576 = vshll.u32 %v2416, 16
      %v2578 = vrot.slane %v2576, 1
      %v2579 = vor.u32 %v2574, %v2578
      %v2581 = vshll.u32 %v2480, 16
      %v2583 = vrot.slane %v2581, 1
      %v2584 = vsel %vm522, %v2579, %v2583
      %v2586 = vshrl.u32 %v2417, 16
      %v2588 = vshll.u32 %v2417, 16
      %v2590 = vrot.slane %v2588, 1
      %v2591 = vor.u32 %v2586, %v2590
      %v2593 = vshll.u32 %v2481, 16
      %v2595 = vrot.slane %v2593, 1
      %v2596 = vsel %vm522, %v2591, %v2595
      %v2598 = vshrl.u32 %v2418, 16
      %v2600 = vshll.u32 %v2418, 16
      %v2602 = vrot.slane %v2600, 1
      %v2603 = vor.u32 %v2598, %v2602
      %v2605 = vshll.u32 %v2482, 16
      %v2607 = vrot.slane %v2605, 1
      %v2608 = vsel %vm522, %v2603, %v2607
      %v2610 = vshrl.u32 %v2419, 16
      %v2612 = vshll.u32 %v2419, 16
      %v2614 = vrot.slane %v2612, 1
      %v2615 = vor.u32 %v2610, %v2614
      %v2617 = vshll.u32 %v2483, 16
      %v2619 = vrot.slane %v2617, 1
      %v2620 = vsel %vm522, %v2615, %v2619
      %v2622 = vshrl.u32 %v2420, 16
      %v2624 = vshll.u32 %v2420, 16
      %v2626 = vrot.slane %v2624, 1
      %v2627 = vor.u32 %v2622, %v2626
      %v2629 = vshll.u32 %v2484, 16
      %v2631 = vrot.slane %v2629, 1
      %v2632 = vsel %vm522, %v2627, %v2631
      %v2634 = vshrl.u32 %v2421, 16
      %v2636 = vshll.u32 %v2421, 16
      %v2638 = vrot.slane %v2636, 1
      %v2639 = vor.u32 %v2634, %v2638
      %v2641 = vshll.u32 %v2485, 16
      %v2643 = vrot.slane %v2641, 1
      %v2644 = vsel %vm522, %v2639, %v2643
      %v2646 = vshrl.u32 %v2422, 16
      %v2648 = vshll.u32 %v2422, 16
      %v2650 = vrot.slane %v2648, 1
      %v2651 = vor.u32 %v2646, %v2650
      %v2653 = vshll.u32 %v2486, 16
      %v2655 = vrot.slane %v2653, 1
      %v2656 = vsel %vm522, %v2651, %v2655
      %v2658 = vshrl.u32 %v2423, 16
      %v2660 = vshll.u32 %v2423, 16
      %v2662 = vrot.slane %v2660, 1
      %v2663 = vor.u32 %v2658, %v2662
      %v2665 = vshll.u32 %v2487, 16
      %v2667 = vrot.slane %v2665, 1
      %v2668 = vsel %vm522, %v2663, %v2667
      %v2670 = vshrl.u32 %v2424, 16
      %v2672 = vshll.u32 %v2424, 16
      %v2674 = vrot.slane %v2672, 1
      %v2675 = vor.u32 %v2670, %v2674
      %v2677 = vshll.u32 %v2488, 16
      %v2679 = vrot.slane %v2677, 1
      %v2680 = vsel %vm522, %v2675, %v2679
      %v2697 = vrot.slane %v2409, 1
      %v2698 = vrot.slane %v2473, 1
      %v2699 = vsel %vm731, %v2697, %v2698
      %v2700 = vrot.slane %v2410, 1
      %v2701 = vrot.slane %v2474, 1
      %v2702 = vsel %vm731, %v2700, %v2701
      %v2703 = vrot.slane %v2411, 1
      %v2704 = vrot.slane %v2475, 1
      %v2705 = vsel %vm731, %v2703, %v2704
      %v2706 = vrot.slane %v2412, 1
      %v2707 = vrot.slane %v2476, 1
      %v2708 = vsel %vm731, %v2706, %v2707
      %v2709 = vrot.slane %v2413, 1
      %v2710 = vrot.slane %v2477, 1
      %v2711 = vsel %vm731, %v2709, %v2710
      %v2712 = vrot.slane %v2414, 1
      %v2713 = vrot.slane %v2478, 1
      %v2714 = vsel %vm731, %v2712, %v2713
      %v2715 = vrot.slane %v2415, 1
      %v2716 = vrot.slane %v2479, 1
      %v2717 = vsel %vm731, %v2715, %v2716
      %v2718 = vrot.slane %v2416, 1
      %v2719 = vrot.slane %v2480, 1
      %v2720 = vsel %vm731, %v2718, %v2719
      %v2721 = vrot.slane %v2417, 1
      %v2722 = vrot.slane %v2481, 1
      %v2723 = vsel %vm731, %v2721, %v2722
      %v2724 = vrot.slane %v2418, 1
      %v2725 = vrot.slane %v2482, 1
      %v2726 = vsel %vm731, %v2724, %v2725
      %v2727 = vrot.slane %v2419, 1
      %v2728 = vrot.slane %v2483, 1
      %v2729 = vsel %vm731, %v2727, %v2728
      %v2730 = vrot.slane %v2420, 1
      %v2731 = vrot.slane %v2484, 1
      %v2732 = vsel %vm731, %v2730, %v2731
      %v2733 = vrot.slane %v2421, 1
      %v2734 = vrot.slane %v2485, 1
      %v2735 = vsel %vm731, %v2733, %v2734
      %v2736 = vrot.slane %v2422, 1
      %v2737 = vrot.slane %v2486, 1
      %v2738 = vsel %vm731, %v2736, %v2737
      %v2739 = vrot.slane %v2423, 1
      %v2740 = vrot.slane %v2487, 1
      %v2741 = vsel %vm731, %v2739, %v2740
      %v2742 = vrot.slane %v2424, 1
      %v2743 = vrot.slane %v2488, 1
      %v2744 = vsel %vm731, %v2742, %v2743
      %s2761 = scalar_lea.vmem %s1, 384
      %v2762 = vld [vmem:[%s2761] sm:$0xf]
      %v2763 = vld [vmem:[%s2761 + $0x4] sm:$0xf]
      %v2764 = vld [vmem:[%s2761 + $0x8] sm:$0xf]
      %v2765 = vld [vmem:[%s2761 + $0xc] sm:$0xf]
      %v2766 = vld [vmem:[%s2761 + $0x10] sm:$0xf]
      %v2767 = vld [vmem:[%s2761 + $0x14] sm:$0xf]
      %v2768 = vld [vmem:[%s2761 + $0x18] sm:$0xf]
      %v2769 = vld [vmem:[%s2761 + $0x1c] sm:$0xf]
      %v2770 = vld [vmem:[%s2761 + $0x20] sm:$0xf]
      %v2771 = vld [vmem:[%s2761 + $0x24] sm:$0xf]
      %v2772 = vld [vmem:[%s2761 + $0x28] sm:$0xf]
      %v2773 = vld [vmem:[%s2761 + $0x2c] sm:$0xf]
      %v2774 = vld [vmem:[%s2761 + $0x30] sm:$0xf]
      %v2775 = vld [vmem:[%s2761 + $0x34] sm:$0xf]
      %v2776 = vld [vmem:[%s2761 + $0x38] sm:$0xf]
      %v2777 = vld [vmem:[%s2761 + $0x3c] sm:$0xf]
      %v2778 = vld [vmem:[%s2761 + $0x40] sm:$0xf]
      %v2779 = vld [vmem:[%s2761 + $0x44] sm:$0xf]
      %v2780 = vld [vmem:[%s2761 + $0x48] sm:$0xf]
      %v2781 = vld [vmem:[%s2761 + $0x4c] sm:$0xf]
      %v2782 = vld [vmem:[%s2761 + $0x50] sm:$0xf]
      %v2783 = vld [vmem:[%s2761 + $0x54] sm:$0xf]
      %v2784 = vld [vmem:[%s2761 + $0x58] sm:$0xf]
      %v2785 = vld [vmem:[%s2761 + $0x5c] sm:$0xf]
      %v2786 = vld [vmem:[%s2761 + $0x60] sm:$0xf]
      %v2787 = vld [vmem:[%s2761 + $0x64] sm:$0xf]
      %v2788 = vld [vmem:[%s2761 + $0x68] sm:$0xf]
      %v2789 = vld [vmem:[%s2761 + $0x6c] sm:$0xf]
      %v2790 = vld [vmem:[%s2761 + $0x70] sm:$0xf]
      %v2791 = vld [vmem:[%s2761 + $0x74] sm:$0xf]
      %v2792 = vld [vmem:[%s2761 + $0x78] sm:$0xf]
      %v2793 = vld [vmem:[%s2761 + $0x7c] sm:$0xf]
      %v2794 = vld [vmem:[%s2761 + $0x80] sm:$0xf]
      %v2795 = vld [vmem:[%s2761 + $0x84] sm:$0xf]
      %v2796 = vld [vmem:[%s2761 + $0x88] sm:$0xf]
      %v2797 = vld [vmem:[%s2761 + $0x8c] sm:$0xf]
      %v2798 = vld [vmem:[%s2761 + $0x90] sm:$0xf]
      %v2799 = vld [vmem:[%s2761 + $0x94] sm:$0xf]
      %v2800 = vld [vmem:[%s2761 + $0x98] sm:$0xf]
      %v2801 = vld [vmem:[%s2761 + $0x9c] sm:$0xf]
      %v2802 = vld [vmem:[%s2761 + $0xa0] sm:$0xf]
      %v2803 = vld [vmem:[%s2761 + $0xa4] sm:$0xf]
      %v2804 = vld [vmem:[%s2761 + $0xa8] sm:$0xf]
      %v2805 = vld [vmem:[%s2761 + $0xac] sm:$0xf]
      %v2806 = vld [vmem:[%s2761 + $0xb0] sm:$0xf]
      %v2807 = vld [vmem:[%s2761 + $0xb4] sm:$0xf]
      %v2808 = vld [vmem:[%s2761 + $0xb8] sm:$0xf]
      %v2809 = vld [vmem:[%s2761 + $0xbc] sm:$0xf]
      %v2858 = vunpack.c.l.b16 %v2762
      %v2859 = vunpack.c.l.b16 %v2763
      %v2860 = vunpack.c.l.b16 %v2764
      %v2861 = vunpack.c.l.b16 %v2765
      %v2862 = vunpack.c.l.b16 %v2766
      %v2863 = vunpack.c.l.b16 %v2767
      %v2864 = vunpack.c.l.b16 %v2768
      %v2865 = vunpack.c.l.b16 %v2769
      %v2866 = vunpack.c.l.b16 %v2770
      %v2867 = vunpack.c.l.b16 %v2771
      %v2868 = vunpack.c.l.b16 %v2772
      %v2869 = vunpack.c.l.b16 %v2773
      %v2870 = vunpack.c.l.b16 %v2774
      %v2871 = vunpack.c.l.b16 %v2775
      %v2872 = vunpack.c.l.b16 %v2776
      %v2873 = vunpack.c.l.b16 %v2777
      %v2874 = vunpack.c.l.b16 %v2778
      %v2875 = vunpack.c.l.b16 %v2779
      %v2876 = vunpack.c.l.b16 %v2780
      %v2877 = vunpack.c.l.b16 %v2781
      %v2878 = vunpack.c.l.b16 %v2782
      %v2879 = vunpack.c.l.b16 %v2783
      %v2880 = vunpack.c.l.b16 %v2784
      %v2881 = vunpack.c.l.b16 %v2785
      %v2882 = vunpack.c.l.b16 %v2786
      %v2883 = vunpack.c.l.b16 %v2787
      %v2884 = vunpack.c.l.b16 %v2788
      %v2885 = vunpack.c.l.b16 %v2789
      %v2886 = vunpack.c.l.b16 %v2790
      %v2887 = vunpack.c.l.b16 %v2791
      %v2888 = vunpack.c.l.b16 %v2792
      %v2889 = vunpack.c.l.b16 %v2793
      %v2890 = vunpack.c.l.b16 %v2794
      %v2891 = vunpack.c.l.b16 %v2795
      %v2892 = vunpack.c.l.b16 %v2796
      %v2893 = vunpack.c.l.b16 %v2797
      %v2894 = vunpack.c.l.b16 %v2798
      %v2895 = vunpack.c.l.b16 %v2799
      %v2896 = vunpack.c.l.b16 %v2800
      %v2897 = vunpack.c.l.b16 %v2801
      %v2898 = vunpack.c.l.b16 %v2802
      %v2899 = vunpack.c.l.b16 %v2803
      %v2900 = vunpack.c.l.b16 %v2804
      %v2901 = vunpack.c.l.b16 %v2805
      %v2902 = vunpack.c.l.b16 %v2806
      %v2903 = vunpack.c.l.b16 %v2807
      %v2904 = vunpack.c.l.b16 %v2808
      %v2905 = vunpack.c.l.b16 %v2809
      %v2906 = vpack.c.b16 %v2859, %v2858
      %v2907 = vpack.c.b16 %v2861, %v2860
      %v2908 = vpack.c.b16 %v2863, %v2862
      %v2909 = vpack.c.b16 %v2865, %v2864
      %v2910 = vpack.c.b16 %v2867, %v2866
      %v2911 = vpack.c.b16 %v2869, %v2868
      %v2912 = vpack.c.b16 %v2871, %v2870
      %v2913 = vpack.c.b16 %v2873, %v2872
      %v2914 = vpack.c.b16 %v2875, %v2874
      %v2915 = vpack.c.b16 %v2877, %v2876
      %v2916 = vpack.c.b16 %v2879, %v2878
      %v2917 = vpack.c.b16 %v2881, %v2880
      %v2918 = vpack.c.b16 %v2883, %v2882
      %v2919 = vpack.c.b16 %v2885, %v2884
      %v2920 = vpack.c.b16 %v2887, %v2886
      %v2921 = vpack.c.b16 %v2889, %v2888
      %v2922 = vpack.c.b16 %v2891, %v2890
      %v2923 = vpack.c.b16 %v2893, %v2892
      %v2924 = vpack.c.b16 %v2895, %v2894
      %v2925 = vpack.c.b16 %v2897, %v2896
      %v2926 = vpack.c.b16 %v2899, %v2898
      %v2927 = vpack.c.b16 %v2901, %v2900
      %v2928 = vpack.c.b16 %v2903, %v2902
      %v2929 = vpack.c.b16 %v2905, %v2904
      %2954 = vmatprep.subr.bf16.mxu0 0
      %2955 = vmatpush1.bf16.msra.mxu0 %v2906
      %2956 = vmatprep.subr.bf16.mxu0 0
      %2957 = vmatpush1.bf16.msra.mxu0 %v2907
      %2958 = vmatprep.subr.bf16.mxu0 0
      %2959 = vmatpush1.bf16.msra.mxu0 %v2908
      %2960 = vmatprep.subr.bf16.mxu0 0
      %2961 = vmatpush1.bf16.msra.mxu0 %v2909
      %2962 = vmatprep.subr.bf16.mxu0 0
      %2963 = vmatpush1.bf16.msra.mxu0 %v2910
      %2964 = vmatprep.subr.bf16.mxu0 0
      %2965 = vmatpush1.bf16.msra.mxu0 %v2911
      %2966 = vmatprep.subr.bf16.mxu0 0
      %2967 = vmatpush1.bf16.msra.mxu0 %v2912
      %2968 = vmatprep.subr.bf16.mxu0 0
      %2969 = vmatpush1.bf16.msra.mxu0 %v2913
      %2970 = vmatprep.subr.bf16.mxu0 0
      %2971 = vmatpush1.bf16.msra.mxu0 %v2914
      %2972 = vmatprep.subr.bf16.mxu0 0
      %2973 = vmatpush1.bf16.msra.mxu0 %v2915
      %2974 = vmatprep.subr.bf16.mxu0 0
      %2975 = vmatpush1.bf16.msra.mxu0 %v2916
      %2976 = vmatprep.subr.bf16.mxu0 0
      %2977 = vmatpush1.bf16.msra.mxu0 %v2917
      %2978 = vmatprep.subr.bf16.mxu0 0
      %2979 = vmatpush1.bf16.msra.mxu0 %v2918
      %2980 = vmatprep.subr.bf16.mxu0 0
      %2981 = vmatpush1.bf16.msra.mxu0 %v2919
      %2982 = vmatprep.subr.bf16.mxu0 0
      %2983 = vmatpush1.bf16.msra.mxu0 %v2920
      %2984 = vmatprep.subr.bf16.mxu0 0
      %2985 = vmatpush1.bf16.msra.mxu0 %v2921
      %2986 = vmatprep.mubr.bf16.mxu0 %v2500
      %2987 = vmatmul.mubr.bf16.gmra.mrb[0].mxu0 %v2409
      %v2988 = vpop.f32.mrb[0].mxu0
      %v2989 = vadd.f32 0.0, %v2988
      %v2990 = vpop.f32.mrb[0].mxu0
      %v2991 = vpop.f32.mrb[0].mxu0
      %v2992 = vadd.f32 0.0, %v2991
      %v2993 = vpop.f32.mrb[0].mxu0
      %2994 = vmatprep.mubr.bf16.mxu0 %v2512
      %2995 = vmatmul.mubr.bf16.gmra.mrb[0].mxu0 %v2410
      %v2996 = vpop.f32.mrb[0].mxu0
      %v2997 = vadd.f32 0.0, %v2996
      %v2998 = vpop.f32.mrb[0].mxu0
      %v2999 = vpop.f32.mrb[0].mxu0
      %v3000 = vadd.f32 0.0, %v2999
      %v3001 = vpop.f32.mrb[0].mxu0
      %3002 = vmatprep.mubr.bf16.mxu0 %v2524
      %3003 = vmatmul.mubr.bf16.gmra.mrb[0].mxu0 %v2411
      %v3004 = vpop.f32.mrb[0].mxu0
      %v3005 = vadd.f32 0.0, %v3004
      %v3006 = vpop.f32.mrb[0].mxu0
      %v3007 = vpop.f32.mrb[0].mxu0
      %v3008 = vadd.f32 0.0, %v3007
      %v3009 = vpop.f32.mrb[0].mxu0
      %3010 = vmatprep.mubr.bf16.mxu0 %v2536
      %3011 = vmatmul.mubr.bf16.gmra.mrb[0].mxu0 %v2412
      %v3012 = vpop.f32.mrb[0].mxu0
      %v3013 = vadd.f32 0.0, %v3012
      %v3014 = vpop.f32.mrb[0].mxu0
      %v3015 = vpop.f32.mrb[0].mxu0
      %v3016 = vadd.f32 0.0, %v3015
      %v3017 = vpop.f32.mrb[0].mxu0
      %3018 = vmatprep.mubr.bf16.mxu0 %v2548
      %3019 = vmatmul.mubr.bf16.gmra.mrb[0].mxu0 %v2413
      %v3020 = vpop.f32.mrb[0].mxu0
      %v3021 = vadd.f32 0.0, %v3020
      %v3022 = vpop.f32.mrb[0].mxu0
      %v3023 = vpop.f32.mrb[0].mxu0
      %v3024 = vadd.f32 0.0, %v3023
      %v3025 = vpop.f32.mrb[0].mxu0
      %3026 = vmatprep.mubr.bf16.mxu0 %v2560
      %3027 = vmatmul.mubr.bf16.gmra.mrb[0].mxu0 %v2414
      %v3028 = vpop.f32.mrb[0].mxu0
      %v3029 = vadd.f32 0.0, %v3028
      %v3030 = vpop.f32.mrb[0].mxu0
      %v3031 = vpop.f32.mrb[0].mxu0
      %v3032 = vadd.f32 0.0, %v3031
      %v3033 = vpop.f32.mrb[0].mxu0
      %3034 = vmatprep.mubr.bf16.mxu0 %v2572
      %3035 = vmatmul.mubr.bf16.gmra.mrb[0].mxu0 %v2415
      %v3036 = vpop.f32.mrb[0].mxu0
      %v3037 = vadd.f32 0.0, %v3036
      %v3038 = vpop.f32.mrb[0].mxu0
      %v3039 = vpop.f32.mrb[0].mxu0
      %v3040 = vadd.f32 0.0, %v3039
      %v3041 = vpop.f32.mrb[0].mxu0
      %3042 = vmatprep.mubr.bf16.mxu0 %v2584
      %3043 = vmatmul.mubr.bf16.gmra.mrb[0].mxu0 %v2416
      %v3044 = vpop.f32.mrb[0].mxu0
      %v3045 = vadd.f32 0.0, %v3044
      %v3046 = vpop.f32.mrb[0].mxu0
      %v3047 = vpop.f32.mrb[0].mxu0
      %v3048 = vadd.f32 0.0, %v3047
      %v3049 = vpop.f32.mrb[0].mxu0
      %3050 = vmatprep.mubr.bf16.mxu0 %v2596
      %3051 = vmatmul.mubr.bf16.gmra.mrb[0].mxu0 %v2417
      %v3052 = vpop.f32.mrb[0].mxu0
      %v3053 = vadd.f32 0.0, %v3052
      %v3054 = vpop.f32.mrb[0].mxu0
      %v3055 = vpop.f32.mrb[0].mxu0
      %v3056 = vadd.f32 0.0, %v3055
      %v3057 = vpop.f32.mrb[0].mxu0
      %3058 = vmatprep.mubr.bf16.mxu0 %v2608
      %3059 = vmatmul.mubr.bf16.gmra.mrb[0].mxu0 %v2418
      %v3060 = vpop.f32.mrb[0].mxu0
      %v3061 = vadd.f32 0.0, %v3060
      %v3062 = vpop.f32.mrb[0].mxu0
      %v3063 = vpop.f32.mrb[0].mxu0
      %v3064 = vadd.f32 0.0, %v3063
      %v3065 = vpop.f32.mrb[0].mxu0
      %3066 = vmatprep.mubr.bf16.mxu0 %v2620
      %3067 = vmatmul.mubr.bf16.gmra.mrb[0].mxu0 %v2419
      %v3068 = vpop.f32.mrb[0].mxu0
      %v3069 = vadd.f32 0.0, %v3068
      %v3070 = vpop.f32.mrb[0].mxu0
      %v3071 = vpop.f32.mrb[0].mxu0
      %v3072 = vadd.f32 0.0, %v3071
      %v3073 = vpop.f32.mrb[0].mxu0
      %3074 = vmatprep.mubr.bf16.mxu0 %v2632
      %3075 = vmatmul.mubr.bf16.gmra.mrb[0].mxu0 %v2420
      %v3076 = vpop.f32.mrb[0].mxu0
      %v3077 = vadd.f32 0.0, %v3076
      %v3078 = vpop.f32.mrb[0].mxu0
      %v3079 = vpop.f32.mrb[0].mxu0
      %v3080 = vadd.f32 0.0, %v3079
      %v3081 = vpop.f32.mrb[0].mxu0
      %3082 = vmatprep.mubr.bf16.mxu0 %v2644
      %3083 = vmatmul.mubr.bf16.gmra.mrb[0].mxu0 %v2421
      %v3084 = vpop.f32.mrb[0].mxu0
      %v3085 = vadd.f32 0.0, %v3084
      %v3086 = vpop.f32.mrb[0].mxu0
      %v3087 = vpop.f32.mrb[0].mxu0
      %v3088 = vadd.f32 0.0, %v3087
      %v3089 = vpop.f32.mrb[0].mxu0
      %3090 = vmatprep.mubr.bf16.mxu0 %v2656
      %3091 = vmatmul.mubr.bf16.gmra.mrb[0].mxu0 %v2422
      %v3092 = vpop.f32.mrb[0].mxu0
      %v3093 = vadd.f32 0.0, %v3092
      %v3094 = vpop.f32.mrb[0].mxu0
      %v3095 = vpop.f32.mrb[0].mxu0
      %v3096 = vadd.f32 0.0, %v3095
      %v3097 = vpop.f32.mrb[0].mxu0
      %3098 = vmatprep.mubr.bf16.mxu0 %v2668
      %3099 = vmatmul.mubr.bf16.gmra.mrb[0].mxu0 %v2423
      %v3100 = vpop.f32.mrb[0].mxu0
      %v3101 = vadd.f32 0.0, %v3100
      %v3102 = vpop.f32.mrb[0].mxu0
      %v3103 = vpop.f32.mrb[0].mxu0
      %v3104 = vadd.f32 0.0, %v3103
      %v3105 = vpop.f32.mrb[0].mxu0
      %3106 = vmatprep.mubr.bf16.mxu0 %v2680
      %3107 = vmatmul.mubr.bf16.gmra.mrb[0].mxu0 %v2424
      %v3108 = vpop.f32.mrb[0].mxu0
      %v3109 = vadd.f32 0.0, %v3108
      %v3110 = vpop.f32.mrb[0].mxu0
      %v3111 = vpop.f32.mrb[0].mxu0
      %v3112 = vadd.f32 0.0, %v3111
      %v3113 = vpop.f32.mrb[0].mxu0
      %3114 = vdwg.mxu0
      %3115 = vmatprep.subr.bf16.mxu0 0
      %3116 = vmatpush1.bf16.msra.mxu0 %v2922
      %3117 = vmatprep.subr.bf16.mxu0 0
      %3118 = vmatpush1.bf16.msra.mxu0 %v2923
      %3119 = vmatprep.subr.bf16.mxu0 0
      %3120 = vmatpush1.bf16.msra.mxu0 %v2924
      %3121 = vmatprep.subr.bf16.mxu0 0
      %3122 = vmatpush1.bf16.msra.mxu0 %v2925
      %3123 = vmatprep.subr.bf16.mxu0 0
      %3124 = vmatpush1.bf16.msra.mxu0 %v2926
      %3125 = vmatprep.subr.bf16.mxu0 0
      %3126 = vmatpush1.bf16.msra.mxu0 %v2927
      %3127 = vmatprep.subr.bf16.mxu0 0
      %3128 = vmatpush1.bf16.msra.mxu0 %v2928
      %3129 = vmatprep.subr.bf16.mxu0 0
      %3130 = vmatpush1.bf16.msra.mxu0 %v2929
      %3131 = vmatprep.subr.bf16.mxu0 0
      %3132 = vmatpush1.bf16.msra.mxu0 0
      %3133 = vmatprep.subr.bf16.mxu0 0
      %3134 = vmatpush1.bf16.msra.mxu0 0
      %3135 = vmatprep.subr.bf16.mxu0 0
      %3136 = vmatpush1.bf16.msra.mxu0 0
      %3137 = vmatprep.subr.bf16.mxu0 0
      %3138 = vmatpush1.bf16.msra.mxu0 0
      %3139 = vmatprep.subr.bf16.mxu0 0
      %3140 = vmatpush1.bf16.msra.mxu0 0
      %3141 = vmatprep.subr.bf16.mxu0 0
      %3142 = vmatpush1.bf16.msra.mxu0 0
      %3143 = vmatprep.subr.bf16.mxu0 0
      %3144 = vmatpush1.bf16.msra.mxu0 0
      %3145 = vmatprep.subr.bf16.mxu0 0
      %3146 = vmatpush1.bf16.msra.mxu0 0
      %3147 = vmatprep.mubr.bf16.mxu0 0
      %3148 = vmatmul.mubr.bf16.gmra.mrb[0].mxu0 %v2699
      %v3149 = vpop.f32.mrb[0].mxu0
      %v3150 = vadd.f32 %v2989, %v3149
      %v3151 = vpop.f32.mrb[0].mxu0
      %v3152 = vpop.f32.mrb[0].mxu0
      %v3153 = vadd.f32 %v2992, %v3152
      %v3154 = vpop.f32.mrb[0].mxu0
      %3155 = vmatprep.mubr.bf16.mxu0 0
      %3156 = vmatmul.mubr.bf16.gmra.mrb[0].mxu0 %v2702
      %v3157 = vpop.f32.mrb[0].mxu0
      %v3158 = vadd.f32 %v2997, %v3157
      %v3159 = vpop.f32.mrb[0].mxu0
      %v3160 = vpop.f32.mrb[0].mxu0
      %v3161 = vadd.f32 %v3000, %v3160
      %v3162 = vpop.f32.mrb[0].mxu0
      %3163 = vmatprep.mubr.bf16.mxu0 0
      %3164 = vmatmul.mubr.bf16.gmra.mrb[0].mxu0 %v2705
      %v3165 = vpop.f32.mrb[0].mxu0
      %v3166 = vadd.f32 %v3005, %v3165
      %v3167 = vpop.f32.mrb[0].mxu0
      %v3168 = vpop.f32.mrb[0].mxu0
      %v3169 = vadd.f32 %v3008, %v3168
      %v3170 = vpop.f32.mrb[0].mxu0
      %3171 = vmatprep.mubr.bf16.mxu0 0
      %3172 = vmatmul.mubr.bf16.gmra.mrb[0].mxu0 %v2708
      %v3173 = vpop.f32.mrb[0].mxu0
      %v3174 = vadd.f32 %v3013, %v3173
      %v3175 = vpop.f32.mrb[0].mxu0
      %v3176 = vpop.f32.mrb[0].mxu0
      %v3177 = vadd.f32 %v3016, %v3176
      %v3178 = vpop.f32.mrb[0].mxu0
      %3179 = vmatprep.mubr.bf16.mxu0 0
      %3180 = vmatmul.mubr.bf16.gmra.mrb[0].mxu0 %v2711
      %v3181 = vpop.f32.mrb[0].mxu0
      %v3182 = vadd.f32 %v3021, %v3181
      %v3183 = vpop.f32.mrb[0].mxu0
      %v3184 = vpop.f32.mrb[0].mxu0
      %v3185 = vadd.f32 %v3024, %v3184
      %v3186 = vpop.f32.mrb[0].mxu0
      %3187 = vmatprep.mubr.bf16.mxu0 0
      %3188 = vmatmul.mubr.bf16.gmra.mrb[0].mxu0 %v2714
      %v3189 = vpop.f32.mrb[0].mxu0
      %v3190 = vadd.f32 %v3029, %v3189
      %v3191 = vpop.f32.mrb[0].mxu0
      %v3192 = vpop.f32.mrb[0].mxu0
      %v3193 = vadd.f32 %v3032, %v3192
      %v3194 = vpop.f32.mrb[0].mxu0
      %3195 = vmatprep.mubr.bf16.mxu0 0
      %3196 = vmatmul.mubr.bf16.gmra.mrb[0].mxu0 %v2717
      %v3197 = vpop.f32.mrb[0].mxu0
      %v3198 = vadd.f32 %v3037, %v3197
      %v3199 = vpop.f32.mrb[0].mxu0
      %v3200 = vpop.f32.mrb[0].mxu0
      %v3201 = vadd.f32 %v3040, %v3200
      %v3202 = vpop.f32.mrb[0].mxu0
      %3203 = vmatprep.mubr.bf16.mxu0 0
      %3204 = vmatmul.mubr.bf16.gmra.mrb[0].mxu0 %v2720
      %v3205 = vpop.f32.mrb[0].mxu0
      %v3206 = vadd.f32 %v3045, %v3205
      %v3207 = vpop.f32.mrb[0].mxu0
      %v3208 = vpop.f32.mrb[0].mxu0
      %v3209 = vadd.f32 %v3048, %v3208
      %v3210 = vpop.f32.mrb[0].mxu0
      %3211 = vmatprep.mubr.bf16.mxu0 0
      %3212 = vmatmul.mubr.bf16.gmra.mrb[0].mxu0 %v2723
      %v3213 = vpop.f32.mrb[0].mxu0
      %v3214 = vadd.f32 %v3053, %v3213
      %v3215 = vpop.f32.mrb[0].mxu0
      %v3216 = vpop.f32.mrb[0].mxu0
      %v3217 = vadd.f32 %v3056, %v3216
      %v3218 = vpop.f32.mrb[0].mxu0
      %3219 = vmatprep.mubr.bf16.mxu0 0
      %3220 = vmatmul.mubr.bf16.gmra.mrb[0].mxu0 %v2726
      %v3221 = vpop.f32.mrb[0].mxu0
      %v3222 = vadd.f32 %v3061, %v3221
      %v3223 = vpop.f32.mrb[0].mxu0
      %v3224 = vpop.f32.mrb[0].mxu0
      %v3225 = vadd.f32 %v3064, %v3224
      %v3226 = vpop.f32.mrb[0].mxu0
      %3227 = vmatprep.mubr.bf16.mxu0 0
      %3228 = vmatmul.mubr.bf16.gmra.mrb[0].mxu0 %v2729
      %v3229 = vpop.f32.mrb[0].mxu0
      %v3230 = vadd.f32 %v3069, %v3229
      %v3231 = vpop.f32.mrb[0].mxu0
      %v3232 = vpop.f32.mrb[0].mxu0
      %v3233 = vadd.f32 %v3072, %v3232
      %v3234 = vpop.f32.mrb[0].mxu0
      %3235 = vmatprep.mubr.bf16.mxu0 0
      %3236 = vmatmul.mubr.bf16.gmra.mrb[0].mxu0 %v2732
      %v3237 = vpop.f32.mrb[0].mxu0
      %v3238 = vadd.f32 %v3077, %v3237
      %v3239 = vpop.f32.mrb[0].mxu0
      %v3240 = vpop.f32.mrb[0].mxu0
      %v3241 = vadd.f32 %v3080, %v3240
      %v3242 = vpop.f32.mrb[0].mxu0
      %3243 = vmatprep.mubr.bf16.mxu0 0
      %3244 = vmatmul.mubr.bf16.gmra.mrb[0].mxu0 %v2735
      %v3245 = vpop.f32.mrb[0].mxu0
      %v3246 = vadd.f32 %v3085, %v3245
      %v3247 = vpop.f32.mrb[0].mxu0
      %v3248 = vpop.f32.mrb[0].mxu0
      %v3249 = vadd.f32 %v3088, %v3248
      %v3250 = vpop.f32.mrb[0].mxu0
      %3251 = vmatprep.mubr.bf16.mxu0 0
      %3252 = vmatmul.mubr.bf16.gmra.mrb[0].mxu0 %v2738
      %v3253 = vpop.f32.mrb[0].mxu0
      %v3254 = vadd.f32 %v3093, %v3253
      %v3255 = vpop.f32.mrb[0].mxu0
      %v3256 = vpop.f32.mrb[0].mxu0
      %v3257 = vadd.f32 %v3096, %v3256
      %v3258 = vpop.f32.mrb[0].mxu0
      %3259 = vmatprep.mubr.bf16.mxu0 0
      %3260 = vmatmul.mubr.bf16.gmra.mrb[0].mxu0 %v2741
      %v3261 = vpop.f32.mrb[0].mxu0
      %v3262 = vadd.f32 %v3101, %v3261
      %v3263 = vpop.f32.mrb[0].mxu0
      %v3264 = vpop.f32.mrb[0].mxu0
      %v3265 = vadd.f32 %v3104, %v3264
      %v3266 = vpop.f32.mrb[0].mxu0
      %3267 = vmatprep.mubr.bf16.mxu0 0
      %3268 = vmatmul.mubr.bf16.gmra.mrb[0].mxu0 %v2744
      %v3269 = vpop.f32.mrb[0].mxu0
      %v3270 = vadd.f32 %v3109, %v3269
      %v3271 = vpop.f32.mrb[0].mxu0
      %v3272 = vpop.f32.mrb[0].mxu0
      %v3273 = vadd.f32 %v3112, %v3272
      %v3274 = vpop.f32.mrb[0].mxu0
      %3275 = vdwg.mxu0
      %v3276 = vadd.f32 %v2167, %v3150
      %v3277 = vadd.f32 %v2170, %v3153
      %v3278 = vadd.f32 %v2175, %v3158
      %v3279 = vadd.f32 %v2178, %v3161
      %v3280 = vadd.f32 %v2183, %v3166
      %v3281 = vadd.f32 %v2186, %v3169
      %v3282 = vadd.f32 %v2191, %v3174
      %v3283 = vadd.f32 %v2194, %v3177
      %v3284 = vadd.f32 %v2199, %v3182
      %v3285 = vadd.f32 %v2202, %v3185
      %v3286 = vadd.f32 %v2207, %v3190
      %v3287 = vadd.f32 %v2210, %v3193
      %v3288 = vadd.f32 %v2215, %v3198
      %v3289 = vadd.f32 %v2218, %v3201
      %v3290 = vadd.f32 %v2223, %v3206
      %v3291 = vadd.f32 %v2226, %v3209
      %v3292 = vadd.f32 %v2231, %v3214
      %v3293 = vadd.f32 %v2234, %v3217
      %v3294 = vadd.f32 %v2239, %v3222
      %v3295 = vadd.f32 %v2242, %v3225
      %v3296 = vadd.f32 %v2247, %v3230
      %v3297 = vadd.f32 %v2250, %v3233
      %v3298 = vadd.f32 %v2255, %v3238
      %v3299 = vadd.f32 %v2258, %v3241
      %v3300 = vadd.f32 %v2263, %v3246
      %v3301 = vadd.f32 %v2266, %v3249
      %v3302 = vadd.f32 %v2271, %v3254
      %v3303 = vadd.f32 %v2274, %v3257
      %v3304 = vadd.f32 %v2279, %v3262
      %v3305 = vadd.f32 %v2282, %v3265
      %v3306 = vadd.f32 %v2287, %v3270
      %v3307 = vadd.f32 %v2290, %v3273
      %v3308 = vld [vmem:[%s2] sm:$0x1]
      %v3310 = vlaneseq
      %v3311 = vshrl.u32 %v3310, 7
      %v3312 = vsub.s32 0, %v3311
      %v3313 = vrot.slane %v3308, %v3312
      %v3315 = vmul.f32 %v3276, %v3313
      %v3316 = vmul.f32 %v3277, %v3313
      %v3317 = vmul.f32 %v3278, %v3313
      %v3318 = vmul.f32 %v3279, %v3313
      %v3319 = vmul.f32 %v3280, %v3313
      %v3320 = vmul.f32 %v3281, %v3313
      %v3321 = vmul.f32 %v3282, %v3313
      %v3322 = vmul.f32 %v3283, %v3313
      %v3323 = vmul.f32 %v3284, %v3313
      %v3324 = vmul.f32 %v3285, %v3313
      %v3325 = vmul.f32 %v3286, %v3313
      %v3326 = vmul.f32 %v3287, %v3313
      %v3327 = vmul.f32 %v3288, %v3313
      %v3328 = vmul.f32 %v3289, %v3313
      %v3329 = vmul.f32 %v3290, %v3313
      %v3330 = vmul.f32 %v3291, %v3313
      %v3331 = vmul.f32 %v3292, %v3313
      %v3332 = vmul.f32 %v3293, %v3313
      %v3333 = vmul.f32 %v3294, %v3313
      %v3334 = vmul.f32 %v3295, %v3313
      %v3335 = vmul.f32 %v3296, %v3313
      %v3336 = vmul.f32 %v3297, %v3313
      %v3337 = vmul.f32 %v3298, %v3313
      %v3338 = vmul.f32 %v3299, %v3313
      %v3339 = vmul.f32 %v3300, %v3313
      %v3340 = vmul.f32 %v3301, %v3313
      %v3341 = vmul.f32 %v3302, %v3313
      %v3342 = vmul.f32 %v3303, %v3313
      %v3343 = vmul.f32 %v3304, %v3313
      %v3344 = vmul.f32 %v3305, %v3313
      %v3345 = vmul.f32 %v3306, %v3313
      %v3346 = vmul.f32 %v3307, %v3313
      %v3347 = vld [vmem:[%s3] sm:$0x1]
      %v3349 = vlaneseq
      %v3350 = vshrl.u32 %v3349, 7
      %v3351 = vsub.s32 0, %v3350
      %v3352 = vrot.slane %v3347, %v3351
      %v3354 = vadd.f32 %v3315, %v3352
      %v3355 = vadd.f32 %v3316, %v3352
      %v3356 = vadd.f32 %v3317, %v3352
      %v3357 = vadd.f32 %v3318, %v3352
      %v3358 = vadd.f32 %v3319, %v3352
      %v3359 = vadd.f32 %v3320, %v3352
      %v3360 = vadd.f32 %v3321, %v3352
      %v3361 = vadd.f32 %v3322, %v3352
      %v3362 = vadd.f32 %v3323, %v3352
      %v3363 = vadd.f32 %v3324, %v3352
      %v3364 = vadd.f32 %v3325, %v3352
      %v3365 = vadd.f32 %v3326, %v3352
      %v3366 = vadd.f32 %v3327, %v3352
      %v3367 = vadd.f32 %v3328, %v3352
      %v3368 = vadd.f32 %v3329, %v3352
      %v3369 = vadd.f32 %v3330, %v3352
      %v3370 = vadd.f32 %v3331, %v3352
      %v3371 = vadd.f32 %v3332, %v3352
      %v3372 = vadd.f32 %v3333, %v3352
      %v3373 = vadd.f32 %v3334, %v3352
      %v3374 = vadd.f32 %v3335, %v3352
      %v3375 = vadd.f32 %v3336, %v3352
      %v3376 = vadd.f32 %v3337, %v3352
      %v3377 = vadd.f32 %v3338, %v3352
      %v3378 = vadd.f32 %v3339, %v3352
      %v3379 = vadd.f32 %v3340, %v3352
      %v3380 = vadd.f32 %v3341, %v3352
      %v3381 = vadd.f32 %v3342, %v3352
      %v3382 = vadd.f32 %v3343, %v3352
      %v3383 = vadd.f32 %v3344, %v3352
      %v3384 = vadd.f32 %v3345, %v3352
      %v3385 = vadd.f32 %v3346, %v3352
      %v3386 = vmax.f32 %v3354, 0.0
      %v3387 = vmax.f32 %v3355, 0.0
      %v3388 = vmax.f32 %v3356, 0.0
      %v3389 = vmax.f32 %v3357, 0.0
      %v3390 = vmax.f32 %v3358, 0.0
      %v3391 = vmax.f32 %v3359, 0.0
      %v3392 = vmax.f32 %v3360, 0.0
      %v3393 = vmax.f32 %v3361, 0.0
      %v3394 = vmax.f32 %v3362, 0.0
      %v3395 = vmax.f32 %v3363, 0.0
      %v3396 = vmax.f32 %v3364, 0.0
      %v3397 = vmax.f32 %v3365, 0.0
      %v3398 = vmax.f32 %v3366, 0.0
      %v3399 = vmax.f32 %v3367, 0.0
      %v3400 = vmax.f32 %v3368, 0.0
      %v3401 = vmax.f32 %v3369, 0.0
      %v3402 = vmax.f32 %v3370, 0.0
      %v3403 = vmax.f32 %v3371, 0.0
      %v3404 = vmax.f32 %v3372, 0.0
      %v3405 = vmax.f32 %v3373, 0.0
      %v3406 = vmax.f32 %v3374, 0.0
      %v3407 = vmax.f32 %v3375, 0.0
      %v3408 = vmax.f32 %v3376, 0.0
      %v3409 = vmax.f32 %v3377, 0.0
      %v3410 = vmax.f32 %v3378, 0.0
      %v3411 = vmax.f32 %v3379, 0.0
      %v3412 = vmax.f32 %v3380, 0.0
      %v3413 = vmax.f32 %v3381, 0.0
      %v3414 = vmax.f32 %v3382, 0.0
      %v3415 = vmax.f32 %v3383, 0.0
      %v3416 = vmax.f32 %v3384, 0.0
      %v3417 = vmax.f32 %v3385, 0.0
      %v3418 = vpack.c.bf16 %v3387, %v3386
      %v3419 = vpack.c.bf16 %v3389, %v3388
      %v3420 = vpack.c.bf16 %v3391, %v3390
      %v3421 = vpack.c.bf16 %v3393, %v3392
      %v3422 = vpack.c.bf16 %v3395, %v3394
      %v3423 = vpack.c.bf16 %v3397, %v3396
      %v3424 = vpack.c.bf16 %v3399, %v3398
      %v3425 = vpack.c.bf16 %v3401, %v3400
      %v3426 = vpack.c.bf16 %v3403, %v3402
      %v3427 = vpack.c.bf16 %v3405, %v3404
      %v3428 = vpack.c.bf16 %v3407, %v3406
      %v3429 = vpack.c.bf16 %v3409, %v3408
      %v3430 = vpack.c.bf16 %v3411, %v3410
      %v3431 = vpack.c.bf16 %v3413, %v3412
      %v3432 = vpack.c.bf16 %v3415, %v3414
      %v3433 = vpack.c.bf16 %v3417, %v3416
      %v3450 = vunpack.c.l.b16 %v3418
      %v3451 = vunpack.c.h.b16 %v3418
      %v3452 = vunpack.c.l.b16 %v3419
      %v3453 = vunpack.c.h.b16 %v3419
      %v3454 = vunpack.c.l.b16 %v3420
      %v3455 = vunpack.c.h.b16 %v3420
      %v3456 = vunpack.c.l.b16 %v3421
      %v3457 = vunpack.c.h.b16 %v3421
      %v3458 = vunpack.c.l.b16 %v3422
      %v3459 = vunpack.c.h.b16 %v3422
      %v3460 = vunpack.c.l.b16 %v3423
      %v3461 = vunpack.c.h.b16 %v3423
      %v3462 = vunpack.c.l.b16 %v3424
      %v3463 = vunpack.c.h.b16 %v3424
      %v3464 = vunpack.c.l.b16 %v3425
      %v3465 = vunpack.c.h.b16 %v3425
      %v3466 = vunpack.c.l.b16 %v3426
      %v3467 = vunpack.c.h.b16 %v3426
      %v3468 = vunpack.c.l.b16 %v3427
      %v3469 = vunpack.c.h.b16 %v3427
      %v3470 = vunpack.c.l.b16 %v3428
      %v3471 = vunpack.c.h.b16 %v3428
      %v3472 = vunpack.c.l.b16 %v3429
      %v3473 = vunpack.c.h.b16 %v3429
      %v3474 = vunpack.c.l.b16 %v3430
      %v3475 = vunpack.c.h.b16 %v3430
      %v3476 = vunpack.c.l.b16 %v3431
      %v3477 = vunpack.c.h.b16 %v3431
      %v3478 = vunpack.c.l.b16 %v3432
      %v3479 = vunpack.c.h.b16 %v3432
      %v3480 = vunpack.c.l.b16 %v3433
      %v3481 = vunpack.c.h.b16 %v3433
      %v3482 = vpack.c.b16 %v3450, %v3450
      %v3483 = vpack.c.b16 %v3451, %v3451
      %v3484 = vpack.c.b16 %v3452, %v3452
      %v3485 = vpack.c.b16 %v3453, %v3453
      %v3486 = vpack.c.b16 %v3454, %v3454
      %v3487 = vpack.c.b16 %v3455, %v3455
      %v3488 = vpack.c.b16 %v3456, %v3456
      %v3489 = vpack.c.b16 %v3457, %v3457
      %v3490 = vpack.c.b16 %v3458, %v3458
      %v3491 = vpack.c.b16 %v3459, %v3459
      %v3492 = vpack.c.b16 %v3460, %v3460
      %v3493 = vpack.c.b16 %v3461, %v3461
      %v3494 = vpack.c.b16 %v3462, %v3462
      %v3495 = vpack.c.b16 %v3463, %v3463
      %v3496 = vpack.c.b16 %v3464, %v3464
      %v3497 = vpack.c.b16 %v3465, %v3465
      %v3498 = vpack.c.b16 %v3466, %v3466
      %v3499 = vpack.c.b16 %v3467, %v3467
      %v3500 = vpack.c.b16 %v3468, %v3468
      %v3501 = vpack.c.b16 %v3469, %v3469
      %v3502 = vpack.c.b16 %v3470, %v3470
      %v3503 = vpack.c.b16 %v3471, %v3471
      %v3504 = vpack.c.b16 %v3472, %v3472
      %v3505 = vpack.c.b16 %v3473, %v3473
      %v3506 = vpack.c.b16 %v3474, %v3474
      %v3507 = vpack.c.b16 %v3475, %v3475
      %v3508 = vpack.c.b16 %v3476, %v3476
      %v3509 = vpack.c.b16 %v3477, %v3477
      %v3510 = vpack.c.b16 %v3478, %v3478
      %v3511 = vpack.c.b16 %v3479, %v3479
      %v3512 = vpack.c.b16 %v3480, %v3480
      %v3513 = vpack.c.b16 %v3481, %v3481
      %s3546 = smul.u32 %s844, 4
      %s3547 = smul.addr %s3546, 4
      %s3548 = scalar_lea.vmem %s209, %s3547
      %3549 = vst [vmem:[%s3548 + $0x4] sm:$0xf] %v3482
      %3550 = vst [vmem:[%s3548 + $0x8] sm:$0xf] %v3483
      %3551 = vst [vmem:[%s3548 + $0x14] sm:$0xf] %v3484
      %3552 = vst [vmem:[%s3548 + $0x18] sm:$0xf] %v3485
      %3553 = vst [vmem:[%s3548 + $0x24] sm:$0xf] %v3486
      %3554 = vst [vmem:[%s3548 + $0x28] sm:$0xf] %v3487
      %3555 = vst [vmem:[%s3548 + $0x34] sm:$0xf] %v3488
      %3556 = vst [vmem:[%s3548 + $0x38] sm:$0xf] %v3489
      %3557 = vst [vmem:[%s3548 + $0x44] sm:$0xf] %v3490
      %3558 = vst [vmem:[%s3548 + $0x48] sm:$0xf] %v3491
      %3559 = vst [vmem:[%s3548 + $0x54] sm:$0xf] %v3492
      %3560 = vst [vmem:[%s3548 + $0x58] sm:$0xf] %v3493
      %3561 = vst [vmem:[%s3548 + $0x64] sm:$0xf] %v3494
      %3562 = vst [vmem:[%s3548 + $0x68] sm:$0xf] %v3495
      %3563 = vst [vmem:[%s3548 + $0x74] sm:$0xf] %v3496
      %3564 = vst [vmem:[%s3548 + $0x78] sm:$0xf] %v3497
      %3565 = vst [vmem:[%s3548 + $0x84] sm:$0xf] %v3498
      %3566 = vst [vmem:[%s3548 + $0x88] sm:$0xf] %v3499
      %3567 = vst [vmem:[%s3548 + $0x94] sm:$0xf] %v3500
      %3568 = vst [vmem:[%s3548 + $0x98] sm:$0xf] %v3501
      %3569 = vst [vmem:[%s3548 + $0xa4] sm:$0xf] %v3502
      %3570 = vst [vmem:[%s3548 + $0xa8] sm:$0xf] %v3503
      %3571 = vst [vmem:[%s3548 + $0xb4] sm:$0xf] %v3504
      %3572 = vst [vmem:[%s3548 + $0xb8] sm:$0xf] %v3505
      %3573 = vst [vmem:[%s3548 + $0xc4] sm:$0xf] %v3506
      %3574 = vst [vmem:[%s3548 + $0xc8] sm:$0xf] %v3507
      %3575 = vst [vmem:[%s3548 + $0xd4] sm:$0xf] %v3508
      %3576 = vst [vmem:[%s3548 + $0xd8] sm:$0xf] %v3509
      %3577 = vst [vmem:[%s3548 + $0xe4] sm:$0xf] %v3510
      %3578 = vst [vmem:[%s3548 + $0xe8] sm:$0xf] %v3511
      %3579 = vst [vmem:[%s3548 + $0xf4] sm:$0xf] %v3512
      %3580 = vst [vmem:[%s3548 + $0xf8] sm:$0xf] %v3513
      %p3581 = scmp.lt.s32.totalorder %s19, 1
      %s3582 = scalar_select %p3581, %s19, 1
      %s3583 = smul.addr %s3582, 72
      %s3584 = smul.addr %s3583, 4
      %s3585 = scalar_lea.vmem %s4, %s3584
      // Predicated region
      $region41: #{residual_block_pallas.2} parent=35 // pred_check
        %p3586 = pneg %p134
      $region42: #{residual_block_pallas.2} parent=35 // pred_check_branch
        %3588 = sbr.rel (%p3586) target = $region44
      $region43: #{residual_block_pallas.2} parent=35 // pred_region
        _
      $region44: #{residual_block_pallas.2} parent=35 // pred_fallthru
        _
    $region36: #{residual_block_pallas.2} parent=5 // pred_fallthru
      _
    %p3589 = scmp.le.s32.totalorder 2, %s10
    // Predicated region
    $region45: #{residual_block_pallas.2} parent=5 // pred_check
      %p3590 = pneg %p3589
    $region46: #{residual_block_pallas.2} parent=5 // pred_check_branch
      %3592 = sbr.rel (%p3590) target = $region48
    $region47: #{residual_block_pallas.2} parent=5 // pred_region
      %s3593 = ssub.s32 %s10, 2
      // Predicated region
      $region49: #{residual_block_pallas.2} parent=47 // pred_check
        %p3594 = pneg %p140
      $region50: #{residual_block_pallas.2} parent=47 // pred_check_branch
        %3596 = sbr.rel (%p3594) target = $region52
      $region51: #{residual_block_pallas.2} parent=47 // pred_region
        %p3597 = scmp.lt.s32.totalorder %s21, 1
        %s3598 = scalar_select %p3597, %s21, 1
        %s3599 = smul.addr %s3598, 72
        %s3600 = smul.addr %s3599, 4
        %s3601 = scalar_lea.vmem %s4, %s3600
      $region52: #{residual_block_pallas.2} parent=47 // pred_fallthru
        _
    $region48: #{residual_block_pallas.2} parent=5 // pred_fallthru
      _
  $region6: #{residual_block_pallas.2} parent=0 // loop_footer
    %s14 = sadd.s32 1, %s10
  $region7: #{residual_block_pallas.2} parent=0 // loop_footer_branch
    %9 = sbr.rel target = $region3
  $region8: #{residual_block_pallas.2} parent=0 // loop_exit
    _

// kernel: residual_block_pallas.3
$region0: #{residual_block_pallas.3}
  #allocation0 [shape = 'u32[]', space=smem, size = 0x4, offset = 0x4, fixed_abs, tag = 'smem constant byte address 0x4 - core index']
  #allocation1 [shape = 'u32[144,128]{1,0:T(1,128)}', space=vmem, size = 0x12000, scoped, tag = 'internal scratch']
  %s0 = inlined_call_operand.vmem [shape: bf16[2,18,25,128], index: 0, kind: input, shape index: {}]
  %s1 = inlined_call_operand.vmem [shape: bf16[3,384,128], index: 1, kind: input, shape index: {}]
  %s2 = inlined_call_operand.vmem [shape: f32[1,128], index: 2, kind: input, shape index: {}]
  %s3 = inlined_call_operand.vmem [shape: f32[1,128], index: 3, kind: input, shape index: {}]
  %s4 = inlined_call_operand.vmem [shape: bf16[2,18,18,128], index: 4, kind: input, shape index: {}]
  %s5 = inlined_call_operand.vmem [shape: bf16[128,128], index: 5, kind: input, shape index: {}]
  %s6 = inlined_call_operand.vmem [shape: f32[1,128], index: 6, kind: input, shape index: {}]
  %s7 = inlined_call_operand.vmem [shape: f32[1,128], index: 7, kind: input, shape index: {}]
  %s8 = inlined_call_operand.vmem [shape: bf16[2,16,16,128], index: 8, kind: output, shape index: {}]
  %s9 = sld [smem:[#allocation0]]
  $region65: #{residual_block_pallas.3} parent=0
    _
  %s11 = ssub.s32 1, %s9
  %s12 = scalar_select 0, %s11, %s9
  loop: start=0, step=1, limit=4
  $region2: #{residual_block_pallas.3} parent=0 // loop_pre_header
    _
  $region3: #{residual_block_pallas.3} parent=0 // loop_header
    %s14 = sphi 0, %s18
    %p15 = scmp.ge.s32.totalorder %s14, 4
    %s21 = sphi 0, %s33
    %s22 = sphi 0, %s29
    %s23 = sphi 0, %s21
    %s24 = sphi 0, %s22
    %s25 = sphi 0, %s23
    %s26 = sphi 0, %s24
    %s36 = sphi 0, %s38
    %s39 = sphi 0, %s36
    %s40 = sphi 0, %s39
    %s56 = sphi 0, %s40
    %s60 = sphi 0, %s60
    %s62 = sphi 0, %s60
    %s63 = sphi 0, %s62
    %s77 = sphi 0, %s63
    %s81 = sphi 0, %s81
    %s83 = sphi 0, %s81
    %s84 = sphi 0, %s83
    %s98 = sphi 0, %s84
    %s102 = sphi 0, %s102
    %s104 = sphi 0, %s102
    %s105 = sphi 0, %s104
    %s119 = sphi 0, %s105
    %s125 = sphi 0, %s127
    %s128 = sphi 0, %s125
    %s129 = sphi 0, %s128
    %s145 = sphi 0, %s129
    %s149 = sphi 0, %s149
    %s151 = sphi 0, %s149
    %s152 = sphi 0, %s151
    %s166 = sphi 0, %s152
    %s170 = sphi 0, %s170
    %s172 = sphi 0, %s170
    %s173 = sphi 0, %s172
    %s187 = sphi 0, %s173
    %s191 = sphi 0, %s191
    %s193 = sphi 0, %s191
    %s194 = sphi 0, %s193
    %s208 = sphi 0, %s194
    %s216 = sphi 0, %s218
    %s219 = sphi 0, %s216
    %s220 = sphi 0, %s219
    %s236 = sphi 0, %s220
  $region4: #{residual_block_pallas.3} parent=0 // loop_header_branch
    %17 = sbr.rel (%p15) target = $region8
  $region5: #{residual_block_pallas.3} parent=0 // loop_body
    %s19 = ssub.s32 %s14, 1
    %s20 = ssub.s32 %s14, 2
    %s27 = sadd.s32 1, %s22
    %p28 = scmp.ge.s32.totalorder %s27, 1
    %s29 = scalar_select %p28, 0, %s27
    %s30 = sadd.s32 1, %s21
    %s31 = scalar_select %p28, %s30, %s21
    %p32 = scmp.ge.s32.totalorder %s31, 2
    %s33 = scalar_select %p32, 0, %s31
    %s34 = ssub.s32 %s21, %s33
    %p35 = scmp.eq.s32.totalorder %s34, 0
    %s37 = sadd.s32 %s36, 1
    %s38 = scalar_select %p35, %s36, %s37
    %p41 = pneg %p35
    %p42 = scmp.eq.s32.totalorder %s14, 1
    %p43 = por %p41, %p42
    %p44 = scmp.ne.s32.totalorder %s36, %s39
    %p45 = scmp.eq.s32.totalorder %s14, 0
    %p46 = por %p44, %p45
    %p47 = scmp.ne.s32.totalorder %s36, %s39
    %p48 = scmp.eq.s32.totalorder %s19, 1
    %p49 = por %p47, %p48
    %p50 = scmp.ne.s32.totalorder %s39, %s40
    %p51 = scmp.eq.s32.totalorder %s19, 0
    %p52 = por %p50, %p51
    %p53 = scmp.ne.s32.totalorder %s39, %s40
    %p54 = scmp.eq.s32.totalorder %s20, 1
    %p55 = por %p53, %p54
    %p57 = scmp.ne.s32.totalorder %s40, %s56
    %p58 = scmp.eq.s32.totalorder %s20, 0
    %p59 = por %p57, %p58
    %s61 = sadd.s32 %s60, 1
    %p64 = scmp.eq.s32.totalorder %s14, 1
    %p65 = scmp.ne.s32.totalorder %s60, %s62
    %p66 = scmp.eq.s32.totalorder %s14, 0
    %p67 = por %p65, %p66
    %p68 = scmp.ne.s32.totalorder %s60, %s62
    %p69 = scmp.eq.s32.totalorder %s19, 1
    %p70 = por %p68, %p69
    %p71 = scmp.ne.s32.totalorder %s62, %s63
    %p72 = scmp.eq.s32.totalorder %s19, 0
    %p73 = por %p71, %p72
    %p74 = scmp.ne.s32.totalorder %s62, %s63
    %p75 = scmp.eq.s32.totalorder %s20, 1
    %p76 = por %p74, %p75
    %p78 = scmp.ne.s32.totalorder %s63, %s77
    %p79 = scmp.eq.s32.totalorder %s20, 0
    %p80 = por %p78, %p79
    %s82 = sadd.s32 %s81, 1
    %p85 = scmp.eq.s32.totalorder %s14, 1
    %p86 = scmp.ne.s32.totalorder %s81, %s83
    %p87 = scmp.eq.s32.totalorder %s14, 0
    %p88 = por %p86, %p87
    %p89 = scmp.ne.s32.totalorder %s81, %s83
    %p90 = scmp.eq.s32.totalorder %s19, 1
    %p91 = por %p89, %p90
    %p92 = scmp.ne.s32.totalorder %s83, %s84
    %p93 = scmp.eq.s32.totalorder %s19, 0
    %p94 = por %p92, %p93
    %p95 = scmp.ne.s32.totalorder %s83, %s84
    %p96 = scmp.eq.s32.totalorder %s20, 1
    %p97 = por %p95, %p96
    %p99 = scmp.ne.s32.totalorder %s84, %s98
    %p100 = scmp.eq.s32.totalorder %s20, 0
    %p101 = por %p99, %p100
    %s103 = sadd.s32 %s102, 1
    %p106 = scmp.eq.s32.totalorder %s14, 1
    %p107 = scmp.ne.s32.totalorder %s102, %s104
    %p108 = scmp.eq.s32.totalorder %s14, 0
    %p109 = por %p107, %p108
    %p110 = scmp.ne.s32.totalorder %s102, %s104
    %p111 = scmp.eq.s32.totalorder %s19, 1
    %p112 = por %p110, %p111
    %p113 = scmp.ne.s32.totalorder %s104, %s105
    %p114 = scmp.eq.s32.totalorder %s19, 0
    %p115 = por %p113, %p114
    %p116 = scmp.ne.s32.totalorder %s104, %s105
    %p117 = scmp.eq.s32.totalorder %s20, 1
    %p118 = por %p116, %p117
    %p120 = scmp.ne.s32.totalorder %s105, %s119
    %p121 = scmp.eq.s32.totalorder %s20, 0
    %p122 = por %p120, %p121
    %s123 = ssub.s32 %s21, %s33
    %p124 = scmp.eq.s32.totalorder %s123, 0
    %s126 = sadd.s32 %s125, 1
    %s127 = scalar_select %p124, %s125, %s126
    %p130 = pneg %p124
    %p131 = scmp.eq.s32.totalorder %s14, 1
    %p132 = por %p130, %p131
    %p133 = scmp.ne.s32.totalorder %s125, %s128
    %p134 = scmp.eq.s32.totalorder %s14, 0
    %p135 = por %p133, %p134
    %p136 = scmp.ne.s32.totalorder %s125, %s128
    %p137 = scmp.eq.s32.totalorder %s19, 1
    %p138 = por %p136, %p137
    %p139 = scmp.ne.s32.totalorder %s128, %s129
    %p140 = scmp.eq.s32.totalorder %s19, 0
    %p141 = por %p139, %p140
    %p142 = scmp.ne.s32.totalorder %s128, %s129
    %p143 = scmp.eq.s32.totalorder %s20, 1
    %p144 = por %p142, %p143
    %p146 = scmp.ne.s32.totalorder %s129, %s145
    %p147 = scmp.eq.s32.totalorder %s20, 0
    %p148 = por %p146, %p147
    %s150 = sadd.s32 %s149, 1
    %p153 = scmp.eq.s32.totalorder %s14, 1
    %p154 = scmp.ne.s32.totalorder %s149, %s151
    %p155 = scmp.eq.s32.totalorder %s14, 0
    %p156 = por %p154, %p155
    %p157 = scmp.ne.s32.totalorder %s149, %s151
    %p158 = scmp.eq.s32.totalorder %s19, 1
    %p159 = por %p157, %p158
    %p160 = scmp.ne.s32.totalorder %s151, %s152
    %p161 = scmp.eq.s32.totalorder %s19, 0
    %p162 = por %p160, %p161
    %p163 = scmp.ne.s32.totalorder %s151, %s152
    %p164 = scmp.eq.s32.totalorder %s20, 1
    %p165 = por %p163, %p164
    %p167 = scmp.ne.s32.totalorder %s152, %s166
    %p168 = scmp.eq.s32.totalorder %s20, 0
    %p169 = por %p167, %p168
    %s171 = sadd.s32 %s170, 1
    %p174 = scmp.eq.s32.totalorder %s14, 1
    %p175 = scmp.ne.s32.totalorder %s170, %s172
    %p176 = scmp.eq.s32.totalorder %s14, 0
    %p177 = por %p175, %p176
    %p178 = scmp.ne.s32.totalorder %s170, %s172
    %p179 = scmp.eq.s32.totalorder %s19, 1
    %p180 = por %p178, %p179
    %p181 = scmp.ne.s32.totalorder %s172, %s173
    %p182 = scmp.eq.s32.totalorder %s19, 0
    %p183 = por %p181, %p182
    %p184 = scmp.ne.s32.totalorder %s172, %s173
    %p185 = scmp.eq.s32.totalorder %s20, 1
    %p186 = por %p184, %p185
    %p188 = scmp.ne.s32.totalorder %s173, %s187
    %p189 = scmp.eq.s32.totalorder %s20, 0
    %p190 = por %p188, %p189
    %s192 = sadd.s32 %s191, 1
    %p195 = scmp.eq.s32.totalorder %s14, 1
    %p196 = scmp.ne.s32.totalorder %s191, %s193
    %p197 = scmp.eq.s32.totalorder %s14, 0
    %p198 = por %p196, %p197
    %p199 = scmp.ne.s32.totalorder %s191, %s193
    %p200 = scmp.eq.s32.totalorder %s19, 1
    %p201 = por %p199, %p200
    %p202 = scmp.ne.s32.totalorder %s193, %s194
    %p203 = scmp.eq.s32.totalorder %s19, 0
    %p204 = por %p202, %p203
    %p205 = scmp.ne.s32.totalorder %s193, %s194
    %p206 = scmp.eq.s32.totalorder %s20, 1
    %p207 = por %p205, %p206
    %p209 = scmp.ne.s32.totalorder %s194, %s208
    %p210 = scmp.eq.s32.totalorder %s20, 0
    %p211 = por %p209, %p210
    %s212 = ssub.s32 %s21, %s33
    %s213 = ssub.s32 %s22, %s29
    %s214 = sor.u32 %s212, %s213
    %p215 = scmp.eq.s32.totalorder %s214, 0
    %s217 = sadd.s32 %s216, 1
    %s218 = scalar_select %p215, %s216, %s217
    %p221 = pneg %p215
    %p222 = scmp.eq.s32.totalorder %s14, 1
    %p223 = por %p221, %p222
    %p224 = scmp.ne.s32.totalorder %s216, %s219
    %p225 = scmp.eq.s32.totalorder %s14, 0
    %p226 = por %p224, %p225
    %p227 = scmp.ne.s32.totalorder %s216, %s219
    %p228 = scmp.eq.s32.totalorder %s19, 1
    %p229 = por %p227, %p228
    %p230 = scmp.ne.s32.totalorder %s219, %s220
    %p231 = scmp.eq.s32.totalorder %s19, 0
    %p232 = por %p230, %p231
    %p233 = scmp.ne.s32.totalorder %s219, %s220
    %p234 = scmp.eq.s32.totalorder %s20, 1
    %p235 = por %p233, %p234
    %p237 = scmp.ne.s32.totalorder %s220, %s236
    %p238 = scmp.eq.s32.totalorder %s20, 0
    %p239 = por %p237, %p238
    %p240 = scmp.le.s32.totalorder 1, %s14
    %p241 = scmp.lt.s32.totalorder %s14, 3
    %p242 = pnand %p240, %p241
    %p243 = pneg %p242
    // Predicated region
    $region9: #{residual_block_pallas.3} parent=5 // pred_check
      _
    $region10: #{residual_block_pallas.3} parent=5 // pred_check_branch
      %245 = sbr.rel (%p242) target = $region12
    $region11: #{residual_block_pallas.3} parent=5 // pred_region
      %s246 = ssub.s32 %s14, 1
      // Predicated region
      $region13: #{residual_block_pallas.3} parent=11 // pred_check
        %p247 = pneg %p73
      $region14: #{residual_block_pallas.3} parent=11 // pred_check_branch
        %249 = sbr.rel (%p247) target = $region16
      $region15: #{residual_block_pallas.3} parent=11 // pred_region
        _
      $region16: #{residual_block_pallas.3} parent=11 // pred_fallthru
        _
      // Predicated region
      $region17: #{residual_block_pallas.3} parent=11 // pred_check
        %p250 = pneg %p94
      $region18: #{residual_block_pallas.3} parent=11 // pred_check_branch
        %252 = sbr.rel (%p250) target = $region20
      $region19: #{residual_block_pallas.3} parent=11 // pred_region
        _
      $region20: #{residual_block_pallas.3} parent=11 // pred_fallthru
        _
      // Predicated region
      $region21: #{residual_block_pallas.3} parent=11 // pred_check
        %p253 = pneg %p115
      $region22: #{residual_block_pallas.3} parent=11 // pred_check_branch
        %255 = sbr.rel (%p253) target = $region24
      $region23: #{residual_block_pallas.3} parent=11 // pred_region
        _
      $region24: #{residual_block_pallas.3} parent=11 // pred_fallthru
        _
      // Predicated region
      $region25: #{residual_block_pallas.3} parent=11 // pred_check
        %p256 = pneg %p162
      $region26: #{residual_block_pallas.3} parent=11 // pred_check_branch
        %258 = sbr.rel (%p256) target = $region28
      $region27: #{residual_block_pallas.3} parent=11 // pred_region
        _
      $region28: #{residual_block_pallas.3} parent=11 // pred_fallthru
        _
      // Predicated region
      $region29: #{residual_block_pallas.3} parent=11 // pred_check
        %p259 = pneg %p183
      $region30: #{residual_block_pallas.3} parent=11 // pred_check_branch
        %261 = sbr.rel (%p259) target = $region32
      $region31: #{residual_block_pallas.3} parent=11 // pred_region
        _
      $region32: #{residual_block_pallas.3} parent=11 // pred_fallthru
        _
      // Predicated region
      $region33: #{residual_block_pallas.3} parent=11 // pred_check
        %p262 = pneg %p204
      $region34: #{residual_block_pallas.3} parent=11 // pred_check_branch
        %264 = sbr.rel (%p262) target = $region36
      $region35: #{residual_block_pallas.3} parent=11 // pred_region
        _
      $region36: #{residual_block_pallas.3} parent=11 // pred_fallthru
        _
    $region12: #{residual_block_pallas.3} parent=5 // pred_fallthru
      _
    %p265 = scmp.lt.s32.totalorder %s14, 2
    // Predicated region
    $region37: #{residual_block_pallas.3} parent=5 // pred_check
      %p266 = pneg %p265
    $region38: #{residual_block_pallas.3} parent=5 // pred_check_branch
      %268 = sbr.rel (%p266) target = $region40
    $region39: #{residual_block_pallas.3} parent=5 // pred_region
      // Predicated region
      $region41: #{residual_block_pallas.3} parent=39 // pred_check
        %p269 = pneg %p46
      $region42: #{residual_block_pallas.3} parent=39 // pred_check_branch
        %271 = sbr.rel (%p269) target = $region44
      $region43: #{residual_block_pallas.3} parent=39 // pred_region
        %p272 = scmp.lt.s32.totalorder %s21, 1
        %s273 = scalar_select %p272, %s21, 1
        %s274 = smul.addr %s273, 72
        %s275 = smul.addr %s274, 4
        %s276 = scalar_lea.vmem %s0, %s275
      $region44: #{residual_block_pallas.3} parent=39 // pred_fallthru
        _
      // Predicated region
      $region45: #{residual_block_pallas.3} parent=39 // pred_check
        %p277 = pneg %p135
      $region46: #{residual_block_pallas.3} parent=39 // pred_check_branch
        %279 = sbr.rel (%p277) target = $region48
      $region47: #{residual_block_pallas.3} parent=39 // pred_region
        %p280 = scmp.lt.s32.totalorder %s21, 1
        %s281 = scalar_select %p280, %s21, 1
        %s282 = smul.addr %s281, 54
        %s283 = smul.addr %s282, 4
        %s284 = scalar_lea.vmem %s4, %s283
      $region48: #{residual_block_pallas.3} parent=39 // pred_fallthru
        _
    $region40: #{residual_block_pallas.3} parent=5 // pred_fallthru
      _
    %p285 = scmp.le.s32.totalorder 1, %s14
    %p286 = scmp.lt.s32.totalorder %s14, 3
    %p287 = pnand %p285, %p286
    %p288 = pneg %p287
    // Predicated region
    $region49: #{residual_block_pallas.3} parent=5 // pred_check
      _
    $region50: #{residual_block_pallas.3} parent=5 // pred_check_branch
      %290 = sbr.rel (%p287) target = $region52
    $region51: #{residual_block_pallas.3} parent=5 // pred_region
      %s291 = ssub.s32 %s14, 1
      %p292 = scmp.lt.s32.totalorder %s23, 1
      %s293 = scalar_select %p292, %s23, 1
      %s294 = smul.addr %s293, 72
      %s295 = smul.addr %s294, 4
      %s296 = scalar_lea.vmem %s0, %s295
      %p297 = pneg %p52
      %p298 = pneg %p49
      %p299 = pneg %p73
      %p300 = pneg %p70
      %p301 = pneg %p94
      %p302 = pneg %p91
      %p303 = pneg %p115
      %p304 = pneg %p112
      %p305 = scmp.lt.s32.totalorder %s23, 1
      %s306 = scalar_select %p305, %s23, 1
      %s307 = smul.addr %s306, 54
      %s308 = smul.addr %s307, 4
      %s309 = scalar_lea.vmem %s4, %s308
      %p310 = pneg %p141
      %p311 = pneg %p138
      %p312 = pneg %p162
      %p313 = pneg %p159
      %p314 = pneg %p183
      %p315 = pneg %p180
      %p316 = pneg %p204
      %p317 = pneg %p201
      %p318 = pneg %p232
      %p319 = pneg %p229
      %s320 = smul.u32 16, %s24
      %p321 = scmp.lt.s32.totalorder %s23, 1
      %s322 = scalar_select %p321, %s23, 1
      %p323 = scmp.lt.s32.totalorder %s320, 15
      %s324 = scalar_select %p323, %s320, 15
      %s325 = smul.addr %s324, 2
      %s326 = smul.addr %s322, 32
      %s327 = sadd.s32 %s325, %s326
      %s328 = smul.addr %s327, 4
      %s329 = scalar_lea.vmem %s8, %s328
      %p330 = scmp.lt.s32.totalorder %s23, 1
      %s331 = scalar_select %p330, %s23, 1
      %s332 = smul.addr %s331, 72
      %s333 = smul.addr %s332, 4
      %s334 = scalar_lea.vmem %s0, %s333
      %p335 = scmp.lt.s32.totalorder %s23, 1
      %s336 = scalar_select %p335, %s23, 1
      %s337 = smul.addr %s336, 54
      %s338 = smul.addr %s337, 4
      %s339 = scalar_lea.vmem %s4, %s338
      %s340 = smul.u32 16, %s24
      %p341 = scmp.lt.s32.totalorder %s23, 1
      %s342 = scalar_select %p341, %s23, 1
      %p343 = scmp.lt.s32.totalorder %s340, 15
      %s344 = scalar_select %p343, %s340, 15
      %s345 = smul.addr %s344, 2
      %s346 = smul.addr %s342, 32
      %s347 = sadd.s32 %s345, %s346
      %s348 = smul.addr %s347, 4
      %s349 = scalar_lea.vmem %s8, %s348
      %s350 = smul.u32 16, %s24
      %s352 = smul.u32 %s24, 16
      %s353 = smul.u32 %s352, 4
      %s354 = smul.addr %s353, 4
      %s355 = scalar_lea.vmem %s334, %s354
      %v356 = vld [vmem:[%s355] sm:$0xf]
      %v357 = vld [vmem:[%s355 + $0x4] sm:$0xf]
      %v358 = vld [vmem:[%s355 + $0x8] sm:$0xf]
      %v359 = vld [vmem:[%s355 + $0xc] sm:$0x1]
      %v360 = vld [vmem:[%s355 + $0x10] sm:$0xf]
      %v361 = vld [vmem:[%s355 + $0x14] sm:$0xf]
      %v362 = vld [vmem:[%s355 + $0x18] sm:$0xf]
      %v363 = vld [vmem:[%s355 + $0x1c] sm:$0x1]
      %v364 = vld [vmem:[%s355 + $0x20] sm:$0xf]
      %v365 = vld [vmem:[%s355 + $0x24] sm:$0xf]
      %v366 = vld [vmem:[%s355 + $0x28] sm:$0xf]
      %v367 = vld [vmem:[%s355 + $0x2c] sm:$0x1]
      %v368 = vld [vmem:[%s355 + $0x30] sm:$0xf]
      %v369 = vld [vmem:[%s355 + $0x34] sm:$0xf]
      %v370 = vld [vmem:[%s355 + $0x38] sm:$0xf]
      %v371 = vld [vmem:[%s355 + $0x3c] sm:$0x1]
      %v372 = vld [vmem:[%s355 + $0x40] sm:$0xf]
      %v373 = vld [vmem:[%s355 + $0x44] sm:$0xf]
      %v374 = vld [vmem:[%s355 + $0x48] sm:$0xf]
      %v375 = vld [vmem:[%s355 + $0x4c] sm:$0x1]
      %v376 = vld [vmem:[%s355 + $0x50] sm:$0xf]
      %v377 = vld [vmem:[%s355 + $0x54] sm:$0xf]
      %v378 = vld [vmem:[%s355 + $0x58] sm:$0xf]
      %v379 = vld [vmem:[%s355 + $0x5c] sm:$0x1]
      %v380 = vld [vmem:[%s355 + $0x60] sm:$0xf]
      %v381 = vld [vmem:[%s355 + $0x64] sm:$0xf]
      %v382 = vld [vmem:[%s355 + $0x68] sm:$0xf]
      %v383 = vld [vmem:[%s355 + $0x6c] sm:$0x1]
      %v384 = vld [vmem:[%s355 + $0x70] sm:$0xf]
      %v385 = vld [vmem:[%s355 + $0x74] sm:$0xf]
      %v386 = vld [vmem:[%s355 + $0x78] sm:$0xf]
      %v387 = vld [vmem:[%s355 + $0x7c] sm:$0x1]
      %v388 = vld [vmem:[%s355 + $0x80] sm:$0xf]
      %v389 = vld [vmem:[%s355 + $0x84] sm:$0xf]
      %v390 = vld [vmem:[%s355 + $0x88] sm:$0xf]
      %v391 = vld [vmem:[%s355 + $0x8c] sm:$0x1]
      %v392 = vld [vmem:[%s355 + $0x90] sm:$0xf]
      %v393 = vld [vmem:[%s355 + $0x94] sm:$0xf]
      %v394 = vld [vmem:[%s355 + $0x98] sm:$0xf]
      %v395 = vld [vmem:[%s355 + $0x9c] sm:$0x1]
      %v396 = vld [vmem:[%s355 + $0xa0] sm:$0xf]
      %v397 = vld [vmem:[%s355 + $0xa4] sm:$0xf]
      %v398 = vld [vmem:[%s355 + $0xa8] sm:$0xf]
      %v399 = vld [vmem:[%s355 + $0xac] sm:$0x1]
      %v400 = vld [vmem:[%s355 + $0xb0] sm:$0xf]
      %v401 = vld [vmem:[%s355 + $0xb4] sm:$0xf]
      %v402 = vld [vmem:[%s355 + $0xb8] sm:$0xf]
      %v403 = vld [vmem:[%s355 + $0xbc] sm:$0x1]
      %v404 = vld [vmem:[%s355 + $0xc0] sm:$0xf]
      %v405 = vld [vmem:[%s355 + $0xc4] sm:$0xf]
      %v406 = vld [vmem:[%s355 + $0xc8] sm:$0xf]
      %v407 = vld [vmem:[%s355 + $0xcc] sm:$0x1]
      %v408 = vld [vmem:[%s355 + $0xd0] sm:$0xf]
      %v409 = vld [vmem:[%s355 + $0xd4] sm:$0xf]
      %v410 = vld [vmem:[%s355 + $0xd8] sm:$0xf]
      %v411 = vld [vmem:[%s355 + $0xdc] sm:$0x1]
      %v412 = vld [vmem:[%s355 + $0xe0] sm:$0xf]
      %v413 = vld [vmem:[%s355 + $0xe4] sm:$0xf]
      %v414 = vld [vmem:[%s355 + $0xe8] sm:$0xf]
      %v415 = vld [vmem:[%s355 + $0xec] sm:$0x1]
      %v416 = vld [vmem:[%s355 + $0xf0] sm:$0xf]
      %v417 = vld [vmem:[%s355 + $0xf4] sm:$0xf]
      %v418 = vld [vmem:[%s355 + $0xf8] sm:$0xf]
      %v419 = vld [vmem:[%s355 + $0xfc] sm:$0x1]
      %v468 = vunpack.c.l.b16 %v356
      %v469 = vunpack.c.l.b16 %v357
      %v470 = vunpack.c.l.b16 %v358
      %v471 = vunpack.c.l.b16 %v360
      %v472 = vunpack.c.l.b16 %v361
      %v473 = vunpack.c.l.b16 %v362
      %v474 = vunpack.c.l.b16 %v364
      %v475 = vunpack.c.l.b16 %v365
      %v476 = vunpack.c.l.b16 %v366
      %v477 = vunpack.c.l.b16 %v368
      %v478 = vunpack.c.l.b16 %v369
      %v479 = vunpack.c.l.b16 %v370
      %v480 = vunpack.c.l.b16 %v372
      %v481 = vunpack.c.l.b16 %v373
      %v482 = vunpack.c.l.b16 %v374
      %v483 = vunpack.c.l.b16 %v376
      %v484 = vunpack.c.l.b16 %v377
      %v485 = vunpack.c.l.b16 %v378
      %v486 = vunpack.c.l.b16 %v380
      %v487 = vunpack.c.l.b16 %v381
      %v488 = vunpack.c.l.b16 %v382
      %v489 = vunpack.c.l.b16 %v384
      %v490 = vunpack.c.l.b16 %v385
      %v491 = vunpack.c.l.b16 %v386
      %v492 = vunpack.c.l.b16 %v388
      %v493 = vunpack.c.l.b16 %v389
      %v494 = vunpack.c.l.b16 %v390
      %v495 = vunpack.c.l.b16 %v392
      %v496 = vunpack.c.l.b16 %v393
      %v497 = vunpack.c.l.b16 %v394
      %v498 = vunpack.c.l.b16 %v396
      %v499 = vunpack.c.l.b16 %v397
      %v500 = vunpack.c.l.b16 %v398
      %v501 = vunpack.c.l.b16 %v400
      %v502 = vunpack.c.l.b16 %v401
      %v503 = vunpack.c.l.b16 %v402
      %v504 = vunpack.c.l.b16 %v404
      %v505 = vunpack.c.l.b16 %v405
      %v506 = vunpack.c.l.b16 %v406
      %v507 = vunpack.c.l.b16 %v408
      %v508 = vunpack.c.l.b16 %v409
      %v509 = vunpack.c.l.b16 %v410
      %v510 = vunpack.c.l.b16 %v412
      %v511 = vunpack.c.l.b16 %v413
      %v512 = vunpack.c.l.b16 %v414
      %v513 = vunpack.c.l.b16 %v416
      %v514 = vunpack.c.l.b16 %v417
      %v515 = vunpack.c.l.b16 %v418
      %v516 = vpack.c.b16 %v469, %v468
      %v517 = vpack.c.b16 %v470, %v470
      %v518 = vpack.c.b16 %v472, %v471
      %v519 = vpack.c.b16 %v473, %v473
      %v520 = vpack.c.b16 %v475, %v474
      %v521 = vpack.c.b16 %v476, %v476
      %v522 = vpack.c.b16 %v478, %v477
      %v523 = vpack.c.b16 %v479, %v479
      %v524 = vpack.c.b16 %v481, %v480
      %v525 = vpack.c.b16 %v482, %v482
      %v526 = vpack.c.b16 %v484, %v483
      %v527 = vpack.c.b16 %v485, %v485
      %v528 = vpack.c.b16 %v487, %v486
      %v529 = vpack.c.b16 %v488, %v488
      %v530 = vpack.c.b16 %v490, %v489
      %v531 = vpack.c.b16 %v491, %v491
      %v532 = vpack.c.b16 %v493, %v492
      %v533 = vpack.c.b16 %v494, %v494
      %v534 = vpack.c.b16 %v496, %v495
      %v535 = vpack.c.b16 %v497, %v497
      %v536 = vpack.c.b16 %v499, %v498
      %v537 = vpack.c.b16 %v500, %v500
      %v538 = vpack.c.b16 %v502, %v501
      %v539 = vpack.c.b16 %v503, %v503
      %v540 = vpack.c.b16 %v505, %v504
      %v541 = vpack.c.b16 %v506, %v506
      %v542 = vpack.c.b16 %v508, %v507
      %v543 = vpack.c.b16 %v509, %v509
      %v544 = vpack.c.b16 %v511, %v510
      %v545 = vpack.c.b16 %v512, %v512
      %v546 = vpack.c.b16 %v514, %v513
      %v547 = vpack.c.b16 %v515, %v515
      %v548 = vpack.c.b16 %v470, %v469
      %v549 = vpack.c.b16 %v473, %v472
      %v550 = vpack.c.b16 %v476, %v475
      %v551 = vpack.c.b16 %v479, %v478
      %v552 = vpack.c.b16 %v482, %v481
      %v553 = vpack.c.b16 %v485, %v484
      %v554 = vpack.c.b16 %v488, %v487
      %v555 = vpack.c.b16 %v491, %v490
      %v556 = vpack.c.b16 %v494, %v493
      %v557 = vpack.c.b16 %v497, %v496
      %v558 = vpack.c.b16 %v500, %v499
      %v559 = vpack.c.b16 %v503, %v502
      %v560 = vpack.c.b16 %v506, %v505
      %v561 = vpack.c.b16 %v509, %v508
      %v562 = vpack.c.b16 %v512, %v511
      %v563 = vpack.c.b16 %v515, %v514
      %v565 = vshrl.u32 %v548, 16
      %v567 = vrot.slane %v565, 4
      %v568 = vshll.u32 %v548, 16
      %v570 = vrot.slane %v568, 5
      %v571 = vor.u32 %v567, %v570
      %v573 = vshrl.u32 %v549, 16
      %v575 = vrot.slane %v573, 4
      %v576 = vshll.u32 %v549, 16
      %v578 = vrot.slane %v576, 5
      %v579 = vor.u32 %v575, %v578
      %v581 = vshrl.u32 %v550, 16
      %v583 = vrot.slane %v581, 4
      %v584 = vshll.u32 %v550, 16
      %v586 = vrot.slane %v584, 5
      %v587 = vor.u32 %v583, %v586
      %v589 = vshrl.u32 %v551, 16
      %v591 = vrot.slane %v589, 4
      %v592 = vshll.u32 %v551, 16
      %v594 = vrot.slane %v592, 5
      %v595 = vor.u32 %v591, %v594
      %v597 = vshrl.u32 %v552, 16
      %v599 = vrot.slane %v597, 4
      %v600 = vshll.u32 %v552, 16
      %v602 = vrot.slane %v600, 5
      %v603 = vor.u32 %v599, %v602
      %v605 = vshrl.u32 %v553, 16
      %v607 = vrot.slane %v605, 4
      %v608 = vshll.u32 %v553, 16
      %v610 = vrot.slane %v608, 5
      %v611 = vor.u32 %v607, %v610
      %v613 = vshrl.u32 %v554, 16
      %v615 = vrot.slane %v613, 4
      %v616 = vshll.u32 %v554, 16
      %v618 = vrot.slane %v616, 5
      %v619 = vor.u32 %v615, %v618
      %v621 = vshrl.u32 %v555, 16
      %v623 = vrot.slane %v621, 4
      %v624 = vshll.u32 %v555, 16
      %v626 = vrot.slane %v624, 5
      %v627 = vor.u32 %v623, %v626
      %v629 = vshrl.u32 %v556, 16
      %v631 = vrot.slane %v629, 4
      %v632 = vshll.u32 %v556, 16
      %v634 = vrot.slane %v632, 5
      %v635 = vor.u32 %v631, %v634
      %v637 = vshrl.u32 %v557, 16
      %v639 = vrot.slane %v637, 4
      %v640 = vshll.u32 %v557, 16
      %v642 = vrot.slane %v640, 5
      %v643 = vor.u32 %v639, %v642
      %v645 = vshrl.u32 %v558, 16
      %v647 = vrot.slane %v645, 4
      %v648 = vshll.u32 %v558, 16
      %v650 = vrot.slane %v648, 5
      %v651 = vor.u32 %v647, %v650
      %v653 = vshrl.u32 %v559, 16
      %v655 = vrot.slane %v653, 4
      %v656 = vshll.u32 %v559, 16
      %v658 = vrot.slane %v656, 5
      %v659 = vor.u32 %v655, %v658
      %v661 = vshrl.u32 %v560, 16
      %v663 = vrot.slane %v661, 4
      %v664 = vshll.u32 %v560, 16
      %v666 = vrot.slane %v664, 5
      %v667 = vor.u32 %v663, %v666
      %v669 = vshrl.u32 %v561, 16
      %v671 = vrot.slane %v669, 4
      %v672 = vshll.u32 %v561, 16
      %v674 = vrot.slane %v672, 5
      %v675 = vor.u32 %v671, %v674
      %v677 = vshrl.u32 %v562, 16
      %v679 = vrot.slane %v677, 4
      %v680 = vshll.u32 %v562, 16
      %v682 = vrot.slane %v680, 5
      %v683 = vor.u32 %v679, %v682
      %v685 = vshrl.u32 %v563, 16
      %v687 = vrot.slane %v685, 4
      %v688 = vshll.u32 %v563, 16
      %v690 = vrot.slane %v688, 5
      %v691 = vor.u32 %v687, %v690
      %v708 = vunpack.c.l.b16 %v359
      %v709 = vunpack.c.l.b16 %v363
      %v710 = vunpack.c.l.b16 %v367
      %v711 = vunpack.c.l.b16 %v371
      %v712 = vunpack.c.l.b16 %v375
      %v713 = vunpack.c.l.b16 %v379
      %v714 = vunpack.c.l.b16 %v383
      %v715 = vunpack.c.l.b16 %v387
      %v716 = vunpack.c.l.b16 %v391
      %v717 = vunpack.c.l.b16 %v395
      %v718 = vunpack.c.l.b16 %v399
      %v719 = vunpack.c.l.b16 %v403
      %v720 = vunpack.c.l.b16 %v407
      %v721 = vunpack.c.l.b16 %v411
      %v722 = vunpack.c.l.b16 %v415
      %v723 = vunpack.c.l.b16 %v419
      %v724 = vpack.c.b16 %v708, %v708
      %v725 = vpack.c.b16 %v709, %v709
      %v726 = vpack.c.b16 %v710, %v710
      %v727 = vpack.c.b16 %v711, %v711
      %v728 = vpack.c.b16 %v712, %v712
      %v729 = vpack.c.b16 %v713, %v713
      %v730 = vpack.c.b16 %v714, %v714
      %v731 = vpack.c.b16 %v715, %v715
      %v732 = vpack.c.b16 %v716, %v716
      %v733 = vpack.c.b16 %v717, %v717
      %v734 = vpack.c.b16 %v718, %v718
      %v735 = vpack.c.b16 %v719, %v719
      %v736 = vpack.c.b16 %v720, %v720
      %v737 = vpack.c.b16 %v721, %v721
      %v738 = vpack.c.b16 %v722, %v722
      %v739 = vpack.c.b16 %v723, %v723
      %vm740 = vcmask 1042432
      %v741 = vrot.slane %v548, 5
      %v742 = vrot.slane %v724, 5
      %v743 = vsel %vm740, %v741, %v742
      %v744 = vrot.slane %v549, 5
      %v745 = vrot.slane %v725, 5
      %v746 = vsel %vm740, %v744, %v745
      %v747 = vrot.slane %v550, 5
      %v748 = vrot.slane %v726, 5
      %v749 = vsel %vm740, %v747, %v748
      %v750 = vrot.slane %v551, 5
      %v751 = vrot.slane %v727, 5
      %v752 = vsel %vm740, %v750, %v751
      %v753 = vrot.slane %v552, 5
      %v754 = vrot.slane %v728, 5
      %v755 = vsel %vm740, %v753, %v754
      %v756 = vrot.slane %v553, 5
      %v757 = vrot.slane %v729, 5
      %v758 = vsel %vm740, %v756, %v757
      %v759 = vrot.slane %v554, 5
      %v760 = vrot.slane %v730, 5
      %v761 = vsel %vm740, %v759, %v760
      %v762 = vrot.slane %v555, 5
      %v763 = vrot.slane %v731, 5
      %v764 = vsel %vm740, %v762, %v763
      %v765 = vrot.slane %v556, 5
      %v766 = vrot.slane %v732, 5
      %v767 = vsel %vm740, %v765, %v766
      %v768 = vrot.slane %v557, 5
      %v769 = vrot.slane %v733, 5
      %v770 = vsel %vm740, %v768, %v769
      %v771 = vrot.slane %v558, 5
      %v772 = vrot.slane %v734, 5
      %v773 = vsel %vm740, %v771, %v772
      %v774 = vrot.slane %v559, 5
      %v775 = vrot.slane %v735, 5
      %v776 = vsel %vm740, %v774, %v775
      %v777 = vrot.slane %v560, 5
      %v778 = vrot.slane %v736, 5
      %v779 = vsel %vm740, %v777, %v778
      %v780 = vrot.slane %v561, 5
      %v781 = vrot.slane %v737, 5
      %v782 = vsel %vm740, %v780, %v781
      %v783 = vrot.slane %v562, 5
      %v784 = vrot.slane %v738, 5
      %v785 = vsel %vm740, %v783, %v784
      %v786 = vrot.slane %v563, 5
      %v787 = vrot.slane %v739, 5
      %v788 = vsel %vm740, %v786, %v787
      %vm789 = vsmask.f32 4352
      %v791 = vshrl.u32 %v516, 16
      %v793 = vrot.slane %v791, 3
      %v794 = vshll.u32 %v516, 16
      %v796 = vrot.slane %v794, 4
      %v797 = vor.u32 %v793, %v796
      %v799 = vshrl.u32 %v517, 16
      %v801 = vrot.slane %v799, 3
      %v802 = vshll.u32 %v517, 16
      %v804 = vrot.slane %v802, 4
      %v805 = vor.u32 %v801, %v804
      %v806 = vsel %vm789, %v797, %v805
      %v808 = vshrl.u32 %v571, 16
      %v810 = vrot.slane %v808, 3
      %v811 = vshll.u32 %v571, 16
      %v813 = vrot.slane %v811, 4
      %v814 = vor.u32 %v810, %v813
      %v815 = vsel %vm789, %v814, %v814
      %v817 = vshrl.u32 %v741, 16
      %v819 = vrot.slane %v817, 3
      %v820 = vshll.u32 %v741, 16
      %v822 = vrot.slane %v820, 4
      %v823 = vor.u32 %v819, %v822
      %v825 = vshrl.u32 %v743, 16
      %v827 = vrot.slane %v825, 3
      %v828 = vshll.u32 %v743, 16
      %v830 = vrot.slane %v828, 4
      %v831 = vor.u32 %v827, %v830
      %v832 = vsel %vm789, %v823, %v831
      %v834 = vshrl.u32 %v518, 16
      %v836 = vrot.slane %v834, 3
      %v837 = vshll.u32 %v518, 16
      %v839 = vrot.slane %v837, 4
      %v840 = vor.u32 %v836, %v839
      %v842 = vshrl.u32 %v519, 16
      %v844 = vrot.slane %v842, 3
      %v845 = vshll.u32 %v519, 16
      %v847 = vrot.slane %v845, 4
      %v848 = vor.u32 %v844, %v847
      %v849 = vsel %vm789, %v840, %v848
      %v851 = vshrl.u32 %v579, 16
      %v853 = vrot.slane %v851, 3
      %v854 = vshll.u32 %v579, 16
      %v856 = vrot.slane %v854, 4
      %v857 = vor.u32 %v853, %v856
      %v858 = vsel %vm789, %v857, %v857
      %v860 = vshrl.u32 %v744, 16
      %v862 = vrot.slane %v860, 3
      %v863 = vshll.u32 %v744, 16
      %v865 = vrot.slane %v863, 4
      %v866 = vor.u32 %v862, %v865
      %v868 = vshrl.u32 %v746, 16
      %v870 = vrot.slane %v868, 3
      %v871 = vshll.u32 %v746, 16
      %v873 = vrot.slane %v871, 4
      %v874 = vor.u32 %v870, %v873
      %v875 = vsel %vm789, %v866, %v874
      %v877 = vshrl.u32 %v520, 16
      %v879 = vrot.slane %v877, 3
      %v880 = vshll.u32 %v520, 16
      %v882 = vrot.slane %v880, 4
      %v883 = vor.u32 %v879, %v882
      %v885 = vshrl.u32 %v521, 16
      %v887 = vrot.slane %v885, 3
      %v888 = vshll.u32 %v521, 16
      %v890 = vrot.slane %v888, 4
      %v891 = vor.u32 %v887, %v890
      %v892 = vsel %vm789, %v883, %v891
      %v894 = vshrl.u32 %v587, 16
      %v896 = vrot.slane %v894, 3
      %v897 = vshll.u32 %v587, 16
      %v899 = vrot.slane %v897, 4
      %v900 = vor.u32 %v896, %v899
      %v901 = vsel %vm789, %v900, %v900
      %v903 = vshrl.u32 %v747, 16
      %v905 = vrot.slane %v903, 3
      %v906 = vshll.u32 %v747, 16
      %v908 = vrot.slane %v906, 4
      %v909 = vor.u32 %v905, %v908
      %v911 = vshrl.u32 %v749, 16
      %v913 = vrot.slane %v911, 3
      %v914 = vshll.u32 %v749, 16
      %v916 = vrot.slane %v914, 4
      %v917 = vor.u32 %v913, %v916
      %v918 = vsel %vm789, %v909, %v917
      %v920 = vshrl.u32 %v522, 16
      %v922 = vrot.slane %v920, 3
      %v923 = vshll.u32 %v522, 16
      %v925 = vrot.slane %v923, 4
      %v926 = vor.u32 %v922, %v925
      %v928 = vshrl.u32 %v523, 16
      %v930 = vrot.slane %v928, 3
      %v931 = vshll.u32 %v523, 16
      %v933 = vrot.slane %v931, 4
      %v934 = vor.u32 %v930, %v933
      %v935 = vsel %vm789, %v926, %v934
      %v937 = vshrl.u32 %v595, 16
      %v939 = vrot.slane %v937, 3
      %v940 = vshll.u32 %v595, 16
      %v942 = vrot.slane %v940, 4
      %v943 = vor.u32 %v939, %v942
      %v944 = vsel %vm789, %v943, %v943
      %v946 = vshrl.u32 %v750, 16
      %v948 = vrot.slane %v946, 3
      %v949 = vshll.u32 %v750, 16
      %v951 = vrot.slane %v949, 4
      %v952 = vor.u32 %v948, %v951
      %v954 = vshrl.u32 %v752, 16
      %v956 = vrot.slane %v954, 3
      %v957 = vshll.u32 %v752, 16
      %v959 = vrot.slane %v957, 4
      %v960 = vor.u32 %v956, %v959
      %v961 = vsel %vm789, %v952, %v960
      %v963 = vshrl.u32 %v524, 16
      %v965 = vrot.slane %v963, 3
      %v966 = vshll.u32 %v524, 16
      %v968 = vrot.slane %v966, 4
      %v969 = vor.u32 %v965, %v968
      %v971 = vshrl.u32 %v525, 16
      %v973 = vrot.slane %v971, 3
      %v974 = vshll.u32 %v525, 16
      %v976 = vrot.slane %v974, 4
      %v977 = vor.u32 %v973, %v976
      %v978 = vsel %vm789, %v969, %v977
      %v980 = vshrl.u32 %v603, 16
      %v982 = vrot.slane %v980, 3
      %v983 = vshll.u32 %v603, 16
      %v985 = vrot.slane %v983, 4
      %v986 = vor.u32 %v982, %v985
      %v987 = vsel %vm789, %v986, %v986
      %v989 = vshrl.u32 %v753, 16
      %v991 = vrot.slane %v989, 3
      %v992 = vshll.u32 %v753, 16
      %v994 = vrot.slane %v992, 4
      %v995 = vor.u32 %v991, %v994
      %v997 = vshrl.u32 %v755, 16
      %v999 = vrot.slane %v997, 3
      %v1000 = vshll.u32 %v755, 16
      %v1002 = vrot.slane %v1000, 4
      %v1003 = vor.u32 %v999, %v1002
      %v1004 = vsel %vm789, %v995, %v1003
      %v1006 = vshrl.u32 %v526, 16
      %v1008 = vrot.slane %v1006, 3
      %v1009 = vshll.u32 %v526, 16
      %v1011 = vrot.slane %v1009, 4
      %v1012 = vor.u32 %v1008, %v1011
      %v1014 = vshrl.u32 %v527, 16
      %v1016 = vrot.slane %v1014, 3
      %v1017 = vshll.u32 %v527, 16
      %v1019 = vrot.slane %v1017, 4
      %v1020 = vor.u32 %v1016, %v1019
      %v1021 = vsel %vm789, %v1012, %v1020
      %v1023 = vshrl.u32 %v611, 16
      %v1025 = vrot.slane %v1023, 3
      %v1026 = vshll.u32 %v611, 16
      %v1028 = vrot.slane %v1026, 4
      %v1029 = vor.u32 %v1025, %v1028
      %v1030 = vsel %vm789, %v1029, %v1029
      %v1032 = vshrl.u32 %v756, 16
      %v1034 = vrot.slane %v1032, 3
      %v1035 = vshll.u32 %v756, 16
      %v1037 = vrot.slane %v1035, 4
      %v1038 = vor.u32 %v1034, %v1037
      %v1040 = vshrl.u32 %v758, 16
      %v1042 = vrot.slane %v1040, 3
      %v1043 = vshll.u32 %v758, 16
      %v1045 = vrot.slane %v1043, 4
      %v1046 = vor.u32 %v1042, %v1045
      %v1047 = vsel %vm789, %v1038, %v1046
      %v1049 = vshrl.u32 %v528, 16
      %v1051 = vrot.slane %v1049, 3
      %v1052 = vshll.u32 %v528, 16
      %v1054 = vrot.slane %v1052, 4
      %v1055 = vor.u32 %v1051, %v1054
      %v1057 = vshrl.u32 %v529, 16
      %v1059 = vrot.slane %v1057, 3
      %v1060 = vshll.u32 %v529, 16
      %v1062 = vrot.slane %v1060, 4
      %v1063 = vor.u32 %v1059, %v1062
      %v1064 = vsel %vm789, %v1055, %v1063
      %v1066 = vshrl.u32 %v619, 16
      %v1068 = vrot.slane %v1066, 3
      %v1069 = vshll.u32 %v619, 16
      %v1071 = vrot.slane %v1069, 4
      %v1072 = vor.u32 %v1068, %v1071
      %v1073 = vsel %vm789, %v1072, %v1072
      %v1075 = vshrl.u32 %v759, 16
      %v1077 = vrot.slane %v1075, 3
      %v1078 = vshll.u32 %v759, 16
      %v1080 = vrot.slane %v1078, 4
      %v1081 = vor.u32 %v1077, %v1080
      %v1083 = vshrl.u32 %v761, 16
      %v1085 = vrot.slane %v1083, 3
      %v1086 = vshll.u32 %v761, 16
      %v1088 = vrot.slane %v1086, 4
      %v1089 = vor.u32 %v1085, %v1088
      %v1090 = vsel %vm789, %v1081, %v1089
      %v1092 = vshrl.u32 %v530, 16
      %v1094 = vrot.slane %v1092, 3
      %v1095 = vshll.u32 %v530, 16
      %v1097 = vrot.slane %v1095, 4
      %v1098 = vor.u32 %v1094, %v1097
      %v1100 = vshrl.u32 %v531, 16
      %v1102 = vrot.slane %v1100, 3
      %v1103 = vshll.u32 %v531, 16
      %v1105 = vrot.slane %v1103, 4
      %v1106 = vor.u32 %v1102, %v1105
      %v1107 = vsel %vm789, %v1098, %v1106
      %v1109 = vshrl.u32 %v627, 16
      %v1111 = vrot.slane %v1109, 3
      %v1112 = vshll.u32 %v627, 16
      %v1114 = vrot.slane %v1112, 4
      %v1115 = vor.u32 %v1111, %v1114
      %v1116 = vsel %vm789, %v1115, %v1115
      %v1118 = vshrl.u32 %v762, 16
      %v1120 = vrot.slane %v1118, 3
      %v1121 = vshll.u32 %v762, 16
      %v1123 = vrot.slane %v1121, 4
      %v1124 = vor.u32 %v1120, %v1123
      %v1126 = vshrl.u32 %v764, 16
      %v1128 = vrot.slane %v1126, 3
      %v1129 = vshll.u32 %v764, 16
      %v1131 = vrot.slane %v1129, 4
      %v1132 = vor.u32 %v1128, %v1131
      %v1133 = vsel %vm789, %v1124, %v1132
      %v1135 = vshrl.u32 %v532, 16
      %v1137 = vrot.slane %v1135, 3
      %v1138 = vshll.u32 %v532, 16
      %v1140 = vrot.slane %v1138, 4
      %v1141 = vor.u32 %v1137, %v1140
      %v1143 = vshrl.u32 %v533, 16
      %v1145 = vrot.slane %v1143, 3
      %v1146 = vshll.u32 %v533, 16
      %v1148 = vrot.slane %v1146, 4
      %v1149 = vor.u32 %v1145, %v1148
      %v1150 = vsel %vm789, %v1141, %v1149
      %v1152 = vshrl.u32 %v635, 16
      %v1154 = vrot.slane %v1152, 3
      %v1155 = vshll.u32 %v635, 16
      %v1157 = vrot.slane %v1155, 4
      %v1158 = vor.u32 %v1154, %v1157
      %v1159 = vsel %vm789, %v1158, %v1158
      %v1161 = vshrl.u32 %v765, 16
      %v1163 = vrot.slane %v1161, 3
      %v1164 = vshll.u32 %v765, 16
      %v1166 = vrot.slane %v1164, 4
      %v1167 = vor.u32 %v1163, %v1166
      %v1169 = vshrl.u32 %v767, 16
      %v1171 = vrot.slane %v1169, 3
      %v1172 = vshll.u32 %v767, 16
      %v1174 = vrot.slane %v1172, 4
      %v1175 = vor.u32 %v1171, %v1174
      %v1176 = vsel %vm789, %v1167, %v1175
      %v1178 = vshrl.u32 %v534, 16
      %v1180 = vrot.slane %v1178, 3
      %v1181 = vshll.u32 %v534, 16
      %v1183 = vrot.slane %v1181, 4
      %v1184 = vor.u32 %v1180, %v1183
      %v1186 = vshrl.u32 %v535, 16
      %v1188 = vrot.slane %v1186, 3
      %v1189 = vshll.u32 %v535, 16
      %v1191 = vrot.slane %v1189, 4
      %v1192 = vor.u32 %v1188, %v1191
      %v1193 = vsel %vm789, %v1184, %v1192
      %v1195 = vshrl.u32 %v643, 16
      %v1197 = vrot.slane %v1195, 3
      %v1198 = vshll.u32 %v643, 16
      %v1200 = vrot.slane %v1198, 4
      %v1201 = vor.u32 %v1197, %v1200
      %v1202 = vsel %vm789, %v1201, %v1201
      %v1204 = vshrl.u32 %v768, 16
      %v1206 = vrot.slane %v1204, 3
      %v1207 = vshll.u32 %v768, 16
      %v1209 = vrot.slane %v1207, 4
      %v1210 = vor.u32 %v1206, %v1209
      %v1212 = vshrl.u32 %v770, 16
      %v1214 = vrot.slane %v1212, 3
      %v1215 = vshll.u32 %v770, 16
      %v1217 = vrot.slane %v1215, 4
      %v1218 = vor.u32 %v1214, %v1217
      %v1219 = vsel %vm789, %v1210, %v1218
      %v1221 = vshrl.u32 %v536, 16
      %v1223 = vrot.slane %v1221, 3
      %v1224 = vshll.u32 %v536, 16
      %v1226 = vrot.slane %v1224, 4
      %v1227 = vor.u32 %v1223, %v1226
      %v1229 = vshrl.u32 %v537, 16
      %v1231 = vrot.slane %v1229, 3
      %v1232 = vshll.u32 %v537, 16
      %v1234 = vrot.slane %v1232, 4
      %v1235 = vor.u32 %v1231, %v1234
      %v1236 = vsel %vm789, %v1227, %v1235
      %v1238 = vshrl.u32 %v651, 16
      %v1240 = vrot.slane %v1238, 3
      %v1241 = vshll.u32 %v651, 16
      %v1243 = vrot.slane %v1241, 4
      %v1244 = vor.u32 %v1240, %v1243
      %v1245 = vsel %vm789, %v1244, %v1244
      %v1247 = vshrl.u32 %v771, 16
      %v1249 = vrot.slane %v1247, 3
      %v1250 = vshll.u32 %v771, 16
      %v1252 = vrot.slane %v1250, 4
      %v1253 = vor.u32 %v1249, %v1252
      %v1255 = vshrl.u32 %v773, 16
      %v1257 = vrot.slane %v1255, 3
      %v1258 = vshll.u32 %v773, 16
      %v1260 = vrot.slane %v1258, 4
      %v1261 = vor.u32 %v1257, %v1260
      %v1262 = vsel %vm789, %v1253, %v1261
      %v1264 = vshrl.u32 %v538, 16
      %v1266 = vrot.slane %v1264, 3
      %v1267 = vshll.u32 %v538, 16
      %v1269 = vrot.slane %v1267, 4
      %v1270 = vor.u32 %v1266, %v1269
      %v1272 = vshrl.u32 %v539, 16
      %v1274 = vrot.slane %v1272, 3
      %v1275 = vshll.u32 %v539, 16
      %v1277 = vrot.slane %v1275, 4
      %v1278 = vor.u32 %v1274, %v1277
      %v1279 = vsel %vm789, %v1270, %v1278
      %v1281 = vshrl.u32 %v659, 16
      %v1283 = vrot.slane %v1281, 3
      %v1284 = vshll.u32 %v659, 16
      %v1286 = vrot.slane %v1284, 4
      %v1287 = vor.u32 %v1283, %v1286
      %v1288 = vsel %vm789, %v1287, %v1287
      %v1290 = vshrl.u32 %v774, 16
      %v1292 = vrot.slane %v1290, 3
      %v1293 = vshll.u32 %v774, 16
      %v1295 = vrot.slane %v1293, 4
      %v1296 = vor.u32 %v1292, %v1295
      %v1298 = vshrl.u32 %v776, 16
      %v1300 = vrot.slane %v1298, 3
      %v1301 = vshll.u32 %v776, 16
      %v1303 = vrot.slane %v1301, 4
      %v1304 = vor.u32 %v1300, %v1303
      %v1305 = vsel %vm789, %v1296, %v1304
      %v1307 = vshrl.u32 %v540, 16
      %v1309 = vrot.slane %v1307, 3
      %v1310 = vshll.u32 %v540, 16
      %v1312 = vrot.slane %v1310, 4
      %v1313 = vor.u32 %v1309, %v1312
      %v1315 = vshrl.u32 %v541, 16
      %v1317 = vrot.slane %v1315, 3
      %v1318 = vshll.u32 %v541, 16
      %v1320 = vrot.slane %v1318, 4
      %v1321 = vor.u32 %v1317, %v1320
      %v1322 = vsel %vm789, %v1313, %v1321
      %v1324 = vshrl.u32 %v667, 16
      %v1326 = vrot.slane %v1324, 3
      %v1327 = vshll.u32 %v667, 16
      %v1329 = vrot.slane %v1327, 4
      %v1330 = vor.u32 %v1326, %v1329
      %v1331 = vsel %vm789, %v1330, %v1330
      %v1333 = vshrl.u32 %v777, 16
      %v1335 = vrot.slane %v1333, 3
      %v1336 = vshll.u32 %v777, 16
      %v1338 = vrot.slane %v1336, 4
      %v1339 = vor.u32 %v1335, %v1338
      %v1341 = vshrl.u32 %v779, 16
      %v1343 = vrot.slane %v1341, 3
      %v1344 = vshll.u32 %v779, 16
      %v1346 = vrot.slane %v1344, 4
      %v1347 = vor.u32 %v1343, %v1346
      %v1348 = vsel %vm789, %v1339, %v1347
      %v1350 = vshrl.u32 %v542, 16
      %v1352 = vrot.slane %v1350, 3
      %v1353 = vshll.u32 %v542, 16
      %v1355 = vrot.slane %v1353, 4
      %v1356 = vor.u32 %v1352, %v1355
      %v1358 = vshrl.u32 %v543, 16
      %v1360 = vrot.slane %v1358, 3
      %v1361 = vshll.u32 %v543, 16
      %v1363 = vrot.slane %v1361, 4
      %v1364 = vor.u32 %v1360, %v1363
      %v1365 = vsel %vm789, %v1356, %v1364
      %v1367 = vshrl.u32 %v675, 16
      %v1369 = vrot.slane %v1367, 3
      %v1370 = vshll.u32 %v675, 16
      %v1372 = vrot.slane %v1370, 4
      %v1373 = vor.u32 %v1369, %v1372
      %v1374 = vsel %vm789, %v1373, %v1373
      %v1376 = vshrl.u32 %v780, 16
      %v1378 = vrot.slane %v1376, 3
      %v1379 = vshll.u32 %v780, 16
      %v1381 = vrot.slane %v1379, 4
      %v1382 = vor.u32 %v1378, %v1381
      %v1384 = vshrl.u32 %v782, 16
      %v1386 = vrot.slane %v1384, 3
      %v1387 = vshll.u32 %v782, 16
      %v1389 = vrot.slane %v1387, 4
      %v1390 = vor.u32 %v1386, %v1389
      %v1391 = vsel %vm789, %v1382, %v1390
      %v1393 = vshrl.u32 %v544, 16
      %v1395 = vrot.slane %v1393, 3
      %v1396 = vshll.u32 %v544, 16
      %v1398 = vrot.slane %v1396, 4
      %v1399 = vor.u32 %v1395, %v1398
      %v1401 = vshrl.u32 %v545, 16
      %v1403 = vrot.slane %v1401, 3
      %v1404 = vshll.u32 %v545, 16
      %v1406 = vrot.slane %v1404, 4
      %v1407 = vor.u32 %v1403, %v1406
      %v1408 = vsel %vm789, %v1399, %v1407
      %v1410 = vshrl.u32 %v683, 16
      %v1412 = vrot.slane %v1410, 3
      %v1413 = vshll.u32 %v683, 16
      %v1415 = vrot.slane %v1413, 4
      %v1416 = vor.u32 %v1412, %v1415
      %v1417 = vsel %vm789, %v1416, %v1416
      %v1419 = vshrl.u32 %v783, 16
      %v1421 = vrot.slane %v1419, 3
      %v1422 = vshll.u32 %v783, 16
      %v1424 = vrot.slane %v1422, 4
      %v1425 = vor.u32 %v1421, %v1424
      %v1427 = vshrl.u32 %v785, 16
      %v1429 = vrot.slane %v1427, 3
      %v1430 = vshll.u32 %v785, 16
      %v1432 = vrot.slane %v1430, 4
      %v1433 = vor.u32 %v1429, %v1432
      %v1434 = vsel %vm789, %v1425, %v1433
      %v1436 = vshrl.u32 %v546, 16
      %v1438 = vrot.slane %v1436, 3
      %v1439 = vshll.u32 %v546, 16
      %v1441 = vrot.slane %v1439, 4
      %v1442 = vor.u32 %v1438, %v1441
      %v1444 = vshrl.u32 %v547, 16
      %v1446 = vrot.slane %v1444, 3
      %v1447 = vshll.u32 %v547, 16
      %v1449 = vrot.slane %v1447, 4
      %v1450 = vor.u32 %v1446, %v1449
      %v1451 = vsel %vm789, %v1442, %v1450
      %v1453 = vshrl.u32 %v691, 16
      %v1455 = vrot.slane %v1453, 3
      %v1456 = vshll.u32 %v691, 16
      %v1458 = vrot.slane %v1456, 4
      %v1459 = vor.u32 %v1455, %v1458
      %v1460 = vsel %vm789, %v1459, %v1459
      %v1462 = vshrl.u32 %v786, 16
      %v1464 = vrot.slane %v1462, 3
      %v1465 = vshll.u32 %v786, 16
      %v1467 = vrot.slane %v1465, 4
      %v1468 = vor.u32 %v1464, %v1467
      %v1470 = vshrl.u32 %v788, 16
      %v1472 = vrot.slane %v1470, 3
      %v1473 = vshll.u32 %v788, 16
      %v1475 = vrot.slane %v1473, 4
      %v1476 = vor.u32 %v1472, %v1475
      %v1477 = vsel %vm789, %v1468, %v1476
      %v1526 = vld [vmem:[%s1] sm:$0xf]
      %v1527 = vld [vmem:[%s1 + $0x4] sm:$0xf]
      %v1528 = vld [vmem:[%s1 + $0x8] sm:$0xf]
      %v1529 = vld [vmem:[%s1 + $0xc] sm:$0xf]
      %v1530 = vld [vmem:[%s1 + $0x10] sm:$0xf]
      %v1531 = vld [vmem:[%s1 + $0x14] sm:$0xf]
      %v1532 = vld [vmem:[%s1 + $0x18] sm:$0xf]
      %v1533 = vld [vmem:[%s1 + $0x1c] sm:$0xf]
      %v1534 = vld [vmem:[%s1 + $0x20] sm:$0xf]
      %v1535 = vld [vmem:[%s1 + $0x24] sm:$0xf]
      %v1536 = vld [vmem:[%s1 + $0x28] sm:$0xf]
      %v1537 = vld [vmem:[%s1 + $0x2c] sm:$0xf]
      %v1538 = vld [vmem:[%s1 + $0x30] sm:$0xf]
      %v1539 = vld [vmem:[%s1 + $0x34] sm:$0xf]
      %v1540 = vld [vmem:[%s1 + $0x38] sm:$0xf]
      %v1541 = vld [vmem:[%s1 + $0x3c] sm:$0xf]
      %v1542 = vld [vmem:[%s1 + $0x40] sm:$0xf]
      %v1543 = vld [vmem:[%s1 + $0x44] sm:$0xf]
      %v1544 = vld [vmem:[%s1 + $0x48] sm:$0xf]
      %v1545 = vld [vmem:[%s1 + $0x4c] sm:$0xf]
      %v1546 = vld [vmem:[%s1 + $0x50] sm:$0xf]
      %v1547 = vld [vmem:[%s1 + $0x54] sm:$0xf]
      %v1548 = vld [vmem:[%s1 + $0x58] sm:$0xf]
      %v1549 = vld [vmem:[%s1 + $0x5c] sm:$0xf]
      %v1550 = vld [vmem:[%s1 + $0x60] sm:$0xf]
      %v1551 = vld [vmem:[%s1 + $0x64] sm:$0xf]
      %v1552 = vld [vmem:[%s1 + $0x68] sm:$0xf]
      %v1553 = vld [vmem:[%s1 + $0x6c] sm:$0xf]
      %v1554 = vld [vmem:[%s1 + $0x70] sm:$0xf]
      %v1555 = vld [vmem:[%s1 + $0x74] sm:$0xf]
      %v1556 = vld [vmem:[%s1 + $0x78] sm:$0xf]
      %v1557 = vld [vmem:[%s1 + $0x7c] sm:$0xf]
      %v1558 = vld [vmem:[%s1 + $0x80] sm:$0xf]
      %v1559 = vld [vmem:[%s1 + $0x84] sm:$0xf]
      %v1560 = vld [vmem:[%s1 + $0x88] sm:$0xf]
      %v1561 = vld [vmem:[%s1 + $0x8c] sm:$0xf]
      %v1562 = vld [vmem:[%s1 + $0x90] sm:$0xf]
      %v1563 = vld [vmem:[%s1 + $0x94] sm:$0xf]
      %v1564 = vld [vmem:[%s1 + $0x98] sm:$0xf]
      %v1565 = vld [vmem:[%s1 + $0x9c] sm:$0xf]
      %v1566 = vld [vmem:[%s1 + $0xa0] sm:$0xf]
      %v1567 = vld [vmem:[%s1 + $0xa4] sm:$0xf]
      %v1568 = vld [vmem:[%s1 + $0xa8] sm:$0xf]
      %v1569 = vld [vmem:[%s1 + $0xac] sm:$0xf]
      %v1570 = vld [vmem:[%s1 + $0xb0] sm:$0xf]
      %v1571 = vld [vmem:[%s1 + $0xb4] sm:$0xf]
      %v1572 = vld [vmem:[%s1 + $0xb8] sm:$0xf]
      %v1573 = vld [vmem:[%s1 + $0xbc] sm:$0xf]
      %s1574 = sadd.s32 %s352, 1
      %s1575 = smul.u32 %s1574, 4
      %s1576 = smul.addr %s1575, 4
      %s1577 = scalar_lea.vmem %s334, %s1576
      %v1578 = vld [vmem:[%s1577] sm:$0xf]
      %v1579 = vld [vmem:[%s1577 + $0x4] sm:$0xf]
      %v1580 = vld [vmem:[%s1577 + $0x8] sm:$0xf]
      %v1581 = vld [vmem:[%s1577 + $0xc] sm:$0x1]
      %v1582 = vld [vmem:[%s1577 + $0x10] sm:$0xf]
      %v1583 = vld [vmem:[%s1577 + $0x14] sm:$0xf]
      %v1584 = vld [vmem:[%s1577 + $0x18] sm:$0xf]
      %v1585 = vld [vmem:[%s1577 + $0x1c] sm:$0x1]
      %v1586 = vld [vmem:[%s1577 + $0x20] sm:$0xf]
      %v1587 = vld [vmem:[%s1577 + $0x24] sm:$0xf]
      %v1588 = vld [vmem:[%s1577 + $0x28] sm:$0xf]
      %v1589 = vld [vmem:[%s1577 + $0x2c] sm:$0x1]
      %v1590 = vld [vmem:[%s1577 + $0x30] sm:$0xf]
      %v1591 = vld [vmem:[%s1577 + $0x34] sm:$0xf]
      %v1592 = vld [vmem:[%s1577 + $0x38] sm:$0xf]
      %v1593 = vld [vmem:[%s1577 + $0x3c] sm:$0x1]
      %v1594 = vld [vmem:[%s1577 + $0x40] sm:$0xf]
      %v1595 = vld [vmem:[%s1577 + $0x44] sm:$0xf]
      %v1596 = vld [vmem:[%s1577 + $0x48] sm:$0xf]
      %v1597 = vld [vmem:[%s1577 + $0x4c] sm:$0x1]
      %v1598 = vld [vmem:[%s1577 + $0x50] sm:$0xf]
      %v1599 = vld [vmem:[%s1577 + $0x54] sm:$0xf]
      %v1600 = vld [vmem:[%s1577 + $0x58] sm:$0xf]
      %v1601 = vld [vmem:[%s1577 + $0x5c] sm:$0x1]
      %v1602 = vld [vmem:[%s1577 + $0x60] sm:$0xf]
      %v1603 = vld [vmem:[%s1577 + $0x64] sm:$0xf]
      %v1604 = vld [vmem:[%s1577 + $0x68] sm:$0xf]
      %v1605 = vld [vmem:[%s1577 + $0x6c] sm:$0x1]
      %v1606 = vld [vmem:[%s1577 + $0x70] sm:$0xf]
      %v1607 = vld [vmem:[%s1577 + $0x74] sm:$0xf]
      %v1608 = vld [vmem:[%s1577 + $0x78] sm:$0xf]
      %v1609 = vld [vmem:[%s1577 + $0x7c] sm:$0x1]
      %v1610 = vld [vmem:[%s1577 + $0x80] sm:$0xf]
      %v1611 = vld [vmem:[%s1577 + $0x84] sm:$0xf]
      %v1612 = vld [vmem:[%s1577 + $0x88] sm:$0xf]
      %v1613 = vld [vmem:[%s1577 + $0x8c] sm:$0x1]
      %v1614 = vld [vmem:[%s1577 + $0x90] sm:$0xf]
      %v1615 = vld [vmem:[%s1577 + $0x94] sm:$0xf]
      %v1616 = vld [vmem:[%s1577 + $0x98] sm:$0xf]
      %v1617 = vld [vmem:[%s1577 + $0x9c] sm:$0x1]
      %v1618 = vld [vmem:[%s1577 + $0xa0] sm:$0xf]
      %v1619 = vld [vmem:[%s1577 + $0xa4] sm:$0xf]
      %v1620 = vld [vmem:[%s1577 + $0xa8] sm:$0xf]
      %v1621 = vld [vmem:[%s1577 + $0xac] sm:$0x1]
      %v1622 = vld [vmem:[%s1577 + $0xb0] sm:$0xf]
      %v1623 = vld [vmem:[%s1577 + $0xb4] sm:$0xf]
      %v1624 = vld [vmem:[%s1577 + $0xb8] sm:$0xf]
      %v1625 = vld [vmem:[%s1577 + $0xbc] sm:$0x1]
      %v1626 = vld [vmem:[%s1577 + $0xc0] sm:$0xf]
      %v1627 = vld [vmem:[%s1577 + $0xc4] sm:$0xf]
      %v1628 = vld [vmem:[%s1577 + $0xc8] sm:$0xf]
      %v1629 = vld [vmem:[%s1577 + $0xcc] sm:$0x1]
      %v1630 = vld [vmem:[%s1577 + $0xd0] sm:$0xf]
      %v1631 = vld [vmem:[%s1577 + $0xd4] sm:$0xf]
      %v1632 = vld [vmem:[%s1577 + $0xd8] sm:$0xf]
      %v1633 = vld [vmem:[%s1577 + $0xdc] sm:$0x1]
      %v1634 = vld [vmem:[%s1577 + $0xe0] sm:$0xf]
      %v1635 = vld [vmem:[%s1577 + $0xe4] sm:$0xf]
      %v1636 = vld [vmem:[%s1577 + $0xe8] sm:$0xf]
      %v1637 = vld [vmem:[%s1577 + $0xec] sm:$0x1]
      %v1638 = vld [vmem:[%s1577 + $0xf0] sm:$0xf]
      %v1639 = vld [vmem:[%s1577 + $0xf4] sm:$0xf]
      %v1640 = vld [vmem:[%s1577 + $0xf8] sm:$0xf]
      %v1641 = vld [vmem:[%s1577 + $0xfc] sm:$0x1]
      %v1690 = vunpack.c.l.b16 %v1578
      %v1691 = vunpack.c.l.b16 %v1579
      %v1692 = vunpack.c.l.b16 %v1580
      %v1693 = vunpack.c.l.b16 %v1582
      %v1694 = vunpack.c.l.b16 %v1583
      %v1695 = vunpack.c.l.b16 %v1584
      %v1696 = vunpack.c.l.b16 %v1586
      %v1697 = vunpack.c.l.b16 %v1587
      %v1698 = vunpack.c.l.b16 %v1588
      %v1699 = vunpack.c.l.b16 %v1590
      %v1700 = vunpack.c.l.b16 %v1591
      %v1701 = vunpack.c.l.b16 %v1592
      %v1702 = vunpack.c.l.b16 %v1594
      %v1703 = vunpack.c.l.b16 %v1595
      %v1704 = vunpack.c.l.b16 %v1596
      %v1705 = vunpack.c.l.b16 %v1598
      %v1706 = vunpack.c.l.b16 %v1599
      %v1707 = vunpack.c.l.b16 %v1600
      %v1708 = vunpack.c.l.b16 %v1602
      %v1709 = vunpack.c.l.b16 %v1603
      %v1710 = vunpack.c.l.b16 %v1604
      %v1711 = vunpack.c.l.b16 %v1606
      %v1712 = vunpack.c.l.b16 %v1607
      %v1713 = vunpack.c.l.b16 %v1608
      %v1714 = vunpack.c.l.b16 %v1610
      %v1715 = vunpack.c.l.b16 %v1611
      %v1716 = vunpack.c.l.b16 %v1612
      %v1717 = vunpack.c.l.b16 %v1614
      %v1718 = vunpack.c.l.b16 %v1615
      %v1719 = vunpack.c.l.b16 %v1616
      %v1720 = vunpack.c.l.b16 %v1618
      %v1721 = vunpack.c.l.b16 %v1619
      %v1722 = vunpack.c.l.b16 %v1620
      %v1723 = vunpack.c.l.b16 %v1622
      %v1724 = vunpack.c.l.b16 %v1623
      %v1725 = vunpack.c.l.b16 %v1624
      %v1726 = vunpack.c.l.b16 %v1626
      %v1727 = vunpack.c.l.b16 %v1627
      %v1728 = vunpack.c.l.b16 %v1628
      %v1729 = vunpack.c.l.b16 %v1630
      %v1730 = vunpack.c.l.b16 %v1631
      %v1731 = vunpack.c.l.b16 %v1632
      %v1732 = vunpack.c.l.b16 %v1634
      %v1733 = vunpack.c.l.b16 %v1635
      %v1734 = vunpack.c.l.b16 %v1636
      %v1735 = vunpack.c.l.b16 %v1638
      %v1736 = vunpack.c.l.b16 %v1639
      %v1737 = vunpack.c.l.b16 %v1640
      %v1738 = vpack.c.b16 %v1691, %v1690
      %v1739 = vpack.c.b16 %v1692, %v1692
      %v1740 = vpack.c.b16 %v1694, %v1693
      %v1741 = vpack.c.b16 %v1695, %v1695
      %v1742 = vpack.c.b16 %v1697, %v1696
      %v1743 = vpack.c.b16 %v1698, %v1698
      %v1744 = vpack.c.b16 %v1700, %v1699
      %v1745 = vpack.c.b16 %v1701, %v1701
      %v1746 = vpack.c.b16 %v1703, %v1702
      %v1747 = vpack.c.b16 %v1704, %v1704
      %v1748 = vpack.c.b16 %v1706, %v1705
      %v1749 = vpack.c.b16 %v1707, %v1707
      %v1750 = vpack.c.b16 %v1709, %v1708
      %v1751 = vpack.c.b16 %v1710, %v1710
      %v1752 = vpack.c.b16 %v1712, %v1711
      %v1753 = vpack.c.b16 %v1713, %v1713
      %v1754 = vpack.c.b16 %v1715, %v1714
      %v1755 = vpack.c.b16 %v1716, %v1716
      %v1756 = vpack.c.b16 %v1718, %v1717
      %v1757 = vpack.c.b16 %v1719, %v1719
      %v1758 = vpack.c.b16 %v1721, %v1720
      %v1759 = vpack.c.b16 %v1722, %v1722
      %v1760 = vpack.c.b16 %v1724, %v1723
      %v1761 = vpack.c.b16 %v1725, %v1725
      %v1762 = vpack.c.b16 %v1727, %v1726
      %v1763 = vpack.c.b16 %v1728, %v1728
      %v1764 = vpack.c.b16 %v1730, %v1729
      %v1765 = vpack.c.b16 %v1731, %v1731
      %v1766 = vpack.c.b16 %v1733, %v1732
      %v1767 = vpack.c.b16 %v1734, %v1734
      %v1768 = vpack.c.b16 %v1736, %v1735
      %v1769 = vpack.c.b16 %v1737, %v1737
      %v1770 = vpack.c.b16 %v1692, %v1691
      %v1771 = vpack.c.b16 %v1695, %v1694
      %v1772 = vpack.c.b16 %v1698, %v1697
      %v1773 = vpack.c.b16 %v1701, %v1700
      %v1774 = vpack.c.b16 %v1704, %v1703
      %v1775 = vpack.c.b16 %v1707, %v1706
      %v1776 = vpack.c.b16 %v1710, %v1709
      %v1777 = vpack.c.b16 %v1713, %v1712
      %v1778 = vpack.c.b16 %v1716, %v1715
      %v1779 = vpack.c.b16 %v1719, %v1718
      %v1780 = vpack.c.b16 %v1722, %v1721
      %v1781 = vpack.c.b16 %v1725, %v1724
      %v1782 = vpack.c.b16 %v1728, %v1727
      %v1783 = vpack.c.b16 %v1731, %v1730
      %v1784 = vpack.c.b16 %v1734, %v1733
      %v1785 = vpack.c.b16 %v1737, %v1736
      %v1787 = vshrl.u32 %v1770, 16
      %v1789 = vrot.slane %v1787, 4
      %v1790 = vshll.u32 %v1770, 16
      %v1792 = vrot.slane %v1790, 5
      %v1793 = vor.u32 %v1789, %v1792
      %v1795 = vshrl.u32 %v1771, 16
      %v1797 = vrot.slane %v1795, 4
      %v1798 = vshll.u32 %v1771, 16
      %v1800 = vrot.slane %v1798, 5
      %v1801 = vor.u32 %v1797, %v1800
      %v1803 = vshrl.u32 %v1772, 16
      %v1805 = vrot.slane %v1803, 4
      %v1806 = vshll.u32 %v1772, 16
      %v1808 = vrot.slane %v1806, 5
      %v1809 = vor.u32 %v1805, %v1808
      %v1811 = vshrl.u32 %v1773, 16
      %v1813 = vrot.slane %v1811, 4
      %v1814 = vshll.u32 %v1773, 16
      %v1816 = vrot.slane %v1814, 5
      %v1817 = vor.u32 %v1813, %v1816
      %v1819 = vshrl.u32 %v1774, 16
      %v1821 = vrot.slane %v1819, 4
      %v1822 = vshll.u32 %v1774, 16
      %v1824 = vrot.slane %v1822, 5
      %v1825 = vor.u32 %v1821, %v1824
      %v1827 = vshrl.u32 %v1775, 16
      %v1829 = vrot.slane %v1827, 4
      %v1830 = vshll.u32 %v1775, 16
      %v1832 = vrot.slane %v1830, 5
      %v1833 = vor.u32 %v1829, %v1832
      %v1835 = vshrl.u32 %v1776, 16
      %v1837 = vrot.slane %v1835, 4
      %v1838 = vshll.u32 %v1776, 16
      %v1840 = vrot.slane %v1838, 5
      %v1841 = vor.u32 %v1837, %v1840
      %v1843 = vshrl.u32 %v1777, 16
      %v1845 = vrot.slane %v1843, 4
      %v1846 = vshll.u32 %v1777, 16
      %v1848 = vrot.slane %v1846, 5
      %v1849 = vor.u32 %v1845, %v1848
      %v1851 = vshrl.u32 %v1778, 16
      %v1853 = vrot.slane %v1851, 4
      %v1854 = vshll.u32 %v1778, 16
      %v1856 = vrot.slane %v1854, 5
      %v1857 = vor.u32 %v1853, %v1856
      %v1859 = vshrl.u32 %v1779, 16
      %v1861 = vrot.slane %v1859, 4
      %v1862 = vshll.u32 %v1779, 16
      %v1864 = vrot.slane %v1862, 5
      %v1865 = vor.u32 %v1861, %v1864
      %v1867 = vshrl.u32 %v1780, 16
      %v1869 = vrot.slane %v1867, 4
      %v1870 = vshll.u32 %v1780, 16
      %v1872 = vrot.slane %v1870, 5
      %v1873 = vor.u32 %v1869, %v1872
      %v1875 = vshrl.u32 %v1781, 16
      %v1877 = vrot.slane %v1875, 4
      %v1878 = vshll.u32 %v1781, 16
      %v1880 = vrot.slane %v1878, 5
      %v1881 = vor.u32 %v1877, %v1880
      %v1883 = vshrl.u32 %v1782, 16
      %v1885 = vrot.slane %v1883, 4
      %v1886 = vshll.u32 %v1782, 16
      %v1888 = vrot.slane %v1886, 5
      %v1889 = vor.u32 %v1885, %v1888
      %v1891 = vshrl.u32 %v1783, 16
      %v1893 = vrot.slane %v1891, 4
      %v1894 = vshll.u32 %v1783, 16
      %v1896 = vrot.slane %v1894, 5
      %v1897 = vor.u32 %v1893, %v1896
      %v1899 = vshrl.u32 %v1784, 16
      %v1901 = vrot.slane %v1899, 4
      %v1902 = vshll.u32 %v1784, 16
      %v1904 = vrot.slane %v1902, 5
      %v1905 = vor.u32 %v1901, %v1904
      %v1907 = vshrl.u32 %v1785, 16
      %v1909 = vrot.slane %v1907, 4
      %v1910 = vshll.u32 %v1785, 16
      %v1912 = vrot.slane %v1910, 5
      %v1913 = vor.u32 %v1909, %v1912
      %v1930 = vunpack.c.l.b16 %v1581
      %v1931 = vunpack.c.l.b16 %v1585
      %v1932 = vunpack.c.l.b16 %v1589
      %v1933 = vunpack.c.l.b16 %v1593
      %v1934 = vunpack.c.l.b16 %v1597
      %v1935 = vunpack.c.l.b16 %v1601
      %v1936 = vunpack.c.l.b16 %v1605
      %v1937 = vunpack.c.l.b16 %v1609
      %v1938 = vunpack.c.l.b16 %v1613
      %v1939 = vunpack.c.l.b16 %v1617
      %v1940 = vunpack.c.l.b16 %v1621
      %v1941 = vunpack.c.l.b16 %v1625
      %v1942 = vunpack.c.l.b16 %v1629
      %v1943 = vunpack.c.l.b16 %v1633
      %v1944 = vunpack.c.l.b16 %v1637
      %v1945 = vunpack.c.l.b16 %v1641
      %v1946 = vpack.c.b16 %v1930, %v1930
      %v1947 = vpack.c.b16 %v1931, %v1931
      %v1948 = vpack.c.b16 %v1932, %v1932
      %v1949 = vpack.c.b16 %v1933, %v1933
      %v1950 = vpack.c.b16 %v1934, %v1934
      %v1951 = vpack.c.b16 %v1935, %v1935
      %v1952 = vpack.c.b16 %v1936, %v1936
      %v1953 = vpack.c.b16 %v1937, %v1937
      %v1954 = vpack.c.b16 %v1938, %v1938
      %v1955 = vpack.c.b16 %v1939, %v1939
      %v1956 = vpack.c.b16 %v1940, %v1940
      %v1957 = vpack.c.b16 %v1941, %v1941
      %v1958 = vpack.c.b16 %v1942, %v1942
      %v1959 = vpack.c.b16 %v1943, %v1943
      %v1960 = vpack.c.b16 %v1944, %v1944
      %v1961 = vpack.c.b16 %v1945, %v1945
      %v1962 = vrot.slane %v1770, 5
      %v1963 = vrot.slane %v1946, 5
      %v1964 = vsel %vm740, %v1962, %v1963
      %v1965 = vrot.slane %v1771, 5
      %v1966 = vrot.slane %v1947, 5
      %v1967 = vsel %vm740, %v1965, %v1966
      %v1968 = vrot.slane %v1772, 5
      %v1969 = vrot.slane %v1948, 5
      %v1970 = vsel %vm740, %v1968, %v1969
      %v1971 = vrot.slane %v1773, 5
      %v1972 = vrot.slane %v1949, 5
      %v1973 = vsel %vm740, %v1971, %v1972
      %v1974 = vrot.slane %v1774, 5
      %v1975 = vrot.slane %v1950, 5
      %v1976 = vsel %vm740, %v1974, %v1975
      %v1977 = vrot.slane %v1775, 5
      %v1978 = vrot.slane %v1951, 5
      %v1979 = vsel %vm740, %v1977, %v1978
      %v1980 = vrot.slane %v1776, 5
      %v1981 = vrot.slane %v1952, 5
      %v1982 = vsel %vm740, %v1980, %v1981
      %v1983 = vrot.slane %v1777, 5
      %v1984 = vrot.slane %v1953, 5
      %v1985 = vsel %vm740, %v1983, %v1984
      %v1986 = vrot.slane %v1778, 5
      %v1987 = vrot.slane %v1954, 5
      %v1988 = vsel %vm740, %v1986, %v1987
      %v1989 = vrot.slane %v1779, 5
      %v1990 = vrot.slane %v1955, 5
      %v1991 = vsel %vm740, %v1989, %v1990
      %v1992 = vrot.slane %v1780, 5
      %v1993 = vrot.slane %v1956, 5
      %v1994 = vsel %vm740, %v1992, %v1993
      %v1995 = vrot.slane %v1781, 5
      %v1996 = vrot.slane %v1957, 5
      %v1997 = vsel %vm740, %v1995, %v1996
      %v1998 = vrot.slane %v1782, 5
      %v1999 = vrot.slane %v1958, 5
      %v2000 = vsel %vm740, %v1998, %v1999
      %v2001 = vrot.slane %v1783, 5
      %v2002 = vrot.slane %v1959, 5
      %v2003 = vsel %vm740, %v2001, %v2002
      %v2004 = vrot.slane %v1784, 5
      %v2005 = vrot.slane %v1960, 5
      %v2006 = vsel %vm740, %v2004, %v2005
      %v2007 = vrot.slane %v1785, 5
      %v2008 = vrot.slane %v1961, 5
      %v2009 = vsel %vm740, %v2007, %v2008
      %v2011 = vshrl.u32 %v1738, 16
      %v2013 = vrot.slane %v2011, 3
      %v2014 = vshll.u32 %v1738, 16
      %v2016 = vrot.slane %v2014, 4
      %v2017 = vor.u32 %v2013, %v2016
      %v2019 = vshrl.u32 %v1739, 16
      %v2021 = vrot.slane %v2019, 3
      %v2022 = vshll.u32 %v1739, 16
      %v2024 = vrot.slane %v2022, 4
      %v2025 = vor.u32 %v2021, %v2024
      %v2026 = vsel %vm789, %v2017, %v2025
      %v2028 = vshrl.u32 %v1793, 16
      %v2030 = vrot.slane %v2028, 3
      %v2031 = vshll.u32 %v1793, 16
      %v2033 = vrot.slane %v2031, 4
      %v2034 = vor.u32 %v2030, %v2033
      %v2035 = vsel %vm789, %v2034, %v2034
      %v2037 = vshrl.u32 %v1962, 16
      %v2039 = vrot.slane %v2037, 3
      %v2040 = vshll.u32 %v1962, 16
      %v2042 = vrot.slane %v2040, 4
      %v2043 = vor.u32 %v2039, %v2042
      %v2045 = vshrl.u32 %v1964, 16
      %v2047 = vrot.slane %v2045, 3
      %v2048 = vshll.u32 %v1964, 16
      %v2050 = vrot.slane %v2048, 4
      %v2051 = vor.u32 %v2047, %v2050
      %v2052 = vsel %vm789, %v2043, %v2051
      %v2054 = vshrl.u32 %v1740, 16
      %v2056 = vrot.slane %v2054, 3
      %v2057 = vshll.u32 %v1740, 16
      %v2059 = vrot.slane %v2057, 4
      %v2060 = vor.u32 %v2056, %v2059
      %v2062 = vshrl.u32 %v1741, 16
      %v2064 = vrot.slane %v2062, 3
      %v2065 = vshll.u32 %v1741, 16
      %v2067 = vrot.slane %v2065, 4
      %v2068 = vor.u32 %v2064, %v2067
      %v2069 = vsel %vm789, %v2060, %v2068
      %v2071 = vshrl.u32 %v1801, 16
      %v2073 = vrot.slane %v2071, 3
      %v2074 = vshll.u32 %v1801, 16
      %v2076 = vrot.slane %v2074, 4
      %v2077 = vor.u32 %v2073, %v2076
      %v2078 = vsel %vm789, %v2077, %v2077
      %v2080 = vshrl.u32 %v1965, 16
      %v2082 = vrot.slane %v2080, 3
      %v2083 = vshll.u32 %v1965, 16
      %v2085 = vrot.slane %v2083, 4
      %v2086 = vor.u32 %v2082, %v2085
      %v2088 = vshrl.u32 %v1967, 16
      %v2090 = vrot.slane %v2088, 3
      %v2091 = vshll.u32 %v1967, 16
      %v2093 = vrot.slane %v2091, 4
      %v2094 = vor.u32 %v2090, %v2093
      %v2095 = vsel %vm789, %v2086, %v2094
      %v2097 = vshrl.u32 %v1742, 16
      %v2099 = vrot.slane %v2097, 3
      %v2100 = vshll.u32 %v1742, 16
      %v2102 = vrot.slane %v2100, 4
      %v2103 = vor.u32 %v2099, %v2102
      %v2105 = vshrl.u32 %v1743, 16
      %v2107 = vrot.slane %v2105, 3
      %v2108 = vshll.u32 %v1743, 16
      %v2110 = vrot.slane %v2108, 4
      %v2111 = vor.u32 %v2107, %v2110
      %v2112 = vsel %vm789, %v2103, %v2111
      %v2114 = vshrl.u32 %v1809, 16
      %v2116 = vrot.slane %v2114, 3
      %v2117 = vshll.u32 %v1809, 16
      %v2119 = vrot.slane %v2117, 4
      %v2120 = vor.u32 %v2116, %v2119
      %v2121 = vsel %vm789, %v2120, %v2120
      %v2123 = vshrl.u32 %v1968, 16
      %v2125 = vrot.slane %v2123, 3
      %v2126 = vshll.u32 %v1968, 16
      %v2128 = vrot.slane %v2126, 4
      %v2129 = vor.u32 %v2125, %v2128
      %v2131 = vshrl.u32 %v1970, 16
      %v2133 = vrot.slane %v2131, 3
      %v2134 = vshll.u32 %v1970, 16
      %v2136 = vrot.slane %v2134, 4
      %v2137 = vor.u32 %v2133, %v2136
      %v2138 = vsel %vm789, %v2129, %v2137
      %v2140 = vshrl.u32 %v1744, 16
      %v2142 = vrot.slane %v2140, 3
      %v2143 = vshll.u32 %v1744, 16
      %v2145 = vrot.slane %v2143, 4
      %v2146 = vor.u32 %v2142, %v2145
      %v2148 = vshrl.u32 %v1745, 16
      %v2150 = vrot.slane %v2148, 3
      %v2151 = vshll.u32 %v1745, 16
      %v2153 = vrot.slane %v2151, 4
      %v2154 = vor.u32 %v2150, %v2153
      %v2155 = vsel %vm789, %v2146, %v2154
      %v2157 = vshrl.u32 %v1817, 16
      %v2159 = vrot.slane %v2157, 3
      %v2160 = vshll.u32 %v1817, 16
      %v2162 = vrot.slane %v2160, 4
      %v2163 = vor.u32 %v2159, %v2162
      %v2164 = vsel %vm789, %v2163, %v2163
      %v2166 = vshrl.u32 %v1971, 16
      %v2168 = vrot.slane %v2166, 3
      %v2169 = vshll.u32 %v1971, 16
      %v2171 = vrot.slane %v2169, 4
      %v2172 = vor.u32 %v2168, %v2171
      %v2174 = vshrl.u32 %v1973, 16
      %v2176 = vrot.slane %v2174, 3
      %v2177 = vshll.u32 %v1973, 16
      %v2179 = vrot.slane %v2177, 4
      %v2180 = vor.u32 %v2176, %v2179
      %v2181 = vsel %vm789, %v2172, %v2180
      %v2183 = vshrl.u32 %v1746, 16
      %v2185 = vrot.slane %v2183, 3
      %v2186 = vshll.u32 %v1746, 16
      %v2188 = vrot.slane %v2186, 4
      %v2189 = vor.u32 %v2185, %v2188
      %v2191 = vshrl.u32 %v1747, 16
      %v2193 = vrot.slane %v2191, 3
      %v2194 = vshll.u32 %v1747, 16
      %v2196 = vrot.slane %v2194, 4
      %v2197 = vor.u32 %v2193, %v2196
      %v2198 = vsel %vm789, %v2189, %v2197
      %v2200 = vshrl.u32 %v1825, 16
      %v2202 = vrot.slane %v2200, 3
      %v2203 = vshll.u32 %v1825, 16
      %v2205 = vrot.slane %v2203, 4
      %v2206 = vor.u32 %v2202, %v2205
      %v2207 = vsel %vm789, %v2206, %v2206
      %v2209 = vshrl.u32 %v1974, 16
      %v2211 = vrot.slane %v2209, 3
      %v2212 = vshll.u32 %v1974, 16
      %v2214 = vrot.slane %v2212, 4
      %v2215 = vor.u32 %v2211, %v2214
      %v2217 = vshrl.u32 %v1976, 16
      %v2219 = vrot.slane %v2217, 3
      %v2220 = vshll.u32 %v1976, 16
      %v2222 = vrot.slane %v2220, 4
      %v2223 = vor.u32 %v2219, %v2222
      %v2224 = vsel %vm789, %v2215, %v2223
      %v2226 = vshrl.u32 %v1748, 16
      %v2228 = vrot.slane %v2226, 3
      %v2229 = vshll.u32 %v1748, 16
      %v2231 = vrot.slane %v2229, 4
      %v2232 = vor.u32 %v2228, %v2231
      %v2234 = vshrl.u32 %v1749, 16
      %v2236 = vrot.slane %v2234, 3
      %v2237 = vshll.u32 %v1749, 16
      %v2239 = vrot.slane %v2237, 4
      %v2240 = vor.u32 %v2236, %v2239
      %v2241 = vsel %vm789, %v2232, %v2240
      %v2243 = vshrl.u32 %v1833, 16
      %v2245 = vrot.slane %v2243, 3
      %v2246 = vshll.u32 %v1833, 16
      %v2248 = vrot.slane %v2246, 4
      %v2249 = vor.u32 %v2245, %v2248
      %v2250 = vsel %vm789, %v2249, %v2249
      %v2252 = vshrl.u32 %v1977, 16
      %v2254 = vrot.slane %v2252, 3
      %v2255 = vshll.u32 %v1977, 16
      %v2257 = vrot.slane %v2255, 4
      %v2258 = vor.u32 %v2254, %v2257
      %v2260 = vshrl.u32 %v1979, 16
      %v2262 = vrot.slane %v2260, 3
      %v2263 = vshll.u32 %v1979, 16
      %v2265 = vrot.slane %v2263, 4
      %v2266 = vor.u32 %v2262, %v2265
      %v2267 = vsel %vm789, %v2258, %v2266
      %v2269 = vshrl.u32 %v1750, 16
      %v2271 = vrot.slane %v2269, 3
      %v2272 = vshll.u32 %v1750, 16
      %v2274 = vrot.slane %v2272, 4
      %v2275 = vor.u32 %v2271, %v2274
      %v2277 = vshrl.u32 %v1751, 16
      %v2279 = vrot.slane %v2277, 3
      %v2280 = vshll.u32 %v1751, 16
      %v2282 = vrot.slane %v2280, 4
      %v2283 = vor.u32 %v2279, %v2282
      %v2284 = vsel %vm789, %v2275, %v2283
      %v2286 = vshrl.u32 %v1841, 16
      %v2288 = vrot.slane %v2286, 3
      %v2289 = vshll.u32 %v1841, 16
      %v2291 = vrot.slane %v2289, 4
      %v2292 = vor.u32 %v2288, %v2291
      %v2293 = vsel %vm789, %v2292, %v2292
      %v2295 = vshrl.u32 %v1980, 16
      %v2297 = vrot.slane %v2295, 3
      %v2298 = vshll.u32 %v1980, 16
      %v2300 = vrot.slane %v2298, 4
      %v2301 = vor.u32 %v2297, %v2300
      %v2303 = vshrl.u32 %v1982, 16
      %v2305 = vrot.slane %v2303, 3
      %v2306 = vshll.u32 %v1982, 16
      %v2308 = vrot.slane %v2306, 4
      %v2309 = vor.u32 %v2305, %v2308
      %v2310 = vsel %vm789, %v2301, %v2309
      %v2312 = vshrl.u32 %v1752, 16
      %v2314 = vrot.slane %v2312, 3
      %v2315 = vshll.u32 %v1752, 16
      %v2317 = vrot.slane %v2315, 4
      %v2318 = vor.u32 %v2314, %v2317
      %v2320 = vshrl.u32 %v1753, 16
      %v2322 = vrot.slane %v2320, 3
      %v2323 = vshll.u32 %v1753, 16
      %v2325 = vrot.slane %v2323, 4
      %v2326 = vor.u32 %v2322, %v2325
      %v2327 = vsel %vm789, %v2318, %v2326
      %v2329 = vshrl.u32 %v1849, 16
      %v2331 = vrot.slane %v2329, 3
      %v2332 = vshll.u32 %v1849, 16
      %v2334 = vrot.slane %v2332, 4
      %v2335 = vor.u32 %v2331, %v2334
      %v2336 = vsel %vm789, %v2335, %v2335
      %v2338 = vshrl.u32 %v1983, 16
      %v2340 = vrot.slane %v2338, 3
      %v2341 = vshll.u32 %v1983, 16
      %v2343 = vrot.slane %v2341, 4
      %v2344 = vor.u32 %v2340, %v2343
      %v2346 = vshrl.u32 %v1985, 16
      %v2348 = vrot.slane %v2346, 3
      %v2349 = vshll.u32 %v1985, 16
      %v2351 = vrot.slane %v2349, 4
      %v2352 = vor.u32 %v2348, %v2351
      %v2353 = vsel %vm789, %v2344, %v2352
      %v2355 = vshrl.u32 %v1754, 16
      %v2357 = vrot.slane %v2355, 3
      %v2358 = vshll.u32 %v1754, 16
      %v2360 = vrot.slane %v2358, 4
      %v2361 = vor.u32 %v2357, %v2360
      %v2363 = vshrl.u32 %v1755, 16
      %v2365 = vrot.slane %v2363, 3
      %v2366 = vshll.u32 %v1755, 16
      %v2368 = vrot.slane %v2366, 4
      %v2369 = vor.u32 %v2365, %v2368
      %v2370 = vsel %vm789, %v2361, %v2369
      %v2372 = vshrl.u32 %v1857, 16
      %v2374 = vrot.slane %v2372, 3
      %v2375 = vshll.u32 %v1857, 16
      %v2377 = vrot.slane %v2375, 4
      %v2378 = vor.u32 %v2374, %v2377
      %v2379 = vsel %vm789, %v2378, %v2378
      %v2381 = vshrl.u32 %v1986, 16
      %v2383 = vrot.slane %v2381, 3
      %v2384 = vshll.u32 %v1986, 16
      %v2386 = vrot.slane %v2384, 4
      %v2387 = vor.u32 %v2383, %v2386
      %v2389 = vshrl.u32 %v1988, 16
      %v2391 = vrot.slane %v2389, 3
      %v2392 = vshll.u32 %v1988, 16
      %v2394 = vrot.slane %v2392, 4
      %v2395 = vor.u32 %v2391, %v2394
      %v2396 = vsel %vm789, %v2387, %v2395
      %v2398 = vshrl.u32 %v1756, 16
      %v2400 = vrot.slane %v2398, 3
      %v2401 = vshll.u32 %v1756, 16
      %v2403 = vrot.slane %v2401, 4
      %v2404 = vor.u32 %v2400, %v2403
      %v2406 = vshrl.u32 %v1757, 16
      %v2408 = vrot.slane %v2406, 3
      %v2409 = vshll.u32 %v1757, 16
      %v2411 = vrot.slane %v2409, 4
      %v2412 = vor.u32 %v2408, %v2411
      %v2413 = vsel %vm789, %v2404, %v2412
      %v2415 = vshrl.u32 %v1865, 16
      %v2417 = vrot.slane %v2415, 3
      %v2418 = vshll.u32 %v1865, 16
      %v2420 = vrot.slane %v2418, 4
      %v2421 = vor.u32 %v2417, %v2420
      %v2422 = vsel %vm789, %v2421, %v2421
      %v2424 = vshrl.u32 %v1989, 16
      %v2426 = vrot.slane %v2424, 3
      %v2427 = vshll.u32 %v1989, 16
      %v2429 = vrot.slane %v2427, 4
      %v2430 = vor.u32 %v2426, %v2429
      %v2432 = vshrl.u32 %v1991, 16
      %v2434 = vrot.slane %v2432, 3
      %v2435 = vshll.u32 %v1991, 16
      %v2437 = vrot.slane %v2435, 4
      %v2438 = vor.u32 %v2434, %v2437
      %v2439 = vsel %vm789, %v2430, %v2438
      %v2441 = vshrl.u32 %v1758, 16
      %v2443 = vrot.slane %v2441, 3
      %v2444 = vshll.u32 %v1758, 16
      %v2446 = vrot.slane %v2444, 4
      %v2447 = vor.u32 %v2443, %v2446
      %v2449 = vshrl.u32 %v1759, 16
      %v2451 = vrot.slane %v2449, 3
      %v2452 = vshll.u32 %v1759, 16
      %v2454 = vrot.slane %v2452, 4
      %v2455 = vor.u32 %v2451, %v2454
      %v2456 = vsel %vm789, %v2447, %v2455
      %v2458 = vshrl.u32 %v1873, 16
      %v2460 = vrot.slane %v2458, 3
      %v2461 = vshll.u32 %v1873, 16
      %v2463 = vrot.slane %v2461, 4
      %v2464 = vor.u32 %v2460, %v2463
      %v2465 = vsel %vm789, %v2464, %v2464
      %v2467 = vshrl.u32 %v1992, 16
      %v2469 = vrot.slane %v2467, 3
      %v2470 = vshll.u32 %v1992, 16
      %v2472 = vrot.slane %v2470, 4
      %v2473 = vor.u32 %v2469, %v2472
      %v2475 = vshrl.u32 %v1994, 16
      %v2477 = vrot.slane %v2475, 3
      %v2478 = vshll.u32 %v1994, 16
      %v2480 = vrot.slane %v2478, 4
      %v2481 = vor.u32 %v2477, %v2480
      %v2482 = vsel %vm789, %v2473, %v2481
      %v2484 = vshrl.u32 %v1760, 16
      %v2486 = vrot.slane %v2484, 3
      %v2487 = vshll.u32 %v1760, 16
      %v2489 = vrot.slane %v2487, 4
      %v2490 = vor.u32 %v2486, %v2489
      %v2492 = vshrl.u32 %v1761, 16
      %v2494 = vrot.slane %v2492, 3
      %v2495 = vshll.u32 %v1761, 16
      %v2497 = vrot.slane %v2495, 4
      %v2498 = vor.u32 %v2494, %v2497
      %v2499 = vsel %vm789, %v2490, %v2498
      %v2501 = vshrl.u32 %v1881, 16
      %v2503 = vrot.slane %v2501, 3
      %v2504 = vshll.u32 %v1881, 16
      %v2506 = vrot.slane %v2504, 4
      %v2507 = vor.u32 %v2503, %v2506
      %v2508 = vsel %vm789, %v2507, %v2507
      %v2510 = vshrl.u32 %v1995, 16
      %v2512 = vrot.slane %v2510, 3
      %v2513 = vshll.u32 %v1995, 16
      %v2515 = vrot.slane %v2513, 4
      %v2516 = vor.u32 %v2512, %v2515
      %v2518 = vshrl.u32 %v1997, 16
      %v2520 = vrot.slane %v2518, 3
      %v2521 = vshll.u32 %v1997, 16
      %v2523 = vrot.slane %v2521, 4
      %v2524 = vor.u32 %v2520, %v2523
      %v2525 = vsel %vm789, %v2516, %v2524
      %v2527 = vshrl.u32 %v1762, 16
      %v2529 = vrot.slane %v2527, 3
      %v2530 = vshll.u32 %v1762, 16
      %v2532 = vrot.slane %v2530, 4
      %v2533 = vor.u32 %v2529, %v2532
      %v2535 = vshrl.u32 %v1763, 16
      %v2537 = vrot.slane %v2535, 3
      %v2538 = vshll.u32 %v1763, 16
      %v2540 = vrot.slane %v2538, 4
      %v2541 = vor.u32 %v2537, %v2540
      %v2542 = vsel %vm789, %v2533, %v2541
      %v2544 = vshrl.u32 %v1889, 16
      %v2546 = vrot.slane %v2544, 3
      %v2547 = vshll.u32 %v1889, 16
      %v2549 = vrot.slane %v2547, 4
      %v2550 = vor.u32 %v2546, %v2549
      %v2551 = vsel %vm789, %v2550, %v2550
      %v2553 = vshrl.u32 %v1998, 16
      %v2555 = vrot.slane %v2553, 3
      %v2556 = vshll.u32 %v1998, 16
      %v2558 = vrot.slane %v2556, 4
      %v2559 = vor.u32 %v2555, %v2558
      %v2561 = vshrl.u32 %v2000, 16
      %v2563 = vrot.slane %v2561, 3
      %v2564 = vshll.u32 %v2000, 16
      %v2566 = vrot.slane %v2564, 4
      %v2567 = vor.u32 %v2563, %v2566
      %v2568 = vsel %vm789, %v2559, %v2567
      %v2570 = vshrl.u32 %v1764, 16
      %v2572 = vrot.slane %v2570, 3
      %v2573 = vshll.u32 %v1764, 16
      %v2575 = vrot.slane %v2573, 4
      %v2576 = vor.u32 %v2572, %v2575
      %v2578 = vshrl.u32 %v1765, 16
      %v2580 = vrot.slane %v2578, 3
      %v2581 = vshll.u32 %v1765, 16
      %v2583 = vrot.slane %v2581, 4
      %v2584 = vor.u32 %v2580, %v2583
      %v2585 = vsel %vm789, %v2576, %v2584
      %v2587 = vshrl.u32 %v1897, 16
      %v2589 = vrot.slane %v2587, 3
      %v2590 = vshll.u32 %v1897, 16
      %v2592 = vrot.slane %v2590, 4
      %v2593 = vor.u32 %v2589, %v2592
      %v2594 = vsel %vm789, %v2593, %v2593
      %v2596 = vshrl.u32 %v2001, 16
      %v2598 = vrot.slane %v2596, 3
      %v2599 = vshll.u32 %v2001, 16
      %v2601 = vrot.slane %v2599, 4
      %v2602 = vor.u32 %v2598, %v2601
      %v2604 = vshrl.u32 %v2003, 16
      %v2606 = vrot.slane %v2604, 3
      %v2607 = vshll.u32 %v2003, 16
      %v2609 = vrot.slane %v2607, 4
      %v2610 = vor.u32 %v2606, %v2609
      %v2611 = vsel %vm789, %v2602, %v2610
      %v2613 = vshrl.u32 %v1766, 16
      %v2615 = vrot.slane %v2613, 3
      %v2616 = vshll.u32 %v1766, 16
      %v2618 = vrot.slane %v2616, 4
      %v2619 = vor.u32 %v2615, %v2618
      %v2621 = vshrl.u32 %v1767, 16
      %v2623 = vrot.slane %v2621, 3
      %v2624 = vshll.u32 %v1767, 16
      %v2626 = vrot.slane %v2624, 4
      %v2627 = vor.u32 %v2623, %v2626
      %v2628 = vsel %vm789, %v2619, %v2627
      %v2630 = vshrl.u32 %v1905, 16
      %v2632 = vrot.slane %v2630, 3
      %v2633 = vshll.u32 %v1905, 16
      %v2635 = vrot.slane %v2633, 4
      %v2636 = vor.u32 %v2632, %v2635
      %v2637 = vsel %vm789, %v2636, %v2636
      %v2639 = vshrl.u32 %v2004, 16
      %v2641 = vrot.slane %v2639, 3
      %v2642 = vshll.u32 %v2004, 16
      %v2644 = vrot.slane %v2642, 4
      %v2645 = vor.u32 %v2641, %v2644
      %v2647 = vshrl.u32 %v2006, 16
      %v2649 = vrot.slane %v2647, 3
      %v2650 = vshll.u32 %v2006, 16
      %v2652 = vrot.slane %v2650, 4
      %v2653 = vor.u32 %v2649, %v2652
      %v2654 = vsel %vm789, %v2645, %v2653
      %v2656 = vshrl.u32 %v1768, 16
      %v2658 = vrot.slane %v2656, 3
      %v2659 = vshll.u32 %v1768, 16
      %v2661 = vrot.slane %v2659, 4
      %v2662 = vor.u32 %v2658, %v2661
      %v2664 = vshrl.u32 %v1769, 16
      %v2666 = vrot.slane %v2664, 3
      %v2667 = vshll.u32 %v1769, 16
      %v2669 = vrot.slane %v2667, 4
      %v2670 = vor.u32 %v2666, %v2669
      %v2671 = vsel %vm789, %v2662, %v2670
      %v2673 = vshrl.u32 %v1913, 16
      %v2675 = vrot.slane %v2673, 3
      %v2676 = vshll.u32 %v1913, 16
      %v2678 = vrot.slane %v2676, 4
      %v2679 = vor.u32 %v2675, %v2678
      %v2680 = vsel %vm789, %v2679, %v2679
      %v2682 = vshrl.u32 %v2007, 16
      %v2684 = vrot.slane %v2682, 3
      %v2685 = vshll.u32 %v2007, 16
      %v2687 = vrot.slane %v2685, 4
      %v2688 = vor.u32 %v2684, %v2687
      %v2690 = vshrl.u32 %v2009, 16
      %v2692 = vrot.slane %v2690, 3
      %v2693 = vshll.u32 %v2009, 16
      %v2695 = vrot.slane %v2693, 4
      %v2696 = vor.u32 %v2692, %v2695
      %v2697 = vsel %vm789, %v2688, %v2696
      %s2746 = scalar_lea.vmem %s1, 192
      %v2747 = vld [vmem:[%s2746] sm:$0xf]
      %v2748 = vld [vmem:[%s2746 + $0x4] sm:$0xf]
      %v2749 = vld [vmem:[%s2746 + $0x8] sm:$0xf]
      %v2750 = vld [vmem:[%s2746 + $0xc] sm:$0xf]
      %v2751 = vld [vmem:[%s2746 + $0x10] sm:$0xf]
      %v2752 = vld [vmem:[%s2746 + $0x14] sm:$0xf]
      %v2753 = vld [vmem:[%s2746 + $0x18] sm:$0xf]
      %v2754 = vld [vmem:[%s2746 + $0x1c] sm:$0xf]
      %v2755 = vld [vmem:[%s2746 + $0x20] sm:$0xf]
      %v2756 = vld [vmem:[%s2746 + $0x24] sm:$0xf]
      %v2757 = vld [vmem:[%s2746 + $0x28] sm:$0xf]
      %v2758 = vld [vmem:[%s2746 + $0x2c] sm:$0xf]
      %v2759 = vld [vmem:[%s2746 + $0x30] sm:$0xf]
      %v2760 = vld [vmem:[%s2746 + $0x34] sm:$0xf]
      %v2761 = vld [vmem:[%s2746 + $0x38] sm:$0xf]
      %v2762 = vld [vmem:[%s2746 + $0x3c] sm:$0xf]
      %v2763 = vld [vmem:[%s2746 + $0x40] sm:$0xf]
      %v2764 = vld [vmem:[%s2746 + $0x44] sm:$0xf]
      %v2765 = vld [vmem:[%s2746 + $0x48] sm:$0xf]
      %v2766 = vld [vmem:[%s2746 + $0x4c] sm:$0xf]
      %v2767 = vld [vmem:[%s2746 + $0x50] sm:$0xf]
      %v2768 = vld [vmem:[%s2746 + $0x54] sm:$0xf]
      %v2769 = vld [vmem:[%s2746 + $0x58] sm:$0xf]
      %v2770 = vld [vmem:[%s2746 + $0x5c] sm:$0xf]
      %v2771 = vld [vmem:[%s2746 + $0x60] sm:$0xf]
      %v2772 = vld [vmem:[%s2746 + $0x64] sm:$0xf]
      %v2773 = vld [vmem:[%s2746 + $0x68] sm:$0xf]
      %v2774 = vld [vmem:[%s2746 + $0x6c] sm:$0xf]
      %v2775 = vld [vmem:[%s2746 + $0x70] sm:$0xf]
      %v2776 = vld [vmem:[%s2746 + $0x74] sm:$0xf]
      %v2777 = vld [vmem:[%s2746 + $0x78] sm:$0xf]
      %v2778 = vld [vmem:[%s2746 + $0x7c] sm:$0xf]
      %v2779 = vld [vmem:[%s2746 + $0x80] sm:$0xf]
      %v2780 = vld [vmem:[%s2746 + $0x84] sm:$0xf]
      %v2781 = vld [vmem:[%s2746 + $0x88] sm:$0xf]
      %v2782 = vld [vmem:[%s2746 + $0x8c] sm:$0xf]
      %v2783 = vld [vmem:[%s2746 + $0x90] sm:$0xf]
      %v2784 = vld [vmem:[%s2746 + $0x94] sm:$0xf]
      %v2785 = vld [vmem:[%s2746 + $0x98] sm:$0xf]
      %v2786 = vld [vmem:[%s2746 + $0x9c] sm:$0xf]
      %v2787 = vld [vmem:[%s2746 + $0xa0] sm:$0xf]
      %v2788 = vld [vmem:[%s2746 + $0xa4] sm:$0xf]
      %v2789 = vld [vmem:[%s2746 + $0xa8] sm:$0xf]
      %v2790 = vld [vmem:[%s2746 + $0xac] sm:$0xf]
      %v2791 = vld [vmem:[%s2746 + $0xb0] sm:$0xf]
      %v2792 = vld [vmem:[%s2746 + $0xb4] sm:$0xf]
      %v2793 = vld [vmem:[%s2746 + $0xb8] sm:$0xf]
      %v2794 = vld [vmem:[%s2746 + $0xbc] sm:$0xf]
      %v2843 = vunpack.c.l.b16 %v2747
      %v2844 = vunpack.c.l.b16 %v2748
      %v2845 = vunpack.c.l.b16 %v2749
      %v2846 = vunpack.c.l.b16 %v2750
      %v2847 = vunpack.c.l.b16 %v2751
      %v2848 = vunpack.c.l.b16 %v2752
      %v2849 = vunpack.c.l.b16 %v2753
      %v2850 = vunpack.c.l.b16 %v2754
      %v2851 = vunpack.c.l.b16 %v2755
      %v2852 = vunpack.c.l.b16 %v2756
      %v2853 = vunpack.c.l.b16 %v2757
      %v2854 = vunpack.c.l.b16 %v2758
      %v2855 = vunpack.c.l.b16 %v2759
      %v2856 = vunpack.c.l.b16 %v2760
      %v2857 = vunpack.c.l.b16 %v2761
      %v2858 = vunpack.c.l.b16 %v2762
      %v2859 = vunpack.c.l.b16 %v2763
      %v2860 = vunpack.c.l.b16 %v2764
      %v2861 = vunpack.c.l.b16 %v2765
      %v2862 = vunpack.c.l.b16 %v2766
      %v2863 = vunpack.c.l.b16 %v2767
      %v2864 = vunpack.c.l.b16 %v2768
      %v2865 = vunpack.c.l.b16 %v2769
      %v2866 = vunpack.c.l.b16 %v2770
      %v2867 = vunpack.c.l.b16 %v2771
      %v2868 = vunpack.c.l.b16 %v2772
      %v2869 = vunpack.c.l.b16 %v2773
      %v2870 = vunpack.c.l.b16 %v2774
      %v2871 = vunpack.c.l.b16 %v2775
      %v2872 = vunpack.c.l.b16 %v2776
      %v2873 = vunpack.c.l.b16 %v2777
      %v2874 = vunpack.c.l.b16 %v2778
      %v2875 = vunpack.c.l.b16 %v2779
      %v2876 = vunpack.c.l.b16 %v2780
      %v2877 = vunpack.c.l.b16 %v2781
      %v2878 = vunpack.c.l.b16 %v2782
      %v2879 = vunpack.c.l.b16 %v2783
      %v2880 = vunpack.c.l.b16 %v2784
      %v2881 = vunpack.c.l.b16 %v2785
      %v2882 = vunpack.c.l.b16 %v2786
      %v2883 = vunpack.c.l.b16 %v2787
      %v2884 = vunpack.c.l.b16 %v2788
      %v2885 = vunpack.c.l.b16 %v2789
      %v2886 = vunpack.c.l.b16 %v2790
      %v2887 = vunpack.c.l.b16 %v2791
      %v2888 = vunpack.c.l.b16 %v2792
      %v2889 = vunpack.c.l.b16 %v2793
      %v2890 = vunpack.c.l.b16 %v2794
      %v2891 = vpack.c.b16 %v2844, %v2843
      %v2892 = vpack.c.b16 %v2846, %v2845
      %v2893 = vpack.c.b16 %v2848, %v2847
      %v2894 = vpack.c.b16 %v2850, %v2849
      %v2895 = vpack.c.b16 %v2852, %v2851
      %v2896 = vpack.c.b16 %v2854, %v2853
      %v2897 = vpack.c.b16 %v2856, %v2855
      %v2898 = vpack.c.b16 %v2858, %v2857
      %v2899 = vpack.c.b16 %v2860, %v2859
      %v2900 = vpack.c.b16 %v2862, %v2861
      %v2901 = vpack.c.b16 %v2864, %v2863
      %v2902 = vpack.c.b16 %v2866, %v2865
      %v2903 = vpack.c.b16 %v2868, %v2867
      %v2904 = vpack.c.b16 %v2870, %v2869
      %v2905 = vpack.c.b16 %v2872, %v2871
      %v2906 = vpack.c.b16 %v2874, %v2873
      %v2907 = vpack.c.b16 %v2876, %v2875
      %v2908 = vpack.c.b16 %v2878, %v2877
      %v2909 = vpack.c.b16 %v2880, %v2879
      %v2910 = vpack.c.b16 %v2882, %v2881
      %v2911 = vpack.c.b16 %v2884, %v2883
      %v2912 = vpack.c.b16 %v2886, %v2885
      %v2913 = vpack.c.b16 %v2888, %v2887
      %v2914 = vpack.c.b16 %v2890, %v2889
      %2939 = vmatprep.subr.bf16.mxu0 0
      %2940 = vmatpush1.bf16.msra.mxu0 %v2891
      %2941 = vmatprep.subr.bf16.mxu0 0
      %2942 = vmatpush1.bf16.msra.mxu0 %v2892
      %2943 = vmatprep.subr.bf16.mxu0 0
      %2944 = vmatpush1.bf16.msra.mxu0 %v2893
      %2945 = vmatprep.subr.bf16.mxu0 0
      %2946 = vmatpush1.bf16.msra.mxu0 %v2894
      %2947 = vmatprep.subr.bf16.mxu0 0
      %2948 = vmatpush1.bf16.msra.mxu0 %v2895
      %2949 = vmatprep.subr.bf16.mxu0 0
      %2950 = vmatpush1.bf16.msra.mxu0 %v2896
      %2951 = vmatprep.subr.bf16.mxu0 0
      %2952 = vmatpush1.bf16.msra.mxu0 %v2897
      %2953 = vmatprep.subr.bf16.mxu0 0
      %2954 = vmatpush1.bf16.msra.mxu0 %v2898
      %2955 = vmatprep.subr.bf16.mxu0 0
      %2956 = vmatpush1.bf16.msra.mxu0 %v2899
      %2957 = vmatprep.subr.bf16.mxu0 0
      %2958 = vmatpush1.bf16.msra.mxu0 %v2900
      %2959 = vmatprep.subr.bf16.mxu0 0
      %2960 = vmatpush1.bf16.msra.mxu0 %v2901
      %2961 = vmatprep.subr.bf16.mxu0 0
      %2962 = vmatpush1.bf16.msra.mxu0 %v2902
      %2963 = vmatprep.subr.bf16.mxu0 0
      %2964 = vmatpush1.bf16.msra.mxu0 %v2903
      %2965 = vmatprep.subr.bf16.mxu0 0
      %2966 = vmatpush1.bf16.msra.mxu0 %v2904
      %2967 = vmatprep.subr.bf16.mxu0 0
      %2968 = vmatpush1.bf16.msra.mxu0 %v2905
      %2969 = vmatprep.subr.bf16.mxu0 0
      %2970 = vmatpush1.bf16.msra.mxu0 %v2906
      %2971 = vmatprep.mubr.bf16.mxu0 %v2035
      %2972 = vmatmul.mubr.bf16.gmra.mrb[0].mxu0 %v2026
      %v2973 = vpop.f32.mrb[0].mxu0
      %v2974 = vadd.f32 0.0, %v2973
      %v2975 = vpop.f32.mrb[0].mxu0
      %v2976 = vpop.f32.mrb[0].mxu0
      %v2977 = vadd.f32 0.0, %v2976
      %v2978 = vpop.f32.mrb[0].mxu0
      %2979 = vmatprep.mubr.bf16.mxu0 %v2078
      %2980 = vmatmul.mubr.bf16.gmra.mrb[0].mxu0 %v2069
      %v2981 = vpop.f32.mrb[0].mxu0
      %v2982 = vadd.f32 0.0, %v2981
      %v2983 = vpop.f32.mrb[0].mxu0
      %v2984 = vpop.f32.mrb[0].mxu0
      %v2985 = vadd.f32 0.0, %v2984
      %v2986 = vpop.f32.mrb[0].mxu0
      %2987 = vmatprep.mubr.bf16.mxu0 %v2121
      %2988 = vmatmul.mubr.bf16.gmra.mrb[0].mxu0 %v2112
      %v2989 = vpop.f32.mrb[0].mxu0
      %v2990 = vadd.f32 0.0, %v2989
      %v2991 = vpop.f32.mrb[0].mxu0
      %v2992 = vpop.f32.mrb[0].mxu0
      %v2993 = vadd.f32 0.0, %v2992
      %v2994 = vpop.f32.mrb[0].mxu0
      %2995 = vmatprep.mubr.bf16.mxu0 %v2164
      %2996 = vmatmul.mubr.bf16.gmra.mrb[0].mxu0 %v2155
      %v2997 = vpop.f32.mrb[0].mxu0
      %v2998 = vadd.f32 0.0, %v2997
      %v2999 = vpop.f32.mrb[0].mxu0
      %v3000 = vpop.f32.mrb[0].mxu0
      %v3001 = vadd.f32 0.0, %v3000
      %v3002 = vpop.f32.mrb[0].mxu0
      %3003 = vmatprep.mubr.bf16.mxu0 %v2207
      %3004 = vmatmul.mubr.bf16.gmra.mrb[0].mxu0 %v2198
      %v3005 = vpop.f32.mrb[0].mxu0
      %v3006 = vadd.f32 0.0, %v3005
      %v3007 = vpop.f32.mrb[0].mxu0
      %v3008 = vpop.f32.mrb[0].mxu0
      %v3009 = vadd.f32 0.0, %v3008
      %v3010 = vpop.f32.mrb[0].mxu0
      %3011 = vmatprep.mubr.bf16.mxu0 %v2250
      %3012 = vmatmul.mubr.bf16.gmra.mrb[0].mxu0 %v2241
      %v3013 = vpop.f32.mrb[0].mxu0
      %v3014 = vadd.f32 0.0, %v3013
      %v3015 = vpop.f32.mrb[0].mxu0
      %v3016 = vpop.f32.mrb[0].mxu0
      %v3017 = vadd.f32 0.0, %v3016
      %v3018 = vpop.f32.mrb[0].mxu0
      %3019 = vmatprep.mubr.bf16.mxu0 %v2293
      %3020 = vmatmul.mubr.bf16.gmra.mrb[0].mxu0 %v2284
      %v3021 = vpop.f32.mrb[0].mxu0
      %v3022 = vadd.f32 0.0, %v3021
      %v3023 = vpop.f32.mrb[0].mxu0
      %v3024 = vpop.f32.mrb[0].mxu0
      %v3025 = vadd.f32 0.0, %v3024
      %v3026 = vpop.f32.mrb[0].mxu0
      %3027 = vmatprep.mubr.bf16.mxu0 %v2336
      %3028 = vmatmul.mubr.bf16.gmra.mrb[0].mxu0 %v2327
      %v3029 = vpop.f32.mrb[0].mxu0
      %v3030 = vadd.f32 0.0, %v3029
      %v3031 = vpop.f32.mrb[0].mxu0
      %v3032 = vpop.f32.mrb[0].mxu0
      %v3033 = vadd.f32 0.0, %v3032
      %v3034 = vpop.f32.mrb[0].mxu0
      %3035 = vmatprep.mubr.bf16.mxu0 %v2379
      %3036 = vmatmul.mubr.bf16.gmra.mrb[0].mxu0 %v2370
      %v3037 = vpop.f32.mrb[0].mxu0
      %v3038 = vadd.f32 0.0, %v3037
      %v3039 = vpop.f32.mrb[0].mxu0
      %v3040 = vpop.f32.mrb[0].mxu0
      %v3041 = vadd.f32 0.0, %v3040
      %v3042 = vpop.f32.mrb[0].mxu0
      %3043 = vmatprep.mubr.bf16.mxu0 %v2422
      %3044 = vmatmul.mubr.bf16.gmra.mrb[0].mxu0 %v2413
      %v3045 = vpop.f32.mrb[0].mxu0
      %v3046 = vadd.f32 0.0, %v3045
      %v3047 = vpop.f32.mrb[0].mxu0
      %v3048 = vpop.f32.mrb[0].mxu0
      %v3049 = vadd.f32 0.0, %v3048
      %v3050 = vpop.f32.mrb[0].mxu0
      %3051 = vmatprep.mubr.bf16.mxu0 %v2465
      %3052 = vmatmul.mubr.bf16.gmra.mrb[0].mxu0 %v2456
      %v3053 = vpop.f32.mrb[0].mxu0
      %v3054 = vadd.f32 0.0, %v3053
      %v3055 = vpop.f32.mrb[0].mxu0
      %v3056 = vpop.f32.mrb[0].mxu0
      %v3057 = vadd.f32 0.0, %v3056
      %v3058 = vpop.f32.mrb[0].mxu0
      %3059 = vmatprep.mubr.bf16.mxu0 %v2508
      %3060 = vmatmul.mubr.bf16.gmra.mrb[0].mxu0 %v2499
      %v3061 = vpop.f32.mrb[0].mxu0
      %v3062 = vadd.f32 0.0, %v3061
      %v3063 = vpop.f32.mrb[0].mxu0
      %v3064 = vpop.f32.mrb[0].mxu0
      %v3065 = vadd.f32 0.0, %v3064
      %v3066 = vpop.f32.mrb[0].mxu0
      %3067 = vmatprep.mubr.bf16.mxu0 %v2551
      %3068 = vmatmul.mubr.bf16.gmra.mrb[0].mxu0 %v2542
      %v3069 = vpop.f32.mrb[0].mxu0
      %v3070 = vadd.f32 0.0, %v3069
      %v3071 = vpop.f32.mrb[0].mxu0
      %v3072 = vpop.f32.mrb[0].mxu0
      %v3073 = vadd.f32 0.0, %v3072
      %v3074 = vpop.f32.mrb[0].mxu0
      %3075 = vmatprep.mubr.bf16.mxu0 %v2594
      %3076 = vmatmul.mubr.bf16.gmra.mrb[0].mxu0 %v2585
      %v3077 = vpop.f32.mrb[0].mxu0
      %v3078 = vadd.f32 0.0, %v3077
      %v3079 = vpop.f32.mrb[0].mxu0
      %v3080 = vpop.f32.mrb[0].mxu0
      %v3081 = vadd.f32 0.0, %v3080
      %v3082 = vpop.f32.mrb[0].mxu0
      %3083 = vmatprep.mubr.bf16.mxu0 %v2637
      %3084 = vmatmul.mubr.bf16.gmra.mrb[0].mxu0 %v2628
      %v3085 = vpop.f32.mrb[0].mxu0
      %v3086 = vadd.f32 0.0, %v3085
      %v3087 = vpop.f32.mrb[0].mxu0
      %v3088 = vpop.f32.mrb[0].mxu0
      %v3089 = vadd.f32 0.0, %v3088
      %v3090 = vpop.f32.mrb[0].mxu0
      %3091 = vmatprep.mubr.bf16.mxu0 %v2680
      %3092 = vmatmul.mubr.bf16.gmra.mrb[0].mxu0 %v2671
      %v3093 = vpop.f32.mrb[0].mxu0
      %v3094 = vadd.f32 0.0, %v3093
      %v3095 = vpop.f32.mrb[0].mxu0
      %v3096 = vpop.f32.mrb[0].mxu0
      %v3097 = vadd.f32 0.0, %v3096
      %v3098 = vpop.f32.mrb[0].mxu0
      %3099 = vdwg.mxu0
      %3100 = vmatprep.subr.bf16.mxu0 0
      %3101 = vmatpush1.bf16.msra.mxu0 %v2907
      %3102 = vmatprep.subr.bf16.mxu0 0
      %3103 = vmatpush1.bf16.msra.mxu0 %v2908
      %3104 = vmatprep.subr.bf16.mxu0 0
      %3105 = vmatpush1.bf16.msra.mxu0 %v2909
      %3106 = vmatprep.subr.bf16.mxu0 0
      %3107 = vmatpush1.bf16.msra.mxu0 %v2910
      %3108 = vmatprep.subr.bf16.mxu0 0
      %3109 = vmatpush1.bf16.msra.mxu0 %v2911
      %3110 = vmatprep.subr.bf16.mxu0 0
      %3111 = vmatpush1.bf16.msra.mxu0 %v2912
      %3112 = vmatprep.subr.bf16.mxu0 0
      %3113 = vmatpush1.bf16.msra.mxu0 %v2913
      %3114 = vmatprep.subr.bf16.mxu0 0
      %3115 = vmatpush1.bf16.msra.mxu0 %v2914
      %3116 = vmatprep.subr.bf16.mxu0 0
      %3117 = vmatpush1.bf16.msra.mxu0 0
      %3118 = vmatprep.subr.bf16.mxu0 0
      %3119 = vmatpush1.bf16.msra.mxu0 0
      %3120 = vmatprep.subr.bf16.mxu0 0
      %3121 = vmatpush1.bf16.msra.mxu0 0
      %3122 = vmatprep.subr.bf16.mxu0 0
      %3123 = vmatpush1.bf16.msra.mxu0 0
      %3124 = vmatprep.subr.bf16.mxu0 0
      %3125 = vmatpush1.bf16.msra.mxu0 0
      %3126 = vmatprep.subr.bf16.mxu0 0
      %3127 = vmatpush1.bf16.msra.mxu0 0
      %3128 = vmatprep.subr.bf16.mxu0 0
      %3129 = vmatpush1.bf16.msra.mxu0 0
      %3130 = vmatprep.subr.bf16.mxu0 0
      %3131 = vmatpush1.bf16.msra.mxu0 0
      %3132 = vmatprep.mubr.bf16.mxu0 0
      %3133 = vmatmul.mubr.bf16.gmra.mrb[0].mxu0 %v2052
      %v3134 = vpop.f32.mrb[0].mxu0
      %v3135 = vadd.f32 %v2974, %v3134
      %v3136 = vpop.f32.mrb[0].mxu0
      %v3137 = vpop.f32.mrb[0].mxu0
      %v3138 = vadd.f32 %v2977, %v3137
      %v3139 = vpop.f32.mrb[0].mxu0
      %3140 = vmatprep.mubr.bf16.mxu0 0
      %3141 = vmatmul.mubr.bf16.gmra.mrb[0].mxu0 %v2095
      %v3142 = vpop.f32.mrb[0].mxu0
      %v3143 = vadd.f32 %v2982, %v3142
      %v3144 = vpop.f32.mrb[0].mxu0
      %v3145 = vpop.f32.mrb[0].mxu0
      %v3146 = vadd.f32 %v2985, %v3145
      %v3147 = vpop.f32.mrb[0].mxu0
      %3148 = vmatprep.mubr.bf16.mxu0 0
      %3149 = vmatmul.mubr.bf16.gmra.mrb[0].mxu0 %v2138
      %v3150 = vpop.f32.mrb[0].mxu0
      %v3151 = vadd.f32 %v2990, %v3150
      %v3152 = vpop.f32.mrb[0].mxu0
      %v3153 = vpop.f32.mrb[0].mxu0
      %v3154 = vadd.f32 %v2993, %v3153
      %v3155 = vpop.f32.mrb[0].mxu0
      %3156 = vmatprep.mubr.bf16.mxu0 0
      %3157 = vmatmul.mubr.bf16.gmra.mrb[0].mxu0 %v2181
      %v3158 = vpop.f32.mrb[0].mxu0
      %v3159 = vadd.f32 %v2998, %v3158
      %v3160 = vpop.f32.mrb[0].mxu0
      %v3161 = vpop.f32.mrb[0].mxu0
      %v3162 = vadd.f32 %v3001, %v3161
      %v3163 = vpop.f32.mrb[0].mxu0
      %3164 = vmatprep.mubr.bf16.mxu0 0
      %3165 = vmatmul.mubr.bf16.gmra.mrb[0].mxu0 %v2224
      %v3166 = vpop.f32.mrb[0].mxu0
      %v3167 = vadd.f32 %v3006, %v3166
      %v3168 = vpop.f32.mrb[0].mxu0
      %v3169 = vpop.f32.mrb[0].mxu0
      %v3170 = vadd.f32 %v3009, %v3169
      %v3171 = vpop.f32.mrb[0].mxu0
      %3172 = vmatprep.mubr.bf16.mxu0 0
      %3173 = vmatmul.mubr.bf16.gmra.mrb[0].mxu0 %v2267
      %v3174 = vpop.f32.mrb[0].mxu0
      %v3175 = vadd.f32 %v3014, %v3174
      %v3176 = vpop.f32.mrb[0].mxu0
      %v3177 = vpop.f32.mrb[0].mxu0
      %v3178 = vadd.f32 %v3017, %v3177
      %v3179 = vpop.f32.mrb[0].mxu0
      %3180 = vmatprep.mubr.bf16.mxu0 0
      %3181 = vmatmul.mubr.bf16.gmra.mrb[0].mxu0 %v2310
      %v3182 = vpop.f32.mrb[0].mxu0
      %v3183 = vadd.f32 %v3022, %v3182
      %v3184 = vpop.f32.mrb[0].mxu0
      %v3185 = vpop.f32.mrb[0].mxu0
      %v3186 = vadd.f32 %v3025, %v3185
      %v3187 = vpop.f32.mrb[0].mxu0
      %3188 = vmatprep.mubr.bf16.mxu0 0
      %3189 = vmatmul.mubr.bf16.gmra.mrb[0].mxu0 %v2353
      %v3190 = vpop.f32.mrb[0].mxu0
      %v3191 = vadd.f32 %v3030, %v3190
      %v3192 = vpop.f32.mrb[0].mxu0
      %v3193 = vpop.f32.mrb[0].mxu0
      %v3194 = vadd.f32 %v3033, %v3193
      %v3195 = vpop.f32.mrb[0].mxu0
      %3196 = vmatprep.mubr.bf16.mxu0 0
      %3197 = vmatmul.mubr.bf16.gmra.mrb[0].mxu0 %v2396
      %v3198 = vpop.f32.mrb[0].mxu0
      %v3199 = vadd.f32 %v3038, %v3198
      %v3200 = vpop.f32.mrb[0].mxu0
      %v3201 = vpop.f32.mrb[0].mxu0
      %v3202 = vadd.f32 %v3041, %v3201
      %v3203 = vpop.f32.mrb[0].mxu0
      %3204 = vmatprep.mubr.bf16.mxu0 0
      %3205 = vmatmul.mubr.bf16.gmra.mrb[0].mxu0 %v2439
      %v3206 = vpop.f32.mrb[0].mxu0
      %v3207 = vadd.f32 %v3046, %v3206
      %v3208 = vpop.f32.mrb[0].mxu0
      %v3209 = vpop.f32.mrb[0].mxu0
      %v3210 = vadd.f32 %v3049, %v3209
      %v3211 = vpop.f32.mrb[0].mxu0
      %3212 = vmatprep.mubr.bf16.mxu0 0
      %3213 = vmatmul.mubr.bf16.gmra.mrb[0].mxu0 %v2482
      %v3214 = vpop.f32.mrb[0].mxu0
      %v3215 = vadd.f32 %v3054, %v3214
      %v3216 = vpop.f32.mrb[0].mxu0
      %v3217 = vpop.f32.mrb[0].mxu0
      %v3218 = vadd.f32 %v3057, %v3217
      %v3219 = vpop.f32.mrb[0].mxu0
      %3220 = vmatprep.mubr.bf16.mxu0 0
      %3221 = vmatmul.mubr.bf16.gmra.mrb[0].mxu0 %v2525
      %v3222 = vpop.f32.mrb[0].mxu0
      %v3223 = vadd.f32 %v3062, %v3222
      %v3224 = vpop.f32.mrb[0].mxu0
      %v3225 = vpop.f32.mrb[0].mxu0
      %v3226 = vadd.f32 %v3065, %v3225
      %v3227 = vpop.f32.mrb[0].mxu0
      %3228 = vmatprep.mubr.bf16.mxu0 0
      %3229 = vmatmul.mubr.bf16.gmra.mrb[0].mxu0 %v2568
      %v3230 = vpop.f32.mrb[0].mxu0
      %v3231 = vadd.f32 %v3070, %v3230
      %v3232 = vpop.f32.mrb[0].mxu0
      %v3233 = vpop.f32.mrb[0].mxu0
      %v3234 = vadd.f32 %v3073, %v3233
      %v3235 = vpop.f32.mrb[0].mxu0
      %3236 = vmatprep.mubr.bf16.mxu0 0
      %3237 = vmatmul.mubr.bf16.gmra.mrb[0].mxu0 %v2611
      %v3238 = vpop.f32.mrb[0].mxu0
      %v3239 = vadd.f32 %v3078, %v3238
      %v3240 = vpop.f32.mrb[0].mxu0
      %v3241 = vpop.f32.mrb[0].mxu0
      %v3242 = vadd.f32 %v3081, %v3241
      %v3243 = vpop.f32.mrb[0].mxu0
      %3244 = vmatprep.mubr.bf16.mxu0 0
      %3245 = vmatmul.mubr.bf16.gmra.mrb[0].mxu0 %v2654
      %v3246 = vpop.f32.mrb[0].mxu0
      %v3247 = vadd.f32 %v3086, %v3246
      %v3248 = vpop.f32.mrb[0].mxu0
      %v3249 = vpop.f32.mrb[0].mxu0
      %v3250 = vadd.f32 %v3089, %v3249
      %v3251 = vpop.f32.mrb[0].mxu0
      %3252 = vmatprep.mubr.bf16.mxu0 0
      %3253 = vmatmul.mubr.bf16.gmra.mrb[0].mxu0 %v2697
      %v3254 = vpop.f32.mrb[0].mxu0
      %v3255 = vadd.f32 %v3094, %v3254
      %v3256 = vpop.f32.mrb[0].mxu0
      %v3257 = vpop.f32.mrb[0].mxu0
      %v3258 = vadd.f32 %v3097, %v3257
      %v3259 = vpop.f32.mrb[0].mxu0
      %3260 = vdwg.mxu0
      %v3309 = vunpack.c.l.b16 %v1526
      %v3310 = vunpack.c.l.b16 %v1527
      %v3311 = vunpack.c.l.b16 %v1528
      %v3312 = vunpack.c.l.b16 %v1529
      %v3313 = vunpack.c.l.b16 %v1530
      %v3314 = vunpack.c.l.b16 %v1531
      %v3315 = vunpack.c.l.b16 %v1532
      %v3316 = vunpack.c.l.b16 %v1533
      %v3317 = vunpack.c.l.b16 %v1534
      %v3318 = vunpack.c.l.b16 %v1535
      %v3319 = vunpack.c.l.b16 %v1536
      %v3320 = vunpack.c.l.b16 %v1537
      %v3321 = vunpack.c.l.b16 %v1538
      %v3322 = vunpack.c.l.b16 %v1539
      %v3323 = vunpack.c.l.b16 %v1540
      %v3324 = vunpack.c.l.b16 %v1541
      %v3325 = vunpack.c.l.b16 %v1542
      %v3326 = vunpack.c.l.b16 %v1543
      %v3327 = vunpack.c.l.b16 %v1544
      %v3328 = vunpack.c.l.b16 %v1545
      %v3329 = vunpack.c.l.b16 %v1546
      %v3330 = vunpack.c.l.b16 %v1547
      %v3331 = vunpack.c.l.b16 %v1548
      %v3332 = vunpack.c.l.b16 %v1549
      %v3333 = vunpack.c.l.b16 %v1550
      %v3334 = vunpack.c.l.b16 %v1551
      %v3335 = vunpack.c.l.b16 %v1552
      %v3336 = vunpack.c.l.b16 %v1553
      %v3337 = vunpack.c.l.b16 %v1554
      %v3338 = vunpack.c.l.b16 %v1555
      %v3339 = vunpack.c.l.b16 %v1556
      %v3340 = vunpack.c.l.b16 %v1557
      %v3341 = vunpack.c.l.b16 %v1558
      %v3342 = vunpack.c.l.b16 %v1559
      %v3343 = vunpack.c.l.b16 %v1560
      %v3344 = vunpack.c.l.b16 %v1561
      %v3345 = vunpack.c.l.b16 %v1562
      %v3346 = vunpack.c.l.b16 %v1563
      %v3347 = vunpack.c.l.b16 %v1564
      %v3348 = vunpack.c.l.b16 %v1565
      %v3349 = vunpack.c.l.b16 %v1566
      %v3350 = vunpack.c.l.b16 %v1567
      %v3351 = vunpack.c.l.b16 %v1568
      %v3352 = vunpack.c.l.b16 %v1569
      %v3353 = vunpack.c.l.b16 %v1570
      %v3354 = vunpack.c.l.b16 %v1571
      %v3355 = vunpack.c.l.b16 %v1572
      %v3356 = vunpack.c.l.b16 %v1573
      %v3357 = vpack.c.b16 %v3310, %v3309
      %v3358 = vpack.c.b16 %v3312, %v3311
      %v3359 = vpack.c.b16 %v3314, %v3313
      %v3360 = vpack.c.b16 %v3316, %v3315
      %v3361 = vpack.c.b16 %v3318, %v3317
      %v3362 = vpack.c.b16 %v3320, %v3319
      %v3363 = vpack.c.b16 %v3322, %v3321
      %v3364 = vpack.c.b16 %v3324, %v3323
      %v3365 = vpack.c.b16 %v3326, %v3325
      %v3366 = vpack.c.b16 %v3328, %v3327
      %v3367 = vpack.c.b16 %v3330, %v3329
      %v3368 = vpack.c.b16 %v3332, %v3331
      %v3369 = vpack.c.b16 %v3334, %v3333
      %v3370 = vpack.c.b16 %v3336, %v3335
      %v3371 = vpack.c.b16 %v3338, %v3337
      %v3372 = vpack.c.b16 %v3340, %v3339
      %v3373 = vpack.c.b16 %v3342, %v3341
      %v3374 = vpack.c.b16 %v3344, %v3343
      %v3375 = vpack.c.b16 %v3346, %v3345
      %v3376 = vpack.c.b16 %v3348, %v3347
      %v3377 = vpack.c.b16 %v3350, %v3349
      %v3378 = vpack.c.b16 %v3352, %v3351
      %v3379 = vpack.c.b16 %v3354, %v3353
      %v3380 = vpack.c.b16 %v3356, %v3355
      %3405 = vmatprep.subr.bf16.mxu0 0
      %3406 = vmatpush1.bf16.msra.mxu0 %v3357
      %3407 = vmatprep.subr.bf16.mxu0 0
      %3408 = vmatpush1.bf16.msra.mxu0 %v3358
      %3409 = vmatprep.subr.bf16.mxu0 0
      %3410 = vmatpush1.bf16.msra.mxu0 %v3359
      %3411 = vmatprep.subr.bf16.mxu0 0
      %3412 = vmatpush1.bf16.msra.mxu0 %v3360
      %3413 = vmatprep.subr.bf16.mxu0 0
      %3414 = vmatpush1.bf16.msra.mxu0 %v3361
      %3415 = vmatprep.subr.bf16.mxu0 0
      %3416 = vmatpush1.bf16.msra.mxu0 %v3362
      %3417 = vmatprep.subr.bf16.mxu0 0
      %3418 = vmatpush1.bf16.msra.mxu0 %v3363
      %3419 = vmatprep.subr.bf16.mxu0 0
      %3420 = vmatpush1.bf16.msra.mxu0 %v3364
      %3421 = vmatprep.subr.bf16.mxu0 0
      %3422 = vmatpush1.bf16.msra.mxu0 %v3365
      %3423 = vmatprep.subr.bf16.mxu0 0
      %3424 = vmatpush1.bf16.msra.mxu0 %v3366
      %3425 = vmatprep.subr.bf16.mxu0 0
      %3426 = vmatpush1.bf16.msra.mxu0 %v3367
      %3427 = vmatprep.subr.bf16.mxu0 0
      %3428 = vmatpush1.bf16.msra.mxu0 %v3368
      %3429 = vmatprep.subr.bf16.mxu0 0
      %3430 = vmatpush1.bf16.msra.mxu0 %v3369
      %3431 = vmatprep.subr.bf16.mxu0 0
      %3432 = vmatpush1.bf16.msra.mxu0 %v3370
      %3433 = vmatprep.subr.bf16.mxu0 0
      %3434 = vmatpush1.bf16.msra.mxu0 %v3371
      %3435 = vmatprep.subr.bf16.mxu0 0
      %3436 = vmatpush1.bf16.msra.mxu0 %v3372
      %3437 = vmatprep.mubr.bf16.mxu0 %v815
      %3438 = vmatmul.mubr.bf16.gmra.mrb[0].mxu0 %v806
      %v3439 = vpop.f32.mrb[0].mxu0
      %v3440 = vadd.f32 %v3135, %v3439
      %v3441 = vpop.f32.mrb[0].mxu0
      %v3442 = vpop.f32.mrb[0].mxu0
      %v3443 = vadd.f32 %v3138, %v3442
      %v3444 = vpop.f32.mrb[0].mxu0
      %3445 = vmatprep.mubr.bf16.mxu0 %v858
      %3446 = vmatmul.mubr.bf16.gmra.mrb[0].mxu0 %v849
      %v3447 = vpop.f32.mrb[0].mxu0
      %v3448 = vadd.f32 %v3143, %v3447
      %v3449 = vpop.f32.mrb[0].mxu0
      %v3450 = vpop.f32.mrb[0].mxu0
      %v3451 = vadd.f32 %v3146, %v3450
      %v3452 = vpop.f32.mrb[0].mxu0
      %3453 = vmatprep.mubr.bf16.mxu0 %v901
      %3454 = vmatmul.mubr.bf16.gmra.mrb[0].mxu0 %v892
      %v3455 = vpop.f32.mrb[0].mxu0
      %v3456 = vadd.f32 %v3151, %v3455
      %v3457 = vpop.f32.mrb[0].mxu0
      %v3458 = vpop.f32.mrb[0].mxu0
      %v3459 = vadd.f32 %v3154, %v3458
      %v3460 = vpop.f32.mrb[0].mxu0
      %3461 = vmatprep.mubr.bf16.mxu0 %v944
      %3462 = vmatmul.mubr.bf16.gmra.mrb[0].mxu0 %v935
      %v3463 = vpop.f32.mrb[0].mxu0
      %v3464 = vadd.f32 %v3159, %v3463
      %v3465 = vpop.f32.mrb[0].mxu0
      %v3466 = vpop.f32.mrb[0].mxu0
      %v3467 = vadd.f32 %v3162, %v3466
      %v3468 = vpop.f32.mrb[0].mxu0
      %3469 = vmatprep.mubr.bf16.mxu0 %v987
      %3470 = vmatmul.mubr.bf16.gmra.mrb[0].mxu0 %v978
      %v3471 = vpop.f32.mrb[0].mxu0
      %v3472 = vadd.f32 %v3167, %v3471
      %v3473 = vpop.f32.mrb[0].mxu0
      %v3474 = vpop.f32.mrb[0].mxu0
      %v3475 = vadd.f32 %v3170, %v3474
      %v3476 = vpop.f32.mrb[0].mxu0
      %3477 = vmatprep.mubr.bf16.mxu0 %v1030
      %3478 = vmatmul.mubr.bf16.gmra.mrb[0].mxu0 %v1021
      %v3479 = vpop.f32.mrb[0].mxu0
      %v3480 = vadd.f32 %v3175, %v3479
      %v3481 = vpop.f32.mrb[0].mxu0
      %v3482 = vpop.f32.mrb[0].mxu0
      %v3483 = vadd.f32 %v3178, %v3482
      %v3484 = vpop.f32.mrb[0].mxu0
      %3485 = vmatprep.mubr.bf16.mxu0 %v1073
      %3486 = vmatmul.mubr.bf16.gmra.mrb[0].mxu0 %v1064
      %v3487 = vpop.f32.mrb[0].mxu0
      %v3488 = vadd.f32 %v3183, %v3487
      %v3489 = vpop.f32.mrb[0].mxu0
      %v3490 = vpop.f32.mrb[0].mxu0
      %v3491 = vadd.f32 %v3186, %v3490
      %v3492 = vpop.f32.mrb[0].mxu0
      %3493 = vmatprep.mubr.bf16.mxu0 %v1116
      %3494 = vmatmul.mubr.bf16.gmra.mrb[0].mxu0 %v1107
      %v3495 = vpop.f32.mrb[0].mxu0
      %v3496 = vadd.f32 %v3191, %v3495
      %v3497 = vpop.f32.mrb[0].mxu0
      %v3498 = vpop.f32.mrb[0].mxu0
      %v3499 = vadd.f32 %v3194, %v3498
      %v3500 = vpop.f32.mrb[0].mxu0
      %3501 = vmatprep.mubr.bf16.mxu0 %v1159
      %3502 = vmatmul.mubr.bf16.gmra.mrb[0].mxu0 %v1150
      %v3503 = vpop.f32.mrb[0].mxu0
      %v3504 = vadd.f32 %v3199, %v3503
      %v3505 = vpop.f32.mrb[0].mxu0
      %v3506 = vpop.f32.mrb[0].mxu0
      %v3507 = vadd.f32 %v3202, %v3506
      %v3508 = vpop.f32.mrb[0].mxu0
      %3509 = vmatprep.mubr.bf16.mxu0 %v1202
      %3510 = vmatmul.mubr.bf16.gmra.mrb[0].mxu0 %v1193
      %v3511 = vpop.f32.mrb[0].mxu0
      %v3512 = vadd.f32 %v3207, %v3511
      %v3513 = vpop.f32.mrb[0].mxu0
      %v3514 = vpop.f32.mrb[0].mxu0
      %v3515 = vadd.f32 %v3210, %v3514
      %v3516 = vpop.f32.mrb[0].mxu0
      %3517 = vmatprep.mubr.bf16.mxu0 %v1245
      %3518 = vmatmul.mubr.bf16.gmra.mrb[0].mxu0 %v1236
      %v3519 = vpop.f32.mrb[0].mxu0
      %v3520 = vadd.f32 %v3215, %v3519
      %v3521 = vpop.f32.mrb[0].mxu0
      %v3522 = vpop.f32.mrb[0].mxu0
      %v3523 = vadd.f32 %v3218, %v3522
      %v3524 = vpop.f32.mrb[0].mxu0
      %3525 = vmatprep.mubr.bf16.mxu0 %v1288
      %3526 = vmatmul.mubr.bf16.gmra.mrb[0].mxu0 %v1279
      %v3527 = vpop.f32.mrb[0].mxu0
      %v3528 = vadd.f32 %v3223, %v3527
      %v3529 = vpop.f32.mrb[0].mxu0
      %v3530 = vpop.f32.mrb[0].mxu0
      %v3531 = vadd.f32 %v3226, %v3530
      %v3532 = vpop.f32.mrb[0].mxu0
      %3533 = vmatprep.mubr.bf16.mxu0 %v1331
      %3534 = vmatmul.mubr.bf16.gmra.mrb[0].mxu0 %v1322
      %v3535 = vpop.f32.mrb[0].mxu0
      %v3536 = vadd.f32 %v3231, %v3535
      %v3537 = vpop.f32.mrb[0].mxu0
      %v3538 = vpop.f32.mrb[0].mxu0
      %v3539 = vadd.f32 %v3234, %v3538
      %v3540 = vpop.f32.mrb[0].mxu0
      %3541 = vmatprep.mubr.bf16.mxu0 %v1374
      %3542 = vmatmul.mubr.bf16.gmra.mrb[0].mxu0 %v1365
      %v3543 = vpop.f32.mrb[0].mxu0
      %v3544 = vadd.f32 %v3239, %v3543
      %v3545 = vpop.f32.mrb[0].mxu0
      %v3546 = vpop.f32.mrb[0].mxu0
      %v3547 = vadd.f32 %v3242, %v3546
      %v3548 = vpop.f32.mrb[0].mxu0
      %3549 = vmatprep.mubr.bf16.mxu0 %v1417
      %3550 = vmatmul.mubr.bf16.gmra.mrb[0].mxu0 %v1408
      %v3551 = vpop.f32.mrb[0].mxu0
      %v3552 = vadd.f32 %v3247, %v3551
      %v3553 = vpop.f32.mrb[0].mxu0
      %v3554 = vpop.f32.mrb[0].mxu0
      %v3555 = vadd.f32 %v3250, %v3554
      %v3556 = vpop.f32.mrb[0].mxu0
      %3557 = vmatprep.mubr.bf16.mxu0 %v1460
      %3558 = vmatmul.mubr.bf16.gmra.mrb[0].mxu0 %v1451
      %v3559 = vpop.f32.mrb[0].mxu0
      %v3560 = vadd.f32 %v3255, %v3559
      %v3561 = vpop.f32.mrb[0].mxu0
      %v3562 = vpop.f32.mrb[0].mxu0
      %v3563 = vadd.f32 %v3258, %v3562
      %v3564 = vpop.f32.mrb[0].mxu0
      %3565 = vdwg.mxu0
      %3566 = vmatprep.subr.bf16.mxu0 0
      %3567 = vmatpush1.bf16.msra.mxu0 %v3373
      %3568 = vmatprep.subr.bf16.mxu0 0
      %3569 = vmatpush1.bf16.msra.mxu0 %v3374
      %3570 = vmatprep.subr.bf16.mxu0 0
      %3571 = vmatpush1.bf16.msra.mxu0 %v3375
      %3572 = vmatprep.subr.bf16.mxu0 0
      %3573 = vmatpush1.bf16.msra.mxu0 %v3376
      %3574 = vmatprep.subr.bf16.mxu0 0
      %3575 = vmatpush1.bf16.msra.mxu0 %v3377
      %3576 = vmatprep.subr.bf16.mxu0 0
      %3577 = vmatpush1.bf16.msra.mxu0 %v3378
      %3578 = vmatprep.subr.bf16.mxu0 0
      %3579 = vmatpush1.bf16.msra.mxu0 %v3379
      %3580 = vmatprep.subr.bf16.mxu0 0
      %3581 = vmatpush1.bf16.msra.mxu0 %v3380
      %3582 = vmatprep.subr.bf16.mxu0 0
      %3583 = vmatpush1.bf16.msra.mxu0 0
      %3584 = vmatprep.subr.bf16.mxu0 0
      %3585 = vmatpush1.bf16.msra.mxu0 0
      %3586 = vmatprep.subr.bf16.mxu0 0
      %3587 = vmatpush1.bf16.msra.mxu0 0
      %3588 = vmatprep.subr.bf16.mxu0 0
      %3589 = vmatpush1.bf16.msra.mxu0 0
      %3590 = vmatprep.subr.bf16.mxu0 0
      %3591 = vmatpush1.bf16.msra.mxu0 0
      %3592 = vmatprep.subr.bf16.mxu0 0
      %3593 = vmatpush1.bf16.msra.mxu0 0
      %3594 = vmatprep.subr.bf16.mxu0 0
      %3595 = vmatpush1.bf16.msra.mxu0 0
      %3596 = vmatprep.subr.bf16.mxu0 0
      %3597 = vmatpush1.bf16.msra.mxu0 0
      %3598 = vmatprep.mubr.bf16.mxu0 0
      %3599 = vmatmul.mubr.bf16.gmra.mrb[0].mxu0 %v832
      %v3600 = vpop.f32.mrb[0].mxu0
      %v3601 = vadd.f32 %v3440, %v3600
      %v3602 = vpop.f32.mrb[0].mxu0
      %v3603 = vpop.f32.mrb[0].mxu0
      %v3604 = vadd.f32 %v3443, %v3603
      %v3605 = vpop.f32.mrb[0].mxu0
      %3606 = vmatprep.mubr.bf16.mxu0 0
      %3607 = vmatmul.mubr.bf16.gmra.mrb[0].mxu0 %v875
      %v3608 = vpop.f32.mrb[0].mxu0
      %v3609 = vadd.f32 %v3448, %v3608
      %v3610 = vpop.f32.mrb[0].mxu0
      %v3611 = vpop.f32.mrb[0].mxu0
      %v3612 = vadd.f32 %v3451, %v3611
      %v3613 = vpop.f32.mrb[0].mxu0
      %3614 = vmatprep.mubr.bf16.mxu0 0
      %3615 = vmatmul.mubr.bf16.gmra.mrb[0].mxu0 %v918
      %v3616 = vpop.f32.mrb[0].mxu0
      %v3617 = vadd.f32 %v3456, %v3616
      %v3618 = vpop.f32.mrb[0].mxu0
      %v3619 = vpop.f32.mrb[0].mxu0
      %v3620 = vadd.f32 %v3459, %v3619
      %v3621 = vpop.f32.mrb[0].mxu0
      %3622 = vmatprep.mubr.bf16.mxu0 0
      %3623 = vmatmul.mubr.bf16.gmra.mrb[0].mxu0 %v961
      %v3624 = vpop.f32.mrb[0].mxu0
      %v3625 = vadd.f32 %v3464, %v3624
      %v3626 = vpop.f32.mrb[0].mxu0
      %v3627 = vpop.f32.mrb[0].mxu0
      %v3628 = vadd.f32 %v3467, %v3627
      %v3629 = vpop.f32.mrb[0].mxu0
      %3630 = vmatprep.mubr.bf16.mxu0 0
      %3631 = vmatmul.mubr.bf16.gmra.mrb[0].mxu0 %v1004
      %v3632 = vpop.f32.mrb[0].mxu0
      %v3633 = vadd.f32 %v3472, %v3632
      %v3634 = vpop.f32.mrb[0].mxu0
      %v3635 = vpop.f32.mrb[0].mxu0
      %v3636 = vadd.f32 %v3475, %v3635
      %v3637 = vpop.f32.mrb[0].mxu0
      %3638 = vmatprep.mubr.bf16.mxu0 0
      %3639 = vmatmul.mubr.bf16.gmra.mrb[0].mxu0 %v1047
      %v3640 = vpop.f32.mrb[0].mxu0
      %v3641 = vadd.f32 %v3480, %v3640
      %v3642 = vpop.f32.mrb[0].mxu0
      %v3643 = vpop.f32.mrb[0].mxu0
      %v3644 = vadd.f32 %v3483, %v3643
      %v3645 = vpop.f32.mrb[0].mxu0
      %3646 = vmatprep.mubr.bf16.mxu0 0
      %3647 = vmatmul.mubr.bf16.gmra.mrb[0].mxu0 %v1090
      %v3648 = vpop.f32.mrb[0].mxu0
      %v3649 = vadd.f32 %v3488, %v3648
      %v3650 = vpop.f32.mrb[0].mxu0
      %v3651 = vpop.f32.mrb[0].mxu0
      %v3652 = vadd.f32 %v3491, %v3651
      %v3653 = vpop.f32.mrb[0].mxu0
      %3654 = vmatprep.mubr.bf16.mxu0 0
      %3655 = vmatmul.mubr.bf16.gmra.mrb[0].mxu0 %v1133
      %v3656 = vpop.f32.mrb[0].mxu0
      %v3657 = vadd.f32 %v3496, %v3656
      %v3658 = vpop.f32.mrb[0].mxu0
      %v3659 = vpop.f32.mrb[0].mxu0
      %v3660 = vadd.f32 %v3499, %v3659
      %v3661 = vpop.f32.mrb[0].mxu0
      %3662 = vmatprep.mubr.bf16.mxu0 0
      %3663 = vmatmul.mubr.bf16.gmra.mrb[0].mxu0 %v1176
      %v3664 = vpop.f32.mrb[0].mxu0
      %v3665 = vadd.f32 %v3504, %v3664
      %v3666 = vpop.f32.mrb[0].mxu0
      %v3667 = vpop.f32.mrb[0].mxu0
      %v3668 = vadd.f32 %v3507, %v3667
      %v3669 = vpop.f32.mrb[0].mxu0
      %3670 = vmatprep.mubr.bf16.mxu0 0
      %3671 = vmatmul.mubr.bf16.gmra.mrb[0].mxu0 %v1219
      %v3672 = vpop.f32.mrb[0].mxu0
      %v3673 = vadd.f32 %v3512, %v3672
      %v3674 = vpop.f32.mrb[0].mxu0
      %v3675 = vpop.f32.mrb[0].mxu0
      %v3676 = vadd.f32 %v3515, %v3675
      %v3677 = vpop.f32.mrb[0].mxu0
      %3678 = vmatprep.mubr.bf16.mxu0 0
      %3679 = vmatmul.mubr.bf16.gmra.mrb[0].mxu0 %v1262
      %v3680 = vpop.f32.mrb[0].mxu0
      %v3681 = vadd.f32 %v3520, %v3680
      %v3682 = vpop.f32.mrb[0].mxu0
      %v3683 = vpop.f32.mrb[0].mxu0
      %v3684 = vadd.f32 %v3523, %v3683
      %v3685 = vpop.f32.mrb[0].mxu0
      %3686 = vmatprep.mubr.bf16.mxu0 0
      %3687 = vmatmul.mubr.bf16.gmra.mrb[0].mxu0 %v1305
      %v3688 = vpop.f32.mrb[0].mxu0
      %v3689 = vadd.f32 %v3528, %v3688
      %v3690 = vpop.f32.mrb[0].mxu0
      %v3691 = vpop.f32.mrb[0].mxu0
      %v3692 = vadd.f32 %v3531, %v3691
      %v3693 = vpop.f32.mrb[0].mxu0
      %3694 = vmatprep.mubr.bf16.mxu0 0
      %3695 = vmatmul.mubr.bf16.gmra.mrb[0].mxu0 %v1348
      %v3696 = vpop.f32.mrb[0].mxu0
      %v3697 = vadd.f32 %v3536, %v3696
      %v3698 = vpop.f32.mrb[0].mxu0
      %v3699 = vpop.f32.mrb[0].mxu0
      %v3700 = vadd.f32 %v3539, %v3699
      %v3701 = vpop.f32.mrb[0].mxu0
      %3702 = vmatprep.mubr.bf16.mxu0 0
      %3703 = vmatmul.mubr.bf16.gmra.mrb[0].mxu0 %v1391
      %v3704 = vpop.f32.mrb[0].mxu0
      %v3705 = vadd.f32 %v3544, %v3704
      %v3706 = vpop.f32.mrb[0].mxu0
      %v3707 = vpop.f32.mrb[0].mxu0
      %v3708 = vadd.f32 %v3547, %v3707
      %v3709 = vpop.f32.mrb[0].mxu0
      %3710 = vmatprep.mubr.bf16.mxu0 0
      %3711 = vmatmul.mubr.bf16.gmra.mrb[0].mxu0 %v1434
      %v3712 = vpop.f32.mrb[0].mxu0
      %v3713 = vadd.f32 %v3552, %v3712
      %v3714 = vpop.f32.mrb[0].mxu0
      %v3715 = vpop.f32.mrb[0].mxu0
      %v3716 = vadd.f32 %v3555, %v3715
      %v3717 = vpop.f32.mrb[0].mxu0
      %3718 = vmatprep.mubr.bf16.mxu0 0
      %3719 = vmatmul.mubr.bf16.gmra.mrb[0].mxu0 %v1477
      %v3720 = vpop.f32.mrb[0].mxu0
      %v3721 = vadd.f32 %v3560, %v3720
      %v3722 = vpop.f32.mrb[0].mxu0
      %v3723 = vpop.f32.mrb[0].mxu0
      %v3724 = vadd.f32 %v3563, %v3723
      %v3725 = vpop.f32.mrb[0].mxu0
      %3726 = vdwg.mxu0
      %s3727 = sadd.s32 %s352, 2
      %s3728 = smul.u32 %s3727, 4
      %s3729 = smul.addr %s3728, 4
      %s3730 = scalar_lea.vmem %s334, %s3729
      %v3731 = vld [vmem:[%s3730] sm:$0xf]
      %v3732 = vld [vmem:[%s3730 + $0x4] sm:$0xf]
      %v3733 = vld [vmem:[%s3730 + $0x8] sm:$0xf]
      %v3734 = vld [vmem:[%s3730 + $0xc] sm:$0x1]
      %v3735 = vld [vmem:[%s3730 + $0x10] sm:$0xf]
      %v3736 = vld [vmem:[%s3730 + $0x14] sm:$0xf]
      %v3737 = vld [vmem:[%s3730 + $0x18] sm:$0xf]
      %v3738 = vld [vmem:[%s3730 + $0x1c] sm:$0x1]
      %v3739 = vld [vmem:[%s3730 + $0x20] sm:$0xf]
      %v3740 = vld [vmem:[%s3730 + $0x24] sm:$0xf]
      %v3741 = vld [vmem:[%s3730 + $0x28] sm:$0xf]
      %v3742 = vld [vmem:[%s3730 + $0x2c] sm:$0x1]
      %v3743 = vld [vmem:[%s3730 + $0x30] sm:$0xf]
      %v3744 = vld [vmem:[%s3730 + $0x34] sm:$0xf]
      %v3745 = vld [vmem:[%s3730 + $0x38] sm:$0xf]
      %v3746 = vld [vmem:[%s3730 + $0x3c] sm:$0x1]
      %v3747 = vld [vmem:[%s3730 + $0x40] sm:$0xf]
      %v3748 = vld [vmem:[%s3730 + $0x44] sm:$0xf]
      %v3749 = vld [vmem:[%s3730 + $0x48] sm:$0xf]
      %v3750 = vld [vmem:[%s3730 + $0x4c] sm:$0x1]
      %v3751 = vld [vmem:[%s3730 + $0x50] sm:$0xf]
      %v3752 = vld [vmem:[%s3730 + $0x54] sm:$0xf]
      %v3753 = vld [vmem:[%s3730 + $0x58] sm:$0xf]
      %v3754 = vld [vmem:[%s3730 + $0x5c] sm:$0x1]
      %v3755 = vld [vmem:[%s3730 + $0x60] sm:$0xf]
      %v3756 = vld [vmem:[%s3730 + $0x64] sm:$0xf]
      %v3757 = vld [vmem:[%s3730 + $0x68] sm:$0xf]
      %v3758 = vld [vmem:[%s3730 + $0x6c] sm:$0x1]
      %v3759 = vld [vmem:[%s3730 + $0x70] sm:$0xf]
      %v3760 = vld [vmem:[%s3730 + $0x74] sm:$0xf]
      %v3761 = vld [vmem:[%s3730 + $0x78] sm:$0xf]
      %v3762 = vld [vmem:[%s3730 + $0x7c] sm:$0x1]
      %v3763 = vld [vmem:[%s3730 + $0x80] sm:$0xf]
      %v3764 = vld [vmem:[%s3730 + $0x84] sm:$0xf]
      %v3765 = vld [vmem:[%s3730 + $0x88] sm:$0xf]
      %v3766 = vld [vmem:[%s3730 + $0x8c] sm:$0x1]
      %v3767 = vld [vmem:[%s3730 + $0x90] sm:$0xf]
      %v3768 = vld [vmem:[%s3730 + $0x94] sm:$0xf]
      %v3769 = vld [vmem:[%s3730 + $0x98] sm:$0xf]
      %v3770 = vld [vmem:[%s3730 + $0x9c] sm:$0x1]
      %v3771 = vld [vmem:[%s3730 + $0xa0] sm:$0xf]
      %v3772 = vld [vmem:[%s3730 + $0xa4] sm:$0xf]
      %v3773 = vld [vmem:[%s3730 + $0xa8] sm:$0xf]
      %v3774 = vld [vmem:[%s3730 + $0xac] sm:$0x1]
      %v3775 = vld [vmem:[%s3730 + $0xb0] sm:$0xf]
      %v3776 = vld [vmem:[%s3730 + $0xb4] sm:$0xf]
      %v3777 = vld [vmem:[%s3730 + $0xb8] sm:$0xf]
      %v3778 = vld [vmem:[%s3730 + $0xbc] sm:$0x1]
      %v3779 = vld [vmem:[%s3730 + $0xc0] sm:$0xf]
      %v3780 = vld [vmem:[%s3730 + $0xc4] sm:$0xf]
      %v3781 = vld [vmem:[%s3730 + $0xc8] sm:$0xf]
      %v3782 = vld [vmem:[%s3730 + $0xcc] sm:$0x1]
      %v3783 = vld [vmem:[%s3730 + $0xd0] sm:$0xf]
      %v3784 = vld [vmem:[%s3730 + $0xd4] sm:$0xf]
      %v3785 = vld [vmem:[%s3730 + $0xd8] sm:$0xf]
      %v3786 = vld [vmem:[%s3730 + $0xdc] sm:$0x1]
      %v3787 = vld [vmem:[%s3730 + $0xe0] sm:$0xf]
      %v3788 = vld [vmem:[%s3730 + $0xe4] sm:$0xf]
      %v3789 = vld [vmem:[%s3730 + $0xe8] sm:$0xf]
      %v3790 = vld [vmem:[%s3730 + $0xec] sm:$0x1]
      %v3791 = vld [vmem:[%s3730 + $0xf0] sm:$0xf]
      %v3792 = vld [vmem:[%s3730 + $0xf4] sm:$0xf]
      %v3793 = vld [vmem:[%s3730 + $0xf8] sm:$0xf]
      %v3794 = vld [vmem:[%s3730 + $0xfc] sm:$0x1]
      %v3843 = vunpack.c.l.b16 %v3731
      %v3844 = vunpack.c.l.b16 %v3732
      %v3845 = vunpack.c.l.b16 %v3733
      %v3846 = vunpack.c.l.b16 %v3735
      %v3847 = vunpack.c.l.b16 %v3736
      %v3848 = vunpack.c.l.b16 %v3737
      %v3849 = vunpack.c.l.b16 %v3739
      %v3850 = vunpack.c.l.b16 %v3740
      %v3851 = vunpack.c.l.b16 %v3741
      %v3852 = vunpack.c.l.b16 %v3743
      %v3853 = vunpack.c.l.b16 %v3744
      %v3854 = vunpack.c.l.b16 %v3745
      %v3855 = vunpack.c.l.b16 %v3747
      %v3856 = vunpack.c.l.b16 %v3748
      %v3857 = vunpack.c.l.b16 %v3749
      %v3858 = vunpack.c.l.b16 %v3751
      %v3859 = vunpack.c.l.b16 %v3752
      %v3860 = vunpack.c.l.b16 %v3753
      %v3861 = vunpack.c.l.b16 %v3755
      %v3862 = vunpack.c.l.b16 %v3756
      %v3863 = vunpack.c.l.b16 %v3757
      %v3864 = vunpack.c.l.b16 %v3759
      %v3865 = vunpack.c.l.b16 %v3760
      %v3866 = vunpack.c.l.b16 %v3761
      %v3867 = vunpack.c.l.b16 %v3763
      %v3868 = vunpack.c.l.b16 %v3764
      %v3869 = vunpack.c.l.b16 %v3765
      %v3870 = vunpack.c.l.b16 %v3767
      %v3871 = vunpack.c.l.b16 %v3768
      %v3872 = vunpack.c.l.b16 %v3769
      %v3873 = vunpack.c.l.b16 %v3771
      %v3874 = vunpack.c.l.b16 %v3772
      %v3875 = vunpack.c.l.b16 %v3773
      %v3876 = vunpack.c.l.b16 %v3775
      %v3877 = vunpack.c.l.b16 %v3776
      %v3878 = vunpack.c.l.b16 %v3777
      %v3879 = vunpack.c.l.b16 %v3779
      %v3880 = vunpack.c.l.b16 %v3780
      %v3881 = vunpack.c.l.b16 %v3781
      %v3882 = vunpack.c.l.b16 %v3783
      %v3883 = vunpack.c.l.b16 %v3784
      %v3884 = vunpack.c.l.b16 %v3785
      %v3885 = vunpack.c.l.b16 %v3787
      %v3886 = vunpack.c.l.b16 %v3788
      %v3887 = vunpack.c.l.b16 %v3789
      %v3888 = vunpack.c.l.b16 %v3791
      %v3889 = vunpack.c.l.b16 %v3792
      %v3890 = vunpack.c.l.b16 %v3793
      %v3891 = vpack.c.b16 %v3844, %v3843
      %v3892 = vpack.c.b16 %v3845, %v3845
      %v3893 = vpack.c.b16 %v3847, %v3846
      %v3894 = vpack.c.b16 %v3848, %v3848
      %v3895 = vpack.c.b16 %v3850, %v3849
      %v3896 = vpack.c.b16 %v3851, %v3851
      %v3897 = vpack.c.b16 %v3853, %v3852
      %v3898 = vpack.c.b16 %v3854, %v3854
      %v3899 = vpack.c.b16 %v3856, %v3855
      %v3900 = vpack.c.b16 %v3857, %v3857
      %v3901 = vpack.c.b16 %v3859, %v3858
      %v3902 = vpack.c.b16 %v3860, %v3860
      %v3903 = vpack.c.b16 %v3862, %v3861
      %v3904 = vpack.c.b16 %v3863, %v3863
      %v3905 = vpack.c.b16 %v3865, %v3864
      %v3906 = vpack.c.b16 %v3866, %v3866
      %v3907 = vpack.c.b16 %v3868, %v3867
      %v3908 = vpack.c.b16 %v3869, %v3869
      %v3909 = vpack.c.b16 %v3871, %v3870
      %v3910 = vpack.c.b16 %v3872, %v3872
      %v3911 = vpack.c.b16 %v3874, %v3873
      %v3912 = vpack.c.b16 %v3875, %v3875
      %v3913 = vpack.c.b16 %v3877, %v3876
      %v3914 = vpack.c.b16 %v3878, %v3878
      %v3915 = vpack.c.b16 %v3880, %v3879
      %v3916 = vpack.c.b16 %v3881, %v3881
      %v3917 = vpack.c.b16 %v3883, %v3882
      %v3918 = vpack.c.b16 %v3884, %v3884
      %v3919 = vpack.c.b16 %v3886, %v3885
      %v3920 = vpack.c.b16 %v3887, %v3887
      %v3921 = vpack.c.b16 %v3889, %v3888
      %v3922 = vpack.c.b16 %v3890, %v3890
      %v3923 = vpack.c.b16 %v3845, %v3844
      %v3924 = vpack.c.b16 %v3848, %v3847
      %v3925 = vpack.c.b16 %v3851, %v3850
      %v3926 = vpack.c.b16 %v3854, %v3853
      %v3927 = vpack.c.b16 %v3857, %v3856
      %v3928 = vpack.c.b16 %v3860, %v3859
      %v3929 = vpack.c.b16 %v3863, %v3862
      %v3930 = vpack.c.b16 %v3866, %v3865
      %v3931 = vpack.c.b16 %v3869, %v3868
      %v3932 = vpack.c.b16 %v3872, %v3871
      %v3933 = vpack.c.b16 %v3875, %v3874
      %v3934 = vpack.c.b16 %v3878, %v3877
      %v3935 = vpack.c.b16 %v3881, %v3880
      %v3936 = vpack.c.b16 %v3884, %v3883
      %v3937 = vpack.c.b16 %v3887, %v3886
      %v3938 = vpack.c.b16 %v3890, %v3889
      %v3940 = vshrl.u32 %v3923, 16
      %v3942 = vrot.slane %v3940, 4
      %v3943 = vshll.u32 %v3923, 16
      %v3945 = vrot.slane %v3943, 5
      %v3946 = vor.u32 %v3942, %v3945
      %v3948 = vshrl.u32 %v3924, 16
      %v3950 = vrot.slane %v3948, 4
      %v3951 = vshll.u32 %v3924, 16
      %v3953 = vrot.slane %v3951, 5
      %v3954 = vor.u32 %v3950, %v3953
      %v3956 = vshrl.u32 %v3925, 16
      %v3958 = vrot.slane %v3956, 4
      %v3959 = vshll.u32 %v3925, 16
      %v3961 = vrot.slane %v3959, 5
      %v3962 = vor.u32 %v3958, %v3961
      %v3964 = vshrl.u32 %v3926, 16
      %v3966 = vrot.slane %v3964, 4
      %v3967 = vshll.u32 %v3926, 16
      %v3969 = vrot.slane %v3967, 5
      %v3970 = vor.u32 %v3966, %v3969
      %v3972 = vshrl.u32 %v3927, 16
      %v3974 = vrot.slane %v3972, 4
      %v3975 = vshll.u32 %v3927, 16
      %v3977 = vrot.slane %v3975, 5
      %v3978 = vor.u32 %v3974, %v3977
      %v3980 = vshrl.u32 %v3928, 16
      %v3982 = vrot.slane %v3980, 4
      %v3983 = vshll.u32 %v3928, 16
      %v3985 = vrot.slane %v3983, 5
      %v3986 = vor.u32 %v3982, %v3985
      %v3988 = vshrl.u32 %v3929, 16
      %v3990 = vrot.slane %v3988, 4
      %v3991 = vshll.u32 %v3929, 16
      %v3993 = vrot.slane %v3991, 5
      %v3994 = vor.u32 %v3990, %v3993
      %v3996 = vshrl.u32 %v3930, 16
      %v3998 = vrot.slane %v3996, 4
      %v3999 = vshll.u32 %v3930, 16
      %v4001 = vrot.slane %v3999, 5
      %v4002 = vor.u32 %v3998, %v4001
      %v4004 = vshrl.u32 %v3931, 16
      %v4006 = vrot.slane %v4004, 4
      %v4007 = vshll.u32 %v3931, 16
      %v4009 = vrot.slane %v4007, 5
      %v4010 = vor.u32 %v4006, %v4009
      %v4012 = vshrl.u32 %v3932, 16
      %v4014 = vrot.slane %v4012, 4
      %v4015 = vshll.u32 %v3932, 16
      %v4017 = vrot.slane %v4015, 5
      %v4018 = vor.u32 %v4014, %v4017
      %v4020 = vshrl.u32 %v3933, 16
      %v4022 = vrot.slane %v4020, 4
      %v4023 = vshll.u32 %v3933, 16
      %v4025 = vrot.slane %v4023, 5
      %v4026 = vor.u32 %v4022, %v4025
      %v4028 = vshrl.u32 %v3934, 16
      %v4030 = vrot.slane %v4028, 4
      %v4031 = vshll.u32 %v3934, 16
      %v4033 = vrot.slane %v4031, 5
      %v4034 = vor.u32 %v4030, %v4033
      %v4036 = vshrl.u32 %v3935, 16
      %v4038 = vrot.slane %v4036, 4
      %v4039 = vshll.u32 %v3935, 16
      %v4041 = vrot.slane %v4039, 5
      %v4042 = vor.u32 %v4038, %v4041
      %v4044 = vshrl.u32 %v3936, 16
      %v4046 = vrot.slane %v4044, 4
      %v4047 = vshll.u32 %v3936, 16
      %v4049 = vrot.slane %v4047, 5
      %v4050 = vor.u32 %v4046, %v4049
      %v4052 = vshrl.u32 %v3937, 16
      %v4054 = vrot.slane %v4052, 4
      %v4055 = vshll.u32 %v3937, 16
      %v4057 = vrot.slane %v4055, 5
      %v4058 = vor.u32 %v4054, %v4057
      %v4060 = vshrl.u32 %v3938, 16
      %v4062 = vrot.slane %v4060, 4
      %v4063 = vshll.u32 %v3938, 16
      %v4065 = vrot.slane %v4063, 5
      %v4066 = vor.u32 %v4062, %v4065
      %v4083 = vunpack.c.l.b16 %v3734
      %v4084 = vunpack.c.l.b16 %v3738
      %v4085 = vunpack.c.l.b16 %v3742
      %v4086 = vunpack.c.l.b16 %v3746
      %v4087 = vunpack.c.l.b16 %v3750
      %v4088 = vunpack.c.l.b16 %v3754
      %v4089 = vunpack.c.l.b16 %v3758
      %v4090 = vunpack.c.l.b16 %v3762
      %v4091 = vunpack.c.l.b16 %v3766
      %v4092 = vunpack.c.l.b16 %v3770
      %v4093 = vunpack.c.l.b16 %v3774
      %v4094 = vunpack.c.l.b16 %v3778
      %v4095 = vunpack.c.l.b16 %v3782
      %v4096 = vunpack.c.l.b16 %v3786
      %v4097 = vunpack.c.l.b16 %v3790
      %v4098 = vunpack.c.l.b16 %v3794
      %v4099 = vpack.c.b16 %v4083, %v4083
      %v4100 = vpack.c.b16 %v4084, %v4084
      %v4101 = vpack.c.b16 %v4085, %v4085
      %v4102 = vpack.c.b16 %v4086, %v4086
      %v4103 = vpack.c.b16 %v4087, %v4087
      %v4104 = vpack.c.b16 %v4088, %v4088
      %v4105 = vpack.c.b16 %v4089, %v4089
      %v4106 = vpack.c.b16 %v4090, %v4090
      %v4107 = vpack.c.b16 %v4091, %v4091
      %v4108 = vpack.c.b16 %v4092, %v4092
      %v4109 = vpack.c.b16 %v4093, %v4093
      %v4110 = vpack.c.b16 %v4094, %v4094
      %v4111 = vpack.c.b16 %v4095, %v4095
      %v4112 = vpack.c.b16 %v4096, %v4096
      %v4113 = vpack.c.b16 %v4097, %v4097
      %v4114 = vpack.c.b16 %v4098, %v4098
      %v4115 = vrot.slane %v3923, 5
      %v4116 = vrot.slane %v4099, 5
      %v4117 = vsel %vm740, %v4115, %v4116
      %v4118 = vrot.slane %v3924, 5
      %v4119 = vrot.slane %v4100, 5
      %v4120 = vsel %vm740, %v4118, %v4119
      %v4121 = vrot.slane %v3925, 5
      %v4122 = vrot.slane %v4101, 5
      %v4123 = vsel %vm740, %v4121, %v4122
      %v4124 = vrot.slane %v3926, 5
      %v4125 = vrot.slane %v4102, 5
      %v4126 = vsel %vm740, %v4124, %v4125
      %v4127 = vrot.slane %v3927, 5
      %v4128 = vrot.slane %v4103, 5
      %v4129 = vsel %vm740, %v4127, %v4128
      %v4130 = vrot.slane %v3928, 5
      %v4131 = vrot.slane %v4104, 5
      %v4132 = vsel %vm740, %v4130, %v4131
      %v4133 = vrot.slane %v3929, 5
      %v4134 = vrot.slane %v4105, 5
      %v4135 = vsel %vm740, %v4133, %v4134
      %v4136 = vrot.slane %v3930, 5
      %v4137 = vrot.slane %v4106, 5
      %v4138 = vsel %vm740, %v4136, %v4137
      %v4139 = vrot.slane %v3931, 5
      %v4140 = vrot.slane %v4107, 5
      %v4141 = vsel %vm740, %v4139, %v4140
      %v4142 = vrot.slane %v3932, 5
      %v4143 = vrot.slane %v4108, 5
      %v4144 = vsel %vm740, %v4142, %v4143
      %v4145 = vrot.slane %v3933, 5
      %v4146 = vrot.slane %v4109, 5
      %v4147 = vsel %vm740, %v4145, %v4146
      %v4148 = vrot.slane %v3934, 5
      %v4149 = vrot.slane %v4110, 5
      %v4150 = vsel %vm740, %v4148, %v4149
      %v4151 = vrot.slane %v3935, 5
      %v4152 = vrot.slane %v4111, 5
      %v4153 = vsel %vm740, %v4151, %v4152
      %v4154 = vrot.slane %v3936, 5
      %v4155 = vrot.slane %v4112, 5
      %v4156 = vsel %vm740, %v4154, %v4155
      %v4157 = vrot.slane %v3937, 5
      %v4158 = vrot.slane %v4113, 5
      %v4159 = vsel %vm740, %v4157, %v4158
      %v4160 = vrot.slane %v3938, 5
      %v4161 = vrot.slane %v4114, 5
      %v4162 = vsel %vm740, %v4160, %v4161
      %v4164 = vshrl.u32 %v3891, 16
      %v4166 = vrot.slane %v4164, 3
      %v4167 = vshll.u32 %v3891, 16
      %v4169 = vrot.slane %v4167, 4
      %v4170 = vor.u32 %v4166, %v4169
      %v4172 = vshrl.u32 %v3892, 16
      %v4174 = vrot.slane %v4172, 3
      %v4175 = vshll.u32 %v3892, 16
      %v4177 = vrot.slane %v4175, 4
      %v4178 = vor.u32 %v4174, %v4177
      %v4179 = vsel %vm789, %v4170, %v4178
      %v4181 = vshrl.u32 %v3946, 16
      %v4183 = vrot.slane %v4181, 3
      %v4184 = vshll.u32 %v3946, 16
      %v4186 = vrot.slane %v4184, 4
      %v4187 = vor.u32 %v4183, %v4186
      %v4188 = vsel %vm789, %v4187, %v4187
      %v4190 = vshrl.u32 %v4115, 16
      %v4192 = vrot.slane %v4190, 3
      %v4193 = vshll.u32 %v4115, 16
      %v4195 = vrot.slane %v4193, 4
      %v4196 = vor.u32 %v4192, %v4195
      %v4198 = vshrl.u32 %v4117, 16
      %v4200 = vrot.slane %v4198, 3
      %v4201 = vshll.u32 %v4117, 16
      %v4203 = vrot.slane %v4201, 4
      %v4204 = vor.u32 %v4200, %v4203
      %v4205 = vsel %vm789, %v4196, %v4204
      %v4207 = vshrl.u32 %v3893, 16
      %v4209 = vrot.slane %v4207, 3
      %v4210 = vshll.u32 %v3893, 16
      %v4212 = vrot.slane %v4210, 4
      %v4213 = vor.u32 %v4209, %v4212
      %v4215 = vshrl.u32 %v3894, 16
      %v4217 = vrot.slane %v4215, 3
      %v4218 = vshll.u32 %v3894, 16
      %v4220 = vrot.slane %v4218, 4
      %v4221 = vor.u32 %v4217, %v4220
      %v4222 = vsel %vm789, %v4213, %v4221
      %v4224 = vshrl.u32 %v3954, 16
      %v4226 = vrot.slane %v4224, 3
      %v4227 = vshll.u32 %v3954, 16
      %v4229 = vrot.slane %v4227, 4
      %v4230 = vor.u32 %v4226, %v4229
      %v4231 = vsel %vm789, %v4230, %v4230
      %v4233 = vshrl.u32 %v4118, 16
      %v4235 = vrot.slane %v4233, 3
      %v4236 = vshll.u32 %v4118, 16
      %v4238 = vrot.slane %v4236, 4
      %v4239 = vor.u32 %v4235, %v4238
      %v4241 = vshrl.u32 %v4120, 16
      %v4243 = vrot.slane %v4241, 3
      %v4244 = vshll.u32 %v4120, 16
      %v4246 = vrot.slane %v4244, 4
      %v4247 = vor.u32 %v4243, %v4246
      %v4248 = vsel %vm789, %v4239, %v4247
      %v4250 = vshrl.u32 %v3895, 16
      %v4252 = vrot.slane %v4250, 3
      %v4253 = vshll.u32 %v3895, 16
      %v4255 = vrot.slane %v4253, 4
      %v4256 = vor.u32 %v4252, %v4255
      %v4258 = vshrl.u32 %v3896, 16
      %v4260 = vrot.slane %v4258, 3
      %v4261 = vshll.u32 %v3896, 16
      %v4263 = vrot.slane %v4261, 4
      %v4264 = vor.u32 %v4260, %v4263
      %v4265 = vsel %vm789, %v4256, %v4264
      %v4267 = vshrl.u32 %v3962, 16
      %v4269 = vrot.slane %v4267, 3
      %v4270 = vshll.u32 %v3962, 16
      %v4272 = vrot.slane %v4270, 4
      %v4273 = vor.u32 %v4269, %v4272
      %v4274 = vsel %vm789, %v4273, %v4273
      %v4276 = vshrl.u32 %v4121, 16
      %v4278 = vrot.slane %v4276, 3
      %v4279 = vshll.u32 %v4121, 16
      %v4281 = vrot.slane %v4279, 4
      %v4282 = vor.u32 %v4278, %v4281
      %v4284 = vshrl.u32 %v4123, 16
      %v4286 = vrot.slane %v4284, 3
      %v4287 = vshll.u32 %v4123, 16
      %v4289 = vrot.slane %v4287, 4
      %v4290 = vor.u32 %v4286, %v4289
      %v4291 = vsel %vm789, %v4282, %v4290
      %v4293 = vshrl.u32 %v3897, 16
      %v4295 = vrot.slane %v4293, 3
      %v4296 = vshll.u32 %v3897, 16
      %v4298 = vrot.slane %v4296, 4
      %v4299 = vor.u32 %v4295, %v4298
      %v4301 = vshrl.u32 %v3898, 16
      %v4303 = vrot.slane %v4301, 3
      %v4304 = vshll.u32 %v3898, 16
      %v4306 = vrot.slane %v4304, 4
      %v4307 = vor.u32 %v4303, %v4306
      %v4308 = vsel %vm789, %v4299, %v4307
      %v4310 = vshrl.u32 %v3970, 16
      %v4312 = vrot.slane %v4310, 3
      %v4313 = vshll.u32 %v3970, 16
      %v4315 = vrot.slane %v4313, 4
      %v4316 = vor.u32 %v4312, %v4315
      %v4317 = vsel %vm789, %v4316, %v4316
      %v4319 = vshrl.u32 %v4124, 16
      %v4321 = vrot.slane %v4319, 3
      %v4322 = vshll.u32 %v4124, 16
      %v4324 = vrot.slane %v4322, 4
      %v4325 = vor.u32 %v4321, %v4324
      %v4327 = vshrl.u32 %v4126, 16
      %v4329 = vrot.slane %v4327, 3
      %v4330 = vshll.u32 %v4126, 16
      %v4332 = vrot.slane %v4330, 4
      %v4333 = vor.u32 %v4329, %v4332
      %v4334 = vsel %vm789, %v4325, %v4333
      %v4336 = vshrl.u32 %v3899, 16
      %v4338 = vrot.slane %v4336, 3
      %v4339 = vshll.u32 %v3899, 16
      %v4341 = vrot.slane %v4339, 4
      %v4342 = vor.u32 %v4338, %v4341
      %v4344 = vshrl.u32 %v3900, 16
      %v4346 = vrot.slane %v4344, 3
      %v4347 = vshll.u32 %v3900, 16
      %v4349 = vrot.slane %v4347, 4
      %v4350 = vor.u32 %v4346, %v4349
      %v4351 = vsel %vm789, %v4342, %v4350
      %v4353 = vshrl.u32 %v3978, 16
      %v4355 = vrot.slane %v4353, 3
      %v4356 = vshll.u32 %v3978, 16
      %v4358 = vrot.slane %v4356, 4
      %v4359 = vor.u32 %v4355, %v4358
      %v4360 = vsel %vm789, %v4359, %v4359
      %v4362 = vshrl.u32 %v4127, 16
      %v4364 = vrot.slane %v4362, 3
      %v4365 = vshll.u32 %v4127, 16
      %v4367 = vrot.slane %v4365, 4
      %v4368 = vor.u32 %v4364, %v4367
      %v4370 = vshrl.u32 %v4129, 16
      %v4372 = vrot.slane %v4370, 3
      %v4373 = vshll.u32 %v4129, 16
      %v4375 = vrot.slane %v4373, 4
      %v4376 = vor.u32 %v4372, %v4375
      %v4377 = vsel %vm789, %v4368, %v4376
      %v4379 = vshrl.u32 %v3901, 16
      %v4381 = vrot.slane %v4379, 3
      %v4382 = vshll.u32 %v3901, 16
      %v4384 = vrot.slane %v4382, 4
      %v4385 = vor.u32 %v4381, %v4384
      %v4387 = vshrl.u32 %v3902, 16
      %v4389 = vrot.slane %v4387, 3
      %v4390 = vshll.u32 %v3902, 16
      %v4392 = vrot.slane %v4390, 4
      %v4393 = vor.u32 %v4389, %v4392
      %v4394 = vsel %vm789, %v4385, %v4393
      %v4396 = vshrl.u32 %v3986, 16
      %v4398 = vrot.slane %v4396, 3
      %v4399 = vshll.u32 %v3986, 16
      %v4401 = vrot.slane %v4399, 4
      %v4402 = vor.u32 %v4398, %v4401
      %v4403 = vsel %vm789, %v4402, %v4402
      %v4405 = vshrl.u32 %v4130, 16
      %v4407 = vrot.slane %v4405, 3
      %v4408 = vshll.u32 %v4130, 16
      %v4410 = vrot.slane %v4408, 4
      %v4411 = vor.u32 %v4407, %v4410
      %v4413 = vshrl.u32 %v4132, 16
      %v4415 = vrot.slane %v4413, 3
      %v4416 = vshll.u32 %v4132, 16
      %v4418 = vrot.slane %v4416, 4
      %v4419 = vor.u32 %v4415, %v4418
      %v4420 = vsel %vm789, %v4411, %v4419
      %v4422 = vshrl.u32 %v3903, 16
      %v4424 = vrot.slane %v4422, 3
      %v4425 = vshll.u32 %v3903, 16
      %v4427 = vrot.slane %v4425, 4
      %v4428 = vor.u32 %v4424, %v4427
      %v4430 = vshrl.u32 %v3904, 16
      %v4432 = vrot.slane %v4430, 3
      %v4433 = vshll.u32 %v3904, 16
      %v4435 = vrot.slane %v4433, 4
      %v4436 = vor.u32 %v4432, %v4435
      %v4437 = vsel %vm789, %v4428, %v4436
      %v4439 = vshrl.u32 %v3994, 16
      %v4441 = vrot.slane %v4439, 3
      %v4442 = vshll.u32 %v3994, 16
      %v4444 = vrot.slane %v4442, 4
      %v4445 = vor.u32 %v4441, %v4444
      %v4446 = vsel %vm789, %v4445, %v4445
      %v4448 = vshrl.u32 %v4133, 16
      %v4450 = vrot.slane %v4448, 3
      %v4451 = vshll.u32 %v4133, 16
      %v4453 = vrot.slane %v4451, 4
      %v4454 = vor.u32 %v4450, %v4453
      %v4456 = vshrl.u32 %v4135, 16
      %v4458 = vrot.slane %v4456, 3
      %v4459 = vshll.u32 %v4135, 16
      %v4461 = vrot.slane %v4459, 4
      %v4462 = vor.u32 %v4458, %v4461
      %v4463 = vsel %vm789, %v4454, %v4462
      %v4465 = vshrl.u32 %v3905, 16
      %v4467 = vrot.slane %v4465, 3
      %v4468 = vshll.u32 %v3905, 16
      %v4470 = vrot.slane %v4468, 4
      %v4471 = vor.u32 %v4467, %v4470
      %v4473 = vshrl.u32 %v3906, 16
      %v4475 = vrot.slane %v4473, 3
      %v4476 = vshll.u32 %v3906, 16
      %v4478 = vrot.slane %v4476, 4
      %v4479 = vor.u32 %v4475, %v4478
      %v4480 = vsel %vm789, %v4471, %v4479
      %v4482 = vshrl.u32 %v4002, 16
      %v4484 = vrot.slane %v4482, 3
      %v4485 = vshll.u32 %v4002, 16
      %v4487 = vrot.slane %v4485, 4
      %v4488 = vor.u32 %v4484, %v4487
      %v4489 = vsel %vm789, %v4488, %v4488
      %v4491 = vshrl.u32 %v4136, 16
      %v4493 = vrot.slane %v4491, 3
      %v4494 = vshll.u32 %v4136, 16
      %v4496 = vrot.slane %v4494, 4
      %v4497 = vor.u32 %v4493, %v4496
      %v4499 = vshrl.u32 %v4138, 16
      %v4501 = vrot.slane %v4499, 3
      %v4502 = vshll.u32 %v4138, 16
      %v4504 = vrot.slane %v4502, 4
      %v4505 = vor.u32 %v4501, %v4504
      %v4506 = vsel %vm789, %v4497, %v4505
      %v4508 = vshrl.u32 %v3907, 16
      %v4510 = vrot.slane %v4508, 3
      %v4511 = vshll.u32 %v3907, 16
      %v4513 = vrot.slane %v4511, 4
      %v4514 = vor.u32 %v4510, %v4513
      %v4516 = vshrl.u32 %v3908, 16
      %v4518 = vrot.slane %v4516, 3
      %v4519 = vshll.u32 %v3908, 16
      %v4521 = vrot.slane %v4519, 4
      %v4522 = vor.u32 %v4518, %v4521
      %v4523 = vsel %vm789, %v4514, %v4522
      %v4525 = vshrl.u32 %v4010, 16
      %v4527 = vrot.slane %v4525, 3
      %v4528 = vshll.u32 %v4010, 16
      %v4530 = vrot.slane %v4528, 4
      %v4531 = vor.u32 %v4527, %v4530
      %v4532 = vsel %vm789, %v4531, %v4531
      %v4534 = vshrl.u32 %v4139, 16
      %v4536 = vrot.slane %v4534, 3
      %v4537 = vshll.u32 %v4139, 16
      %v4539 = vrot.slane %v4537, 4
      %v4540 = vor.u32 %v4536, %v4539
      %v4542 = vshrl.u32 %v4141, 16
      %v4544 = vrot.slane %v4542, 3
      %v4545 = vshll.u32 %v4141, 16
      %v4547 = vrot.slane %v4545, 4
      %v4548 = vor.u32 %v4544, %v4547
      %v4549 = vsel %vm789, %v4540, %v4548
      %v4551 = vshrl.u32 %v3909, 16
      %v4553 = vrot.slane %v4551, 3
      %v4554 = vshll.u32 %v3909, 16
      %v4556 = vrot.slane %v4554, 4
      %v4557 = vor.u32 %v4553, %v4556
      %v4559 = vshrl.u32 %v3910, 16
      %v4561 = vrot.slane %v4559, 3
      %v4562 = vshll.u32 %v3910, 16
      %v4564 = vrot.slane %v4562, 4
      %v4565 = vor.u32 %v4561, %v4564
      %v4566 = vsel %vm789, %v4557, %v4565
      %v4568 = vshrl.u32 %v4018, 16
      %v4570 = vrot.slane %v4568, 3
      %v4571 = vshll.u32 %v4018, 16
      %v4573 = vrot.slane %v4571, 4
      %v4574 = vor.u32 %v4570, %v4573
      %v4575 = vsel %vm789, %v4574, %v4574
      %v4577 = vshrl.u32 %v4142, 16
      %v4579 = vrot.slane %v4577, 3
      %v4580 = vshll.u32 %v4142, 16
      %v4582 = vrot.slane %v4580, 4
      %v4583 = vor.u32 %v4579, %v4582
      %v4585 = vshrl.u32 %v4144, 16
      %v4587 = vrot.slane %v4585, 3
      %v4588 = vshll.u32 %v4144, 16
      %v4590 = vrot.slane %v4588, 4
      %v4591 = vor.u32 %v4587, %v4590
      %v4592 = vsel %vm789, %v4583, %v4591
      %v4594 = vshrl.u32 %v3911, 16
      %v4596 = vrot.slane %v4594, 3
      %v4597 = vshll.u32 %v3911, 16
      %v4599 = vrot.slane %v4597, 4
      %v4600 = vor.u32 %v4596, %v4599
      %v4602 = vshrl.u32 %v3912, 16
      %v4604 = vrot.slane %v4602, 3
      %v4605 = vshll.u32 %v3912, 16
      %v4607 = vrot.slane %v4605, 4
      %v4608 = vor.u32 %v4604, %v4607
      %v4609 = vsel %vm789, %v4600, %v4608
      %v4611 = vshrl.u32 %v4026, 16
      %v4613 = vrot.slane %v4611, 3
      %v4614 = vshll.u32 %v4026, 16
      %v4616 = vrot.slane %v4614, 4
      %v4617 = vor.u32 %v4613, %v4616
      %v4618 = vsel %vm789, %v4617, %v4617
      %v4620 = vshrl.u32 %v4145, 16
      %v4622 = vrot.slane %v4620, 3
      %v4623 = vshll.u32 %v4145, 16
      %v4625 = vrot.slane %v4623, 4
      %v4626 = vor.u32 %v4622, %v4625
      %v4628 = vshrl.u32 %v4147, 16
      %v4630 = vrot.slane %v4628, 3
      %v4631 = vshll.u32 %v4147, 16
      %v4633 = vrot.slane %v4631, 4
      %v4634 = vor.u32 %v4630, %v4633
      %v4635 = vsel %vm789, %v4626, %v4634
      %v4637 = vshrl.u32 %v3913, 16
      %v4639 = vrot.slane %v4637, 3
      %v4640 = vshll.u32 %v3913, 16
      %v4642 = vrot.slane %v4640, 4
      %v4643 = vor.u32 %v4639, %v4642
      %v4645 = vshrl.u32 %v3914, 16
      %v4647 = vrot.slane %v4645, 3
      %v4648 = vshll.u32 %v3914, 16
      %v4650 = vrot.slane %v4648, 4
      %v4651 = vor.u32 %v4647, %v4650
      %v4652 = vsel %vm789, %v4643, %v4651
      %v4654 = vshrl.u32 %v4034, 16
      %v4656 = vrot.slane %v4654, 3
      %v4657 = vshll.u32 %v4034, 16
      %v4659 = vrot.slane %v4657, 4
      %v4660 = vor.u32 %v4656, %v4659
      %v4661 = vsel %vm789, %v4660, %v4660
      %v4663 = vshrl.u32 %v4148, 16
      %v4665 = vrot.slane %v4663, 3
      %v4666 = vshll.u32 %v4148, 16
      %v4668 = vrot.slane %v4666, 4
      %v4669 = vor.u32 %v4665, %v4668
      %v4671 = vshrl.u32 %v4150, 16
      %v4673 = vrot.slane %v4671, 3
      %v4674 = vshll.u32 %v4150, 16
      %v4676 = vrot.slane %v4674, 4
      %v4677 = vor.u32 %v4673, %v4676
      %v4678 = vsel %vm789, %v4669, %v4677
      %v4680 = vshrl.u32 %v3915, 16
      %v4682 = vrot.slane %v4680, 3
      %v4683 = vshll.u32 %v3915, 16
      %v4685 = vrot.slane %v4683, 4
      %v4686 = vor.u32 %v4682, %v4685
      %v4688 = vshrl.u32 %v3916, 16
      %v4690 = vrot.slane %v4688, 3
      %v4691 = vshll.u32 %v3916, 16
      %v4693 = vrot.slane %v4691, 4
      %v4694 = vor.u32 %v4690, %v4693
      %v4695 = vsel %vm789, %v4686, %v4694
      %v4697 = vshrl.u32 %v4042, 16
      %v4699 = vrot.slane %v4697, 3
      %v4700 = vshll.u32 %v4042, 16
      %v4702 = vrot.slane %v4700, 4
      %v4703 = vor.u32 %v4699, %v4702
      %v4704 = vsel %vm789, %v4703, %v4703
      %v4706 = vshrl.u32 %v4151, 16
      %v4708 = vrot.slane %v4706, 3
      %v4709 = vshll.u32 %v4151, 16
      %v4711 = vrot.slane %v4709, 4
      %v4712 = vor.u32 %v4708, %v4711
      %v4714 = vshrl.u32 %v4153, 16
      %v4716 = vrot.slane %v4714, 3
      %v4717 = vshll.u32 %v4153, 16
      %v4719 = vrot.slane %v4717, 4
      %v4720 = vor.u32 %v4716, %v4719
      %v4721 = vsel %vm789, %v4712, %v4720
      %v4723 = vshrl.u32 %v3917, 16
      %v4725 = vrot.slane %v4723, 3
      %v4726 = vshll.u32 %v3917, 16
      %v4728 = vrot.slane %v4726, 4
      %v4729 = vor.u32 %v4725, %v4728
      %v4731 = vshrl.u32 %v3918, 16
      %v4733 = vrot.slane %v4731, 3
      %v4734 = vshll.u32 %v3918, 16
      %v4736 = vrot.slane %v4734, 4
      %v4737 = vor.u32 %v4733, %v4736
      %v4738 = vsel %vm789, %v4729, %v4737
      %v4740 = vshrl.u32 %v4050, 16
      %v4742 = vrot.slane %v4740, 3
      %v4743 = vshll.u32 %v4050, 16
      %v4745 = vrot.slane %v4743, 4
      %v4746 = vor.u32 %v4742, %v4745
      %v4747 = vsel %vm789, %v4746, %v4746
      %v4749 = vshrl.u32 %v4154, 16
      %v4751 = vrot.slane %v4749, 3
      %v4752 = vshll.u32 %v4154, 16
      %v4754 = vrot.slane %v4752, 4
      %v4755 = vor.u32 %v4751, %v4754
      %v4757 = vshrl.u32 %v4156, 16
      %v4759 = vrot.slane %v4757, 3
      %v4760 = vshll.u32 %v4156, 16
      %v4762 = vrot.slane %v4760, 4
      %v4763 = vor.u32 %v4759, %v4762
      %v4764 = vsel %vm789, %v4755, %v4763
      %v4766 = vshrl.u32 %v3919, 16
      %v4768 = vrot.slane %v4766, 3
      %v4769 = vshll.u32 %v3919, 16
      %v4771 = vrot.slane %v4769, 4
      %v4772 = vor.u32 %v4768, %v4771
      %v4774 = vshrl.u32 %v3920, 16
      %v4776 = vrot.slane %v4774, 3
      %v4777 = vshll.u32 %v3920, 16
      %v4779 = vrot.slane %v4777, 4
      %v4780 = vor.u32 %v4776, %v4779
      %v4781 = vsel %vm789, %v4772, %v4780
      %v4783 = vshrl.u32 %v4058, 16
      %v4785 = vrot.slane %v4783, 3
      %v4786 = vshll.u32 %v4058, 16
      %v4788 = vrot.slane %v4786, 4
      %v4789 = vor.u32 %v4785, %v4788
      %v4790 = vsel %vm789, %v4789, %v4789
      %v4792 = vshrl.u32 %v4157, 16
      %v4794 = vrot.slane %v4792, 3
      %v4795 = vshll.u32 %v4157, 16
      %v4797 = vrot.slane %v4795, 4
      %v4798 = vor.u32 %v4794, %v4797
      %v4800 = vshrl.u32 %v4159, 16
      %v4802 = vrot.slane %v4800, 3
      %v4803 = vshll.u32 %v4159, 16
      %v4805 = vrot.slane %v4803, 4
      %v4806 = vor.u32 %v4802, %v4805
      %v4807 = vsel %vm789, %v4798, %v4806
      %v4809 = vshrl.u32 %v3921, 16
      %v4811 = vrot.slane %v4809, 3
      %v4812 = vshll.u32 %v3921, 16
      %v4814 = vrot.slane %v4812, 4
      %v4815 = vor.u32 %v4811, %v4814
      %v4817 = vshrl.u32 %v3922, 16
      %v4819 = vrot.slane %v4817, 3
      %v4820 = vshll.u32 %v3922, 16
      %v4822 = vrot.slane %v4820, 4
      %v4823 = vor.u32 %v4819, %v4822
      %v4824 = vsel %vm789, %v4815, %v4823
      %v4826 = vshrl.u32 %v4066, 16
      %v4828 = vrot.slane %v4826, 3
      %v4829 = vshll.u32 %v4066, 16
      %v4831 = vrot.slane %v4829, 4
      %v4832 = vor.u32 %v4828, %v4831
      %v4833 = vsel %vm789, %v4832, %v4832
      %v4835 = vshrl.u32 %v4160, 16
      %v4837 = vrot.slane %v4835, 3
      %v4838 = vshll.u32 %v4160, 16
      %v4840 = vrot.slane %v4838, 4
      %v4841 = vor.u32 %v4837, %v4840
      %v4843 = vshrl.u32 %v4162, 16
      %v4845 = vrot.slane %v4843, 3
      %v4846 = vshll.u32 %v4162, 16
      %v4848 = vrot.slane %v4846, 4
      %v4849 = vor.u32 %v4845, %v4848
      %v4850 = vsel %vm789, %v4841, %v4849
      %s4899 = scalar_lea.vmem %s1, 384
      %v4900 = vld [vmem:[%s4899] sm:$0xf]
      %v4901 = vld [vmem:[%s4899 + $0x4] sm:$0xf]
      %v4902 = vld [vmem:[%s4899 + $0x8] sm:$0xf]
      %v4903 = vld [vmem:[%s4899 + $0xc] sm:$0xf]
      %v4904 = vld [vmem:[%s4899 + $0x10] sm:$0xf]
      %v4905 = vld [vmem:[%s4899 + $0x14] sm:$0xf]
      %v4906 = vld [vmem:[%s4899 + $0x18] sm:$0xf]
      %v4907 = vld [vmem:[%s4899 + $0x1c] sm:$0xf]
      %v4908 = vld [vmem:[%s4899 + $0x20] sm:$0xf]
      %v4909 = vld [vmem:[%s4899 + $0x24] sm:$0xf]
      %v4910 = vld [vmem:[%s4899 + $0x28] sm:$0xf]
      %v4911 = vld [vmem:[%s4899 + $0x2c] sm:$0xf]
      %v4912 = vld [vmem:[%s4899 + $0x30] sm:$0xf]
      %v4913 = vld [vmem:[%s4899 + $0x34] sm:$0xf]
      %v4914 = vld [vmem:[%s4899 + $0x38] sm:$0xf]
      %v4915 = vld [vmem:[%s4899 + $0x3c] sm:$0xf]
      %v4916 = vld [vmem:[%s4899 + $0x40] sm:$0xf]
      %v4917 = vld [vmem:[%s4899 + $0x44] sm:$0xf]
      %v4918 = vld [vmem:[%s4899 + $0x48] sm:$0xf]
      %v4919 = vld [vmem:[%s4899 + $0x4c] sm:$0xf]
      %v4920 = vld [vmem:[%s4899 + $0x50] sm:$0xf]
      %v4921 = vld [vmem:[%s4899 + $0x54] sm:$0xf]
      %v4922 = vld [vmem:[%s4899 + $0x58] sm:$0xf]
      %v4923 = vld [vmem:[%s4899 + $0x5c] sm:$0xf]
      %v4924 = vld [vmem:[%s4899 + $0x60] sm:$0xf]
      %v4925 = vld [vmem:[%s4899 + $0x64] sm:$0xf]
      %v4926 = vld [vmem:[%s4899 + $0x68] sm:$0xf]
      %v4927 = vld [vmem:[%s4899 + $0x6c] sm:$0xf]
      %v4928 = vld [vmem:[%s4899 + $0x70] sm:$0xf]
      %v4929 = vld [vmem:[%s4899 + $0x74] sm:$0xf]
      %v4930 = vld [vmem:[%s4899 + $0x78] sm:$0xf]
      %v4931 = vld [vmem:[%s4899 + $0x7c] sm:$0xf]
      %v4932 = vld [vmem:[%s4899 + $0x80] sm:$0xf]
      %v4933 = vld [vmem:[%s4899 + $0x84] sm:$0xf]
      %v4934 = vld [vmem:[%s4899 + $0x88] sm:$0xf]
      %v4935 = vld [vmem:[%s4899 + $0x8c] sm:$0xf]
      %v4936 = vld [vmem:[%s4899 + $0x90] sm:$0xf]
      %v4937 = vld [vmem:[%s4899 + $0x94] sm:$0xf]
      %v4938 = vld [vmem:[%s4899 + $0x98] sm:$0xf]
      %v4939 = vld [vmem:[%s4899 + $0x9c] sm:$0xf]
      %v4940 = vld [vmem:[%s4899 + $0xa0] sm:$0xf]
      %v4941 = vld [vmem:[%s4899 + $0xa4] sm:$0xf]
      %v4942 = vld [vmem:[%s4899 + $0xa8] sm:$0xf]
      %v4943 = vld [vmem:[%s4899 + $0xac] sm:$0xf]
      %v4944 = vld [vmem:[%s4899 + $0xb0] sm:$0xf]
      %v4945 = vld [vmem:[%s4899 + $0xb4] sm:$0xf]
      %v4946 = vld [vmem:[%s4899 + $0xb8] sm:$0xf]
      %v4947 = vld [vmem:[%s4899 + $0xbc] sm:$0xf]
      %v4996 = vunpack.c.l.b16 %v4900
      %v4997 = vunpack.c.l.b16 %v4901
      %v4998 = vunpack.c.l.b16 %v4902
      %v4999 = vunpack.c.l.b16 %v4903
      %v5000 = vunpack.c.l.b16 %v4904
      %v5001 = vunpack.c.l.b16 %v4905
      %v5002 = vunpack.c.l.b16 %v4906
      %v5003 = vunpack.c.l.b16 %v4907
      %v5004 = vunpack.c.l.b16 %v4908
      %v5005 = vunpack.c.l.b16 %v4909
      %v5006 = vunpack.c.l.b16 %v4910
      %v5007 = vunpack.c.l.b16 %v4911
      %v5008 = vunpack.c.l.b16 %v4912
      %v5009 = vunpack.c.l.b16 %v4913
      %v5010 = vunpack.c.l.b16 %v4914
      %v5011 = vunpack.c.l.b16 %v4915
      %v5012 = vunpack.c.l.b16 %v4916
      %v5013 = vunpack.c.l.b16 %v4917
      %v5014 = vunpack.c.l.b16 %v4918
      %v5015 = vunpack.c.l.b16 %v4919
      %v5016 = vunpack.c.l.b16 %v4920
      %v5017 = vunpack.c.l.b16 %v4921
      %v5018 = vunpack.c.l.b16 %v4922
      %v5019 = vunpack.c.l.b16 %v4923
      %v5020 = vunpack.c.l.b16 %v4924
      %v5021 = vunpack.c.l.b16 %v4925
      %v5022 = vunpack.c.l.b16 %v4926
      %v5023 = vunpack.c.l.b16 %v4927
      %v5024 = vunpack.c.l.b16 %v4928
      %v5025 = vunpack.c.l.b16 %v4929
      %v5026 = vunpack.c.l.b16 %v4930
      %v5027 = vunpack.c.l.b16 %v4931
      %v5028 = vunpack.c.l.b16 %v4932
      %v5029 = vunpack.c.l.b16 %v4933
      %v5030 = vunpack.c.l.b16 %v4934
      %v5031 = vunpack.c.l.b16 %v4935
      %v5032 = vunpack.c.l.b16 %v4936
      %v5033 = vunpack.c.l.b16 %v4937
      %v5034 = vunpack.c.l.b16 %v4938
      %v5035 = vunpack.c.l.b16 %v4939
      %v5036 = vunpack.c.l.b16 %v4940
      %v5037 = vunpack.c.l.b16 %v4941
      %v5038 = vunpack.c.l.b16 %v4942
      %v5039 = vunpack.c.l.b16 %v4943
      %v5040 = vunpack.c.l.b16 %v4944
      %v5041 = vunpack.c.l.b16 %v4945
      %v5042 = vunpack.c.l.b16 %v4946
      %v5043 = vunpack.c.l.b16 %v4947
      %v5044 = vpack.c.b16 %v4997, %v4996
      %v5045 = vpack.c.b16 %v4999, %v4998
      %v5046 = vpack.c.b16 %v5001, %v5000
      %v5047 = vpack.c.b16 %v5003, %v5002
      %v5048 = vpack.c.b16 %v5005, %v5004
      %v5049 = vpack.c.b16 %v5007, %v5006
      %v5050 = vpack.c.b16 %v5009, %v5008
      %v5051 = vpack.c.b16 %v5011, %v5010
      %v5052 = vpack.c.b16 %v5013, %v5012
      %v5053 = vpack.c.b16 %v5015, %v5014
      %v5054 = vpack.c.b16 %v5017, %v5016
      %v5055 = vpack.c.b16 %v5019, %v5018
      %v5056 = vpack.c.b16 %v5021, %v5020
      %v5057 = vpack.c.b16 %v5023, %v5022
      %v5058 = vpack.c.b16 %v5025, %v5024
      %v5059 = vpack.c.b16 %v5027, %v5026
      %v5060 = vpack.c.b16 %v5029, %v5028
      %v5061 = vpack.c.b16 %v5031, %v5030
      %v5062 = vpack.c.b16 %v5033, %v5032
      %v5063 = vpack.c.b16 %v5035, %v5034
      %v5064 = vpack.c.b16 %v5037, %v5036
      %v5065 = vpack.c.b16 %v5039, %v5038
      %v5066 = vpack.c.b16 %v5041, %v5040
      %v5067 = vpack.c.b16 %v5043, %v5042
      %5092 = vmatprep.subr.bf16.mxu0 0
      %5093 = vmatpush1.bf16.msra.mxu0 %v5044
      %5094 = vmatprep.subr.bf16.mxu0 0
      %5095 = vmatpush1.bf16.msra.mxu0 %v5045
      %5096 = vmatprep.subr.bf16.mxu0 0
      %5097 = vmatpush1.bf16.msra.mxu0 %v5046
      %5098 = vmatprep.subr.bf16.mxu0 0
      %5099 = vmatpush1.bf16.msra.mxu0 %v5047
      %5100 = vmatprep.subr.bf16.mxu0 0
      %5101 = vmatpush1.bf16.msra.mxu0 %v5048
      %5102 = vmatprep.subr.bf16.mxu0 0
      %5103 = vmatpush1.bf16.msra.mxu0 %v5049
      %5104 = vmatprep.subr.bf16.mxu0 0
      %5105 = vmatpush1.bf16.msra.mxu0 %v5050
      %5106 = vmatprep.subr.bf16.mxu0 0
      %5107 = vmatpush1.bf16.msra.mxu0 %v5051
      %5108 = vmatprep.subr.bf16.mxu0 0
      %5109 = vmatpush1.bf16.msra.mxu0 %v5052
      %5110 = vmatprep.subr.bf16.mxu0 0
      %5111 = vmatpush1.bf16.msra.mxu0 %v5053
      %5112 = vmatprep.subr.bf16.mxu0 0
      %5113 = vmatpush1.bf16.msra.mxu0 %v5054
      %5114 = vmatprep.subr.bf16.mxu0 0
      %5115 = vmatpush1.bf16.msra.mxu0 %v5055
      %5116 = vmatprep.subr.bf16.mxu0 0
      %5117 = vmatpush1.bf16.msra.mxu0 %v5056
      %5118 = vmatprep.subr.bf16.mxu0 0
      %5119 = vmatpush1.bf16.msra.mxu0 %v5057
      %5120 = vmatprep.subr.bf16.mxu0 0
      %5121 = vmatpush1.bf16.msra.mxu0 %v5058
      %5122 = vmatprep.subr.bf16.mxu0 0
      %5123 = vmatpush1.bf16.msra.mxu0 %v5059
      %5124 = vmatprep.mubr.bf16.mxu0 %v4188
      %5125 = vmatmul.mubr.bf16.gmra.mrb[0].mxu0 %v4179
      %v5126 = vpop.f32.mrb[0].mxu0
      %v5127 = vadd.f32 0.0, %v5126
      %v5128 = vpop.f32.mrb[0].mxu0
      %v5129 = vpop.f32.mrb[0].mxu0
      %v5130 = vadd.f32 0.0, %v5129
      %v5131 = vpop.f32.mrb[0].mxu0
      %5132 = vmatprep.mubr.bf16.mxu0 %v4231
      %5133 = vmatmul.mubr.bf16.gmra.mrb[0].mxu0 %v4222
      %v5134 = vpop.f32.mrb[0].mxu0
      %v5135 = vadd.f32 0.0, %v5134
      %v5136 = vpop.f32.mrb[0].mxu0
      %v5137 = vpop.f32.mrb[0].mxu0
      %v5138 = vadd.f32 0.0, %v5137
      %v5139 = vpop.f32.mrb[0].mxu0
      %5140 = vmatprep.mubr.bf16.mxu0 %v4274
      %5141 = vmatmul.mubr.bf16.gmra.mrb[0].mxu0 %v4265
      %v5142 = vpop.f32.mrb[0].mxu0
      %v5143 = vadd.f32 0.0, %v5142
      %v5144 = vpop.f32.mrb[0].mxu0
      %v5145 = vpop.f32.mrb[0].mxu0
      %v5146 = vadd.f32 0.0, %v5145
      %v5147 = vpop.f32.mrb[0].mxu0
      %5148 = vmatprep.mubr.bf16.mxu0 %v4317
      %5149 = vmatmul.mubr.bf16.gmra.mrb[0].mxu0 %v4308
      %v5150 = vpop.f32.mrb[0].mxu0
      %v5151 = vadd.f32 0.0, %v5150
      %v5152 = vpop.f32.mrb[0].mxu0
      %v5153 = vpop.f32.mrb[0].mxu0
      %v5154 = vadd.f32 0.0, %v5153
      %v5155 = vpop.f32.mrb[0].mxu0
      %5156 = vmatprep.mubr.bf16.mxu0 %v4360
      %5157 = vmatmul.mubr.bf16.gmra.mrb[0].mxu0 %v4351
      %v5158 = vpop.f32.mrb[0].mxu0
      %v5159 = vadd.f32 0.0, %v5158
      %v5160 = vpop.f32.mrb[0].mxu0
      %v5161 = vpop.f32.mrb[0].mxu0
      %v5162 = vadd.f32 0.0, %v5161
      %v5163 = vpop.f32.mrb[0].mxu0
      %5164 = vmatprep.mubr.bf16.mxu0 %v4403
      %5165 = vmatmul.mubr.bf16.gmra.mrb[0].mxu0 %v4394
      %v5166 = vpop.f32.mrb[0].mxu0
      %v5167 = vadd.f32 0.0, %v5166
      %v5168 = vpop.f32.mrb[0].mxu0
      %v5169 = vpop.f32.mrb[0].mxu0
      %v5170 = vadd.f32 0.0, %v5169
      %v5171 = vpop.f32.mrb[0].mxu0
      %5172 = vmatprep.mubr.bf16.mxu0 %v4446
      %5173 = vmatmul.mubr.bf16.gmra.mrb[0].mxu0 %v4437
      %v5174 = vpop.f32.mrb[0].mxu0
      %v5175 = vadd.f32 0.0, %v5174
      %v5176 = vpop.f32.mrb[0].mxu0
      %v5177 = vpop.f32.mrb[0].mxu0
      %v5178 = vadd.f32 0.0, %v5177
      %v5179 = vpop.f32.mrb[0].mxu0
      %5180 = vmatprep.mubr.bf16.mxu0 %v4489
      %5181 = vmatmul.mubr.bf16.gmra.mrb[0].mxu0 %v4480
      %v5182 = vpop.f32.mrb[0].mxu0
      %v5183 = vadd.f32 0.0, %v5182
      %v5184 = vpop.f32.mrb[0].mxu0
      %v5185 = vpop.f32.mrb[0].mxu0
      %v5186 = vadd.f32 0.0, %v5185
      %v5187 = vpop.f32.mrb[0].mxu0
      %5188 = vmatprep.mubr.bf16.mxu0 %v4532
      %5189 = vmatmul.mubr.bf16.gmra.mrb[0].mxu0 %v4523
      %v5190 = vpop.f32.mrb[0].mxu0
      %v5191 = vadd.f32 0.0, %v5190
      %v5192 = vpop.f32.mrb[0].mxu0
      %v5193 = vpop.f32.mrb[0].mxu0
      %v5194 = vadd.f32 0.0, %v5193
      %v5195 = vpop.f32.mrb[0].mxu0
      %5196 = vmatprep.mubr.bf16.mxu0 %v4575
      %5197 = vmatmul.mubr.bf16.gmra.mrb[0].mxu0 %v4566
      %v5198 = vpop.f32.mrb[0].mxu0
      %v5199 = vadd.f32 0.0, %v5198
      %v5200 = vpop.f32.mrb[0].mxu0
      %v5201 = vpop.f32.mrb[0].mxu0
      %v5202 = vadd.f32 0.0, %v5201
      %v5203 = vpop.f32.mrb[0].mxu0
      %5204 = vmatprep.mubr.bf16.mxu0 %v4618
      %5205 = vmatmul.mubr.bf16.gmra.mrb[0].mxu0 %v4609
      %v5206 = vpop.f32.mrb[0].mxu0
      %v5207 = vadd.f32 0.0, %v5206
      %v5208 = vpop.f32.mrb[0].mxu0
      %v5209 = vpop.f32.mrb[0].mxu0
      %v5210 = vadd.f32 0.0, %v5209
      %v5211 = vpop.f32.mrb[0].mxu0
      %5212 = vmatprep.mubr.bf16.mxu0 %v4661
      %5213 = vmatmul.mubr.bf16.gmra.mrb[0].mxu0 %v4652
      %v5214 = vpop.f32.mrb[0].mxu0
      %v5215 = vadd.f32 0.0, %v5214
      %v5216 = vpop.f32.mrb[0].mxu0
      %v5217 = vpop.f32.mrb[0].mxu0
      %v5218 = vadd.f32 0.0, %v5217
      %v5219 = vpop.f32.mrb[0].mxu0
      %5220 = vmatprep.mubr.bf16.mxu0 %v4704
      %5221 = vmatmul.mubr.bf16.gmra.mrb[0].mxu0 %v4695
      %v5222 = vpop.f32.mrb[0].mxu0
      %v5223 = vadd.f32 0.0, %v5222
      %v5224 = vpop.f32.mrb[0].mxu0
      %v5225 = vpop.f32.mrb[0].mxu0
      %v5226 = vadd.f32 0.0, %v5225
      %v5227 = vpop.f32.mrb[0].mxu0
      %5228 = vmatprep.mubr.bf16.mxu0 %v4747
      %5229 = vmatmul.mubr.bf16.gmra.mrb[0].mxu0 %v4738
      %v5230 = vpop.f32.mrb[0].mxu0
      %v5231 = vadd.f32 0.0, %v5230
      %v5232 = vpop.f32.mrb[0].mxu0
      %v5233 = vpop.f32.mrb[0].mxu0
      %v5234 = vadd.f32 0.0, %v5233
      %v5235 = vpop.f32.mrb[0].mxu0
      %5236 = vmatprep.mubr.bf16.mxu0 %v4790
      %5237 = vmatmul.mubr.bf16.gmra.mrb[0].mxu0 %v4781
      %v5238 = vpop.f32.mrb[0].mxu0
      %v5239 = vadd.f32 0.0, %v5238
      %v5240 = vpop.f32.mrb[0].mxu0
      %v5241 = vpop.f32.mrb[0].mxu0
      %v5242 = vadd.f32 0.0, %v5241
      %v5243 = vpop.f32.mrb[0].mxu0
      %5244 = vmatprep.mubr.bf16.mxu0 %v4833
      %5245 = vmatmul.mubr.bf16.gmra.mrb[0].mxu0 %v4824
      %v5246 = vpop.f32.mrb[0].mxu0
      %v5247 = vadd.f32 0.0, %v5246
      %v5248 = vpop.f32.mrb[0].mxu0
      %v5249 = vpop.f32.mrb[0].mxu0
      %v5250 = vadd.f32 0.0, %v5249
      %v5251 = vpop.f32.mrb[0].mxu0
      %5252 = vdwg.mxu0
      %5253 = vmatprep.subr.bf16.mxu0 0
      %5254 = vmatpush1.bf16.msra.mxu0 %v5060
      %5255 = vmatprep.subr.bf16.mxu0 0
      %5256 = vmatpush1.bf16.msra.mxu0 %v5061
      %5257 = vmatprep.subr.bf16.mxu0 0
      %5258 = vmatpush1.bf16.msra.mxu0 %v5062
      %5259 = vmatprep.subr.bf16.mxu0 0
      %5260 = vmatpush1.bf16.msra.mxu0 %v5063
      %5261 = vmatprep.subr.bf16.mxu0 0
      %5262 = vmatpush1.bf16.msra.mxu0 %v5064
      %5263 = vmatprep.subr.bf16.mxu0 0
      %5264 = vmatpush1.bf16.msra.mxu0 %v5065
      %5265 = vmatprep.subr.bf16.mxu0 0
      %5266 = vmatpush1.bf16.msra.mxu0 %v5066
      %5267 = vmatprep.subr.bf16.mxu0 0
      %5268 = vmatpush1.bf16.msra.mxu0 %v5067
      %5269 = vmatprep.subr.bf16.mxu0 0
      %5270 = vmatpush1.bf16.msra.mxu0 0
      %5271 = vmatprep.subr.bf16.mxu0 0
      %5272 = vmatpush1.bf16.msra.mxu0 0
      %5273 = vmatprep.subr.bf16.mxu0 0
      %5274 = vmatpush1.bf16.msra.mxu0 0
      %5275 = vmatprep.subr.bf16.mxu0 0
      %5276 = vmatpush1.bf16.msra.mxu0 0
      %5277 = vmatprep.subr.bf16.mxu0 0
      %5278 = vmatpush1.bf16.msra.mxu0 0
      %5279 = vmatprep.subr.bf16.mxu0 0
      %5280 = vmatpush1.bf16.msra.mxu0 0
      %5281 = vmatprep.subr.bf16.mxu0 0
      %5282 = vmatpush1.bf16.msra.mxu0 0
      %5283 = vmatprep.subr.bf16.mxu0 0
      %5284 = vmatpush1.bf16.msra.mxu0 0
      %5285 = vmatprep.mubr.bf16.mxu0 0
      %5286 = vmatmul.mubr.bf16.gmra.mrb[0].mxu0 %v4205
      %v5287 = vpop.f32.mrb[0].mxu0
      %v5288 = vadd.f32 %v5127, %v5287
      %v5289 = vpop.f32.mrb[0].mxu0
      %v5290 = vpop.f32.mrb[0].mxu0
      %v5291 = vadd.f32 %v5130, %v5290
      %v5292 = vpop.f32.mrb[0].mxu0
      %5293 = vmatprep.mubr.bf16.mxu0 0
      %5294 = vmatmul.mubr.bf16.gmra.mrb[0].mxu0 %v4248
      %v5295 = vpop.f32.mrb[0].mxu0
      %v5296 = vadd.f32 %v5135, %v5295
      %v5297 = vpop.f32.mrb[0].mxu0
      %v5298 = vpop.f32.mrb[0].mxu0
      %v5299 = vadd.f32 %v5138, %v5298
      %v5300 = vpop.f32.mrb[0].mxu0
      %5301 = vmatprep.mubr.bf16.mxu0 0
      %5302 = vmatmul.mubr.bf16.gmra.mrb[0].mxu0 %v4291
      %v5303 = vpop.f32.mrb[0].mxu0
      %v5304 = vadd.f32 %v5143, %v5303
      %v5305 = vpop.f32.mrb[0].mxu0
      %v5306 = vpop.f32.mrb[0].mxu0
      %v5307 = vadd.f32 %v5146, %v5306
      %v5308 = vpop.f32.mrb[0].mxu0
      %5309 = vmatprep.mubr.bf16.mxu0 0
      %5310 = vmatmul.mubr.bf16.gmra.mrb[0].mxu0 %v4334
      %v5311 = vpop.f32.mrb[0].mxu0
      %v5312 = vadd.f32 %v5151, %v5311
      %v5313 = vpop.f32.mrb[0].mxu0
      %v5314 = vpop.f32.mrb[0].mxu0
      %v5315 = vadd.f32 %v5154, %v5314
      %v5316 = vpop.f32.mrb[0].mxu0
      %5317 = vmatprep.mubr.bf16.mxu0 0
      %5318 = vmatmul.mubr.bf16.gmra.mrb[0].mxu0 %v4377
      %v5319 = vpop.f32.mrb[0].mxu0
      %v5320 = vadd.f32 %v5159, %v5319
      %v5321 = vpop.f32.mrb[0].mxu0
      %v5322 = vpop.f32.mrb[0].mxu0
      %v5323 = vadd.f32 %v5162, %v5322
      %v5324 = vpop.f32.mrb[0].mxu0
      %5325 = vmatprep.mubr.bf16.mxu0 0
      %5326 = vmatmul.mubr.bf16.gmra.mrb[0].mxu0 %v4420
      %v5327 = vpop.f32.mrb[0].mxu0
      %v5328 = vadd.f32 %v5167, %v5327
      %v5329 = vpop.f32.mrb[0].mxu0
      %v5330 = vpop.f32.mrb[0].mxu0
      %v5331 = vadd.f32 %v5170, %v5330
      %v5332 = vpop.f32.mrb[0].mxu0
      %5333 = vmatprep.mubr.bf16.mxu0 0
      %5334 = vmatmul.mubr.bf16.gmra.mrb[0].mxu0 %v4463
      %v5335 = vpop.f32.mrb[0].mxu0
      %v5336 = vadd.f32 %v5175, %v5335
      %v5337 = vpop.f32.mrb[0].mxu0
      %v5338 = vpop.f32.mrb[0].mxu0
      %v5339 = vadd.f32 %v5178, %v5338
      %v5340 = vpop.f32.mrb[0].mxu0
      %5341 = vmatprep.mubr.bf16.mxu0 0
      %5342 = vmatmul.mubr.bf16.gmra.mrb[0].mxu0 %v4506
      %v5343 = vpop.f32.mrb[0].mxu0
      %v5344 = vadd.f32 %v5183, %v5343
      %v5345 = vpop.f32.mrb[0].mxu0
      %v5346 = vpop.f32.mrb[0].mxu0
      %v5347 = vadd.f32 %v5186, %v5346
      %v5348 = vpop.f32.mrb[0].mxu0
      %5349 = vmatprep.mubr.bf16.mxu0 0
      %5350 = vmatmul.mubr.bf16.gmra.mrb[0].mxu0 %v4549
      %v5351 = vpop.f32.mrb[0].mxu0
      %v5352 = vadd.f32 %v5191, %v5351
      %v5353 = vpop.f32.mrb[0].mxu0
      %v5354 = vpop.f32.mrb[0].mxu0
      %v5355 = vadd.f32 %v5194, %v5354
      %v5356 = vpop.f32.mrb[0].mxu0
      %5357 = vmatprep.mubr.bf16.mxu0 0
      %5358 = vmatmul.mubr.bf16.gmra.mrb[0].mxu0 %v4592
      %v5359 = vpop.f32.mrb[0].mxu0
      %v5360 = vadd.f32 %v5199, %v5359
      %v5361 = vpop.f32.mrb[0].mxu0
      %v5362 = vpop.f32.mrb[0].mxu0
      %v5363 = vadd.f32 %v5202, %v5362
      %v5364 = vpop.f32.mrb[0].mxu0
      %5365 = vmatprep.mubr.bf16.mxu0 0
      %5366 = vmatmul.mubr.bf16.gmra.mrb[0].mxu0 %v4635
      %v5367 = vpop.f32.mrb[0].mxu0
      %v5368 = vadd.f32 %v5207, %v5367
      %v5369 = vpop.f32.mrb[0].mxu0
      %v5370 = vpop.f32.mrb[0].mxu0
      %v5371 = vadd.f32 %v5210, %v5370
      %v5372 = vpop.f32.mrb[0].mxu0
      %5373 = vmatprep.mubr.bf16.mxu0 0
      %5374 = vmatmul.mubr.bf16.gmra.mrb[0].mxu0 %v4678
      %v5375 = vpop.f32.mrb[0].mxu0
      %v5376 = vadd.f32 %v5215, %v5375
      %v5377 = vpop.f32.mrb[0].mxu0
      %v5378 = vpop.f32.mrb[0].mxu0
      %v5379 = vadd.f32 %v5218, %v5378
      %v5380 = vpop.f32.mrb[0].mxu0
      %5381 = vmatprep.mubr.bf16.mxu0 0
      %5382 = vmatmul.mubr.bf16.gmra.mrb[0].mxu0 %v4721
      %v5383 = vpop.f32.mrb[0].mxu0
      %v5384 = vadd.f32 %v5223, %v5383
      %v5385 = vpop.f32.mrb[0].mxu0
      %v5386 = vpop.f32.mrb[0].mxu0
      %v5387 = vadd.f32 %v5226, %v5386
      %v5388 = vpop.f32.mrb[0].mxu0
      %5389 = vmatprep.mubr.bf16.mxu0 0
      %5390 = vmatmul.mubr.bf16.gmra.mrb[0].mxu0 %v4764
      %v5391 = vpop.f32.mrb[0].mxu0
      %v5392 = vadd.f32 %v5231, %v5391
      %v5393 = vpop.f32.mrb[0].mxu0
      %v5394 = vpop.f32.mrb[0].mxu0
      %v5395 = vadd.f32 %v5234, %v5394
      %v5396 = vpop.f32.mrb[0].mxu0
      %5397 = vmatprep.mubr.bf16.mxu0 0
      %5398 = vmatmul.mubr.bf16.gmra.mrb[0].mxu0 %v4807
      %v5399 = vpop.f32.mrb[0].mxu0
      %v5400 = vadd.f32 %v5239, %v5399
      %v5401 = vpop.f32.mrb[0].mxu0
      %v5402 = vpop.f32.mrb[0].mxu0
      %v5403 = vadd.f32 %v5242, %v5402
      %v5404 = vpop.f32.mrb[0].mxu0
      %5405 = vmatprep.mubr.bf16.mxu0 0
      %5406 = vmatmul.mubr.bf16.gmra.mrb[0].mxu0 %v4850
      %v5407 = vpop.f32.mrb[0].mxu0
      %v5408 = vadd.f32 %v5247, %v5407
      %v5409 = vpop.f32.mrb[0].mxu0
      %v5410 = vpop.f32.mrb[0].mxu0
      %v5411 = vadd.f32 %v5250, %v5410
      %v5412 = vpop.f32.mrb[0].mxu0
      %5413 = vdwg.mxu0
      %v5414 = vadd.f32 %v3601, %v5288
      %v5415 = vadd.f32 %v3604, %v5291
      %v5416 = vadd.f32 %v3609, %v5296
      %v5417 = vadd.f32 %v3612, %v5299
      %v5418 = vadd.f32 %v3617, %v5304
      %v5419 = vadd.f32 %v3620, %v5307
      %v5420 = vadd.f32 %v3625, %v5312
      %v5421 = vadd.f32 %v3628, %v5315
      %v5422 = vadd.f32 %v3633, %v5320
      %v5423 = vadd.f32 %v3636, %v5323
      %v5424 = vadd.f32 %v3641, %v5328
      %v5425 = vadd.f32 %v3644, %v5331
      %v5426 = vadd.f32 %v3649, %v5336
      %v5427 = vadd.f32 %v3652, %v5339
      %v5428 = vadd.f32 %v3657, %v5344
      %v5429 = vadd.f32 %v3660, %v5347
      %v5430 = vadd.f32 %v3665, %v5352
      %v5431 = vadd.f32 %v3668, %v5355
      %v5432 = vadd.f32 %v3673, %v5360
      %v5433 = vadd.f32 %v3676, %v5363
      %v5434 = vadd.f32 %v3681, %v5368
      %v5435 = vadd.f32 %v3684, %v5371
      %v5436 = vadd.f32 %v3689, %v5376
      %v5437 = vadd.f32 %v3692, %v5379
      %v5438 = vadd.f32 %v3697, %v5384
      %v5439 = vadd.f32 %v3700, %v5387
      %v5440 = vadd.f32 %v3705, %v5392
      %v5441 = vadd.f32 %v3708, %v5395
      %v5442 = vadd.f32 %v3713, %v5400
      %v5443 = vadd.f32 %v3716, %v5403
      %v5444 = vadd.f32 %v3721, %v5408
      %v5445 = vadd.f32 %v3724, %v5411
      %v5446 = vld [vmem:[%s2] sm:$0x1]
      %v5448 = vlaneseq
      %v5449 = vshrl.u32 %v5448, 7
      %v5450 = vsub.s32 0, %v5449
      %v5451 = vrot.slane %v5446, %v5450
      %v5453 = vmul.f32 %v5414, %v5451
      %v5454 = vmul.f32 %v5415, %v5451
      %v5455 = vmul.f32 %v5416, %v5451
      %v5456 = vmul.f32 %v5417, %v5451
      %v5457 = vmul.f32 %v5418, %v5451
      %v5458 = vmul.f32 %v5419, %v5451
      %v5459 = vmul.f32 %v5420, %v5451
      %v5460 = vmul.f32 %v5421, %v5451
      %v5461 = vmul.f32 %v5422, %v5451
      %v5462 = vmul.f32 %v5423, %v5451
      %v5463 = vmul.f32 %v5424, %v5451
      %v5464 = vmul.f32 %v5425, %v5451
      %v5465 = vmul.f32 %v5426, %v5451
      %v5466 = vmul.f32 %v5427, %v5451
      %v5467 = vmul.f32 %v5428, %v5451
      %v5468 = vmul.f32 %v5429, %v5451
      %v5469 = vmul.f32 %v5430, %v5451
      %v5470 = vmul.f32 %v5431, %v5451
      %v5471 = vmul.f32 %v5432, %v5451
      %v5472 = vmul.f32 %v5433, %v5451
      %v5473 = vmul.f32 %v5434, %v5451
      %v5474 = vmul.f32 %v5435, %v5451
      %v5475 = vmul.f32 %v5436, %v5451
      %v5476 = vmul.f32 %v5437, %v5451
      %v5477 = vmul.f32 %v5438, %v5451
      %v5478 = vmul.f32 %v5439, %v5451
      %v5479 = vmul.f32 %v5440, %v5451
      %v5480 = vmul.f32 %v5441, %v5451
      %v5481 = vmul.f32 %v5442, %v5451
      %v5482 = vmul.f32 %v5443, %v5451
      %v5483 = vmul.f32 %v5444, %v5451
      %v5484 = vmul.f32 %v5445, %v5451
      %v5485 = vld [vmem:[%s3] sm:$0x1]
      %v5487 = vlaneseq
      %v5488 = vshrl.u32 %v5487, 7
      %v5489 = vsub.s32 0, %v5488
      %v5490 = vrot.slane %v5485, %v5489
      %v5492 = vadd.f32 %v5453, %v5490
      %v5493 = vadd.f32 %v5454, %v5490
      %v5494 = vadd.f32 %v5455, %v5490
      %v5495 = vadd.f32 %v5456, %v5490
      %v5496 = vadd.f32 %v5457, %v5490
      %v5497 = vadd.f32 %v5458, %v5490
      %v5498 = vadd.f32 %v5459, %v5490
      %v5499 = vadd.f32 %v5460, %v5490
      %v5500 = vadd.f32 %v5461, %v5490
      %v5501 = vadd.f32 %v5462, %v5490
      %v5502 = vadd.f32 %v5463, %v5490
      %v5503 = vadd.f32 %v5464, %v5490
      %v5504 = vadd.f32 %v5465, %v5490
      %v5505 = vadd.f32 %v5466, %v5490
      %v5506 = vadd.f32 %v5467, %v5490
      %v5507 = vadd.f32 %v5468, %v5490
      %v5508 = vadd.f32 %v5469, %v5490
      %v5509 = vadd.f32 %v5470, %v5490
      %v5510 = vadd.f32 %v5471, %v5490
      %v5511 = vadd.f32 %v5472, %v5490
      %v5512 = vadd.f32 %v5473, %v5490
      %v5513 = vadd.f32 %v5474, %v5490
      %v5514 = vadd.f32 %v5475, %v5490
      %v5515 = vadd.f32 %v5476, %v5490
      %v5516 = vadd.f32 %v5477, %v5490
      %v5517 = vadd.f32 %v5478, %v5490
      %v5518 = vadd.f32 %v5479, %v5490
      %v5519 = vadd.f32 %v5480, %v5490
      %v5520 = vadd.f32 %v5481, %v5490
      %v5521 = vadd.f32 %v5482, %v5490
      %v5522 = vadd.f32 %v5483, %v5490
      %v5523 = vadd.f32 %v5484, %v5490
      %s5524 = smul.u32 %s1574, 3
      %s5525 = smul.addr %s5524, 4
      %s5526 = scalar_lea.vmem %s339, %s5525
      %v5527 = vld [vmem:[%s5526] sm:$0xf]
      %v5528 = vld [vmem:[%s5526 + $0x4] sm:$0xf]
      %v5529 = vld [vmem:[%s5526 + $0x8] sm:$0x1]
      %v5530 = vld [vmem:[%s5526 + $0xc] sm:$0xf]
      %v5531 = vld [vmem:[%s5526 + $0x10] sm:$0xf]
      %v5532 = vld [vmem:[%s5526 + $0x14] sm:$0x1]
      %v5533 = vld [vmem:[%s5526 + $0x18] sm:$0xf]
      %v5534 = vld [vmem:[%s5526 + $0x1c] sm:$0xf]
      %v5535 = vld [vmem:[%s5526 + $0x20] sm:$0x1]
      %v5536 = vld [vmem:[%s5526 + $0x24] sm:$0xf]
      %v5537 = vld [vmem:[%s5526 + $0x28] sm:$0xf]
      %v5538 = vld [vmem:[%s5526 + $0x2c] sm:$0x1]
      %v5539 = vld [vmem:[%s5526 + $0x30] sm:$0xf]
      %v5540 = vld [vmem:[%s5526 + $0x34] sm:$0xf]
      %v5541 = vld [vmem:[%s5526 + $0x38] sm:$0x1]
      %v5542 = vld [vmem:[%s5526 + $0x3c] sm:$0xf]
      %v5543 = vld [vmem:[%s5526 + $0x40] sm:$0xf]
      %v5544 = vld [vmem:[%s5526 + $0x44] sm:$0x1]
      %v5545 = vld [vmem:[%s5526 + $0x48] sm:$0xf]
      %v5546 = vld [vmem:[%s5526 + $0x4c] sm:$0xf]
      %v5547 = vld [vmem:[%s5526 + $0x50] sm:$0x1]
      %v5548 = vld [vmem:[%s5526 + $0x54] sm:$0xf]
      %v5549 = vld [vmem:[%s5526 + $0x58] sm:$0xf]
      %v5550 = vld [vmem:[%s5526 + $0x5c] sm:$0x1]
      %v5551 = vld [vmem:[%s5526 + $0x60] sm:$0xf]
      %v5552 = vld [vmem:[%s5526 + $0x64] sm:$0xf]
      %v5553 = vld [vmem:[%s5526 + $0x68] sm:$0x1]
      %v5554 = vld [vmem:[%s5526 + $0x6c] sm:$0xf]
      %v5555 = vld [vmem:[%s5526 + $0x70] sm:$0xf]
      %v5556 = vld [vmem:[%s5526 + $0x74] sm:$0x1]
      %v5557 = vld [vmem:[%s5526 + $0x78] sm:$0xf]
      %v5558 = vld [vmem:[%s5526 + $0x7c] sm:$0xf]
      %v5559 = vld [vmem:[%s5526 + $0x80] sm:$0x1]
      %v5560 = vld [vmem:[%s5526 + $0x84] sm:$0xf]
      %v5561 = vld [vmem:[%s5526 + $0x88] sm:$0xf]
      %v5562 = vld [vmem:[%s5526 + $0x8c] sm:$0x1]
      %v5563 = vld [vmem:[%s5526 + $0x90] sm:$0xf]
      %v5564 = vld [vmem:[%s5526 + $0x94] sm:$0xf]
      %v5565 = vld [vmem:[%s5526 + $0x98] sm:$0x1]
      %v5566 = vld [vmem:[%s5526 + $0x9c] sm:$0xf]
      %v5567 = vld [vmem:[%s5526 + $0xa0] sm:$0xf]
      %v5568 = vld [vmem:[%s5526 + $0xa4] sm:$0x1]
      %v5569 = vld [vmem:[%s5526 + $0xa8] sm:$0xf]
      %v5570 = vld [vmem:[%s5526 + $0xac] sm:$0xf]
      %v5571 = vld [vmem:[%s5526 + $0xb0] sm:$0x1]
      %v5572 = vld [vmem:[%s5526 + $0xb4] sm:$0xf]
      %v5573 = vld [vmem:[%s5526 + $0xb8] sm:$0xf]
      %v5574 = vld [vmem:[%s5526 + $0xbc] sm:$0x1]
      %vm5575 = vsmask.f32 3328
      %vm5576 = vsmask.f32 7440
      %vm5577 = vmor %vm5575, %vm5576
      %v5579 = vshrl.u32 %v5527, 16
      %v5581 = vrot.slane %v5579, 4
      %v5582 = vshll.u32 %v5527, 16
      %v5584 = vrot.slane %v5582, 5
      %v5585 = vor.u32 %v5581, %v5584
      %v5586 = vrot.slane %v5585, 4
      %v5588 = vshll.u32 %v5528, 16
      %v5590 = vrot.slane %v5588, 5
      %v5591 = vsel %vm5577, %v5586, %v5590
      %v5592 = vshrl.u32 %v5528, 16
      %v5594 = vrot.slane %v5592, 4
      %v5595 = vor.u32 %v5594, %v5590
      %v5596 = vrot.slane %v5595, 4
      %v5598 = vshll.u32 %v5529, 16
      %v5600 = vrot.slane %v5598, 5
      %v5601 = vsel %vm5577, %v5596, %v5600
      %v5603 = vshrl.u32 %v5530, 16
      %v5605 = vrot.slane %v5603, 4
      %v5606 = vshll.u32 %v5530, 16
      %v5608 = vrot.slane %v5606, 5
      %v5609 = vor.u32 %v5605, %v5608
      %v5610 = vrot.slane %v5609, 4
      %v5612 = vshll.u32 %v5531, 16
      %v5614 = vrot.slane %v5612, 5
      %v5615 = vsel %vm5577, %v5610, %v5614
      %v5616 = vshrl.u32 %v5531, 16
      %v5618 = vrot.slane %v5616, 4
      %v5619 = vor.u32 %v5618, %v5614
      %v5620 = vrot.slane %v5619, 4
      %v5622 = vshll.u32 %v5532, 16
      %v5624 = vrot.slane %v5622, 5
      %v5625 = vsel %vm5577, %v5620, %v5624
      %v5627 = vshrl.u32 %v5533, 16
      %v5629 = vrot.slane %v5627, 4
      %v5630 = vshll.u32 %v5533, 16
      %v5632 = vrot.slane %v5630, 5
      %v5633 = vor.u32 %v5629, %v5632
      %v5634 = vrot.slane %v5633, 4
      %v5636 = vshll.u32 %v5534, 16
      %v5638 = vrot.slane %v5636, 5
      %v5639 = vsel %vm5577, %v5634, %v5638
      %v5640 = vshrl.u32 %v5534, 16
      %v5642 = vrot.slane %v5640, 4
      %v5643 = vor.u32 %v5642, %v5638
      %v5644 = vrot.slane %v5643, 4
      %v5646 = vshll.u32 %v5535, 16
      %v5648 = vrot.slane %v5646, 5
      %v5649 = vsel %vm5577, %v5644, %v5648
      %v5651 = vshrl.u32 %v5536, 16
      %v5653 = vrot.slane %v5651, 4
      %v5654 = vshll.u32 %v5536, 16
      %v5656 = vrot.slane %v5654, 5
      %v5657 = vor.u32 %v5653, %v5656
      %v5658 = vrot.slane %v5657, 4
      %v5660 = vshll.u32 %v5537, 16
      %v5662 = vrot.slane %v5660, 5
      %v5663 = vsel %vm5577, %v5658, %v5662
      %v5664 = vshrl.u32 %v5537, 16
      %v5666 = vrot.slane %v5664, 4
      %v5667 = vor.u32 %v5666, %v5662
      %v5668 = vrot.slane %v5667, 4
      %v5670 = vshll.u32 %v5538, 16
      %v5672 = vrot.slane %v5670, 5
      %v5673 = vsel %vm5577, %v5668, %v5672
      %v5675 = vshrl.u32 %v5539, 16
      %v5677 = vrot.slane %v5675, 4
      %v5678 = vshll.u32 %v5539, 16
      %v5680 = vrot.slane %v5678, 5
      %v5681 = vor.u32 %v5677, %v5680
      %v5682 = vrot.slane %v5681, 4
      %v5684 = vshll.u32 %v5540, 16
      %v5686 = vrot.slane %v5684, 5
      %v5687 = vsel %vm5577, %v5682, %v5686
      %v5688 = vshrl.u32 %v5540, 16
      %v5690 = vrot.slane %v5688, 4
      %v5691 = vor.u32 %v5690, %v5686
      %v5692 = vrot.slane %v5691, 4
      %v5694 = vshll.u32 %v5541, 16
      %v5696 = vrot.slane %v5694, 5
      %v5697 = vsel %vm5577, %v5692, %v5696
      %v5699 = vshrl.u32 %v5542, 16
      %v5701 = vrot.slane %v5699, 4
      %v5702 = vshll.u32 %v5542, 16
      %v5704 = vrot.slane %v5702, 5
      %v5705 = vor.u32 %v5701, %v5704
      %v5706 = vrot.slane %v5705, 4
      %v5708 = vshll.u32 %v5543, 16
      %v5710 = vrot.slane %v5708, 5
      %v5711 = vsel %vm5577, %v5706, %v5710
      %v5712 = vshrl.u32 %v5543, 16
      %v5714 = vrot.slane %v5712, 4
      %v5715 = vor.u32 %v5714, %v5710
      %v5716 = vrot.slane %v5715, 4
      %v5718 = vshll.u32 %v5544, 16
      %v5720 = vrot.slane %v5718, 5
      %v5721 = vsel %vm5577, %v5716, %v5720
      %v5723 = vshrl.u32 %v5545, 16
      %v5725 = vrot.slane %v5723, 4
      %v5726 = vshll.u32 %v5545, 16
      %v5728 = vrot.slane %v5726, 5
      %v5729 = vor.u32 %v5725, %v5728
      %v5730 = vrot.slane %v5729, 4
      %v5732 = vshll.u32 %v5546, 16
      %v5734 = vrot.slane %v5732, 5
      %v5735 = vsel %vm5577, %v5730, %v5734
      %v5736 = vshrl.u32 %v5546, 16
      %v5738 = vrot.slane %v5736, 4
      %v5739 = vor.u32 %v5738, %v5734
      %v5740 = vrot.slane %v5739, 4
      %v5742 = vshll.u32 %v5547, 16
      %v5744 = vrot.slane %v5742, 5
      %v5745 = vsel %vm5577, %v5740, %v5744
      %v5747 = vshrl.u32 %v5548, 16
      %v5749 = vrot.slane %v5747, 4
      %v5750 = vshll.u32 %v5548, 16
      %v5752 = vrot.slane %v5750, 5
      %v5753 = vor.u32 %v5749, %v5752
      %v5754 = vrot.slane %v5753, 4
      %v5756 = vshll.u32 %v5549, 16
      %v5758 = vrot.slane %v5756, 5
      %v5759 = vsel %vm5577, %v5754, %v5758
      %v5760 = vshrl.u32 %v5549, 16
      %v5762 = vrot.slane %v5760, 4
      %v5763 = vor.u32 %v5762, %v5758
      %v5764 = vrot.slane %v5763, 4
      %v5766 = vshll.u32 %v5550, 16
      %v5768 = vrot.slane %v5766, 5
      %v5769 = vsel %vm5577, %v5764, %v5768
      %v5771 = vshrl.u32 %v5551, 16
      %v5773 = vrot.slane %v5771, 4
      %v5774 = vshll.u32 %v5551, 16
      %v5776 = vrot.slane %v5774, 5
      %v5777 = vor.u32 %v5773, %v5776
      %v5778 = vrot.slane %v5777, 4
      %v5780 = vshll.u32 %v5552, 16
      %v5782 = vrot.slane %v5780, 5
      %v5783 = vsel %vm5577, %v5778, %v5782
      %v5784 = vshrl.u32 %v5552, 16
      %v5786 = vrot.slane %v5784, 4
      %v5787 = vor.u32 %v5786, %v5782
      %v5788 = vrot.slane %v5787, 4
      %v5790 = vshll.u32 %v5553, 16
      %v5792 = vrot.slane %v5790, 5
      %v5793 = vsel %vm5577, %v5788, %v5792
      %v5795 = vshrl.u32 %v5554, 16
      %v5797 = vrot.slane %v5795, 4
      %v5798 = vshll.u32 %v5554, 16
      %v5800 = vrot.slane %v5798, 5
      %v5801 = vor.u32 %v5797, %v5800
      %v5802 = vrot.slane %v5801, 4
      %v5804 = vshll.u32 %v5555, 16
      %v5806 = vrot.slane %v5804, 5
      %v5807 = vsel %vm5577, %v5802, %v5806
      %v5808 = vshrl.u32 %v5555, 16
      %v5810 = vrot.slane %v5808, 4
      %v5811 = vor.u32 %v5810, %v5806
      %v5812 = vrot.slane %v5811, 4
      %v5814 = vshll.u32 %v5556, 16
      %v5816 = vrot.slane %v5814, 5
      %v5817 = vsel %vm5577, %v5812, %v5816
      %v5819 = vshrl.u32 %v5557, 16
      %v5821 = vrot.slane %v5819, 4
      %v5822 = vshll.u32 %v5557, 16
      %v5824 = vrot.slane %v5822, 5
      %v5825 = vor.u32 %v5821, %v5824
      %v5826 = vrot.slane %v5825, 4
      %v5828 = vshll.u32 %v5558, 16
      %v5830 = vrot.slane %v5828, 5
      %v5831 = vsel %vm5577, %v5826, %v5830
      %v5832 = vshrl.u32 %v5558, 16
      %v5834 = vrot.slane %v5832, 4
      %v5835 = vor.u32 %v5834, %v5830
      %v5836 = vrot.slane %v5835, 4
      %v5838 = vshll.u32 %v5559, 16
      %v5840 = vrot.slane %v5838, 5
      %v5841 = vsel %vm5577, %v5836, %v5840
      %v5843 = vshrl.u32 %v5560, 16
      %v5845 = vrot.slane %v5843, 4
      %v5846 = vshll.u32 %v5560, 16
      %v5848 = vrot.slane %v5846, 5
      %v5849 = vor.u32 %v5845, %v5848
      %v5850 = vrot.slane %v5849, 4
      %v5852 = vshll.u32 %v5561, 16
      %v5854 = vrot.slane %v5852, 5
      %v5855 = vsel %vm5577, %v5850, %v5854
      %v5856 = vshrl.u32 %v5561, 16
      %v5858 = vrot.slane %v5856, 4
      %v5859 = vor.u32 %v5858, %v5854
      %v5860 = vrot.slane %v5859, 4
      %v5862 = vshll.u32 %v5562, 16
      %v5864 = vrot.slane %v5862, 5
      %v5865 = vsel %vm5577, %v5860, %v5864
      %v5867 = vshrl.u32 %v5563, 16
      %v5869 = vrot.slane %v5867, 4
      %v5870 = vshll.u32 %v5563, 16
      %v5872 = vrot.slane %v5870, 5
      %v5873 = vor.u32 %v5869, %v5872
      %v5874 = vrot.slane %v5873, 4
      %v5876 = vshll.u32 %v5564, 16
      %v5878 = vrot.slane %v5876, 5
      %v5879 = vsel %vm5577, %v5874, %v5878
      %v5880 = vshrl.u32 %v5564, 16
      %v5882 = vrot.slane %v5880, 4
      %v5883 = vor.u32 %v5882, %v5878
      %v5884 = vrot.slane %v5883, 4
      %v5886 = vshll.u32 %v5565, 16
      %v5888 = vrot.slane %v5886, 5
      %v5889 = vsel %vm5577, %v5884, %v5888
      %v5891 = vshrl.u32 %v5566, 16
      %v5893 = vrot.slane %v5891, 4
      %v5894 = vshll.u32 %v5566, 16
      %v5896 = vrot.slane %v5894, 5
      %v5897 = vor.u32 %v5893, %v5896
      %v5898 = vrot.slane %v5897, 4
      %v5900 = vshll.u32 %v5567, 16
      %v5902 = vrot.slane %v5900, 5
      %v5903 = vsel %vm5577, %v5898, %v5902
      %v5904 = vshrl.u32 %v5567, 16
      %v5906 = vrot.slane %v5904, 4
      %v5907 = vor.u32 %v5906, %v5902
      %v5908 = vrot.slane %v5907, 4
      %v5910 = vshll.u32 %v5568, 16
      %v5912 = vrot.slane %v5910, 5
      %v5913 = vsel %vm5577, %v5908, %v5912
      %v5915 = vshrl.u32 %v5569, 16
      %v5917 = vrot.slane %v5915, 4
      %v5918 = vshll.u32 %v5569, 16
      %v5920 = vrot.slane %v5918, 5
      %v5921 = vor.u32 %v5917, %v5920
      %v5922 = vrot.slane %v5921, 4
      %v5924 = vshll.u32 %v5570, 16
      %v5926 = vrot.slane %v5924, 5
      %v5927 = vsel %vm5577, %v5922, %v5926
      %v5928 = vshrl.u32 %v5570, 16
      %v5930 = vrot.slane %v5928, 4
      %v5931 = vor.u32 %v5930, %v5926
      %v5932 = vrot.slane %v5931, 4
      %v5934 = vshll.u32 %v5571, 16
      %v5936 = vrot.slane %v5934, 5
      %v5937 = vsel %vm5577, %v5932, %v5936
      %v5939 = vshrl.u32 %v5572, 16
      %v5941 = vrot.slane %v5939, 4
      %v5942 = vshll.u32 %v5572, 16
      %v5944 = vrot.slane %v5942, 5
      %v5945 = vor.u32 %v5941, %v5944
      %v5946 = vrot.slane %v5945, 4
      %v5948 = vshll.u32 %v5573, 16
      %v5950 = vrot.slane %v5948, 5
      %v5951 = vsel %vm5577, %v5946, %v5950
      %v5952 = vshrl.u32 %v5573, 16
      %v5954 = vrot.slane %v5952, 4
      %v5955 = vor.u32 %v5954, %v5950
      %v5956 = vrot.slane %v5955, 4
      %v5958 = vshll.u32 %v5574, 16
      %v5960 = vrot.slane %v5958, 5
      %v5961 = vsel %vm5577, %v5956, %v5960
      %v5962 = vld [vmem:[%s5] sm:$0xf]
      %v5963 = vld [vmem:[%s5 + $0x4] sm:$0xf]
      %v5964 = vld [vmem:[%s5 + $0x8] sm:$0xf]
      %v5965 = vld [vmem:[%s5 + $0xc] sm:$0xf]
      %v5966 = vld [vmem:[%s5 + $0x10] sm:$0xf]
      %v5967 = vld [vmem:[%s5 + $0x14] sm:$0xf]
      %v5968 = vld [vmem:[%s5 + $0x18] sm:$0xf]
      %v5969 = vld [vmem:[%s5 + $0x1c] sm:$0xf]
      %v5970 = vld [vmem:[%s5 + $0x20] sm:$0xf]
      %v5971 = vld [vmem:[%s5 + $0x24] sm:$0xf]
      %v5972 = vld [vmem:[%s5 + $0x28] sm:$0xf]
      %v5973 = vld [vmem:[%s5 + $0x2c] sm:$0xf]
      %v5974 = vld [vmem:[%s5 + $0x30] sm:$0xf]
      %v5975 = vld [vmem:[%s5 + $0x34] sm:$0xf]
      %v5976 = vld [vmem:[%s5 + $0x38] sm:$0xf]
      %v5977 = vld [vmem:[%s5 + $0x3c] sm:$0xf]
      %v5978 = vunpack.c.l.b16 %v5591
      %v5979 = vunpack.c.l.b16 %v5601
      %v5980 = vunpack.c.l.b16 %v5615
      %v5981 = vunpack.c.l.b16 %v5625
      %v5982 = vunpack.c.l.b16 %v5639
      %v5983 = vunpack.c.l.b16 %v5649
      %v5984 = vunpack.c.l.b16 %v5663
      %v5985 = vunpack.c.l.b16 %v5673
      %v5986 = vunpack.c.l.b16 %v5687
      %v5987 = vunpack.c.l.b16 %v5697
      %v5988 = vunpack.c.l.b16 %v5711
      %v5989 = vunpack.c.l.b16 %v5721
      %v5990 = vunpack.c.l.b16 %v5735
      %v5991 = vunpack.c.l.b16 %v5745
      %v5992 = vunpack.c.l.b16 %v5759
      %v5993 = vunpack.c.l.b16 %v5769
      %v5994 = vunpack.c.l.b16 %v5783
      %v5995 = vunpack.c.l.b16 %v5793
      %v5996 = vunpack.c.l.b16 %v5807
      %v5997 = vunpack.c.l.b16 %v5817
      %v5998 = vunpack.c.l.b16 %v5831
      %v5999 = vunpack.c.l.b16 %v5841
      %v6000 = vunpack.c.l.b16 %v5855
      %v6001 = vunpack.c.l.b16 %v5865
      %v6002 = vunpack.c.l.b16 %v5879
      %v6003 = vunpack.c.l.b16 %v5889
      %v6004 = vunpack.c.l.b16 %v5903
      %v6005 = vunpack.c.l.b16 %v5913
      %v6006 = vunpack.c.l.b16 %v5927
      %v6007 = vunpack.c.l.b16 %v5937
      %v6008 = vunpack.c.l.b16 %v5951
      %v6009 = vunpack.c.l.b16 %v5961
      %v6010 = vpack.c.b16 %v5979, %v5978
      %v6011 = vpack.c.b16 %v5981, %v5980
      %v6012 = vpack.c.b16 %v5983, %v5982
      %v6013 = vpack.c.b16 %v5985, %v5984
      %v6014 = vpack.c.b16 %v5987, %v5986
      %v6015 = vpack.c.b16 %v5989, %v5988
      %v6016 = vpack.c.b16 %v5991, %v5990
      %v6017 = vpack.c.b16 %v5993, %v5992
      %v6018 = vpack.c.b16 %v5995, %v5994
      %v6019 = vpack.c.b16 %v5997, %v5996
      %v6020 = vpack.c.b16 %v5999, %v5998
      %v6021 = vpack.c.b16 %v6001, %v6000
      %v6022 = vpack.c.b16 %v6003, %v6002
      %v6023 = vpack.c.b16 %v6005, %v6004
      %v6024 = vpack.c.b16 %v6007, %v6006
      %v6025 = vpack.c.b16 %v6009, %v6008
      %v6058 = vunpack.c.l.b16 %v5962
      %v6059 = vunpack.c.l.b16 %v5963
      %v6060 = vunpack.c.l.b16 %v5964
      %v6061 = vunpack.c.l.b16 %v5965
      %v6062 = vunpack.c.l.b16 %v5966
      %v6063 = vunpack.c.l.b16 %v5967
      %v6064 = vunpack.c.l.b16 %v5968
      %v6065 = vunpack.c.l.b16 %v5969
      %v6066 = vunpack.c.l.b16 %v5970
      %v6067 = vunpack.c.l.b16 %v5971
      %v6068 = vunpack.c.l.b16 %v5972
      %v6069 = vunpack.c.l.b16 %v5973
      %v6070 = vunpack.c.l.b16 %v5974
      %v6071 = vunpack.c.l.b16 %v5975
      %v6072 = vunpack.c.l.b16 %v5976
      %v6073 = vunpack.c.l.b16 %v5977
      %v6074 = vpack.c.b16 %v6059, %v6058
      %v6075 = vpack.c.b16 %v6061, %v6060
      %v6076 = vpack.c.b16 %v6063, %v6062
      %v6077 = vpack.c.b16 %v6065, %v6064
      %v6078 = vpack.c.b16 %v6067, %v6066
      %v6079 = vpack.c.b16 %v6069, %v6068
      %v6080 = vpack.c.b16 %v6071, %v6070
      %v6081 = vpack.c.b16 %v6073, %v6072
      %6090 = vmatprep.subr.bf16.mxu0 0
      %6091 = vmatpush1.bf16.msra.mxu0 %v6074
      %6092 = vmatprep.subr.bf16.mxu0 0
      %6093 = vmatpush1.bf16.msra.mxu0 %v6075
      %6094 = vmatprep.subr.bf16.mxu0 0
      %6095 = vmatpush1.bf16.msra.mxu0 %v6076
      %6096 = vmatprep.subr.bf16.mxu0 0
      %6097 = vmatpush1.bf16.msra.mxu0 %v6077
      %6098 = vmatprep.subr.bf16.mxu0 0
      %6099 = vmatpush1.bf16.msra.mxu0 %v6078
      %6100 = vmatprep.subr.bf16.mxu0 0
      %6101 = vmatpush1.bf16.msra.mxu0 %v6079
      %6102 = vmatprep.subr.bf16.mxu0 0
      %6103 = vmatpush1.bf16.msra.mxu0 %v6080
      %6104 = vmatprep.subr.bf16.mxu0 0
      %6105 = vmatpush1.bf16.msra.mxu0 %v6081
      %6106 = vmatprep.subr.bf16.mxu0 0
      %6107 = vmatpush1.bf16.msra.mxu0 0
      %6108 = vmatprep.subr.bf16.mxu0 0
      %6109 = vmatpush1.bf16.msra.mxu0 0
      %6110 = vmatprep.subr.bf16.mxu0 0
      %6111 = vmatpush1.bf16.msra.mxu0 0
      %6112 = vmatprep.subr.bf16.mxu0 0
      %6113 = vmatpush1.bf16.msra.mxu0 0
      %6114 = vmatprep.subr.bf16.mxu0 0
      %6115 = vmatpush1.bf16.msra.mxu0 0
      %6116 = vmatprep.subr.bf16.mxu0 0
      %6117 = vmatpush1.bf16.msra.mxu0 0
      %6118 = vmatprep.subr.bf16.mxu0 0
      %6119 = vmatpush1.bf16.msra.mxu0 0
      %6120 = vmatprep.subr.bf16.mxu0 0
      %6121 = vmatpush1.bf16.msra.mxu0 0
      %6122 = vmatprep.mubr.bf16.mxu0 0
      %6123 = vmatmul.mubr.bf16.gmra.mrb[0].mxu0 %v6010
      %v6124 = vpop.f32.mrb[0].mxu0
      %v6125 = vadd.f32 0.0, %v6124
      %v6126 = vpop.f32.mrb[0].mxu0
      %v6127 = vpop.f32.mrb[0].mxu0
      %v6128 = vadd.f32 0.0, %v6127
      %v6129 = vpop.f32.mrb[0].mxu0
      %6130 = vmatprep.mubr.bf16.mxu0 0
      %6131 = vmatmul.mubr.bf16.gmra.mrb[0].mxu0 %v6011
      %v6132 = vpop.f32.mrb[0].mxu0
      %v6133 = vadd.f32 0.0, %v6132
      %v6134 = vpop.f32.mrb[0].mxu0
      %v6135 = vpop.f32.mrb[0].mxu0
      %v6136 = vadd.f32 0.0, %v6135
      %v6137 = vpop.f32.mrb[0].mxu0
      %6138 = vmatprep.mubr.bf16.mxu0 0
      %6139 = vmatmul.mubr.bf16.gmra.mrb[0].mxu0 %v6012
      %v6140 = vpop.f32.mrb[0].mxu0
      %v6141 = vadd.f32 0.0, %v6140
      %v6142 = vpop.f32.mrb[0].mxu0
      %v6143 = vpop.f32.mrb[0].mxu0
      %v6144 = vadd.f32 0.0, %v6143
      %v6145 = vpop.f32.mrb[0].mxu0
      %6146 = vmatprep.mubr.bf16.mxu0 0
      %6147 = vmatmul.mubr.bf16.gmra.mrb[0].mxu0 %v6013
      %v6148 = vpop.f32.mrb[0].mxu0
      %v6149 = vadd.f32 0.0, %v6148
      %v6150 = vpop.f32.mrb[0].mxu0
      %v6151 = vpop.f32.mrb[0].mxu0
      %v6152 = vadd.f32 0.0, %v6151
      %v6153 = vpop.f32.mrb[0].mxu0
      %6154 = vmatprep.mubr.bf16.mxu0 0
      %6155 = vmatmul.mubr.bf16.gmra.mrb[0].mxu0 %v6014
      %v6156 = vpop.f32.mrb[0].mxu0
      %v6157 = vadd.f32 0.0, %v6156
      %v6158 = vpop.f32.mrb[0].mxu0
      %v6159 = vpop.f32.mrb[0].mxu0
      %v6160 = vadd.f32 0.0, %v6159
      %v6161 = vpop.f32.mrb[0].mxu0
      %6162 = vmatprep.mubr.bf16.mxu0 0
      %6163 = vmatmul.mubr.bf16.gmra.mrb[0].mxu0 %v6015
      %v6164 = vpop.f32.mrb[0].mxu0
      %v6165 = vadd.f32 0.0, %v6164
      %v6166 = vpop.f32.mrb[0].mxu0
      %v6167 = vpop.f32.mrb[0].mxu0
      %v6168 = vadd.f32 0.0, %v6167
      %v6169 = vpop.f32.mrb[0].mxu0
      %6170 = vmatprep.mubr.bf16.mxu0 0
      %6171 = vmatmul.mubr.bf16.gmra.mrb[0].mxu0 %v6016
      %v6172 = vpop.f32.mrb[0].mxu0
      %v6173 = vadd.f32 0.0, %v6172
      %v6174 = vpop.f32.mrb[0].mxu0
      %v6175 = vpop.f32.mrb[0].mxu0
      %v6176 = vadd.f32 0.0, %v6175
      %v6177 = vpop.f32.mrb[0].mxu0
      %6178 = vmatprep.mubr.bf16.mxu0 0
      %6179 = vmatmul.mubr.bf16.gmra.mrb[0].mxu0 %v6017
      %v6180 = vpop.f32.mrb[0].mxu0
      %v6181 = vadd.f32 0.0, %v6180
      %v6182 = vpop.f32.mrb[0].mxu0
      %v6183 = vpop.f32.mrb[0].mxu0
      %v6184 = vadd.f32 0.0, %v6183
      %v6185 = vpop.f32.mrb[0].mxu0
      %6186 = vmatprep.mubr.bf16.mxu0 0
      %6187 = vmatmul.mubr.bf16.gmra.mrb[0].mxu0 %v6018
      %v6188 = vpop.f32.mrb[0].mxu0
      %v6189 = vadd.f32 0.0, %v6188
      %v6190 = vpop.f32.mrb[0].mxu0
      %v6191 = vpop.f32.mrb[0].mxu0
      %v6192 = vadd.f32 0.0, %v6191
      %v6193 = vpop.f32.mrb[0].mxu0
      %6194 = vmatprep.mubr.bf16.mxu0 0
      %6195 = vmatmul.mubr.bf16.gmra.mrb[0].mxu0 %v6019
      %v6196 = vpop.f32.mrb[0].mxu0
      %v6197 = vadd.f32 0.0, %v6196
      %v6198 = vpop.f32.mrb[0].mxu0
      %v6199 = vpop.f32.mrb[0].mxu0
      %v6200 = vadd.f32 0.0, %v6199
      %v6201 = vpop.f32.mrb[0].mxu0
      %6202 = vmatprep.mubr.bf16.mxu0 0
      %6203 = vmatmul.mubr.bf16.gmra.mrb[0].mxu0 %v6020
      %v6204 = vpop.f32.mrb[0].mxu0
      %v6205 = vadd.f32 0.0, %v6204
      %v6206 = vpop.f32.mrb[0].mxu0
      %v6207 = vpop.f32.mrb[0].mxu0
      %v6208 = vadd.f32 0.0, %v6207
      %v6209 = vpop.f32.mrb[0].mxu0
      %6210 = vmatprep.mubr.bf16.mxu0 0
      %6211 = vmatmul.mubr.bf16.gmra.mrb[0].mxu0 %v6021
      %v6212 = vpop.f32.mrb[0].mxu0
      %v6213 = vadd.f32 0.0, %v6212
      %v6214 = vpop.f32.mrb[0].mxu0
      %v6215 = vpop.f32.mrb[0].mxu0
      %v6216 = vadd.f32 0.0, %v6215
      %v6217 = vpop.f32.mrb[0].mxu0
      %6218 = vmatprep.mubr.bf16.mxu0 0
      %6219 = vmatmul.mubr.bf16.gmra.mrb[0].mxu0 %v6022
      %v6220 = vpop.f32.mrb[0].mxu0
      %v6221 = vadd.f32 0.0, %v6220
      %v6222 = vpop.f32.mrb[0].mxu0
      %v6223 = vpop.f32.mrb[0].mxu0
      %v6224 = vadd.f32 0.0, %v6223
      %v6225 = vpop.f32.mrb[0].mxu0
      %6226 = vmatprep.mubr.bf16.mxu0 0
      %6227 = vmatmul.mubr.bf16.gmra.mrb[0].mxu0 %v6023
      %v6228 = vpop.f32.mrb[0].mxu0
      %v6229 = vadd.f32 0.0, %v6228
      %v6230 = vpop.f32.mrb[0].mxu0
      %v6231 = vpop.f32.mrb[0].mxu0
      %v6232 = vadd.f32 0.0, %v6231
      %v6233 = vpop.f32.mrb[0].mxu0
      %6234 = vmatprep.mubr.bf16.mxu0 0
      %6235 = vmatmul.mubr.bf16.gmra.mrb[0].mxu0 %v6024
      %v6236 = vpop.f32.mrb[0].mxu0
      %v6237 = vadd.f32 0.0, %v6236
      %v6238 = vpop.f32.mrb[0].mxu0
      %v6239 = vpop.f32.mrb[0].mxu0
      %v6240 = vadd.f32 0.0, %v6239
      %v6241 = vpop.f32.mrb[0].mxu0
      %6242 = vmatprep.mubr.bf16.mxu0 0
      %6243 = vmatmul.mubr.bf16.gmra.mrb[0].mxu0 %v6025
      %v6244 = vpop.f32.mrb[0].mxu0
      %v6245 = vadd.f32 0.0, %v6244
      %v6246 = vpop.f32.mrb[0].mxu0
      %v6247 = vpop.f32.mrb[0].mxu0
      %v6248 = vadd.f32 0.0, %v6247
      %v6249 = vpop.f32.mrb[0].mxu0
      %6250 = vdwg.mxu0
      %v6251 = vld [vmem:[%s6] sm:$0x1]
      %v6253 = vlaneseq
      %v6254 = vshrl.u32 %v6253, 7
      %v6255 = vsub.s32 0, %v6254
      %v6256 = vrot.slane %v6251, %v6255
      %v6258 = vmul.f32 %v6125, %v6256
      %v6259 = vmul.f32 %v6128, %v6256
      %v6260 = vmul.f32 %v6133, %v6256
      %v6261 = vmul.f32 %v6136, %v6256
      %v6262 = vmul.f32 %v6141, %v6256
      %v6263 = vmul.f32 %v6144, %v6256
      %v6264 = vmul.f32 %v6149, %v6256
      %v6265 = vmul.f32 %v6152, %v6256
      %v6266 = vmul.f32 %v6157, %v6256
      %v6267 = vmul.f32 %v6160, %v6256
      %v6268 = vmul.f32 %v6165, %v6256
      %v6269 = vmul.f32 %v6168, %v6256
      %v6270 = vmul.f32 %v6173, %v6256
      %v6271 = vmul.f32 %v6176, %v6256
      %v6272 = vmul.f32 %v6181, %v6256
      %v6273 = vmul.f32 %v6184, %v6256
      %v6274 = vmul.f32 %v6189, %v6256
      %v6275 = vmul.f32 %v6192, %v6256
      %v6276 = vmul.f32 %v6197, %v6256
      %v6277 = vmul.f32 %v6200, %v6256
      %v6278 = vmul.f32 %v6205, %v6256
      %v6279 = vmul.f32 %v6208, %v6256
      %v6280 = vmul.f32 %v6213, %v6256
      %v6281 = vmul.f32 %v6216, %v6256
      %v6282 = vmul.f32 %v6221, %v6256
      %v6283 = vmul.f32 %v6224, %v6256
      %v6284 = vmul.f32 %v6229, %v6256
      %v6285 = vmul.f32 %v6232, %v6256
      %v6286 = vmul.f32 %v6237, %v6256
      %v6287 = vmul.f32 %v6240, %v6256
      %v6288 = vmul.f32 %v6245, %v6256
      %v6289 = vmul.f32 %v6248, %v6256
      %v6290 = vld [vmem:[%s7] sm:$0x1]
      %v6292 = vlaneseq
      %v6293 = vshrl.u32 %v6292, 7
      %v6294 = vsub.s32 0, %v6293
      %v6295 = vrot.slane %v6290, %v6294
      %v6297 = vadd.f32 %v6258, %v6295
      %v6298 = vadd.f32 %v6259, %v6295
      %v6299 = vadd.f32 %v6260, %v6295
      %v6300 = vadd.f32 %v6261, %v6295
      %v6301 = vadd.f32 %v6262, %v6295
      %v6302 = vadd.f32 %v6263, %v6295
      %v6303 = vadd.f32 %v6264, %v6295
      %v6304 = vadd.f32 %v6265, %v6295
      %v6305 = vadd.f32 %v6266, %v6295
      %v6306 = vadd.f32 %v6267, %v6295
      %v6307 = vadd.f32 %v6268, %v6295
      %v6308 = vadd.f32 %v6269, %v6295
      %v6309 = vadd.f32 %v6270, %v6295
      %v6310 = vadd.f32 %v6271, %v6295
      %v6311 = vadd.f32 %v6272, %v6295
      %v6312 = vadd.f32 %v6273, %v6295
      %v6313 = vadd.f32 %v6274, %v6295
      %v6314 = vadd.f32 %v6275, %v6295
      %v6315 = vadd.f32 %v6276, %v6295
      %v6316 = vadd.f32 %v6277, %v6295
      %v6317 = vadd.f32 %v6278, %v6295
      %v6318 = vadd.f32 %v6279, %v6295
      %v6319 = vadd.f32 %v6280, %v6295
      %v6320 = vadd.f32 %v6281, %v6295
      %v6321 = vadd.f32 %v6282, %v6295
      %v6322 = vadd.f32 %v6283, %v6295
      %v6323 = vadd.f32 %v6284, %v6295
      %v6324 = vadd.f32 %v6285, %v6295
      %v6325 = vadd.f32 %v6286, %v6295
      %v6326 = vadd.f32 %v6287, %v6295
      %v6327 = vadd.f32 %v6288, %v6295
      %v6328 = vadd.f32 %v6289, %v6295
      %v6329 = vadd.f32 %v5492, %v6297
      %v6330 = vadd.f32 %v5493, %v6298
      %v6331 = vadd.f32 %v5494, %v6299
      %v6332 = vadd.f32 %v5495, %v6300
      %v6333 = vadd.f32 %v5496, %v6301
      %v6334 = vadd.f32 %v5497, %v6302
      %v6335 = vadd.f32 %v5498, %v6303
      %v6336 = vadd.f32 %v5499, %v6304
      %v6337 = vadd.f32 %v5500, %v6305
      %v6338 = vadd.f32 %v5501, %v6306
      %v6339 = vadd.f32 %v5502, %v6307
      %v6340 = vadd.f32 %v5503, %v6308
      %v6341 = vadd.f32 %v5504, %v6309
      %v6342 = vadd.f32 %v5505, %v6310
      %v6343 = vadd.f32 %v5506, %v6311
      %v6344 = vadd.f32 %v5507, %v6312
      %v6345 = vadd.f32 %v5508, %v6313
      %v6346 = vadd.f32 %v5509, %v6314
      %v6347 = vadd.f32 %v5510, %v6315
      %v6348 = vadd.f32 %v5511, %v6316
      %v6349 = vadd.f32 %v5512, %v6317
      %v6350 = vadd.f32 %v5513, %v6318
      %v6351 = vadd.f32 %v5514, %v6319
      %v6352 = vadd.f32 %v5515, %v6320
      %v6353 = vadd.f32 %v5516, %v6321
      %v6354 = vadd.f32 %v5517, %v6322
      %v6355 = vadd.f32 %v5518, %v6323
      %v6356 = vadd.f32 %v5519, %v6324
      %v6357 = vadd.f32 %v5520, %v6325
      %v6358 = vadd.f32 %v5521, %v6326
      %v6359 = vadd.f32 %v5522, %v6327
      %v6360 = vadd.f32 %v5523, %v6328
      %v6361 = vmax.f32 %v6329, 0.0
      %v6362 = vmax.f32 %v6330, 0.0
      %v6363 = vmax.f32 %v6331, 0.0
      %v6364 = vmax.f32 %v6332, 0.0
      %v6365 = vmax.f32 %v6333, 0.0
      %v6366 = vmax.f32 %v6334, 0.0
      %v6367 = vmax.f32 %v6335, 0.0
      %v6368 = vmax.f32 %v6336, 0.0
      %v6369 = vmax.f32 %v6337, 0.0
      %v6370 = vmax.f32 %v6338, 0.0
      %v6371 = vmax.f32 %v6339, 0.0
      %v6372 = vmax.f32 %v6340, 0.0
      %v6373 = vmax.f32 %v6341, 0.0
      %v6374 = vmax.f32 %v6342, 0.0
      %v6375 = vmax.f32 %v6343, 0.0
      %v6376 = vmax.f32 %v6344, 0.0
      %v6377 = vmax.f32 %v6345, 0.0
      %v6378 = vmax.f32 %v6346, 0.0
      %v6379 = vmax.f32 %v6347, 0.0
      %v6380 = vmax.f32 %v6348, 0.0
      %v6381 = vmax.f32 %v6349, 0.0
      %v6382 = vmax.f32 %v6350, 0.0
      %v6383 = vmax.f32 %v6351, 0.0
      %v6384 = vmax.f32 %v6352, 0.0
      %v6385 = vmax.f32 %v6353, 0.0
      %v6386 = vmax.f32 %v6354, 0.0
      %v6387 = vmax.f32 %v6355, 0.0
      %v6388 = vmax.f32 %v6356, 0.0
      %v6389 = vmax.f32 %v6357, 0.0
      %v6390 = vmax.f32 %v6358, 0.0
      %v6391 = vmax.f32 %v6359, 0.0
      %v6392 = vmax.f32 %v6360, 0.0
      %v6393 = vpack.c.bf16 %v6362, %v6361
      %v6394 = vpack.c.bf16 %v6364, %v6363
      %v6395 = vpack.c.bf16 %v6366, %v6365
      %v6396 = vpack.c.bf16 %v6368, %v6367
      %v6397 = vpack.c.bf16 %v6370, %v6369
      %v6398 = vpack.c.bf16 %v6372, %v6371
      %v6399 = vpack.c.bf16 %v6374, %v6373
      %v6400 = vpack.c.bf16 %v6376, %v6375
      %v6401 = vpack.c.bf16 %v6378, %v6377
      %v6402 = vpack.c.bf16 %v6380, %v6379
      %v6403 = vpack.c.bf16 %v6382, %v6381
      %v6404 = vpack.c.bf16 %v6384, %v6383
      %v6405 = vpack.c.bf16 %v6386, %v6385
      %v6406 = vpack.c.bf16 %v6388, %v6387
      %v6407 = vpack.c.bf16 %v6390, %v6389
      %v6408 = vpack.c.bf16 %v6392, %v6391
      %v6425 = vunpack.c.l.b16 %v6393
      %v6426 = vunpack.c.h.b16 %v6393
      %v6427 = vunpack.c.l.b16 %v6394
      %v6428 = vunpack.c.h.b16 %v6394
      %v6429 = vunpack.c.l.b16 %v6395
      %v6430 = vunpack.c.h.b16 %v6395
      %v6431 = vunpack.c.l.b16 %v6396
      %v6432 = vunpack.c.h.b16 %v6396
      %v6433 = vunpack.c.l.b16 %v6397
      %v6434 = vunpack.c.h.b16 %v6397
      %v6435 = vunpack.c.l.b16 %v6398
      %v6436 = vunpack.c.h.b16 %v6398
      %v6437 = vunpack.c.l.b16 %v6399
      %v6438 = vunpack.c.h.b16 %v6399
      %v6439 = vunpack.c.l.b16 %v6400
      %v6440 = vunpack.c.h.b16 %v6400
      %v6441 = vunpack.c.l.b16 %v6401
      %v6442 = vunpack.c.h.b16 %v6401
      %v6443 = vunpack.c.l.b16 %v6402
      %v6444 = vunpack.c.h.b16 %v6402
      %v6445 = vunpack.c.l.b16 %v6403
      %v6446 = vunpack.c.h.b16 %v6403
      %v6447 = vunpack.c.l.b16 %v6404
      %v6448 = vunpack.c.h.b16 %v6404
      %v6449 = vunpack.c.l.b16 %v6405
      %v6450 = vunpack.c.h.b16 %v6405
      %v6451 = vunpack.c.l.b16 %v6406
      %v6452 = vunpack.c.h.b16 %v6406
      %v6453 = vunpack.c.l.b16 %v6407
      %v6454 = vunpack.c.h.b16 %v6407
      %v6455 = vunpack.c.l.b16 %v6408
      %v6456 = vunpack.c.h.b16 %v6408
      %v6457 = vpack.c.b16 %v6425, %v6425
      %v6458 = vpack.c.b16 %v6426, %v6426
      %v6459 = vpack.c.b16 %v6427, %v6427
      %v6460 = vpack.c.b16 %v6428, %v6428
      %v6461 = vpack.c.b16 %v6429, %v6429
      %v6462 = vpack.c.b16 %v6430, %v6430
      %v6463 = vpack.c.b16 %v6431, %v6431
      %v6464 = vpack.c.b16 %v6432, %v6432
      %v6465 = vpack.c.b16 %v6433, %v6433
      %v6466 = vpack.c.b16 %v6434, %v6434
      %v6467 = vpack.c.b16 %v6435, %v6435
      %v6468 = vpack.c.b16 %v6436, %v6436
      %v6469 = vpack.c.b16 %v6437, %v6437
      %v6470 = vpack.c.b16 %v6438, %v6438
      %v6471 = vpack.c.b16 %v6439, %v6439
      %v6472 = vpack.c.b16 %v6440, %v6440
      %v6473 = vpack.c.b16 %v6441, %v6441
      %v6474 = vpack.c.b16 %v6442, %v6442
      %v6475 = vpack.c.b16 %v6443, %v6443
      %v6476 = vpack.c.b16 %v6444, %v6444
      %v6477 = vpack.c.b16 %v6445, %v6445
      %v6478 = vpack.c.b16 %v6446, %v6446
      %v6479 = vpack.c.b16 %v6447, %v6447
      %v6480 = vpack.c.b16 %v6448, %v6448
      %v6481 = vpack.c.b16 %v6449, %v6449
      %v6482 = vpack.c.b16 %v6450, %v6450
      %v6483 = vpack.c.b16 %v6451, %v6451
      %v6484 = vpack.c.b16 %v6452, %v6452
      %v6485 = vpack.c.b16 %v6453, %v6453
      %v6486 = vpack.c.b16 %v6454, %v6454
      %v6487 = vpack.c.b16 %v6455, %v6455
      %v6488 = vpack.c.b16 %v6456, %v6456
      %6521 = vst [vmem:[%s349] sm:$0xf] %v6457
      %6522 = vst [vmem:[%s349 + $0x4] sm:$0xf] %v6458
      %6523 = vst [vmem:[%s349 + $0x8] sm:$0xf] %v6459
      %6524 = vst [vmem:[%s349 + $0xc] sm:$0xf] %v6460
      %6525 = vst [vmem:[%s349 + $0x10] sm:$0xf] %v6461
      %6526 = vst [vmem:[%s349 + $0x14] sm:$0xf] %v6462
      %6527 = vst [vmem:[%s349 + $0x18] sm:$0xf] %v6463
      %6528 = vst [vmem:[%s349 + $0x1c] sm:$0xf] %v6464
      %6529 = vst [vmem:[%s349 + $0x20] sm:$0xf] %v6465
      %6530 = vst [vmem:[%s349 + $0x24] sm:$0xf] %v6466
      %6531 = vst [vmem:[%s349 + $0x28] sm:$0xf] %v6467
      %6532 = vst [vmem:[%s349 + $0x2c] sm:$0xf] %v6468
      %6533 = vst [vmem:[%s349 + $0x30] sm:$0xf] %v6469
      %6534 = vst [vmem:[%s349 + $0x34] sm:$0xf] %v6470
      %6535 = vst [vmem:[%s349 + $0x38] sm:$0xf] %v6471
      %6536 = vst [vmem:[%s349 + $0x3c] sm:$0xf] %v6472
      %6537 = vst [vmem:[%s349 + $0x40] sm:$0xf] %v6473
      %6538 = vst [vmem:[%s349 + $0x44] sm:$0xf] %v6474
      %6539 = vst [vmem:[%s349 + $0x48] sm:$0xf] %v6475
      %6540 = vst [vmem:[%s349 + $0x4c] sm:$0xf] %v6476
      %6541 = vst [vmem:[%s349 + $0x50] sm:$0xf] %v6477
      %6542 = vst [vmem:[%s349 + $0x54] sm:$0xf] %v6478
      %6543 = vst [vmem:[%s349 + $0x58] sm:$0xf] %v6479
      %6544 = vst [vmem:[%s349 + $0x5c] sm:$0xf] %v6480
      %6545 = vst [vmem:[%s349 + $0x60] sm:$0xf] %v6481
      %6546 = vst [vmem:[%s349 + $0x64] sm:$0xf] %v6482
      %6547 = vst [vmem:[%s349 + $0x68] sm:$0xf] %v6483
      %6548 = vst [vmem:[%s349 + $0x6c] sm:$0xf] %v6484
      %6549 = vst [vmem:[%s349 + $0x70] sm:$0xf] %v6485
      %6550 = vst [vmem:[%s349 + $0x74] sm:$0xf] %v6486
      %6551 = vst [vmem:[%s349 + $0x78] sm:$0xf] %v6487
      %6552 = vst [vmem:[%s349 + $0x7c] sm:$0xf] %v6488
      %s6553 = smul.u32 16, %s24
      %p6554 = scmp.lt.s32.totalorder %s23, 1
      %s6555 = scalar_select %p6554, %s23, 1
      %p6556 = scmp.lt.s32.totalorder %s6553, 15
      %s6557 = scalar_select %p6556, %s6553, 15
      %s6558 = smul.addr %s6557, 2
      %s6559 = smul.addr %s6555, 32
      %s6560 = sadd.s32 %s6558, %s6559
      %s6561 = smul.addr %s6560, 4
      %s6562 = scalar_lea.vmem %s8, %s6561
      // Predicated region
      $region53: #{residual_block_pallas.3} parent=51 // pred_check
        %p6563 = pneg %p229
      $region54: #{residual_block_pallas.3} parent=51 // pred_check_branch
        %6565 = sbr.rel (%p6563) target = $region56
      $region55: #{residual_block_pallas.3} parent=51 // pred_region
        %s6566 = smul.u32 16, %s24
      $region56: #{residual_block_pallas.3} parent=51 // pred_fallthru
        _
    $region52: #{residual_block_pallas.3} parent=5 // pred_fallthru
      _
    %p6567 = scmp.le.s32.totalorder 2, %s14
    // Predicated region
    $region57: #{residual_block_pallas.3} parent=5 // pred_check
      %p6568 = pneg %p6567
    $region58: #{residual_block_pallas.3} parent=5 // pred_check_branch
      %6570 = sbr.rel (%p6568) target = $region60
    $region59: #{residual_block_pallas.3} parent=5 // pred_region
      %s6571 = ssub.s32 %s14, 2
      // Predicated region
      $region61: #{residual_block_pallas.3} parent=59 // pred_check
        %p6572 = pneg %p235
      $region62: #{residual_block_pallas.3} parent=59 // pred_check_branch
        %6574 = sbr.rel (%p6572) target = $region64
      $region63: #{residual_block_pallas.3} parent=59 // pred_region
        %s6575 = smul.u32 16, %s26
        %p6576 = scmp.lt.s32.totalorder %s25, 1
        %s6577 = scalar_select %p6576, %s25, 1
        %p6578 = scmp.lt.s32.totalorder %s6575, 15
        %s6579 = scalar_select %p6578, %s6575, 15
        %s6580 = smul.addr %s6579, 2
        %s6581 = smul.addr %s6577, 32
        %s6582 = sadd.s32 %s6580, %s6581
        %s6583 = smul.addr %s6582, 4
        %s6584 = scalar_lea.vmem %s8, %s6583
      $region64: #{residual_block_pallas.3} parent=59 // pred_fallthru
        _
    $region60: #{residual_block_pallas.3} parent=5 // pred_fallthru
      _
  $region6: #{residual_block_pallas.3} parent=0 // loop_footer
    %s18 = sadd.s32 1, %s14
  $region7: #{residual_block_pallas.3} parent=0 // loop_footer_branch
    %13 = sbr.rel target = $region3
  $region8: #{residual_block_pallas.3} parent=0 // loop_exit
    _

</llo_original>
